<compile_context>
chip_gen: v7x
topology: tpu7x:2x2x1
jax: 0.10.0
libtpu: 0.0.40
codegen_flags: <defaults>
</compile_context>

<pallas_src>
import functools

import jax
import jax.numpy as jnp
from jax import lax
from jax.experimental import pallas as pl
from jax.experimental.pallas import tpu as pltpu


# ----------------------------------------------------------------------------
# Fused kernel: K x (Conv3x3 + InstanceNorm + LeakyReLU) + gumbel-weighted sum,
# one grid step per image.
# ----------------------------------------------------------------------------
def fused_stack_kernel(wsm_ref, x_ref, w1_ref, wr_ref, b_ref, g_ref, bt_ref,
                       o_ref, xpad_ref, apad_ref):
    # wsm_ref : (K,)               SMEM   gumbel-softmax weights
    # x_ref   : (Cin, H*W)         VMEM   input image (batch dim squeezed), lane-dense
    # w1_ref  : (Cout, 9*Cin)      VMEM   block-1 im2col weight
    # wr_ref  : (K-1, Cout, 9*Cout)VMEM   block 2..K im2col weights
    # b_ref   : (K, Cout, 1)       VMEM   conv biases
    # g_ref   : (K, Cout, 1)       VMEM   InstanceNorm gamma
    # bt_ref  : (K, Cout, 1)       VMEM   InstanceNorm beta
    # o_ref   : (Cout, H*W)        VMEM   output (batch dim squeezed), lane-dense
    # xpad_ref: (Cin,  H+2, W+2)   VMEM   scratch: zero-padded input
    # apad_ref: (Cout, H+2, W+2)   VMEM   scratch: zero-padded inter-block activation
    cin, hp, wp = xpad_ref.shape
    cout = o_ref.shape[0]
    h, w = hp - 2, wp - 2
    hw = h * w
    k = b_ref.shape[0]
    inv_hw = 1.0 / float(hw)

    # In-kernel zero padding: zero the (tiny) scratch each step (keeps the halo correct
    # regardless of how grid steps are split across TensorCores), then fill the interior.
    xpad_ref[...] = jnp.zeros_like(xpad_ref)
    apad_ref[...] = jnp.zeros_like(apad_ref)
    xpad_ref[:, 1:1 + h, 1:1 + w] = x_ref[...].reshape(cin, h, w)

    def block(src_ref, c_src, w2, bias, gamma, beta):
        # im2col: 9 shifted (c_src, H, W) windows sliced straight from the padded Ref,
        # concatenated into one (9*c_src, H*W) operand -> single MXU matmul.
        taps = []
        for dy in range(3):
            for dx in range(3):
                taps.append(src_ref[:, dy:dy + h, dx:dx + w].reshape(c_src, hw))
        patches = jnp.concatenate(taps, axis=0)                          # (9*c_src, H*W)
        acc = jnp.dot(w2, patches, preferred_element_type=jnp.float32)   # (Cout, H*W)
        acc = acc + bias                                                 # conv bias

        # InstanceNorm2d: one-pass biased stats over the spatial (lane) axis.
        s = jnp.sum(acc, axis=1, keepdims=True)
        ss = jnp.sum(acc * acc, axis=1, keepdims=True)
        mean = s * inv_hw
        var = jnp.maximum(ss * inv_hw - mean * mean, 0.0)
        y = (acc - mean) * lax.rsqrt(var + 1e-5)
        y = y * gamma + beta

        # LeakyReLU(0.01)
        return jnp.where(y >= 0.0, y, 0.01 * y)

    # Block 1 (Cin -> Cout), then blocks 2..K (Cout -> Cout); activations stay in VMEM.
    y = block(xpad_ref, cin, w1_ref[...], b_ref[0], g_ref[0], bt_ref[0])
    out = wsm_ref[0] * y
    for i in range(1, k):
        apad_ref[:, 1:1 + h, 1:1 + w] = y.reshape(cout, h, w)
        y = block(apad_ref, cout, wr_ref[i - 1], b_ref[i], g_ref[i], bt_ref[i])
        out = out + wsm_ref[i] * y

    o_ref[...] = out   # single lane-dense HBM write per image


def adaptive_stack_pallas(x_nchw, packed, wsm):
    """Run the fused stack on an NCHW input. Returns NCHW output."""
    n, cin, h, w = x_nchw.shape
    k, cout, _ = packed["b"].shape
    assert k >= 2
    hw = h * w
    x_flat = x_nchw.reshape(n, cin, hw)   # free bitcast-style reshape; lane-dense blocks

    out_flat = pl.pallas_call(
        fused_stack_kernel,
        out_shape=jax.ShapeDtypeStruct((n, cout, hw), jnp.float32),
        grid_spec=pltpu.PrefetchScalarGridSpec(
            num_scalar_prefetch=0,
            grid=(n,),
            in_specs=[
                pl.BlockSpec(memory_space=pltpu.MemorySpace.SMEM),          # (K,) weights
                pl.BlockSpec((None, cin, hw), lambda b: (b, 0, 0)),         # image b
                pl.BlockSpec((cout, 9 * cin), lambda b: (0, 0)),            # block-1 W
                pl.BlockSpec((k - 1, cout, 9 * cout), lambda b: (0, 0, 0)),  # blocks 2..K W
                pl.BlockSpec((k, cout, 1), lambda b: (0, 0, 0)),            # conv bias
                pl.BlockSpec((k, cout, 1), lambda b: (0, 0, 0)),            # IN gamma
                pl.BlockSpec((k, cout, 1), lambda b: (0, 0, 0)),            # IN beta
            ],
            out_specs=pl.BlockSpec((None, cout, hw), lambda b: (b, 0, 0)),
            scratch_shapes=[
                pltpu.VMEM((cin, h + 2, w + 2), jnp.float32),
                pltpu.VMEM((cout, h + 2, w + 2), jnp.float32),
            ],
        ),
        compiler_params=pltpu.CompilerParams(
            dimension_semantics=("parallel",),      # batch split across TCs on v7x
            vmem_limit_bytes=32 * 1024 * 1024,      # explicit scoped-VMEM budget
        ),
    )(wsm, x_flat, packed["w1"], packed["w_rest"], packed["b"],
      packed["gamma"], packed["beta"])
    return out_flat.reshape(n, cout, h, w)


# ----------------------------------------------------------------------------
# Parameter construction (deterministic, synthetic, PyTorch-native layouts)
# ----------------------------------------------------------------------------
def init_stacked_params(key, cin, cout, max_num_convs):
    assert max_num_convs in (2, 3, 4)
    keys = jax.random.split(key, 2 * max_num_convs)
    blocks = []
    c_src = cin
    for i in range(max_num_convs):
        kw, kb = keys[2 * i], keys[2 * i + 1]
        w_torch = 0.1 * jax.random.normal(kw, (cout, c_src, 3, 3), jnp.float32)  # OIHW
        b = 0.1 * jax.random.normal(kb, (cout,), jnp.float32)
        blocks.append({"w": w_torch, "b": b,
                       "gamma": jnp.ones((cout,), jnp.float32),   # InstanceNorm affine init
                       "beta": jnp.zeros((cout,), jnp.float32)})
        c_src = cout
    betas = jnp.zeros((max_num_convs,), jnp.float32)              # _initialize_betas
    return blocks, betas


def _oihw_to_im2col(w_oihw):
    # (Cout, Cin, 3, 3) -> (Cout, 9*Cin); column index = (dy*3 + dx)*Cin + ci,
    # matching the tap/channel order of `patches` built inside the kernel.
    cout, cin = w_oihw.shape[0], w_oihw.shape[1]
    return jnp.transpose(w_oihw, (0, 2, 3, 1)).reshape(cout, 9 * cin)


def pack_params(blocks):
    cout = blocks[0]["w"].shape[0]
    w1 = _oihw_to_im2col(blocks[0]["w"])
    w_rest = jnp.stack([_oihw_to_im2col(blk["w"]) for blk in blocks[1:]], axis=0)
    b = jnp.stack([blk["b"] for blk in blocks], axis=0).reshape(-1, cout, 1)
    gamma = jnp.stack([blk["gamma"] for blk in blocks], axis=0).reshape(-1, cout, 1)
    beta = jnp.stack([blk["beta"] for blk in blocks], axis=0).reshape(-1, cout, 1)
    return {"w1": w1, "w_rest": w_rest, "b": b, "gamma": gamma, "beta": beta}


# ----------------------------------------------------------------------------
# Full forward: AdaptiveDepthStackedConvLayers.forward(x, tau)
# ----------------------------------------------------------------------------
@functools.partial(jax.jit, static_argnames=("tau",))
def adaptive_depth_stacked_forward(x_nchw, packed, betas, gumbel_key, tau=1.0):
    # F.gumbel_softmax(betas, tau, hard=False): length-K softmax -> plain-JAX glue
    # (too small to benefit from a kernel); the weights are fed to the fused kernel via SMEM.
    g = jax.random.gumbel(gumbel_key, betas.shape, dtype=jnp.float32)
    wsm = jax.nn.softmax((betas + g) / tau).astype(jnp.float32)
    return adaptive_stack_pallas(x_nchw, packed, wsm)


# ----------------------------------------------------------------------------
# Pure-JAX reference (independent check, f32 path, tight tolerance)
# ----------------------------------------------------------------------------
def _ref_block(x_nhwc, blk):
    w_hwio = jnp.transpose(blk["w"], (2, 3, 1, 0))          # OIHW -> HWIO
    y = lax.conv_general_dilated(
        x_nhwc, w_hwio, window_strides=(1, 1), padding=((1, 1), (1, 1)),
        dimension_numbers=("NHWC", "HWIO", "NHWC"))
    y = y + blk["b"].reshape(1, 1, 1, -1)
    mean = jnp.mean(y, axis=(1, 2), keepdims=True)
    var = jnp.mean(jnp.square(y - mean), axis=(1, 2), keepdims=True)
    y = (y - mean) * lax.rsqrt(var + 1e-5)
    y = y * blk["gamma"].reshape(1, 1, 1, -1) + blk["beta"].reshape(1, 1, 1, -1)
    return jnp.where(y >= 0.0, y, 0.01 * y)


def _ref_forward(x_nchw, blocks, betas, gumbel_key, tau=1.0):
    x = jnp.transpose(x_nchw, (0, 2, 3, 1))
    outs, cur = [], x
    for blk in blocks:
        cur = _ref_block(cur, blk)
        outs.append(cur)
    g = jax.random.gumbel(gumbel_key, betas.shape, dtype=jnp.float32)
    wts = jax.nn.softmax((betas + g) / tau)
    out = sum(wv * r for wv, r in zip(wts, outs))
    return jnp.transpose(out, (0, 3, 1, 2))


if __name__ == "__main__":
    key = jax.random.PRNGKey(0)
    k_x, k_param, k_gumbel = jax.random.split(key, 3)

    N, C_IN, H, W = 2, 4, 16, 16
    C_OUT = 8
    MAX_NUM_CONVS = 3
    TAU = 1.0

    x = jax.random.normal(k_x, (N, C_IN, H, W), jnp.float32)
    blocks, betas = init_stacked_params(k_param, C_IN, C_OUT, MAX_NUM_CONVS)
    packed = pack_params(blocks)

    out = adaptive_depth_stacked_forward(x, packed, betas, k_gumbel, tau=TAU)
    out = jax.block_until_ready(out)

    ref = _ref_forward(x, blocks, betas, k_gumbel, tau=TAU)
    assert out.shape == (N, C_OUT, H, W)
    err = float(jnp.max(jnp.abs(out - ref)))
    assert err < 1e-4, f"max abs err {err}"

    print("KERNEL_OK")
</pallas_src>

<mosaic_0001>
module attributes {stable_mosaic.version = 11 : i64} {
  func.func @fused_stack_kernel(%arg0: i32, %arg1: memref<3xf32, #tpu.memory_space<smem>>, %arg2: memref<1x4x256xf32, #tpu.memory_space<vmem>>, %arg3: memref<8x36xf32, #tpu.memory_space<vmem>>, %arg4: memref<2x8x72xf32, #tpu.memory_space<vmem>>, %arg5: memref<3x8x1xf32, #tpu.memory_space<vmem>>, %arg6: memref<3x8x1xf32, #tpu.memory_space<vmem>>, %arg7: memref<3x8x1xf32, #tpu.memory_space<vmem>>, %arg8: memref<1x8x256xf32, #tpu.memory_space<vmem>>, %arg9: memref<4x18x18xf32, #tpu.memory_space<vmem>>, %arg10: memref<8x18x18xf32, #tpu.memory_space<vmem>>) attributes {dimension_semantics = [#tpu.dimension_semantics<parallel>], iteration_bounds = array<i64: 2>, scalar_prefetch = 0 : i64, scratch_operands = 2 : i64, tpu.core_type = #tpu.core_type<tc>, window_params = [{transform_indices = @transform_0, window_bounds = array<i64: 3>}, {transform_indices = @transform_1, window_bounds = array<i64: 1, 4, 256>}, {pipeline_mode = #tpu.pipeline_mode<synchronous>, transform_indices = @transform_2, window_bounds = array<i64: 8, 36>}, {pipeline_mode = #tpu.pipeline_mode<synchronous>, transform_indices = @transform_3, window_bounds = array<i64: 2, 8, 72>}, {pipeline_mode = #tpu.pipeline_mode<synchronous>, transform_indices = @transform_4, window_bounds = array<i64: 3, 8, 1>}, {pipeline_mode = #tpu.pipeline_mode<synchronous>, transform_indices = @transform_5, window_bounds = array<i64: 3, 8, 1>}, {pipeline_mode = #tpu.pipeline_mode<synchronous>, transform_indices = @transform_6, window_bounds = array<i64: 3, 8, 1>}, {transform_indices = @transform_7, window_bounds = array<i64: 1, 8, 256>}]} {
    %cst = arith.constant 0.000000e+00 : f32
    %0 = vector.broadcast %cst : f32 to vector<4x18x18xf32>
    %c0 = arith.constant 0 : index
    %c0_0 = arith.constant 0 : index
    %c0_1 = arith.constant 0 : index
    %1 = vector.load %arg9[%c0, %c0_0, %c0_1] : memref<4x18x18xf32, #tpu.memory_space<vmem>>, vector<4x18x18xf32>
    tpu.vector_store %arg9[%c0, %c0_0, %c0_1], %0 {strides = array<i32>} : memref<4x18x18xf32, #tpu.memory_space<vmem>>, vector<4x18x18xf32>,
    %cst_2 = arith.constant 0.000000e+00 : f32
    %2 = vector.broadcast %cst_2 : f32 to vector<8x18x18xf32>
    %c0_3 = arith.constant 0 : index
    %c0_4 = arith.constant 0 : index
    %c0_5 = arith.constant 0 : index
    %3 = vector.load %arg10[%c0_3, %c0_4, %c0_5] : memref<8x18x18xf32, #tpu.memory_space<vmem>>, vector<8x18x18xf32>
    tpu.vector_store %arg10[%c0_3, %c0_4, %c0_5], %2 {strides = array<i32>} : memref<8x18x18xf32, #tpu.memory_space<vmem>>, vector<8x18x18xf32>,
    %c0_6 = arith.constant 0 : index
    %c0_7 = arith.constant 0 : index
    %c0_8 = arith.constant 0 : index
    %4 = vector.load %arg2[%c0_6, %c0_7, %c0_8] : memref<1x4x256xf32, #tpu.memory_space<vmem>>, vector<1x4x256xf32>
    %5 = vector.shape_cast %4 : vector<1x4x256xf32> to vector<4x256xf32>
    %6 = vector.shape_cast %5 : vector<4x256xf32> to vector<4x16x16xf32>
    %c0_9 = arith.constant 0 : index
    %c1 = arith.constant 1 : index
    %c1_10 = arith.constant 1 : index
    %7 = vector.load %arg9[%c0_9, %c1, %c1_10] : memref<4x18x18xf32, #tpu.memory_space<vmem>>, vector<4x16x16xf32>
    tpu.vector_store %arg9[%c0_9, %c1, %c1_10], %6 {strides = array<i32>} : memref<4x18x18xf32, #tpu.memory_space<vmem>>, vector<4x16x16xf32>,
    %c0_11 = arith.constant 0 : index
    %c0_12 = arith.constant 0 : index
    %8 = vector.load %arg3[%c0_11, %c0_12] : memref<8x36xf32, #tpu.memory_space<vmem>>, vector<8x36xf32>
    %c0_13 = arith.constant 0 : index
    %c0_14 = arith.constant 0 : index
    %c0_15 = arith.constant 0 : index
    %9 = vector.load %arg5[%c0_13, %c0_14, %c0_15] : memref<3x8x1xf32, #tpu.memory_space<vmem>>, vector<1x8x1xf32>
    %10 = vector.shape_cast %9 : vector<1x8x1xf32> to vector<8x1xf32>
    %c0_16 = arith.constant 0 : index
    %c0_17 = arith.constant 0 : index
    %c0_18 = arith.constant 0 : index
    %11 = vector.load %arg6[%c0_16, %c0_17, %c0_18] : memref<3x8x1xf32, #tpu.memory_space<vmem>>, vector<1x8x1xf32>
    %12 = vector.shape_cast %11 : vector<1x8x1xf32> to vector<8x1xf32>
    %c0_19 = arith.constant 0 : index
    %c0_20 = arith.constant 0 : index
    %c0_21 = arith.constant 0 : index
    %13 = vector.load %arg7[%c0_19, %c0_20, %c0_21] : memref<3x8x1xf32, #tpu.memory_space<vmem>>, vector<1x8x1xf32>
    %14 = vector.shape_cast %13 : vector<1x8x1xf32> to vector<8x1xf32>
    %c0_22 = arith.constant 0 : index
    %c0_23 = arith.constant 0 : index
    %c0_24 = arith.constant 0 : index
    %15 = vector.load %arg9[%c0_22, %c0_23, %c0_24] : memref<4x18x18xf32, #tpu.memory_space<vmem>>, vector<4x16x16xf32>
    %16 = vector.shape_cast %15 : vector<4x16x16xf32> to vector<4x256xf32>
    %c0_25 = arith.constant 0 : index
    %c0_26 = arith.constant 0 : index
    %c1_27 = arith.constant 1 : index
    %17 = vector.load %arg9[%c0_25, %c0_26, %c1_27] : memref<4x18x18xf32, #tpu.memory_space<vmem>>, vector<4x16x16xf32>
    %18 = vector.shape_cast %17 : vector<4x16x16xf32> to vector<4x256xf32>
    %c0_28 = arith.constant 0 : index
    %c0_29 = arith.constant 0 : index
    %c2 = arith.constant 2 : index
    %19 = vector.load %arg9[%c0_28, %c0_29, %c2] : memref<4x18x18xf32, #tpu.memory_space<vmem>>, vector<4x16x16xf32>
    %20 = vector.shape_cast %19 : vector<4x16x16xf32> to vector<4x256xf32>
    %c0_30 = arith.constant 0 : index
    %c1_31 = arith.constant 1 : index
    %c0_32 = arith.constant 0 : index
    %21 = vector.load %arg9[%c0_30, %c1_31, %c0_32] : memref<4x18x18xf32, #tpu.memory_space<vmem>>, vector<4x16x16xf32>
    %22 = vector.shape_cast %21 : vector<4x16x16xf32> to vector<4x256xf32>
    %c0_33 = arith.constant 0 : index
    %c1_34 = arith.constant 1 : index
    %c1_35 = arith.constant 1 : index
    %23 = vector.load %arg9[%c0_33, %c1_34, %c1_35] : memref<4x18x18xf32, #tpu.memory_space<vmem>>, vector<4x16x16xf32>
    %24 = vector.shape_cast %23 : vector<4x16x16xf32> to vector<4x256xf32>
    %c0_36 = arith.constant 0 : index
    %c1_37 = arith.constant 1 : index
    %c2_38 = arith.constant 2 : index
    %25 = vector.load %arg9[%c0_36, %c1_37, %c2_38] : memref<4x18x18xf32, #tpu.memory_space<vmem>>, vector<4x16x16xf32>
    %26 = vector.shape_cast %25 : vector<4x16x16xf32> to vector<4x256xf32>
    %c0_39 = arith.constant 0 : index
    %c2_40 = arith.constant 2 : index
    %c0_41 = arith.constant 0 : index
    %27 = vector.load %arg9[%c0_39, %c2_40, %c0_41] : memref<4x18x18xf32, #tpu.memory_space<vmem>>, vector<4x16x16xf32>
    %28 = vector.shape_cast %27 : vector<4x16x16xf32> to vector<4x256xf32>
    %c0_42 = arith.constant 0 : index
    %c2_43 = arith.constant 2 : index
    %c1_44 = arith.constant 1 : index
    %29 = vector.load %arg9[%c0_42, %c2_43, %c1_44] : memref<4x18x18xf32, #tpu.memory_space<vmem>>, vector<4x16x16xf32>
    %30 = vector.shape_cast %29 : vector<4x16x16xf32> to vector<4x256xf32>
    %c0_45 = arith.constant 0 : index
    %c2_46 = arith.constant 2 : index
    %c2_47 = arith.constant 2 : index
    %31 = vector.load %arg9[%c0_45, %c2_46, %c2_47] : memref<4x18x18xf32, #tpu.memory_space<vmem>>, vector<4x16x16xf32>
    %32 = vector.shape_cast %31 : vector<4x16x16xf32> to vector<4x256xf32>
    %33 = tpu.concatenate %16, %18, %20, %22, %24, %26, %28, %30, %32 in 0 : vector<4x256xf32>, vector<4x256xf32>, vector<4x256xf32>, vector<4x256xf32>, vector<4x256xf32>, vector<4x256xf32>, vector<4x256xf32>, vector<4x256xf32>, vector<4x256xf32> -> vector<36x256xf32>
    %cst_48 = arith.constant dense<0.000000e+00> : vector<8x256xf32>
    %34 = tpu.matmul %8, %33, %cst_48 {dimension_numbers = #tpu.dot_dimension_numbers<[1], [0], [0], [1], [0, 0, 1, 1], [], []>} : vector<8x36xf32>, vector<36x256xf32>, vector<8x256xf32> -> vector<8x256xf32>
    %35 = vector.broadcast %10 : vector<8x1xf32> to vector<8x256xf32>
    %36 = arith.addf %34, %35 : vector<8x256xf32>
    %cst_49 = arith.constant dense<0.000000e+00> : vector<8xf32>
    %37 = vector.multi_reduction <add>, %36, %cst_49 [1] : vector<8x256xf32> to vector<8xf32>
    %38 = vector.shape_cast %37 : vector<8xf32> to vector<8x1xf32>
    %39 = arith.mulf %36, %36 : vector<8x256xf32>
    %cst_50 = arith.constant dense<0.000000e+00> : vector<8xf32>
    %40 = vector.multi_reduction <add>, %39, %cst_50 [1] : vector<8x256xf32> to vector<8xf32>
    %41 = vector.shape_cast %40 : vector<8xf32> to vector<8x1xf32>
    %cst_51 = arith.constant 3.906250e-03 : f32
    %42 = vector.broadcast %cst_51 : f32 to vector<8x1xf32>
    %43 = arith.mulf %38, %42 : vector<8x1xf32>
    %cst_52 = arith.constant 3.906250e-03 : f32
    %44 = vector.broadcast %cst_52 : f32 to vector<8x1xf32>
    %45 = arith.mulf %41, %44 : vector<8x1xf32>
    %46 = arith.mulf %43, %43 : vector<8x1xf32>
    %47 = arith.subf %45, %46 : vector<8x1xf32>
    %cst_53 = arith.constant 0.000000e+00 : f32
    %48 = vector.broadcast %cst_53 : f32 to vector<8x1xf32>
    %49 = arith.maximumf %47, %48 : vector<8x1xf32>
    %50 = vector.broadcast %43 : vector<8x1xf32> to vector<8x256xf32>
    %51 = arith.subf %36, %50 : vector<8x256xf32>
    %cst_54 = arith.constant 9.99999974E-6 : f32
    %52 = vector.broadcast %cst_54 : f32 to vector<8x1xf32>
    %53 = arith.addf %49, %52 : vector<8x1xf32>
    %54 = math.rsqrt %53 : vector<8x1xf32>
    %55 = vector.broadcast %54 : vector<8x1xf32> to vector<8x256xf32>
    %56 = arith.mulf %51, %55 : vector<8x256xf32>
    %57 = vector.broadcast %12 : vector<8x1xf32> to vector<8x256xf32>
    %58 = arith.mulf %56, %57 : vector<8x256xf32>
    %59 = vector.broadcast %14 : vector<8x1xf32> to vector<8x256xf32>
    %60 = arith.addf %58, %59 : vector<8x256xf32>
    %cst_55 = arith.constant 0.000000e+00 : f32
    %61 = vector.broadcast %cst_55 : f32 to vector<8x256xf32>
    %62 = arith.cmpf oge, %60, %61 : vector<8x256xf32>
    %cst_56 = arith.constant 0.00999999977 : f32
    %63 = vector.broadcast %cst_56 : f32 to vector<8x256xf32>
    %64 = arith.mulf %63, %60 : vector<8x256xf32>
    %65 = arith.select %62, %60, %64 : vector<8x256xi1>, vector<8x256xf32>
    %c0_57 = arith.constant 0 : index
    %66 = memref.load %arg1[%c0_57] : memref<3xf32, #tpu.memory_space<smem>>
    %67 = vector.broadcast %66 : f32 to vector<8x256xf32>
    %68 = arith.mulf %67, %65 : vector<8x256xf32>
    %69 = vector.shape_cast %65 : vector<8x256xf32> to vector<8x16x16xf32>
    %c0_58 = arith.constant 0 : index
    %c1_59 = arith.constant 1 : index
    %c1_60 = arith.constant 1 : index
    %70 = vector.load %arg10[%c0_58, %c1_59, %c1_60] : memref<8x18x18xf32, #tpu.memory_space<vmem>>, vector<8x16x16xf32>
    tpu.vector_store %arg10[%c0_58, %c1_59, %c1_60], %69 {strides = array<i32>} : memref<8x18x18xf32, #tpu.memory_space<vmem>>, vector<8x16x16xf32>,
    %c0_61 = arith.constant 0 : index
    %c0_62 = arith.constant 0 : index
    %c0_63 = arith.constant 0 : index
    %71 = vector.load %arg4[%c0_61, %c0_62, %c0_63] : memref<2x8x72xf32, #tpu.memory_space<vmem>>, vector<1x8x72xf32>
    %72 = vector.shape_cast %71 : vector<1x8x72xf32> to vector<8x72xf32>
    %c1_64 = arith.constant 1 : index
    %c0_65 = arith.constant 0 : index
    %c0_66 = arith.constant 0 : index
    %73 = vector.load %arg5[%c1_64, %c0_65, %c0_66] : memref<3x8x1xf32, #tpu.memory_space<vmem>>, vector<1x8x1xf32>
    %74 = vector.shape_cast %73 : vector<1x8x1xf32> to vector<8x1xf32>
    %c1_67 = arith.constant 1 : index
    %c0_68 = arith.constant 0 : index
    %c0_69 = arith.constant 0 : index
    %75 = vector.load %arg6[%c1_67, %c0_68, %c0_69] : memref<3x8x1xf32, #tpu.memory_space<vmem>>, vector<1x8x1xf32>
    %76 = vector.shape_cast %75 : vector<1x8x1xf32> to vector<8x1xf32>
    %c1_70 = arith.constant 1 : index
    %c0_71 = arith.constant 0 : index
    %c0_72 = arith.constant 0 : index
    %77 = vector.load %arg7[%c1_70, %c0_71, %c0_72] : memref<3x8x1xf32, #tpu.memory_space<vmem>>, vector<1x8x1xf32>
    %78 = vector.shape_cast %77 : vector<1x8x1xf32> to vector<8x1xf32>
    %c0_73 = arith.constant 0 : index
    %c0_74 = arith.constant 0 : index
    %c0_75 = arith.constant 0 : index
    %79 = vector.load %arg10[%c0_73, %c0_74, %c0_75] : memref<8x18x18xf32, #tpu.memory_space<vmem>>, vector<8x16x16xf32>
    %80 = vector.shape_cast %79 : vector<8x16x16xf32> to vector<8x256xf32>
    %c0_76 = arith.constant 0 : index
    %c0_77 = arith.constant 0 : index
    %c1_78 = arith.constant 1 : index
    %81 = vector.load %arg10[%c0_76, %c0_77, %c1_78] : memref<8x18x18xf32, #tpu.memory_space<vmem>>, vector<8x16x16xf32>
    %82 = vector.shape_cast %81 : vector<8x16x16xf32> to vector<8x256xf32>
    %c0_79 = arith.constant 0 : index
    %c0_80 = arith.constant 0 : index
    %c2_81 = arith.constant 2 : index
    %83 = vector.load %arg10[%c0_79, %c0_80, %c2_81] : memref<8x18x18xf32, #tpu.memory_space<vmem>>, vector<8x16x16xf32>
    %84 = vector.shape_cast %83 : vector<8x16x16xf32> to vector<8x256xf32>
    %c0_82 = arith.constant 0 : index
    %c1_83 = arith.constant 1 : index
    %c0_84 = arith.constant 0 : index
    %85 = vector.load %arg10[%c0_82, %c1_83, %c0_84] : memref<8x18x18xf32, #tpu.memory_space<vmem>>, vector<8x16x16xf32>
    %86 = vector.shape_cast %85 : vector<8x16x16xf32> to vector<8x256xf32>
    %c0_85 = arith.constant 0 : index
    %c1_86 = arith.constant 1 : index
    %c1_87 = arith.constant 1 : index
    %87 = vector.load %arg10[%c0_85, %c1_86, %c1_87] : memref<8x18x18xf32, #tpu.memory_space<vmem>>, vector<8x16x16xf32>
    %88 = vector.shape_cast %87 : vector<8x16x16xf32> to vector<8x256xf32>
    %c0_88 = arith.constant 0 : index
    %c1_89 = arith.constant 1 : index
    %c2_90 = arith.constant 2 : index
    %89 = vector.load %arg10[%c0_88, %c1_89, %c2_90] : memref<8x18x18xf32, #tpu.memory_space<vmem>>, vector<8x16x16xf32>
    %90 = vector.shape_cast %89 : vector<8x16x16xf32> to vector<8x256xf32>
    %c0_91 = arith.constant 0 : index
    %c2_92 = arith.constant 2 : index
    %c0_93 = arith.constant 0 : index
    %91 = vector.load %arg10[%c0_91, %c2_92, %c0_93] : memref<8x18x18xf32, #tpu.memory_space<vmem>>, vector<8x16x16xf32>
    %92 = vector.shape_cast %91 : vector<8x16x16xf32> to vector<8x256xf32>
    %c0_94 = arith.constant 0 : index
    %c2_95 = arith.constant 2 : index
    %c1_96 = arith.constant 1 : index
    %93 = vector.load %arg10[%c0_94, %c2_95, %c1_96] : memref<8x18x18xf32, #tpu.memory_space<vmem>>, vector<8x16x16xf32>
    %94 = vector.shape_cast %93 : vector<8x16x16xf32> to vector<8x256xf32>
    %c0_97 = arith.constant 0 : index
    %c2_98 = arith.constant 2 : index
    %c2_99 = arith.constant 2 : index
    %95 = vector.load %arg10[%c0_97, %c2_98, %c2_99] : memref<8x18x18xf32, #tpu.memory_space<vmem>>, vector<8x16x16xf32>
    %96 = vector.shape_cast %95 : vector<8x16x16xf32> to vector<8x256xf32>
    %97 = tpu.concatenate %80, %82, %84, %86, %88, %90, %92, %94, %96 in 0 : vector<8x256xf32>, vector<8x256xf32>, vector<8x256xf32>, vector<8x256xf32>, vector<8x256xf32>, vector<8x256xf32>, vector<8x256xf32>, vector<8x256xf32>, vector<8x256xf32> -> vector<72x256xf32>
    %cst_100 = arith.constant dense<0.000000e+00> : vector<8x256xf32>
    %98 = tpu.matmul %72, %97, %cst_100 {dimension_numbers = #tpu.dot_dimension_numbers<[1], [0], [0], [1], [0, 0, 1, 1], [], []>} : vector<8x72xf32>, vector<72x256xf32>, vector<8x256xf32> -> vector<8x256xf32>
    %99 = vector.broadcast %74 : vector<8x1xf32> to vector<8x256xf32>
    %100 = arith.addf %98, %99 : vector<8x256xf32>
    %cst_101 = arith.constant dense<0.000000e+00> : vector<8xf32>
    %101 = vector.multi_reduction <add>, %100, %cst_101 [1] : vector<8x256xf32> to vector<8xf32>
    %102 = vector.shape_cast %101 : vector<8xf32> to vector<8x1xf32>
    %103 = arith.mulf %100, %100 : vector<8x256xf32>
    %cst_102 = arith.constant dense<0.000000e+00> : vector<8xf32>
    %104 = vector.multi_reduction <add>, %103, %cst_102 [1] : vector<8x256xf32> to vector<8xf32>
    %105 = vector.shape_cast %104 : vector<8xf32> to vector<8x1xf32>
    %cst_103 = arith.constant 3.906250e-03 : f32
    %106 = vector.broadcast %cst_103 : f32 to vector<8x1xf32>
    %107 = arith.mulf %102, %106 : vector<8x1xf32>
    %cst_104 = arith.constant 3.906250e-03 : f32
    %108 = vector.broadcast %cst_104 : f32 to vector<8x1xf32>
    %109 = arith.mulf %105, %108 : vector<8x1xf32>
    %110 = arith.mulf %107, %107 : vector<8x1xf32>
    %111 = arith.subf %109, %110 : vector<8x1xf32>
    %cst_105 = arith.constant 0.000000e+00 : f32
    %112 = vector.broadcast %cst_105 : f32 to vector<8x1xf32>
    %113 = arith.maximumf %111, %112 : vector<8x1xf32>
    %114 = vector.broadcast %107 : vector<8x1xf32> to vector<8x256xf32>
    %115 = arith.subf %100, %114 : vector<8x256xf32>
    %cst_106 = arith.constant 9.99999974E-6 : f32
    %116 = vector.broadcast %cst_106 : f32 to vector<8x1xf32>
    %117 = arith.addf %113, %116 : vector<8x1xf32>
    %118 = math.rsqrt %117 : vector<8x1xf32>
    %119 = vector.broadcast %118 : vector<8x1xf32> to vector<8x256xf32>
    %120 = arith.mulf %115, %119 : vector<8x256xf32>
    %121 = vector.broadcast %76 : vector<8x1xf32> to vector<8x256xf32>
    %122 = arith.mulf %120, %121 : vector<8x256xf32>
    %123 = vector.broadcast %78 : vector<8x1xf32> to vector<8x256xf32>
    %124 = arith.addf %122, %123 : vector<8x256xf32>
    %cst_107 = arith.constant 0.000000e+00 : f32
    %125 = vector.broadcast %cst_107 : f32 to vector<8x256xf32>
    %126 = arith.cmpf oge, %124, %125 : vector<8x256xf32>
    %cst_108 = arith.constant 0.00999999977 : f32
    %127 = vector.broadcast %cst_108 : f32 to vector<8x256xf32>
    %128 = arith.mulf %127, %124 : vector<8x256xf32>
    %129 = arith.select %126, %124, %128 : vector<8x256xi1>, vector<8x256xf32>
    %c1_109 = arith.constant 1 : index
    %130 = memref.load %arg1[%c1_109] : memref<3xf32, #tpu.memory_space<smem>>
    %131 = vector.broadcast %130 : f32 to vector<8x256xf32>
    %132 = arith.mulf %131, %129 : vector<8x256xf32>
    %133 = arith.addf %68, %132 : vector<8x256xf32>
    %134 = vector.shape_cast %129 : vector<8x256xf32> to vector<8x16x16xf32>
    %c0_110 = arith.constant 0 : index
    %c1_111 = arith.constant 1 : index
    %c1_112 = arith.constant 1 : index
    %135 = vector.load %arg10[%c0_110, %c1_111, %c1_112] : memref<8x18x18xf32, #tpu.memory_space<vmem>>, vector<8x16x16xf32>
    tpu.vector_store %arg10[%c0_110, %c1_111, %c1_112], %134 {strides = array<i32>} : memref<8x18x18xf32, #tpu.memory_space<vmem>>, vector<8x16x16xf32>,
    %c1_113 = arith.constant 1 : index
    %c0_114 = arith.constant 0 : index
    %c0_115 = arith.constant 0 : index
    %136 = vector.load %arg4[%c1_113, %c0_114, %c0_115] : memref<2x8x72xf32, #tpu.memory_space<vmem>>, vector<1x8x72xf32>
    %137 = vector.shape_cast %136 : vector<1x8x72xf32> to vector<8x72xf32>
    %c2_116 = arith.constant 2 : index
    %c0_117 = arith.constant 0 : index
    %c0_118 = arith.constant 0 : index
    %138 = vector.load %arg5[%c2_116, %c0_117, %c0_118] : memref<3x8x1xf32, #tpu.memory_space<vmem>>, vector<1x8x1xf32>
    %139 = vector.shape_cast %138 : vector<1x8x1xf32> to vector<8x1xf32>
    %c2_119 = arith.constant 2 : index
    %c0_120 = arith.constant 0 : index
    %c0_121 = arith.constant 0 : index
    %140 = vector.load %arg6[%c2_119, %c0_120, %c0_121] : memref<3x8x1xf32, #tpu.memory_space<vmem>>, vector<1x8x1xf32>
    %141 = vector.shape_cast %140 : vector<1x8x1xf32> to vector<8x1xf32>
    %c2_122 = arith.constant 2 : index
    %c0_123 = arith.constant 0 : index
    %c0_124 = arith.constant 0 : index
    %142 = vector.load %arg7[%c2_122, %c0_123, %c0_124] : memref<3x8x1xf32, #tpu.memory_space<vmem>>, vector<1x8x1xf32>
    %143 = vector.shape_cast %142 : vector<1x8x1xf32> to vector<8x1xf32>
    %c0_125 = arith.constant 0 : index
    %c0_126 = arith.constant 0 : index
    %c0_127 = arith.constant 0 : index
    %144 = vector.load %arg10[%c0_125, %c0_126, %c0_127] : memref<8x18x18xf32, #tpu.memory_space<vmem>>, vector<8x16x16xf32>
    %145 = vector.shape_cast %144 : vector<8x16x16xf32> to vector<8x256xf32>
    %c0_128 = arith.constant 0 : index
    %c0_129 = arith.constant 0 : index
    %c1_130 = arith.constant 1 : index
    %146 = vector.load %arg10[%c0_128, %c0_129, %c1_130] : memref<8x18x18xf32, #tpu.memory_space<vmem>>, vector<8x16x16xf32>
    %147 = vector.shape_cast %146 : vector<8x16x16xf32> to vector<8x256xf32>
    %c0_131 = arith.constant 0 : index
    %c0_132 = arith.constant 0 : index
    %c2_133 = arith.constant 2 : index
    %148 = vector.load %arg10[%c0_131, %c0_132, %c2_133] : memref<8x18x18xf32, #tpu.memory_space<vmem>>, vector<8x16x16xf32>
    %149 = vector.shape_cast %148 : vector<8x16x16xf32> to vector<8x256xf32>
    %c0_134 = arith.constant 0 : index
    %c1_135 = arith.constant 1 : index
    %c0_136 = arith.constant 0 : index
    %150 = vector.load %arg10[%c0_134, %c1_135, %c0_136] : memref<8x18x18xf32, #tpu.memory_space<vmem>>, vector<8x16x16xf32>
    %151 = vector.shape_cast %150 : vector<8x16x16xf32> to vector<8x256xf32>
    %c0_137 = arith.constant 0 : index
    %c1_138 = arith.constant 1 : index
    %c1_139 = arith.constant 1 : index
    %152 = vector.load %arg10[%c0_137, %c1_138, %c1_139] : memref<8x18x18xf32, #tpu.memory_space<vmem>>, vector<8x16x16xf32>
    %153 = vector.shape_cast %152 : vector<8x16x16xf32> to vector<8x256xf32>
    %c0_140 = arith.constant 0 : index
    %c1_141 = arith.constant 1 : index
    %c2_142 = arith.constant 2 : index
    %154 = vector.load %arg10[%c0_140, %c1_141, %c2_142] : memref<8x18x18xf32, #tpu.memory_space<vmem>>, vector<8x16x16xf32>
    %155 = vector.shape_cast %154 : vector<8x16x16xf32> to vector<8x256xf32>
    %c0_143 = arith.constant 0 : index
    %c2_144 = arith.constant 2 : index
    %c0_145 = arith.constant 0 : index
    %156 = vector.load %arg10[%c0_143, %c2_144, %c0_145] : memref<8x18x18xf32, #tpu.memory_space<vmem>>, vector<8x16x16xf32>
    %157 = vector.shape_cast %156 : vector<8x16x16xf32> to vector<8x256xf32>
    %c0_146 = arith.constant 0 : index
    %c2_147 = arith.constant 2 : index
    %c1_148 = arith.constant 1 : index
    %158 = vector.load %arg10[%c0_146, %c2_147, %c1_148] : memref<8x18x18xf32, #tpu.memory_space<vmem>>, vector<8x16x16xf32>
    %159 = vector.shape_cast %158 : vector<8x16x16xf32> to vector<8x256xf32>
    %c0_149 = arith.constant 0 : index
    %c2_150 = arith.constant 2 : index
    %c2_151 = arith.constant 2 : index
    %160 = vector.load %arg10[%c0_149, %c2_150, %c2_151] : memref<8x18x18xf32, #tpu.memory_space<vmem>>, vector<8x16x16xf32>
    %161 = vector.shape_cast %160 : vector<8x16x16xf32> to vector<8x256xf32>
    %162 = tpu.concatenate %145, %147, %149, %151, %153, %155, %157, %159, %161 in 0 : vector<8x256xf32>, vector<8x256xf32>, vector<8x256xf32>, vector<8x256xf32>, vector<8x256xf32>, vector<8x256xf32>, vector<8x256xf32>, vector<8x256xf32>, vector<8x256xf32> -> vector<72x256xf32>
    %cst_152 = arith.constant dense<0.000000e+00> : vector<8x256xf32>
    %163 = tpu.matmul %137, %162, %cst_152 {dimension_numbers = #tpu.dot_dimension_numbers<[1], [0], [0], [1], [0, 0, 1, 1], [], []>} : vector<8x72xf32>, vector<72x256xf32>, vector<8x256xf32> -> vector<8x256xf32>
    %164 = vector.broadcast %139 : vector<8x1xf32> to vector<8x256xf32>
    %165 = arith.addf %163, %164 : vector<8x256xf32>
    %cst_153 = arith.constant dense<0.000000e+00> : vector<8xf32>
    %166 = vector.multi_reduction <add>, %165, %cst_153 [1] : vector<8x256xf32> to vector<8xf32>
    %167 = vector.shape_cast %166 : vector<8xf32> to vector<8x1xf32>
    %168 = arith.mulf %165, %165 : vector<8x256xf32>
    %cst_154 = arith.constant dense<0.000000e+00> : vector<8xf32>
    %169 = vector.multi_reduction <add>, %168, %cst_154 [1] : vector<8x256xf32> to vector<8xf32>
    %170 = vector.shape_cast %169 : vector<8xf32> to vector<8x1xf32>
    %cst_155 = arith.constant 3.906250e-03 : f32
    %171 = vector.broadcast %cst_155 : f32 to vector<8x1xf32>
    %172 = arith.mulf %167, %171 : vector<8x1xf32>
    %cst_156 = arith.constant 3.906250e-03 : f32
    %173 = vector.broadcast %cst_156 : f32 to vector<8x1xf32>
    %174 = arith.mulf %170, %173 : vector<8x1xf32>
    %175 = arith.mulf %172, %172 : vector<8x1xf32>
    %176 = arith.subf %174, %175 : vector<8x1xf32>
    %cst_157 = arith.constant 0.000000e+00 : f32
    %177 = vector.broadcast %cst_157 : f32 to vector<8x1xf32>
    %178 = arith.maximumf %176, %177 : vector<8x1xf32>
    %179 = vector.broadcast %172 : vector<8x1xf32> to vector<8x256xf32>
    %180 = arith.subf %165, %179 : vector<8x256xf32>
    %cst_158 = arith.constant 9.99999974E-6 : f32
    %181 = vector.broadcast %cst_158 : f32 to vector<8x1xf32>
    %182 = arith.addf %178, %181 : vector<8x1xf32>
    %183 = math.rsqrt %182 : vector<8x1xf32>
    %184 = vector.broadcast %183 : vector<8x1xf32> to vector<8x256xf32>
    %185 = arith.mulf %180, %184 : vector<8x256xf32>
    %186 = vector.broadcast %141 : vector<8x1xf32> to vector<8x256xf32>
    %187 = arith.mulf %185, %186 : vector<8x256xf32>
    %188 = vector.broadcast %143 : vector<8x1xf32> to vector<8x256xf32>
    %189 = arith.addf %187, %188 : vector<8x256xf32>
    %cst_159 = arith.constant 0.000000e+00 : f32
    %190 = vector.broadcast %cst_159 : f32 to vector<8x256xf32>
    %191 = arith.cmpf oge, %189, %190 : vector<8x256xf32>
    %cst_160 = arith.constant 0.00999999977 : f32
    %192 = vector.broadcast %cst_160 : f32 to vector<8x256xf32>
    %193 = arith.mulf %192, %189 : vector<8x256xf32>
    %194 = arith.select %191, %189, %193 : vector<8x256xi1>, vector<8x256xf32>
    %c2_161 = arith.constant 2 : index
    %195 = memref.load %arg1[%c2_161] : memref<3xf32, #tpu.memory_space<smem>>
    %196 = vector.broadcast %195 : f32 to vector<8x256xf32>
    %197 = arith.mulf %196, %194 : vector<8x256xf32>
    %198 = arith.addf %133, %197 : vector<8x256xf32>
    %c0_162 = arith.constant 0 : index
    %c0_163 = arith.constant 0 : index
    %c0_164 = arith.constant 0 : index
    %199 = vector.load %arg8[%c0_162, %c0_163, %c0_164] : memref<1x8x256xf32, #tpu.memory_space<vmem>>, vector<1x8x256xf32>
    %200 = vector.shape_cast %199 : vector<1x8x256xf32> to vector<8x256xf32>
    %201 = vector.shape_cast %198 : vector<8x256xf32> to vector<1x8x256xf32>
    tpu.vector_store %arg8[%c0_162, %c0_163, %c0_164], %201 {strides = array<i32>} : memref<1x8x256xf32, #tpu.memory_space<vmem>>, vector<1x8x256xf32>,
    return
  }
  func.func @transform_0(%arg0: i32) -> i32 {
    %c0_i32 = arith.constant 0 : i32
    %c0_i32_0 = arith.constant 0 : i32
    return %c0_i32 : i32
  }
  func.func @transform_1(%arg0: i32) -> (i32, i32, i32) {
    %c0_i32 = arith.constant 0 : i32
    %c0_i32_0 = arith.constant 0 : i32
    %c0_i32_1 = arith.constant 0 : i32
    return %arg0, %c0_i32, %c0_i32_0 : i32, i32, i32
  }
  func.func @transform_2(%arg0: i32) -> (i32, i32) {
    %c0_i32 = arith.constant 0 : i32
    %c0_i32_0 = arith.constant 0 : i32
    %c0_i32_1 = arith.constant 0 : i32
    return %c0_i32, %c0_i32_0 : i32, i32
  }
  func.func @transform_3(%arg0: i32) -> (i32, i32, i32) {
    %c0_i32 = arith.constant 0 : i32
    %c0_i32_0 = arith.constant 0 : i32
    %c0_i32_1 = arith.constant 0 : i32
    %c0_i32_2 = arith.constant 0 : i32
    return %c0_i32, %c0_i32_0, %c0_i32_1 : i32, i32, i32
  }
  func.func @transform_4(%arg0: i32) -> (i32, i32, i32) {
    %c0_i32 = arith.constant 0 : i32
    %c0_i32_0 = arith.constant 0 : i32
    %c0_i32_1 = arith.constant 0 : i32
    %c0_i32_2 = arith.constant 0 : i32
    return %c0_i32, %c0_i32_0, %c0_i32_1 : i32, i32, i32
  }
  func.func @transform_5(%arg0: i32) -> (i32, i32, i32) {
    %c0_i32 = arith.constant 0 : i32
    %c0_i32_0 = arith.constant 0 : i32
    %c0_i32_1 = arith.constant 0 : i32
    %c0_i32_2 = arith.constant 0 : i32
    return %c0_i32, %c0_i32_0, %c0_i32_1 : i32, i32, i32
  }
  func.func @transform_6(%arg0: i32) -> (i32, i32, i32) {
    %c0_i32 = arith.constant 0 : i32
    %c0_i32_0 = arith.constant 0 : i32
    %c0_i32_1 = arith.constant 0 : i32
    %c0_i32_2 = arith.constant 0 : i32
    return %c0_i32, %c0_i32_0, %c0_i32_1 : i32, i32, i32
  }
  func.func @transform_7(%arg0: i32) -> (i32, i32, i32) {
    %c0_i32 = arith.constant 0 : i32
    %c0_i32_0 = arith.constant 0 : i32
    %c0_i32_1 = arith.constant 0 : i32
    return %arg0, %c0_i32, %c0_i32_0 : i32, i32, i32
  }
}

</mosaic_0001>

<llo_original>
// kernel: adaptive_depth_stacked_forward.1
$region0: #{adaptive_depth_stacked_forward.1}
  #allocation0 [shape = 'u32[]', space=smem, size = 0x4, offset = 0x4, fixed_abs, tag = 'smem constant byte address 0x4 - core index']
  #allocation1 [shape = 'u32[144,128]{1,0:T(1,128)}', space=vmem, size = 0x12000, scoped, tag = 'internal scratch']
  #allocation2 [shape = 'f32[4,18,18]{2,1,0:T(8,128)}', space=vmem, size = 0xc000, scoped, tag = 'scratch operand']
  #allocation3 [shape = 'f32[8,18,18]{2,1,0:T(8,128)}', space=vmem, size = 0x18000, scoped, tag = 'scratch operand']
  %s0 = inlined_call_operand.vmem [shape: f32[3], index: 0, kind: input, shape index: {}]
  %s1 = inlined_call_operand.vmem [shape: f32[2,4,256], index: 1, kind: input, shape index: {}]
  %s2 = inlined_call_operand.vmem [shape: f32[8,36], index: 2, kind: input, shape index: {}]
  %s3 = inlined_call_operand.vmem [shape: f32[2,8,72], index: 3, kind: input, shape index: {}]
  %s4 = inlined_call_operand.vmem [shape: f32[3,8,1], index: 4, kind: input, shape index: {}]
  %s5 = inlined_call_operand.vmem [shape: f32[3,8,1], index: 5, kind: input, shape index: {}]
  %s6 = inlined_call_operand.vmem [shape: f32[3,8,1], index: 6, kind: input, shape index: {}]
  %s7 = inlined_call_operand.vmem [shape: f32[2,8,256], index: 7, kind: output, shape index: {}]
  %s8 = sld [smem:[#allocation0]]
  $region65: #{adaptive_depth_stacked_forward.1} parent=0
    _
  %s10 = ssub.s32 1, %s8
  %s11 = scalar_select 0, %s10, %s8
  $region1: #{adaptive_depth_stacked_forward.1} parent=0
    #allocation4 [shape = 'u8[512]{0}', space=smem, size = 0x200, scoped, tag = 'input window, operand 0, single buffered']
    #allocation5 [shape = 's32[2]{0}', space=sflag, size = 0x8, scoped, tag = 'scoped memory for adaptive_depth_stacked_forward.1']
    %12 = vsyncpa [#allocation5], 0
    loop: start=0, step=1, limit=4
    $region2: #{adaptive_depth_stacked_forward.1} parent=1 // loop_pre_header
      _
    $region3: #{adaptive_depth_stacked_forward.1} parent=1 // loop_header
      %s14 = sphi 0, %s18
      %p15 = scmp.ge.s32.totalorder %s14, 4
      %s22 = sphi 0, %s22
      %s24 = sphi 0, %s22
      %s25 = sphi 0, %s24
      %s39 = sphi 0, %s25
      %s45 = sphi 0, %s47
      %s48 = sphi 0, %s45
      %s49 = sphi 0, %s48
      %s65 = sphi 0, %s49
      %s69 = sphi 0, %s69
      %s71 = sphi 0, %s69
      %s72 = sphi 0, %s71
      %s86 = sphi 0, %s72
      %s90 = sphi 0, %s90
      %s92 = sphi 0, %s90
      %s93 = sphi 0, %s92
      %s107 = sphi 0, %s93
      %s111 = sphi 0, %s111
      %s113 = sphi 0, %s111
      %s114 = sphi 0, %s113
      %s128 = sphi 0, %s114
      %s132 = sphi 0, %s132
      %s134 = sphi 0, %s132
      %s135 = sphi 0, %s134
      %s149 = sphi 0, %s135
      %s153 = sphi 0, %s153
      %s155 = sphi 0, %s153
      %s156 = sphi 0, %s155
      %s170 = sphi 0, %s156
      %s176 = sphi 0, %s178
      %s179 = sphi 0, %s176
      %s180 = sphi 0, %s179
      %s196 = sphi 0, %s180
    $region4: #{adaptive_depth_stacked_forward.1} parent=1 // loop_header_branch
      %17 = sbr.rel (%p15) target = $region8
    $region5: #{adaptive_depth_stacked_forward.1} parent=1 // loop_body
      %s19 = ssub.s32 %s14, 1
      %s20 = ssub.s32 %s14, 2
      %s21 = sadd.s32 %s14, 1
      %s23 = sadd.s32 %s22, 1
      %p26 = scmp.eq.s32.totalorder %s14, 1
      %p27 = scmp.ne.s32.totalorder %s22, %s24
      %p28 = scmp.eq.s32.totalorder %s14, 0
      %p29 = por %p27, %p28
      %p30 = scmp.ne.s32.totalorder %s22, %s24
      %p31 = scmp.eq.s32.totalorder %s19, 1
      %p32 = por %p30, %p31
      %p33 = scmp.ne.s32.totalorder %s24, %s25
      %p34 = scmp.eq.s32.totalorder %s19, 0
      %p35 = por %p33, %p34
      %p36 = scmp.ne.s32.totalorder %s24, %s25
      %p37 = scmp.eq.s32.totalorder %s20, 1
      %p38 = por %p36, %p37
      %p40 = scmp.ne.s32.totalorder %s25, %s39
      %p41 = scmp.eq.s32.totalorder %s20, 0
      %p42 = por %p40, %p41
      %s43 = ssub.s32 %s14, %s21
      %p44 = scmp.eq.s32.totalorder %s43, 0
      %s46 = sadd.s32 %s45, 1
      %s47 = scalar_select %p44, %s45, %s46
      %p50 = pneg %p44
      %p51 = scmp.eq.s32.totalorder %s14, 1
      %p52 = por %p50, %p51
      %p53 = scmp.ne.s32.totalorder %s45, %s48
      %p54 = scmp.eq.s32.totalorder %s14, 0
      %p55 = por %p53, %p54
      %p56 = scmp.ne.s32.totalorder %s45, %s48
      %p57 = scmp.eq.s32.totalorder %s19, 1
      %p58 = por %p56, %p57
      %p59 = scmp.ne.s32.totalorder %s48, %s49
      %p60 = scmp.eq.s32.totalorder %s19, 0
      %p61 = por %p59, %p60
      %p62 = scmp.ne.s32.totalorder %s48, %s49
      %p63 = scmp.eq.s32.totalorder %s20, 1
      %p64 = por %p62, %p63
      %p66 = scmp.ne.s32.totalorder %s49, %s65
      %p67 = scmp.eq.s32.totalorder %s20, 0
      %p68 = por %p66, %p67
      %s70 = sadd.s32 %s69, 1
      %p73 = scmp.eq.s32.totalorder %s14, 1
      %p74 = scmp.ne.s32.totalorder %s69, %s71
      %p75 = scmp.eq.s32.totalorder %s14, 0
      %p76 = por %p74, %p75
      %p77 = scmp.ne.s32.totalorder %s69, %s71
      %p78 = scmp.eq.s32.totalorder %s19, 1
      %p79 = por %p77, %p78
      %p80 = scmp.ne.s32.totalorder %s71, %s72
      %p81 = scmp.eq.s32.totalorder %s19, 0
      %p82 = por %p80, %p81
      %p83 = scmp.ne.s32.totalorder %s71, %s72
      %p84 = scmp.eq.s32.totalorder %s20, 1
      %p85 = por %p83, %p84
      %p87 = scmp.ne.s32.totalorder %s72, %s86
      %p88 = scmp.eq.s32.totalorder %s20, 0
      %p89 = por %p87, %p88
      %s91 = sadd.s32 %s90, 1
      %p94 = scmp.eq.s32.totalorder %s14, 1
      %p95 = scmp.ne.s32.totalorder %s90, %s92
      %p96 = scmp.eq.s32.totalorder %s14, 0
      %p97 = por %p95, %p96
      %p98 = scmp.ne.s32.totalorder %s90, %s92
      %p99 = scmp.eq.s32.totalorder %s19, 1
      %p100 = por %p98, %p99
      %p101 = scmp.ne.s32.totalorder %s92, %s93
      %p102 = scmp.eq.s32.totalorder %s19, 0
      %p103 = por %p101, %p102
      %p104 = scmp.ne.s32.totalorder %s92, %s93
      %p105 = scmp.eq.s32.totalorder %s20, 1
      %p106 = por %p104, %p105
      %p108 = scmp.ne.s32.totalorder %s93, %s107
      %p109 = scmp.eq.s32.totalorder %s20, 0
      %p110 = por %p108, %p109
      %s112 = sadd.s32 %s111, 1
      %p115 = scmp.eq.s32.totalorder %s14, 1
      %p116 = scmp.ne.s32.totalorder %s111, %s113
      %p117 = scmp.eq.s32.totalorder %s14, 0
      %p118 = por %p116, %p117
      %p119 = scmp.ne.s32.totalorder %s111, %s113
      %p120 = scmp.eq.s32.totalorder %s19, 1
      %p121 = por %p119, %p120
      %p122 = scmp.ne.s32.totalorder %s113, %s114
      %p123 = scmp.eq.s32.totalorder %s19, 0
      %p124 = por %p122, %p123
      %p125 = scmp.ne.s32.totalorder %s113, %s114
      %p126 = scmp.eq.s32.totalorder %s20, 1
      %p127 = por %p125, %p126
      %p129 = scmp.ne.s32.totalorder %s114, %s128
      %p130 = scmp.eq.s32.totalorder %s20, 0
      %p131 = por %p129, %p130
      %s133 = sadd.s32 %s132, 1
      %p136 = scmp.eq.s32.totalorder %s14, 1
      %p137 = scmp.ne.s32.totalorder %s132, %s134
      %p138 = scmp.eq.s32.totalorder %s14, 0
      %p139 = por %p137, %p138
      %p140 = scmp.ne.s32.totalorder %s132, %s134
      %p141 = scmp.eq.s32.totalorder %s19, 1
      %p142 = por %p140, %p141
      %p143 = scmp.ne.s32.totalorder %s134, %s135
      %p144 = scmp.eq.s32.totalorder %s19, 0
      %p145 = por %p143, %p144
      %p146 = scmp.ne.s32.totalorder %s134, %s135
      %p147 = scmp.eq.s32.totalorder %s20, 1
      %p148 = por %p146, %p147
      %p150 = scmp.ne.s32.totalorder %s135, %s149
      %p151 = scmp.eq.s32.totalorder %s20, 0
      %p152 = por %p150, %p151
      %s154 = sadd.s32 %s153, 1
      %p157 = scmp.eq.s32.totalorder %s14, 1
      %p158 = scmp.ne.s32.totalorder %s153, %s155
      %p159 = scmp.eq.s32.totalorder %s14, 0
      %p160 = por %p158, %p159
      %p161 = scmp.ne.s32.totalorder %s153, %s155
      %p162 = scmp.eq.s32.totalorder %s19, 1
      %p163 = por %p161, %p162
      %p164 = scmp.ne.s32.totalorder %s155, %s156
      %p165 = scmp.eq.s32.totalorder %s19, 0
      %p166 = por %p164, %p165
      %p167 = scmp.ne.s32.totalorder %s155, %s156
      %p168 = scmp.eq.s32.totalorder %s20, 1
      %p169 = por %p167, %p168
      %p171 = scmp.ne.s32.totalorder %s156, %s170
      %p172 = scmp.eq.s32.totalorder %s20, 0
      %p173 = por %p171, %p172
      %s174 = ssub.s32 %s14, %s21
      %p175 = scmp.eq.s32.totalorder %s174, 0
      %s177 = sadd.s32 %s176, 1
      %s178 = scalar_select %p175, %s176, %s177
      %p181 = pneg %p175
      %p182 = scmp.eq.s32.totalorder %s14, 1
      %p183 = por %p181, %p182
      %p184 = scmp.ne.s32.totalorder %s176, %s179
      %p185 = scmp.eq.s32.totalorder %s14, 0
      %p186 = por %p184, %p185
      %p187 = scmp.ne.s32.totalorder %s176, %s179
      %p188 = scmp.eq.s32.totalorder %s19, 1
      %p189 = por %p187, %p188
      %p190 = scmp.ne.s32.totalorder %s179, %s180
      %p191 = scmp.eq.s32.totalorder %s19, 0
      %p192 = por %p190, %p191
      %p193 = scmp.ne.s32.totalorder %s179, %s180
      %p194 = scmp.eq.s32.totalorder %s20, 1
      %p195 = por %p193, %p194
      %p197 = scmp.ne.s32.totalorder %s180, %s196
      %p198 = scmp.eq.s32.totalorder %s20, 0
      %p199 = por %p197, %p198
      %p200 = scmp.le.s32.totalorder 1, %s14
      %p201 = scmp.lt.s32.totalorder %s14, 3
      %p202 = pnand %p200, %p201
      %p203 = pneg %p202
      // Predicated region
      $region9: #{adaptive_depth_stacked_forward.1} parent=5 // pred_check
        _
      $region10: #{adaptive_depth_stacked_forward.1} parent=5 // pred_check_branch
        %205 = sbr.rel (%p202) target = $region12
      $region11: #{adaptive_depth_stacked_forward.1} parent=5 // pred_region
        %s206 = ssub.s32 %s14, 1
        // Predicated region
        $region13: #{adaptive_depth_stacked_forward.1} parent=11 // pred_check
          %p207 = pneg %p35
        $region14: #{adaptive_depth_stacked_forward.1} parent=11 // pred_check_branch
          %209 = sbr.rel (%p207) target = $region16
        $region15: #{adaptive_depth_stacked_forward.1} parent=11 // pred_region
          %s211 = ssub.s32 16, 16
          %212 = vsyncadd [#allocation5], %s211
          %s214 = sshll.u32 %s0, 4
          %s215 = int_to_ptr.vmem [resolvable:$true] %s214
          %217 = dma.vmem_to_smem %s215, 16, [#allocation4], [#allocation5]
        $region16: #{adaptive_depth_stacked_forward.1} parent=11 // pred_fallthru
          _
        // Predicated region
        $region17: #{adaptive_depth_stacked_forward.1} parent=11 // pred_check
          %p218 = pneg %p82
        $region18: #{adaptive_depth_stacked_forward.1} parent=11 // pred_check_branch
          %220 = sbr.rel (%p218) target = $region20
        $region19: #{adaptive_depth_stacked_forward.1} parent=11 // pred_region
          _
        $region20: #{adaptive_depth_stacked_forward.1} parent=11 // pred_fallthru
          _
        // Predicated region
        $region21: #{adaptive_depth_stacked_forward.1} parent=11 // pred_check
          %p221 = pneg %p103
        $region22: #{adaptive_depth_stacked_forward.1} parent=11 // pred_check_branch
          %223 = sbr.rel (%p221) target = $region24
        $region23: #{adaptive_depth_stacked_forward.1} parent=11 // pred_region
          _
        $region24: #{adaptive_depth_stacked_forward.1} parent=11 // pred_fallthru
          _
        // Predicated region
        $region25: #{adaptive_depth_stacked_forward.1} parent=11 // pred_check
          %p224 = pneg %p124
        $region26: #{adaptive_depth_stacked_forward.1} parent=11 // pred_check_branch
          %226 = sbr.rel (%p224) target = $region28
        $region27: #{adaptive_depth_stacked_forward.1} parent=11 // pred_region
          _
        $region28: #{adaptive_depth_stacked_forward.1} parent=11 // pred_fallthru
          _
        // Predicated region
        $region29: #{adaptive_depth_stacked_forward.1} parent=11 // pred_check
          %p227 = pneg %p145
        $region30: #{adaptive_depth_stacked_forward.1} parent=11 // pred_check_branch
          %229 = sbr.rel (%p227) target = $region32
        $region31: #{adaptive_depth_stacked_forward.1} parent=11 // pred_region
          _
        $region32: #{adaptive_depth_stacked_forward.1} parent=11 // pred_fallthru
          _
        // Predicated region
        $region33: #{adaptive_depth_stacked_forward.1} parent=11 // pred_check
          %p230 = pneg %p166
        $region34: #{adaptive_depth_stacked_forward.1} parent=11 // pred_check_branch
          %232 = sbr.rel (%p230) target = $region36
        $region35: #{adaptive_depth_stacked_forward.1} parent=11 // pred_region
          _
        $region36: #{adaptive_depth_stacked_forward.1} parent=11 // pred_fallthru
          _
      $region12: #{adaptive_depth_stacked_forward.1} parent=5 // pred_fallthru
        _
      %p233 = scmp.lt.s32.totalorder %s14, 2
      // Predicated region
      $region37: #{adaptive_depth_stacked_forward.1} parent=5 // pred_check
        %p234 = pneg %p233
      $region38: #{adaptive_depth_stacked_forward.1} parent=5 // pred_check_branch
        %236 = sbr.rel (%p234) target = $region40
      $region39: #{adaptive_depth_stacked_forward.1} parent=5 // pred_region
        // Predicated region
        $region41: #{adaptive_depth_stacked_forward.1} parent=39 // pred_check
          %p237 = pneg %p55
        $region42: #{adaptive_depth_stacked_forward.1} parent=39 // pred_check_branch
          %239 = sbr.rel (%p237) target = $region44
        $region43: #{adaptive_depth_stacked_forward.1} parent=39 // pred_region
          %p240 = scmp.lt.s32.totalorder %s14, 1
          %s241 = scalar_select %p240, %s14, 1
          %s242 = smul.addr %s241, 2
          %s243 = smul.addr %s242, 4
          %s244 = scalar_lea.vmem %s1, %s243
        $region44: #{adaptive_depth_stacked_forward.1} parent=39 // pred_fallthru
          _
      $region40: #{adaptive_depth_stacked_forward.1} parent=5 // pred_fallthru
        _
      %p245 = scmp.le.s32.totalorder 1, %s14
      %p246 = scmp.lt.s32.totalorder %s14, 3
      %p247 = pnand %p245, %p246
      %p248 = pneg %p247
      // Predicated region
      $region45: #{adaptive_depth_stacked_forward.1} parent=5 // pred_check
        _
      $region46: #{adaptive_depth_stacked_forward.1} parent=5 // pred_check_branch
        %250 = sbr.rel (%p247) target = $region48
      $region47: #{adaptive_depth_stacked_forward.1} parent=5 // pred_region
        %s251 = ssub.s32 %s14, 1
        // Predicated region
        $region49: #{adaptive_depth_stacked_forward.1} parent=47 // pred_check
          %p252 = pneg %p35
        $region50: #{adaptive_depth_stacked_forward.1} parent=47 // pred_check_branch
          %254 = sbr.rel (%p252) target = $region52
        $region51: #{adaptive_depth_stacked_forward.1} parent=47 // pred_region
          %255 = dma.done [#allocation5], 16
        $region52: #{adaptive_depth_stacked_forward.1} parent=47 // pred_fallthru
          _
        %256 = sfence
        %p257 = pneg %p35
        %p258 = pneg %p32
        %p259 = scmp.lt.s32.totalorder %s19, 1
        %s260 = scalar_select %p259, %s19, 1
        %s261 = smul.addr %s260, 2
        %s262 = smul.addr %s261, 4
        %s263 = scalar_lea.vmem %s1, %s262
        %p264 = pneg %p61
        %p265 = pneg %p58
        %p266 = pneg %p82
        %p267 = pneg %p79
        %p268 = pneg %p103
        %p269 = pneg %p100
        %p270 = pneg %p124
        %p271 = pneg %p121
        %p272 = pneg %p145
        %p273 = pneg %p142
        %p274 = pneg %p166
        %p275 = pneg %p163
        %p276 = pneg %p192
        %p277 = pneg %p189
        %p278 = scmp.lt.s32.totalorder %s19, 1
        %s279 = scalar_select %p278, %s19, 1
        %s280 = smul.addr %s279, 2
        %s281 = smul.addr %s280, 8
        %s282 = scalar_lea.vmem %s7, %s281
        %p283 = scmp.lt.s32.totalorder %s19, 1
        %s284 = scalar_select %p283, %s19, 1
        %s285 = smul.addr %s284, 2
        %s286 = smul.addr %s285, 4
        %s287 = scalar_lea.vmem %s1, %s286
        %p288 = scmp.lt.s32.totalorder %s19, 1
        %s289 = scalar_select %p288, %s19, 1
        %s290 = smul.addr %s289, 2
        %s291 = smul.addr %s290, 8
        %s292 = scalar_lea.vmem %s7, %s291
        %vm293 = vcmask 146432
        %294 = vst.msk [vmem:[#allocation2] sm:$0xff] %vm293, 0.0
        %295 = vst.msk [vmem:[#allocation2 + $0x8] sm:$0xff] %vm293, 0.0
        %vm296 = vcmask 140288
        %297 = vst.msk [vmem:[#allocation2 + $0x10] sm:$0x3] %vm296, 0.0
        %298 = vst.msk [vmem:[#allocation2 + $0x18] sm:$0xff] %vm293, 0.0
        %299 = vst.msk [vmem:[#allocation2 + $0x20] sm:$0xff] %vm293, 0.0
        %300 = vst.msk [vmem:[#allocation2 + $0x28] sm:$0x3] %vm296, 0.0
        %301 = vst.msk [vmem:[#allocation2 + $0x30] sm:$0xff] %vm293, 0.0
        %302 = vst.msk [vmem:[#allocation2 + $0x38] sm:$0xff] %vm293, 0.0
        %303 = vst.msk [vmem:[#allocation2 + $0x40] sm:$0x3] %vm296, 0.0
        %304 = vst.msk [vmem:[#allocation2 + $0x48] sm:$0xff] %vm293, 0.0
        %305 = vst.msk [vmem:[#allocation2 + $0x50] sm:$0xff] %vm293, 0.0
        %306 = vst.msk [vmem:[#allocation2 + $0x58] sm:$0x3] %vm296, 0.0
        %307 = vst.msk [vmem:[#allocation3] sm:$0xff] %vm293, 0.0
        %308 = vst.msk [vmem:[#allocation3 + $0x8] sm:$0xff] %vm293, 0.0
        %309 = vst.msk [vmem:[#allocation3 + $0x10] sm:$0x3] %vm296, 0.0
        %310 = vst.msk [vmem:[#allocation3 + $0x18] sm:$0xff] %vm293, 0.0
        %311 = vst.msk [vmem:[#allocation3 + $0x20] sm:$0xff] %vm293, 0.0
        %312 = vst.msk [vmem:[#allocation3 + $0x28] sm:$0x3] %vm296, 0.0
        %313 = vst.msk [vmem:[#allocation3 + $0x30] sm:$0xff] %vm293, 0.0
        %314 = vst.msk [vmem:[#allocation3 + $0x38] sm:$0xff] %vm293, 0.0
        %315 = vst.msk [vmem:[#allocation3 + $0x40] sm:$0x3] %vm296, 0.0
        %316 = vst.msk [vmem:[#allocation3 + $0x48] sm:$0xff] %vm293, 0.0
        %317 = vst.msk [vmem:[#allocation3 + $0x50] sm:$0xff] %vm293, 0.0
        %318 = vst.msk [vmem:[#allocation3 + $0x58] sm:$0x3] %vm296, 0.0
        %319 = vst.msk [vmem:[#allocation3 + $0x60] sm:$0xff] %vm293, 0.0
        %320 = vst.msk [vmem:[#allocation3 + $0x68] sm:$0xff] %vm293, 0.0
        %321 = vst.msk [vmem:[#allocation3 + $0x70] sm:$0x3] %vm296, 0.0
        %322 = vst.msk [vmem:[#allocation3 + $0x78] sm:$0xff] %vm293, 0.0
        %323 = vst.msk [vmem:[#allocation3 + $0x80] sm:$0xff] %vm293, 0.0
        %324 = vst.msk [vmem:[#allocation3 + $0x88] sm:$0x3] %vm296, 0.0
        %325 = vst.msk [vmem:[#allocation3 + $0x90] sm:$0xff] %vm293, 0.0
        %326 = vst.msk [vmem:[#allocation3 + $0x98] sm:$0xff] %vm293, 0.0
        %327 = vst.msk [vmem:[#allocation3 + $0xa0] sm:$0x3] %vm296, 0.0
        %328 = vst.msk [vmem:[#allocation3 + $0xa8] sm:$0xff] %vm293, 0.0
        %329 = vst.msk [vmem:[#allocation3 + $0xb0] sm:$0xff] %vm293, 0.0
        %330 = vst.msk [vmem:[#allocation3 + $0xb8] sm:$0x3] %vm296, 0.0
        %v331 = vld [vmem:[%s287] sm:$0xff]
        %v333 = vrot.slane %v331, 4
        %335 = vrot.lane.b32.xlu0 %v331, 112
        %v336 = vpop.permute.xlu0 %335
        %v337 = vrot.slane %v336, 4
        %339 = vrot.lane.b32.xlu0 %v331, 96
        %v340 = vpop.permute.xlu0 %339
        %v341 = vrot.slane %v340, 4
        %343 = vrot.lane.b32.xlu0 %v331, 80
        %v344 = vpop.permute.xlu0 %343
        %v345 = vrot.slane %v344, 4
        %347 = vrot.lane.b32.xlu0 %v331, 64
        %v348 = vpop.permute.xlu0 %347
        %v349 = vrot.slane %v348, 4
        %351 = vrot.lane.b32.xlu0 %v331, 48
        %v352 = vpop.permute.xlu0 %351
        %v353 = vrot.slane %v352, 4
        %355 = vrot.lane.b32.xlu0 %v331, 32
        %v356 = vpop.permute.xlu0 %355
        %v357 = vrot.slane %v356, 4
        %359 = vrot.lane.b32.xlu0 %v331, 16
        %v360 = vpop.permute.xlu0 %359
        %v361 = vrot.slane %v360, 4
        %v370 = vcombine.low %v331, %v340
        %v372 = vunpack.c.l.s4 1983009808
        %v373 = vunpack.c.0.s8 %v372
        %v374 = vlaneseq
        %v375 = vshrl.u32 %v374, 7
        %v376 = vsub.s32 %v373, %v375
        %v377 = vrot.slane %v370, %v376
        %v378 = vcombine.low %v336, %v344
        %v380 = vunpack.c.l.s4 1983009808
        %v381 = vunpack.c.0.s8 %v380
        %v382 = vlaneseq
        %v383 = vshrl.u32 %v382, 7
        %v384 = vsub.s32 %v381, %v383
        %v385 = vrot.slane %v378, %v384
        %v386 = vcombine.low %v377, %v385
        %v387 = vcombine.high %v377, %v385
        %v389 = vunpack.c.l.s4 1934713408
        %v390 = vunpack.c.0.s8 %v389
        %v391 = vlaneseq
        %v392 = vshrl.u32 %v391, 7
        %v393 = vsub.s32 %v390, %v392
        %v394 = vrot.slane %v386, %v393
        %v396 = vunpack.c.l.s4 1934713408
        %v397 = vunpack.c.0.s8 %v396
        %v398 = vlaneseq
        %v399 = vshrl.u32 %v398, 7
        %v400 = vsub.s32 %v397, %v399
        %v401 = vrot.slane %v387, %v400
        %v402 = vcombine.high %v394, 0.0
        %v403 = vcombine.high %v401, 0.0
        %v404 = vcombine.low %v348, %v356
        %v406 = vunpack.c.l.s4 1983009808
        %v407 = vunpack.c.0.s8 %v406
        %v408 = vlaneseq
        %v409 = vshrl.u32 %v408, 7
        %v410 = vsub.s32 %v407, %v409
        %v411 = vrot.slane %v404, %v410
        %v412 = vcombine.low %v352, %v360
        %v414 = vunpack.c.l.s4 1983009808
        %v415 = vunpack.c.0.s8 %v414
        %v416 = vlaneseq
        %v417 = vshrl.u32 %v416, 7
        %v418 = vsub.s32 %v415, %v417
        %v419 = vrot.slane %v412, %v418
        %v420 = vcombine.low %v411, %v419
        %v421 = vcombine.high %v411, %v419
        %v423 = vunpack.c.l.s4 1934713408
        %v424 = vunpack.c.0.s8 %v423
        %v425 = vlaneseq
        %v426 = vshrl.u32 %v425, 7
        %v427 = vsub.s32 %v424, %v426
        %v428 = vrot.slane %v420, %v427
        %v430 = vunpack.c.l.s4 1934713408
        %v431 = vunpack.c.0.s8 %v430
        %v432 = vlaneseq
        %v433 = vshrl.u32 %v432, 7
        %v434 = vsub.s32 %v431, %v433
        %v435 = vrot.slane %v421, %v434
        %v436 = vcombine.high %v428, 0.0
        %v437 = vcombine.high %v435, 0.0
        %v438 = vcombine.low %v333, %v341
        %v440 = vunpack.c.l.s4 1983009808
        %v441 = vunpack.c.0.s8 %v440
        %v442 = vlaneseq
        %v443 = vshrl.u32 %v442, 7
        %v444 = vsub.s32 %v441, %v443
        %v445 = vrot.slane %v438, %v444
        %v446 = vcombine.low %v337, %v345
        %v448 = vunpack.c.l.s4 1983009808
        %v449 = vunpack.c.0.s8 %v448
        %v450 = vlaneseq
        %v451 = vshrl.u32 %v450, 7
        %v452 = vsub.s32 %v449, %v451
        %v453 = vrot.slane %v446, %v452
        %v454 = vcombine.low %v445, %v453
        %v455 = vcombine.high %v445, %v453
        %v457 = vunpack.c.l.s4 1934713408
        %v458 = vunpack.c.0.s8 %v457
        %v459 = vlaneseq
        %v460 = vshrl.u32 %v459, 7
        %v461 = vsub.s32 %v458, %v460
        %v462 = vrot.slane %v454, %v461
        %v464 = vunpack.c.l.s4 1934713408
        %v465 = vunpack.c.0.s8 %v464
        %v466 = vlaneseq
        %v467 = vshrl.u32 %v466, 7
        %v468 = vsub.s32 %v465, %v467
        %v469 = vrot.slane %v455, %v468
        %v470 = vcombine.high %v462, 0.0
        %v471 = vcombine.high %v469, 0.0
        %v472 = vcombine.low %v349, %v357
        %v474 = vunpack.c.l.s4 1983009808
        %v475 = vunpack.c.0.s8 %v474
        %v476 = vlaneseq
        %v477 = vshrl.u32 %v476, 7
        %v478 = vsub.s32 %v475, %v477
        %v479 = vrot.slane %v472, %v478
        %v480 = vcombine.low %v353, %v361
        %v482 = vunpack.c.l.s4 1983009808
        %v483 = vunpack.c.0.s8 %v482
        %v484 = vlaneseq
        %v485 = vshrl.u32 %v484, 7
        %v486 = vsub.s32 %v483, %v485
        %v487 = vrot.slane %v480, %v486
        %v488 = vcombine.low %v479, %v487
        %v489 = vcombine.high %v479, %v487
        %v491 = vunpack.c.l.s4 1934713408
        %v492 = vunpack.c.0.s8 %v491
        %v493 = vlaneseq
        %v494 = vshrl.u32 %v493, 7
        %v495 = vsub.s32 %v492, %v494
        %v496 = vrot.slane %v488, %v495
        %v498 = vunpack.c.l.s4 1934713408
        %v499 = vunpack.c.0.s8 %v498
        %v500 = vlaneseq
        %v501 = vshrl.u32 %v500, 7
        %v502 = vsub.s32 %v499, %v501
        %v503 = vrot.slane %v489, %v502
        %v504 = vcombine.high %v496, 0.0
        %v505 = vcombine.high %v503, 0.0
        %v522 = vcombine.low %v394, %v428
        %v523 = vcombine.low %v462, %v496
        %v524 = vcombine.low %v402, %v436
        %v525 = vcombine.low %v470, %v504
        %v526 = vcombine.low %v401, %v435
        %v527 = vcombine.low %v469, %v503
        %v528 = vcombine.low %v403, %v437
        %v529 = vcombine.low %v471, %v505
        %530 = vrot.lane.b32.xlu0 %v522, 1
        %v531 = vpop.permute.xlu0 %530
        %532 = vrot.lane.b32.xlu0 %v523, 1
        %v533 = vpop.permute.xlu0 %532
        %534 = vrot.lane.b32.xlu0 %v524, 1
        %v535 = vpop.permute.xlu0 %534
        %536 = vrot.lane.b32.xlu0 %v525, 1
        %v537 = vpop.permute.xlu0 %536
        %538 = vrot.lane.b32.xlu0 %v526, 1
        %v539 = vpop.permute.xlu0 %538
        %540 = vrot.lane.b32.xlu0 %v527, 1
        %v541 = vpop.permute.xlu0 %540
        %542 = vrot.lane.b32.xlu0 %v528, 1
        %v543 = vpop.permute.xlu0 %542
        %544 = vrot.lane.b32.xlu0 %v529, 1
        %v545 = vpop.permute.xlu0 %544
        %vm554 = vcmask 138248
        %555 = vst.msk [vmem:[#allocation2 + $0x1] sm:$0xff] %vm554, %v531
        %556 = vst.msk [vmem:[#allocation2 + $0x9] sm:$0xff] %vm554, %v533
        %557 = vst.msk [vmem:[#allocation2 + $0x19] sm:$0xff] %vm554, %v535
        %558 = vst.msk [vmem:[#allocation2 + $0x21] sm:$0xff] %vm554, %v537
        %559 = vst.msk [vmem:[#allocation2 + $0x31] sm:$0xff] %vm554, %v539
        %560 = vst.msk [vmem:[#allocation2 + $0x39] sm:$0xff] %vm554, %v541
        %561 = vst.msk [vmem:[#allocation2 + $0x49] sm:$0xff] %vm554, %v543
        %562 = vst.msk [vmem:[#allocation2 + $0x51] sm:$0xff] %vm554, %v545
        %v563 = vld [vmem:[%s2] sm:$0xff]
        %v564 = vld [vmem:[%s4] sm:$0xff]
        %v565 = vld [vmem:[%s5] sm:$0xff]
        %v566 = vld [vmem:[%s6] sm:$0xff]
        %v567 = vld [vmem:[#allocation2] sm:$0xff]
        %v568 = vld [vmem:[#allocation2 + $0x8] sm:$0xff]
        %v569 = vld [vmem:[#allocation2 + $0x18] sm:$0xff]
        %v570 = vld [vmem:[#allocation2 + $0x20] sm:$0xff]
        %v571 = vld [vmem:[#allocation2 + $0x30] sm:$0xff]
        %v572 = vld [vmem:[#allocation2 + $0x38] sm:$0xff]
        %v573 = vld [vmem:[#allocation2 + $0x48] sm:$0xff]
        %v574 = vld [vmem:[#allocation2 + $0x50] sm:$0xff]
        %v575 = vcombine.low %v567, %v571
        %v576 = vcombine.high %v567, %v571
        %v578 = vunpack.c.l.s4 1983009808
        %v579 = vunpack.c.0.s8 %v578
        %v580 = vlaneseq
        %v581 = vshrl.u32 %v580, 7
        %v582 = vsub.s32 %v579, %v581
        %v583 = vrot.slane %v575, %v582
        %v585 = vunpack.c.l.s4 1983009808
        %v586 = vunpack.c.0.s8 %v585
        %v587 = vlaneseq
        %v588 = vshrl.u32 %v587, 7
        %v589 = vsub.s32 %v586, %v588
        %v590 = vrot.slane %v576, %v589
        %v591 = vcombine.low %v569, %v573
        %v592 = vcombine.high %v569, %v573
        %v594 = vunpack.c.l.s4 1983009808
        %v595 = vunpack.c.0.s8 %v594
        %v596 = vlaneseq
        %v597 = vshrl.u32 %v596, 7
        %v598 = vsub.s32 %v595, %v597
        %v599 = vrot.slane %v591, %v598
        %v601 = vunpack.c.l.s4 1983009808
        %v602 = vunpack.c.0.s8 %v601
        %v603 = vlaneseq
        %v604 = vshrl.u32 %v603, 7
        %v605 = vsub.s32 %v602, %v604
        %v606 = vrot.slane %v592, %v605
        %v607 = vcombine.low %v583, %v599
        %v608 = vcombine.high %v583, %v599
        %v610 = vunpack.c.l.s4 1934713408
        %v611 = vunpack.c.0.s8 %v610
        %v612 = vlaneseq
        %v613 = vshrl.u32 %v612, 7
        %v614 = vsub.s32 %v611, %v613
        %v615 = vrot.slane %v607, %v614
        %v617 = vunpack.c.l.s4 1934713408
        %v618 = vunpack.c.0.s8 %v617
        %v619 = vlaneseq
        %v620 = vshrl.u32 %v619, 7
        %v621 = vsub.s32 %v618, %v620
        %v622 = vrot.slane %v608, %v621
        %v623 = vcombine.low %v590, %v606
        %v624 = vcombine.high %v590, %v606
        %v626 = vunpack.c.l.s4 1934713408
        %v627 = vunpack.c.0.s8 %v626
        %v628 = vlaneseq
        %v629 = vshrl.u32 %v628, 7
        %v630 = vsub.s32 %v627, %v629
        %v631 = vrot.slane %v623, %v630
        %v633 = vunpack.c.l.s4 1934713408
        %v634 = vunpack.c.0.s8 %v633
        %v635 = vlaneseq
        %v636 = vshrl.u32 %v635, 7
        %v637 = vsub.s32 %v634, %v636
        %v638 = vrot.slane %v624, %v637
        %v639 = vcombine.high %v615, 0.0
        %v640 = vcombine.high %v622, 0.0
        %v641 = vcombine.high %v631, 0.0
        %v642 = vcombine.high %v638, 0.0
        %v643 = vcombine.low %v568, %v572
        %v644 = vcombine.high %v568, %v572
        %v646 = vunpack.c.l.s4 1983009808
        %v647 = vunpack.c.0.s8 %v646
        %v648 = vlaneseq
        %v649 = vshrl.u32 %v648, 7
        %v650 = vsub.s32 %v647, %v649
        %v651 = vrot.slane %v643, %v650
        %v653 = vunpack.c.l.s4 1983009808
        %v654 = vunpack.c.0.s8 %v653
        %v655 = vlaneseq
        %v656 = vshrl.u32 %v655, 7
        %v657 = vsub.s32 %v654, %v656
        %v658 = vrot.slane %v644, %v657
        %v659 = vcombine.low %v570, %v574
        %v660 = vcombine.high %v570, %v574
        %v662 = vunpack.c.l.s4 1983009808
        %v663 = vunpack.c.0.s8 %v662
        %v664 = vlaneseq
        %v665 = vshrl.u32 %v664, 7
        %v666 = vsub.s32 %v663, %v665
        %v667 = vrot.slane %v659, %v666
        %v669 = vunpack.c.l.s4 1983009808
        %v670 = vunpack.c.0.s8 %v669
        %v671 = vlaneseq
        %v672 = vshrl.u32 %v671, 7
        %v673 = vsub.s32 %v670, %v672
        %v674 = vrot.slane %v660, %v673
        %v675 = vcombine.low %v651, %v667
        %v676 = vcombine.high %v651, %v667
        %v678 = vunpack.c.l.s4 1934713408
        %v679 = vunpack.c.0.s8 %v678
        %v680 = vlaneseq
        %v681 = vshrl.u32 %v680, 7
        %v682 = vsub.s32 %v679, %v681
        %v683 = vrot.slane %v675, %v682
        %v685 = vunpack.c.l.s4 1934713408
        %v686 = vunpack.c.0.s8 %v685
        %v687 = vlaneseq
        %v688 = vshrl.u32 %v687, 7
        %v689 = vsub.s32 %v686, %v688
        %v690 = vrot.slane %v676, %v689
        %v691 = vcombine.low %v658, %v674
        %v692 = vcombine.high %v658, %v674
        %v694 = vunpack.c.l.s4 1934713408
        %v695 = vunpack.c.0.s8 %v694
        %v696 = vlaneseq
        %v697 = vshrl.u32 %v696, 7
        %v698 = vsub.s32 %v695, %v697
        %v699 = vrot.slane %v691, %v698
        %v701 = vunpack.c.l.s4 1934713408
        %v702 = vunpack.c.0.s8 %v701
        %v703 = vlaneseq
        %v704 = vshrl.u32 %v703, 7
        %v705 = vsub.s32 %v702, %v704
        %v706 = vrot.slane %v692, %v705
        %v707 = vcombine.high %v683, 0.0
        %v708 = vcombine.high %v690, 0.0
        %v709 = vcombine.high %v699, 0.0
        %v710 = vcombine.high %v706, 0.0
        %712 = vrot.lane.b32.xlu0 %v639, 16
        %v713 = vpop.permute.xlu0 %712
        %716 = vrot.lane.b32.xlu0 %v622, 32
        %v717 = vpop.permute.xlu0 %716
        %720 = vrot.lane.b32.xlu0 %v640, 48
        %v721 = vpop.permute.xlu0 %720
        %724 = vrot.lane.b32.xlu0 %v631, 64
        %v725 = vpop.permute.xlu0 %724
        %728 = vrot.lane.b32.xlu0 %v641, 80
        %v729 = vpop.permute.xlu0 %728
        %732 = vrot.lane.b32.xlu0 %v638, 96
        %v733 = vpop.permute.xlu0 %732
        %736 = vrot.lane.b32.xlu0 %v642, 112
        %v737 = vpop.permute.xlu0 %736
        %740 = vrot.lane.b32.xlu0 %v707, 16
        %v741 = vpop.permute.xlu0 %740
        %744 = vrot.lane.b32.xlu0 %v690, 32
        %v745 = vpop.permute.xlu0 %744
        %748 = vrot.lane.b32.xlu0 %v708, 48
        %v749 = vpop.permute.xlu0 %748
        %752 = vrot.lane.b32.xlu0 %v699, 64
        %v753 = vpop.permute.xlu0 %752
        %756 = vrot.lane.b32.xlu0 %v709, 80
        %v757 = vpop.permute.xlu0 %756
        %760 = vrot.lane.b32.xlu0 %v706, 96
        %v761 = vpop.permute.xlu0 %760
        %764 = vrot.lane.b32.xlu0 %v710, 112
        %v765 = vpop.permute.xlu0 %764
        %vm767 = vcmask 130048
        %v768 = vsel %vm767, %v615, %v713
        %vm769 = vcmask 261120
        %v770 = vsel %vm769, %v768, %v717
        %vm771 = vcmask 392192
        %v772 = vsel %vm771, %v770, %v721
        %vm773 = vcmask 523264
        %v774 = vsel %vm773, %v772, %v725
        %vm775 = vcmask 654336
        %v776 = vsel %vm775, %v774, %v729
        %vm777 = vcmask 785408
        %v778 = vsel %vm777, %v776, %v733
        %vm779 = vcmask 916480
        %v780 = vsel %vm779, %v778, %v737
        %v781 = vsel %vm767, %v683, %v741
        %v782 = vsel %vm769, %v781, %v745
        %v783 = vsel %vm771, %v782, %v749
        %v784 = vsel %vm773, %v783, %v753
        %v785 = vsel %vm775, %v784, %v757
        %v786 = vsel %vm777, %v785, %v761
        %v787 = vsel %vm779, %v786, %v765
        %796 = vrot.lane.b32.xlu0 %v567, 127
        %v797 = vpop.permute.xlu0 %796
        %798 = vrot.lane.b32.xlu0 %v568, 127
        %v799 = vpop.permute.xlu0 %798
        %800 = vrot.lane.b32.xlu0 %v569, 127
        %v801 = vpop.permute.xlu0 %800
        %802 = vrot.lane.b32.xlu0 %v570, 127
        %v803 = vpop.permute.xlu0 %802
        %804 = vrot.lane.b32.xlu0 %v571, 127
        %v805 = vpop.permute.xlu0 %804
        %806 = vrot.lane.b32.xlu0 %v572, 127
        %v807 = vpop.permute.xlu0 %806
        %808 = vrot.lane.b32.xlu0 %v573, 127
        %v809 = vpop.permute.xlu0 %808
        %810 = vrot.lane.b32.xlu0 %v574, 127
        %v811 = vpop.permute.xlu0 %810
        %v820 = vcombine.low %v797, %v805
        %v821 = vcombine.high %v797, %v805
        %v823 = vunpack.c.l.s4 1983009808
        %v824 = vunpack.c.0.s8 %v823
        %v825 = vlaneseq
        %v826 = vshrl.u32 %v825, 7
        %v827 = vsub.s32 %v824, %v826
        %v828 = vrot.slane %v820, %v827
        %v830 = vunpack.c.l.s4 1983009808
        %v831 = vunpack.c.0.s8 %v830
        %v832 = vlaneseq
        %v833 = vshrl.u32 %v832, 7
        %v834 = vsub.s32 %v831, %v833
        %v835 = vrot.slane %v821, %v834
        %v836 = vcombine.low %v801, %v809
        %v837 = vcombine.high %v801, %v809
        %v839 = vunpack.c.l.s4 1983009808
        %v840 = vunpack.c.0.s8 %v839
        %v841 = vlaneseq
        %v842 = vshrl.u32 %v841, 7
        %v843 = vsub.s32 %v840, %v842
        %v844 = vrot.slane %v836, %v843
        %v846 = vunpack.c.l.s4 1983009808
        %v847 = vunpack.c.0.s8 %v846
        %v848 = vlaneseq
        %v849 = vshrl.u32 %v848, 7
        %v850 = vsub.s32 %v847, %v849
        %v851 = vrot.slane %v837, %v850
        %v852 = vcombine.low %v828, %v844
        %v853 = vcombine.high %v828, %v844
        %v855 = vunpack.c.l.s4 1934713408
        %v856 = vunpack.c.0.s8 %v855
        %v857 = vlaneseq
        %v858 = vshrl.u32 %v857, 7
        %v859 = vsub.s32 %v856, %v858
        %v860 = vrot.slane %v852, %v859
        %v862 = vunpack.c.l.s4 1934713408
        %v863 = vunpack.c.0.s8 %v862
        %v864 = vlaneseq
        %v865 = vshrl.u32 %v864, 7
        %v866 = vsub.s32 %v863, %v865
        %v867 = vrot.slane %v853, %v866
        %v868 = vcombine.low %v835, %v851
        %v869 = vcombine.high %v835, %v851
        %v871 = vunpack.c.l.s4 1934713408
        %v872 = vunpack.c.0.s8 %v871
        %v873 = vlaneseq
        %v874 = vshrl.u32 %v873, 7
        %v875 = vsub.s32 %v872, %v874
        %v876 = vrot.slane %v868, %v875
        %v878 = vunpack.c.l.s4 1934713408
        %v879 = vunpack.c.0.s8 %v878
        %v880 = vlaneseq
        %v881 = vshrl.u32 %v880, 7
        %v882 = vsub.s32 %v879, %v881
        %v883 = vrot.slane %v869, %v882
        %v884 = vcombine.high %v860, 0.0
        %v885 = vcombine.high %v867, 0.0
        %v886 = vcombine.high %v876, 0.0
        %v887 = vcombine.high %v883, 0.0
        %v888 = vcombine.low %v799, %v807
        %v889 = vcombine.high %v799, %v807
        %v891 = vunpack.c.l.s4 1983009808
        %v892 = vunpack.c.0.s8 %v891
        %v893 = vlaneseq
        %v894 = vshrl.u32 %v893, 7
        %v895 = vsub.s32 %v892, %v894
        %v896 = vrot.slane %v888, %v895
        %v898 = vunpack.c.l.s4 1983009808
        %v899 = vunpack.c.0.s8 %v898
        %v900 = vlaneseq
        %v901 = vshrl.u32 %v900, 7
        %v902 = vsub.s32 %v899, %v901
        %v903 = vrot.slane %v889, %v902
        %v904 = vcombine.low %v803, %v811
        %v905 = vcombine.high %v803, %v811
        %v907 = vunpack.c.l.s4 1983009808
        %v908 = vunpack.c.0.s8 %v907
        %v909 = vlaneseq
        %v910 = vshrl.u32 %v909, 7
        %v911 = vsub.s32 %v908, %v910
        %v912 = vrot.slane %v904, %v911
        %v914 = vunpack.c.l.s4 1983009808
        %v915 = vunpack.c.0.s8 %v914
        %v916 = vlaneseq
        %v917 = vshrl.u32 %v916, 7
        %v918 = vsub.s32 %v915, %v917
        %v919 = vrot.slane %v905, %v918
        %v920 = vcombine.low %v896, %v912
        %v921 = vcombine.high %v896, %v912
        %v923 = vunpack.c.l.s4 1934713408
        %v924 = vunpack.c.0.s8 %v923
        %v925 = vlaneseq
        %v926 = vshrl.u32 %v925, 7
        %v927 = vsub.s32 %v924, %v926
        %v928 = vrot.slane %v920, %v927
        %v930 = vunpack.c.l.s4 1934713408
        %v931 = vunpack.c.0.s8 %v930
        %v932 = vlaneseq
        %v933 = vshrl.u32 %v932, 7
        %v934 = vsub.s32 %v931, %v933
        %v935 = vrot.slane %v921, %v934
        %v936 = vcombine.low %v903, %v919
        %v937 = vcombine.high %v903, %v919
        %v939 = vunpack.c.l.s4 1934713408
        %v940 = vunpack.c.0.s8 %v939
        %v941 = vlaneseq
        %v942 = vshrl.u32 %v941, 7
        %v943 = vsub.s32 %v940, %v942
        %v944 = vrot.slane %v936, %v943
        %v946 = vunpack.c.l.s4 1934713408
        %v947 = vunpack.c.0.s8 %v946
        %v948 = vlaneseq
        %v949 = vshrl.u32 %v948, 7
        %v950 = vsub.s32 %v947, %v949
        %v951 = vrot.slane %v937, %v950
        %v952 = vcombine.high %v928, 0.0
        %v953 = vcombine.high %v935, 0.0
        %v954 = vcombine.high %v944, 0.0
        %v955 = vcombine.high %v951, 0.0
        %957 = vrot.lane.b32.xlu0 %v884, 16
        %v958 = vpop.permute.xlu0 %957
        %961 = vrot.lane.b32.xlu0 %v867, 32
        %v962 = vpop.permute.xlu0 %961
        %965 = vrot.lane.b32.xlu0 %v885, 48
        %v966 = vpop.permute.xlu0 %965
        %969 = vrot.lane.b32.xlu0 %v876, 64
        %v970 = vpop.permute.xlu0 %969
        %973 = vrot.lane.b32.xlu0 %v886, 80
        %v974 = vpop.permute.xlu0 %973
        %977 = vrot.lane.b32.xlu0 %v883, 96
        %v978 = vpop.permute.xlu0 %977
        %981 = vrot.lane.b32.xlu0 %v887, 112
        %v982 = vpop.permute.xlu0 %981
        %985 = vrot.lane.b32.xlu0 %v952, 16
        %v986 = vpop.permute.xlu0 %985
        %989 = vrot.lane.b32.xlu0 %v935, 32
        %v990 = vpop.permute.xlu0 %989
        %993 = vrot.lane.b32.xlu0 %v953, 48
        %v994 = vpop.permute.xlu0 %993
        %997 = vrot.lane.b32.xlu0 %v944, 64
        %v998 = vpop.permute.xlu0 %997
        %1001 = vrot.lane.b32.xlu0 %v954, 80
        %v1002 = vpop.permute.xlu0 %1001
        %1005 = vrot.lane.b32.xlu0 %v951, 96
        %v1006 = vpop.permute.xlu0 %1005
        %1009 = vrot.lane.b32.xlu0 %v955, 112
        %v1010 = vpop.permute.xlu0 %1009
        %v1012 = vsel %vm767, %v860, %v958
        %v1013 = vsel %vm769, %v1012, %v962
        %v1014 = vsel %vm771, %v1013, %v966
        %v1015 = vsel %vm773, %v1014, %v970
        %v1016 = vsel %vm775, %v1015, %v974
        %v1017 = vsel %vm777, %v1016, %v978
        %v1018 = vsel %vm779, %v1017, %v982
        %v1019 = vsel %vm767, %v928, %v986
        %v1020 = vsel %vm769, %v1019, %v990
        %v1021 = vsel %vm771, %v1020, %v994
        %v1022 = vsel %vm773, %v1021, %v998
        %v1023 = vsel %vm775, %v1022, %v1002
        %v1024 = vsel %vm777, %v1023, %v1006
        %v1025 = vsel %vm779, %v1024, %v1010
        %1026 = vrot.lane.b32.xlu0 %v567, 126
        %v1027 = vpop.permute.xlu0 %1026
        %1028 = vrot.lane.b32.xlu0 %v568, 126
        %v1029 = vpop.permute.xlu0 %1028
        %1030 = vrot.lane.b32.xlu0 %v569, 126
        %v1031 = vpop.permute.xlu0 %1030
        %1032 = vrot.lane.b32.xlu0 %v570, 126
        %v1033 = vpop.permute.xlu0 %1032
        %1034 = vrot.lane.b32.xlu0 %v571, 126
        %v1035 = vpop.permute.xlu0 %1034
        %1036 = vrot.lane.b32.xlu0 %v572, 126
        %v1037 = vpop.permute.xlu0 %1036
        %1038 = vrot.lane.b32.xlu0 %v573, 126
        %v1039 = vpop.permute.xlu0 %1038
        %1040 = vrot.lane.b32.xlu0 %v574, 126
        %v1041 = vpop.permute.xlu0 %1040
        %v1050 = vcombine.low %v1027, %v1035
        %v1051 = vcombine.high %v1027, %v1035
        %v1053 = vunpack.c.l.s4 1983009808
        %v1054 = vunpack.c.0.s8 %v1053
        %v1055 = vlaneseq
        %v1056 = vshrl.u32 %v1055, 7
        %v1057 = vsub.s32 %v1054, %v1056
        %v1058 = vrot.slane %v1050, %v1057
        %v1060 = vunpack.c.l.s4 1983009808
        %v1061 = vunpack.c.0.s8 %v1060
        %v1062 = vlaneseq
        %v1063 = vshrl.u32 %v1062, 7
        %v1064 = vsub.s32 %v1061, %v1063
        %v1065 = vrot.slane %v1051, %v1064
        %v1066 = vcombine.low %v1031, %v1039
        %v1067 = vcombine.high %v1031, %v1039
        %v1069 = vunpack.c.l.s4 1983009808
        %v1070 = vunpack.c.0.s8 %v1069
        %v1071 = vlaneseq
        %v1072 = vshrl.u32 %v1071, 7
        %v1073 = vsub.s32 %v1070, %v1072
        %v1074 = vrot.slane %v1066, %v1073
        %v1076 = vunpack.c.l.s4 1983009808
        %v1077 = vunpack.c.0.s8 %v1076
        %v1078 = vlaneseq
        %v1079 = vshrl.u32 %v1078, 7
        %v1080 = vsub.s32 %v1077, %v1079
        %v1081 = vrot.slane %v1067, %v1080
        %v1082 = vcombine.low %v1058, %v1074
        %v1083 = vcombine.high %v1058, %v1074
        %v1085 = vunpack.c.l.s4 1934713408
        %v1086 = vunpack.c.0.s8 %v1085
        %v1087 = vlaneseq
        %v1088 = vshrl.u32 %v1087, 7
        %v1089 = vsub.s32 %v1086, %v1088
        %v1090 = vrot.slane %v1082, %v1089
        %v1092 = vunpack.c.l.s4 1934713408
        %v1093 = vunpack.c.0.s8 %v1092
        %v1094 = vlaneseq
        %v1095 = vshrl.u32 %v1094, 7
        %v1096 = vsub.s32 %v1093, %v1095
        %v1097 = vrot.slane %v1083, %v1096
        %v1098 = vcombine.low %v1065, %v1081
        %v1099 = vcombine.high %v1065, %v1081
        %v1101 = vunpack.c.l.s4 1934713408
        %v1102 = vunpack.c.0.s8 %v1101
        %v1103 = vlaneseq
        %v1104 = vshrl.u32 %v1103, 7
        %v1105 = vsub.s32 %v1102, %v1104
        %v1106 = vrot.slane %v1098, %v1105
        %v1108 = vunpack.c.l.s4 1934713408
        %v1109 = vunpack.c.0.s8 %v1108
        %v1110 = vlaneseq
        %v1111 = vshrl.u32 %v1110, 7
        %v1112 = vsub.s32 %v1109, %v1111
        %v1113 = vrot.slane %v1099, %v1112
        %v1114 = vcombine.high %v1090, 0.0
        %v1115 = vcombine.high %v1097, 0.0
        %v1116 = vcombine.high %v1106, 0.0
        %v1117 = vcombine.high %v1113, 0.0
        %v1118 = vcombine.low %v1029, %v1037
        %v1119 = vcombine.high %v1029, %v1037
        %v1121 = vunpack.c.l.s4 1983009808
        %v1122 = vunpack.c.0.s8 %v1121
        %v1123 = vlaneseq
        %v1124 = vshrl.u32 %v1123, 7
        %v1125 = vsub.s32 %v1122, %v1124
        %v1126 = vrot.slane %v1118, %v1125
        %v1128 = vunpack.c.l.s4 1983009808
        %v1129 = vunpack.c.0.s8 %v1128
        %v1130 = vlaneseq
        %v1131 = vshrl.u32 %v1130, 7
        %v1132 = vsub.s32 %v1129, %v1131
        %v1133 = vrot.slane %v1119, %v1132
        %v1134 = vcombine.low %v1033, %v1041
        %v1135 = vcombine.high %v1033, %v1041
        %v1137 = vunpack.c.l.s4 1983009808
        %v1138 = vunpack.c.0.s8 %v1137
        %v1139 = vlaneseq
        %v1140 = vshrl.u32 %v1139, 7
        %v1141 = vsub.s32 %v1138, %v1140
        %v1142 = vrot.slane %v1134, %v1141
        %v1144 = vunpack.c.l.s4 1983009808
        %v1145 = vunpack.c.0.s8 %v1144
        %v1146 = vlaneseq
        %v1147 = vshrl.u32 %v1146, 7
        %v1148 = vsub.s32 %v1145, %v1147
        %v1149 = vrot.slane %v1135, %v1148
        %v1150 = vcombine.low %v1126, %v1142
        %v1151 = vcombine.high %v1126, %v1142
        %v1153 = vunpack.c.l.s4 1934713408
        %v1154 = vunpack.c.0.s8 %v1153
        %v1155 = vlaneseq
        %v1156 = vshrl.u32 %v1155, 7
        %v1157 = vsub.s32 %v1154, %v1156
        %v1158 = vrot.slane %v1150, %v1157
        %v1160 = vunpack.c.l.s4 1934713408
        %v1161 = vunpack.c.0.s8 %v1160
        %v1162 = vlaneseq
        %v1163 = vshrl.u32 %v1162, 7
        %v1164 = vsub.s32 %v1161, %v1163
        %v1165 = vrot.slane %v1151, %v1164
        %v1166 = vcombine.low %v1133, %v1149
        %v1167 = vcombine.high %v1133, %v1149
        %v1169 = vunpack.c.l.s4 1934713408
        %v1170 = vunpack.c.0.s8 %v1169
        %v1171 = vlaneseq
        %v1172 = vshrl.u32 %v1171, 7
        %v1173 = vsub.s32 %v1170, %v1172
        %v1174 = vrot.slane %v1166, %v1173
        %v1176 = vunpack.c.l.s4 1934713408
        %v1177 = vunpack.c.0.s8 %v1176
        %v1178 = vlaneseq
        %v1179 = vshrl.u32 %v1178, 7
        %v1180 = vsub.s32 %v1177, %v1179
        %v1181 = vrot.slane %v1167, %v1180
        %v1182 = vcombine.high %v1158, 0.0
        %v1183 = vcombine.high %v1165, 0.0
        %v1184 = vcombine.high %v1174, 0.0
        %v1185 = vcombine.high %v1181, 0.0
        %1187 = vrot.lane.b32.xlu0 %v1114, 16
        %v1188 = vpop.permute.xlu0 %1187
        %1191 = vrot.lane.b32.xlu0 %v1097, 32
        %v1192 = vpop.permute.xlu0 %1191
        %1195 = vrot.lane.b32.xlu0 %v1115, 48
        %v1196 = vpop.permute.xlu0 %1195
        %1199 = vrot.lane.b32.xlu0 %v1106, 64
        %v1200 = vpop.permute.xlu0 %1199
        %1203 = vrot.lane.b32.xlu0 %v1116, 80
        %v1204 = vpop.permute.xlu0 %1203
        %1207 = vrot.lane.b32.xlu0 %v1113, 96
        %v1208 = vpop.permute.xlu0 %1207
        %1211 = vrot.lane.b32.xlu0 %v1117, 112
        %v1212 = vpop.permute.xlu0 %1211
        %1215 = vrot.lane.b32.xlu0 %v1182, 16
        %v1216 = vpop.permute.xlu0 %1215
        %1219 = vrot.lane.b32.xlu0 %v1165, 32
        %v1220 = vpop.permute.xlu0 %1219
        %1223 = vrot.lane.b32.xlu0 %v1183, 48
        %v1224 = vpop.permute.xlu0 %1223
        %1227 = vrot.lane.b32.xlu0 %v1174, 64
        %v1228 = vpop.permute.xlu0 %1227
        %1231 = vrot.lane.b32.xlu0 %v1184, 80
        %v1232 = vpop.permute.xlu0 %1231
        %1235 = vrot.lane.b32.xlu0 %v1181, 96
        %v1236 = vpop.permute.xlu0 %1235
        %1239 = vrot.lane.b32.xlu0 %v1185, 112
        %v1240 = vpop.permute.xlu0 %1239
        %v1242 = vsel %vm767, %v1090, %v1188
        %v1243 = vsel %vm769, %v1242, %v1192
        %v1244 = vsel %vm771, %v1243, %v1196
        %v1245 = vsel %vm773, %v1244, %v1200
        %v1246 = vsel %vm775, %v1245, %v1204
        %v1247 = vsel %vm777, %v1246, %v1208
        %v1248 = vsel %vm779, %v1247, %v1212
        %v1249 = vsel %vm767, %v1158, %v1216
        %v1250 = vsel %vm769, %v1249, %v1220
        %v1251 = vsel %vm771, %v1250, %v1224
        %v1252 = vsel %vm773, %v1251, %v1228
        %v1253 = vsel %vm775, %v1252, %v1232
        %v1254 = vsel %vm777, %v1253, %v1236
        %v1255 = vsel %vm779, %v1254, %v1240
        %v1256 = vld [vmem:[#allocation2 + $0x1] sm:$0xff]
        %v1257 = vld [vmem:[#allocation2 + $0x9] sm:$0xff]
        %v1258 = vld [vmem:[#allocation2 + $0x19] sm:$0xff]
        %v1259 = vld [vmem:[#allocation2 + $0x21] sm:$0xff]
        %v1260 = vld [vmem:[#allocation2 + $0x31] sm:$0xff]
        %v1261 = vld [vmem:[#allocation2 + $0x39] sm:$0xff]
        %v1262 = vld [vmem:[#allocation2 + $0x49] sm:$0xff]
        %v1263 = vld [vmem:[#allocation2 + $0x51] sm:$0xff]
        %v1264 = vcombine.low %v1256, %v1260
        %v1265 = vcombine.high %v1256, %v1260
        %v1267 = vunpack.c.l.s4 1983009808
        %v1268 = vunpack.c.0.s8 %v1267
        %v1269 = vlaneseq
        %v1270 = vshrl.u32 %v1269, 7
        %v1271 = vsub.s32 %v1268, %v1270
        %v1272 = vrot.slane %v1264, %v1271
        %v1274 = vunpack.c.l.s4 1983009808
        %v1275 = vunpack.c.0.s8 %v1274
        %v1276 = vlaneseq
        %v1277 = vshrl.u32 %v1276, 7
        %v1278 = vsub.s32 %v1275, %v1277
        %v1279 = vrot.slane %v1265, %v1278
        %v1280 = vcombine.low %v1258, %v1262
        %v1281 = vcombine.high %v1258, %v1262
        %v1283 = vunpack.c.l.s4 1983009808
        %v1284 = vunpack.c.0.s8 %v1283
        %v1285 = vlaneseq
        %v1286 = vshrl.u32 %v1285, 7
        %v1287 = vsub.s32 %v1284, %v1286
        %v1288 = vrot.slane %v1280, %v1287
        %v1290 = vunpack.c.l.s4 1983009808
        %v1291 = vunpack.c.0.s8 %v1290
        %v1292 = vlaneseq
        %v1293 = vshrl.u32 %v1292, 7
        %v1294 = vsub.s32 %v1291, %v1293
        %v1295 = vrot.slane %v1281, %v1294
        %v1296 = vcombine.low %v1272, %v1288
        %v1297 = vcombine.high %v1272, %v1288
        %v1299 = vunpack.c.l.s4 1934713408
        %v1300 = vunpack.c.0.s8 %v1299
        %v1301 = vlaneseq
        %v1302 = vshrl.u32 %v1301, 7
        %v1303 = vsub.s32 %v1300, %v1302
        %v1304 = vrot.slane %v1296, %v1303
        %v1306 = vunpack.c.l.s4 1934713408
        %v1307 = vunpack.c.0.s8 %v1306
        %v1308 = vlaneseq
        %v1309 = vshrl.u32 %v1308, 7
        %v1310 = vsub.s32 %v1307, %v1309
        %v1311 = vrot.slane %v1297, %v1310
        %v1312 = vcombine.low %v1279, %v1295
        %v1313 = vcombine.high %v1279, %v1295
        %v1315 = vunpack.c.l.s4 1934713408
        %v1316 = vunpack.c.0.s8 %v1315
        %v1317 = vlaneseq
        %v1318 = vshrl.u32 %v1317, 7
        %v1319 = vsub.s32 %v1316, %v1318
        %v1320 = vrot.slane %v1312, %v1319
        %v1322 = vunpack.c.l.s4 1934713408
        %v1323 = vunpack.c.0.s8 %v1322
        %v1324 = vlaneseq
        %v1325 = vshrl.u32 %v1324, 7
        %v1326 = vsub.s32 %v1323, %v1325
        %v1327 = vrot.slane %v1313, %v1326
        %v1328 = vcombine.high %v1304, 0.0
        %v1329 = vcombine.high %v1311, 0.0
        %v1330 = vcombine.high %v1320, 0.0
        %v1331 = vcombine.high %v1327, 0.0
        %v1332 = vcombine.low %v1257, %v1261
        %v1333 = vcombine.high %v1257, %v1261
        %v1335 = vunpack.c.l.s4 1983009808
        %v1336 = vunpack.c.0.s8 %v1335
        %v1337 = vlaneseq
        %v1338 = vshrl.u32 %v1337, 7
        %v1339 = vsub.s32 %v1336, %v1338
        %v1340 = vrot.slane %v1332, %v1339
        %v1342 = vunpack.c.l.s4 1983009808
        %v1343 = vunpack.c.0.s8 %v1342
        %v1344 = vlaneseq
        %v1345 = vshrl.u32 %v1344, 7
        %v1346 = vsub.s32 %v1343, %v1345
        %v1347 = vrot.slane %v1333, %v1346
        %v1348 = vcombine.low %v1259, %v1263
        %v1349 = vcombine.high %v1259, %v1263
        %v1351 = vunpack.c.l.s4 1983009808
        %v1352 = vunpack.c.0.s8 %v1351
        %v1353 = vlaneseq
        %v1354 = vshrl.u32 %v1353, 7
        %v1355 = vsub.s32 %v1352, %v1354
        %v1356 = vrot.slane %v1348, %v1355
        %v1358 = vunpack.c.l.s4 1983009808
        %v1359 = vunpack.c.0.s8 %v1358
        %v1360 = vlaneseq
        %v1361 = vshrl.u32 %v1360, 7
        %v1362 = vsub.s32 %v1359, %v1361
        %v1363 = vrot.slane %v1349, %v1362
        %v1364 = vcombine.low %v1340, %v1356
        %v1365 = vcombine.high %v1340, %v1356
        %v1367 = vunpack.c.l.s4 1934713408
        %v1368 = vunpack.c.0.s8 %v1367
        %v1369 = vlaneseq
        %v1370 = vshrl.u32 %v1369, 7
        %v1371 = vsub.s32 %v1368, %v1370
        %v1372 = vrot.slane %v1364, %v1371
        %v1374 = vunpack.c.l.s4 1934713408
        %v1375 = vunpack.c.0.s8 %v1374
        %v1376 = vlaneseq
        %v1377 = vshrl.u32 %v1376, 7
        %v1378 = vsub.s32 %v1375, %v1377
        %v1379 = vrot.slane %v1365, %v1378
        %v1380 = vcombine.low %v1347, %v1363
        %v1381 = vcombine.high %v1347, %v1363
        %v1383 = vunpack.c.l.s4 1934713408
        %v1384 = vunpack.c.0.s8 %v1383
        %v1385 = vlaneseq
        %v1386 = vshrl.u32 %v1385, 7
        %v1387 = vsub.s32 %v1384, %v1386
        %v1388 = vrot.slane %v1380, %v1387
        %v1390 = vunpack.c.l.s4 1934713408
        %v1391 = vunpack.c.0.s8 %v1390
        %v1392 = vlaneseq
        %v1393 = vshrl.u32 %v1392, 7
        %v1394 = vsub.s32 %v1391, %v1393
        %v1395 = vrot.slane %v1381, %v1394
        %v1396 = vcombine.high %v1372, 0.0
        %v1397 = vcombine.high %v1379, 0.0
        %v1398 = vcombine.high %v1388, 0.0
        %v1399 = vcombine.high %v1395, 0.0
        %1401 = vrot.lane.b32.xlu0 %v1328, 16
        %v1402 = vpop.permute.xlu0 %1401
        %1405 = vrot.lane.b32.xlu0 %v1311, 32
        %v1406 = vpop.permute.xlu0 %1405
        %1409 = vrot.lane.b32.xlu0 %v1329, 48
        %v1410 = vpop.permute.xlu0 %1409
        %1413 = vrot.lane.b32.xlu0 %v1320, 64
        %v1414 = vpop.permute.xlu0 %1413
        %1417 = vrot.lane.b32.xlu0 %v1330, 80
        %v1418 = vpop.permute.xlu0 %1417
        %1421 = vrot.lane.b32.xlu0 %v1327, 96
        %v1422 = vpop.permute.xlu0 %1421
        %1425 = vrot.lane.b32.xlu0 %v1331, 112
        %v1426 = vpop.permute.xlu0 %1425
        %1429 = vrot.lane.b32.xlu0 %v1396, 16
        %v1430 = vpop.permute.xlu0 %1429
        %1433 = vrot.lane.b32.xlu0 %v1379, 32
        %v1434 = vpop.permute.xlu0 %1433
        %1437 = vrot.lane.b32.xlu0 %v1397, 48
        %v1438 = vpop.permute.xlu0 %1437
        %1441 = vrot.lane.b32.xlu0 %v1388, 64
        %v1442 = vpop.permute.xlu0 %1441
        %1445 = vrot.lane.b32.xlu0 %v1398, 80
        %v1446 = vpop.permute.xlu0 %1445
        %1449 = vrot.lane.b32.xlu0 %v1395, 96
        %v1450 = vpop.permute.xlu0 %1449
        %1453 = vrot.lane.b32.xlu0 %v1399, 112
        %v1454 = vpop.permute.xlu0 %1453
        %v1456 = vsel %vm767, %v1304, %v1402
        %v1457 = vsel %vm769, %v1456, %v1406
        %v1458 = vsel %vm771, %v1457, %v1410
        %v1459 = vsel %vm773, %v1458, %v1414
        %v1460 = vsel %vm775, %v1459, %v1418
        %v1461 = vsel %vm777, %v1460, %v1422
        %v1462 = vsel %vm779, %v1461, %v1426
        %v1463 = vsel %vm767, %v1372, %v1430
        %v1464 = vsel %vm769, %v1463, %v1434
        %v1465 = vsel %vm771, %v1464, %v1438
        %v1466 = vsel %vm773, %v1465, %v1442
        %v1467 = vsel %vm775, %v1466, %v1446
        %v1468 = vsel %vm777, %v1467, %v1450
        %v1469 = vsel %vm779, %v1468, %v1454
        %1478 = vrot.lane.b32.xlu0 %v1256, 127
        %v1479 = vpop.permute.xlu0 %1478
        %1480 = vrot.lane.b32.xlu0 %v1257, 127
        %v1481 = vpop.permute.xlu0 %1480
        %1482 = vrot.lane.b32.xlu0 %v1258, 127
        %v1483 = vpop.permute.xlu0 %1482
        %1484 = vrot.lane.b32.xlu0 %v1259, 127
        %v1485 = vpop.permute.xlu0 %1484
        %1486 = vrot.lane.b32.xlu0 %v1260, 127
        %v1487 = vpop.permute.xlu0 %1486
        %1488 = vrot.lane.b32.xlu0 %v1261, 127
        %v1489 = vpop.permute.xlu0 %1488
        %1490 = vrot.lane.b32.xlu0 %v1262, 127
        %v1491 = vpop.permute.xlu0 %1490
        %1492 = vrot.lane.b32.xlu0 %v1263, 127
        %v1493 = vpop.permute.xlu0 %1492
        %v1502 = vcombine.low %v1479, %v1487
        %v1503 = vcombine.high %v1479, %v1487
        %v1505 = vunpack.c.l.s4 1983009808
        %v1506 = vunpack.c.0.s8 %v1505
        %v1507 = vlaneseq
        %v1508 = vshrl.u32 %v1507, 7
        %v1509 = vsub.s32 %v1506, %v1508
        %v1510 = vrot.slane %v1502, %v1509
        %v1512 = vunpack.c.l.s4 1983009808
        %v1513 = vunpack.c.0.s8 %v1512
        %v1514 = vlaneseq
        %v1515 = vshrl.u32 %v1514, 7
        %v1516 = vsub.s32 %v1513, %v1515
        %v1517 = vrot.slane %v1503, %v1516
        %v1518 = vcombine.low %v1483, %v1491
        %v1519 = vcombine.high %v1483, %v1491
        %v1521 = vunpack.c.l.s4 1983009808
        %v1522 = vunpack.c.0.s8 %v1521
        %v1523 = vlaneseq
        %v1524 = vshrl.u32 %v1523, 7
        %v1525 = vsub.s32 %v1522, %v1524
        %v1526 = vrot.slane %v1518, %v1525
        %v1528 = vunpack.c.l.s4 1983009808
        %v1529 = vunpack.c.0.s8 %v1528
        %v1530 = vlaneseq
        %v1531 = vshrl.u32 %v1530, 7
        %v1532 = vsub.s32 %v1529, %v1531
        %v1533 = vrot.slane %v1519, %v1532
        %v1534 = vcombine.low %v1510, %v1526
        %v1535 = vcombine.high %v1510, %v1526
        %v1537 = vunpack.c.l.s4 1934713408
        %v1538 = vunpack.c.0.s8 %v1537
        %v1539 = vlaneseq
        %v1540 = vshrl.u32 %v1539, 7
        %v1541 = vsub.s32 %v1538, %v1540
        %v1542 = vrot.slane %v1534, %v1541
        %v1544 = vunpack.c.l.s4 1934713408
        %v1545 = vunpack.c.0.s8 %v1544
        %v1546 = vlaneseq
        %v1547 = vshrl.u32 %v1546, 7
        %v1548 = vsub.s32 %v1545, %v1547
        %v1549 = vrot.slane %v1535, %v1548
        %v1550 = vcombine.low %v1517, %v1533
        %v1551 = vcombine.high %v1517, %v1533
        %v1553 = vunpack.c.l.s4 1934713408
        %v1554 = vunpack.c.0.s8 %v1553
        %v1555 = vlaneseq
        %v1556 = vshrl.u32 %v1555, 7
        %v1557 = vsub.s32 %v1554, %v1556
        %v1558 = vrot.slane %v1550, %v1557
        %v1560 = vunpack.c.l.s4 1934713408
        %v1561 = vunpack.c.0.s8 %v1560
        %v1562 = vlaneseq
        %v1563 = vshrl.u32 %v1562, 7
        %v1564 = vsub.s32 %v1561, %v1563
        %v1565 = vrot.slane %v1551, %v1564
        %v1566 = vcombine.high %v1542, 0.0
        %v1567 = vcombine.high %v1549, 0.0
        %v1568 = vcombine.high %v1558, 0.0
        %v1569 = vcombine.high %v1565, 0.0
        %v1570 = vcombine.low %v1481, %v1489
        %v1571 = vcombine.high %v1481, %v1489
        %v1573 = vunpack.c.l.s4 1983009808
        %v1574 = vunpack.c.0.s8 %v1573
        %v1575 = vlaneseq
        %v1576 = vshrl.u32 %v1575, 7
        %v1577 = vsub.s32 %v1574, %v1576
        %v1578 = vrot.slane %v1570, %v1577
        %v1580 = vunpack.c.l.s4 1983009808
        %v1581 = vunpack.c.0.s8 %v1580
        %v1582 = vlaneseq
        %v1583 = vshrl.u32 %v1582, 7
        %v1584 = vsub.s32 %v1581, %v1583
        %v1585 = vrot.slane %v1571, %v1584
        %v1586 = vcombine.low %v1485, %v1493
        %v1587 = vcombine.high %v1485, %v1493
        %v1589 = vunpack.c.l.s4 1983009808
        %v1590 = vunpack.c.0.s8 %v1589
        %v1591 = vlaneseq
        %v1592 = vshrl.u32 %v1591, 7
        %v1593 = vsub.s32 %v1590, %v1592
        %v1594 = vrot.slane %v1586, %v1593
        %v1596 = vunpack.c.l.s4 1983009808
        %v1597 = vunpack.c.0.s8 %v1596
        %v1598 = vlaneseq
        %v1599 = vshrl.u32 %v1598, 7
        %v1600 = vsub.s32 %v1597, %v1599
        %v1601 = vrot.slane %v1587, %v1600
        %v1602 = vcombine.low %v1578, %v1594
        %v1603 = vcombine.high %v1578, %v1594
        %v1605 = vunpack.c.l.s4 1934713408
        %v1606 = vunpack.c.0.s8 %v1605
        %v1607 = vlaneseq
        %v1608 = vshrl.u32 %v1607, 7
        %v1609 = vsub.s32 %v1606, %v1608
        %v1610 = vrot.slane %v1602, %v1609
        %v1612 = vunpack.c.l.s4 1934713408
        %v1613 = vunpack.c.0.s8 %v1612
        %v1614 = vlaneseq
        %v1615 = vshrl.u32 %v1614, 7
        %v1616 = vsub.s32 %v1613, %v1615
        %v1617 = vrot.slane %v1603, %v1616
        %v1618 = vcombine.low %v1585, %v1601
        %v1619 = vcombine.high %v1585, %v1601
        %v1621 = vunpack.c.l.s4 1934713408
        %v1622 = vunpack.c.0.s8 %v1621
        %v1623 = vlaneseq
        %v1624 = vshrl.u32 %v1623, 7
        %v1625 = vsub.s32 %v1622, %v1624
        %v1626 = vrot.slane %v1618, %v1625
        %v1628 = vunpack.c.l.s4 1934713408
        %v1629 = vunpack.c.0.s8 %v1628
        %v1630 = vlaneseq
        %v1631 = vshrl.u32 %v1630, 7
        %v1632 = vsub.s32 %v1629, %v1631
        %v1633 = vrot.slane %v1619, %v1632
        %v1634 = vcombine.high %v1610, 0.0
        %v1635 = vcombine.high %v1617, 0.0
        %v1636 = vcombine.high %v1626, 0.0
        %v1637 = vcombine.high %v1633, 0.0
        %1639 = vrot.lane.b32.xlu0 %v1566, 16
        %v1640 = vpop.permute.xlu0 %1639
        %1643 = vrot.lane.b32.xlu0 %v1549, 32
        %v1644 = vpop.permute.xlu0 %1643
        %1647 = vrot.lane.b32.xlu0 %v1567, 48
        %v1648 = vpop.permute.xlu0 %1647
        %1651 = vrot.lane.b32.xlu0 %v1558, 64
        %v1652 = vpop.permute.xlu0 %1651
        %1655 = vrot.lane.b32.xlu0 %v1568, 80
        %v1656 = vpop.permute.xlu0 %1655
        %1659 = vrot.lane.b32.xlu0 %v1565, 96
        %v1660 = vpop.permute.xlu0 %1659
        %1663 = vrot.lane.b32.xlu0 %v1569, 112
        %v1664 = vpop.permute.xlu0 %1663
        %1667 = vrot.lane.b32.xlu0 %v1634, 16
        %v1668 = vpop.permute.xlu0 %1667
        %1671 = vrot.lane.b32.xlu0 %v1617, 32
        %v1672 = vpop.permute.xlu0 %1671
        %1675 = vrot.lane.b32.xlu0 %v1635, 48
        %v1676 = vpop.permute.xlu0 %1675
        %1679 = vrot.lane.b32.xlu0 %v1626, 64
        %v1680 = vpop.permute.xlu0 %1679
        %1683 = vrot.lane.b32.xlu0 %v1636, 80
        %v1684 = vpop.permute.xlu0 %1683
        %1687 = vrot.lane.b32.xlu0 %v1633, 96
        %v1688 = vpop.permute.xlu0 %1687
        %1691 = vrot.lane.b32.xlu0 %v1637, 112
        %v1692 = vpop.permute.xlu0 %1691
        %v1694 = vsel %vm767, %v1542, %v1640
        %v1695 = vsel %vm769, %v1694, %v1644
        %v1696 = vsel %vm771, %v1695, %v1648
        %v1697 = vsel %vm773, %v1696, %v1652
        %v1698 = vsel %vm775, %v1697, %v1656
        %v1699 = vsel %vm777, %v1698, %v1660
        %v1700 = vsel %vm779, %v1699, %v1664
        %v1701 = vsel %vm767, %v1610, %v1668
        %v1702 = vsel %vm769, %v1701, %v1672
        %v1703 = vsel %vm771, %v1702, %v1676
        %v1704 = vsel %vm773, %v1703, %v1680
        %v1705 = vsel %vm775, %v1704, %v1684
        %v1706 = vsel %vm777, %v1705, %v1688
        %v1707 = vsel %vm779, %v1706, %v1692
        %1708 = vrot.lane.b32.xlu0 %v1256, 126
        %v1709 = vpop.permute.xlu0 %1708
        %1710 = vrot.lane.b32.xlu0 %v1257, 126
        %v1711 = vpop.permute.xlu0 %1710
        %1712 = vrot.lane.b32.xlu0 %v1258, 126
        %v1713 = vpop.permute.xlu0 %1712
        %1714 = vrot.lane.b32.xlu0 %v1259, 126
        %v1715 = vpop.permute.xlu0 %1714
        %1716 = vrot.lane.b32.xlu0 %v1260, 126
        %v1717 = vpop.permute.xlu0 %1716
        %1718 = vrot.lane.b32.xlu0 %v1261, 126
        %v1719 = vpop.permute.xlu0 %1718
        %1720 = vrot.lane.b32.xlu0 %v1262, 126
        %v1721 = vpop.permute.xlu0 %1720
        %1722 = vrot.lane.b32.xlu0 %v1263, 126
        %v1723 = vpop.permute.xlu0 %1722
        %v1732 = vcombine.low %v1709, %v1717
        %v1733 = vcombine.high %v1709, %v1717
        %v1735 = vunpack.c.l.s4 1983009808
        %v1736 = vunpack.c.0.s8 %v1735
        %v1737 = vlaneseq
        %v1738 = vshrl.u32 %v1737, 7
        %v1739 = vsub.s32 %v1736, %v1738
        %v1740 = vrot.slane %v1732, %v1739
        %v1742 = vunpack.c.l.s4 1983009808
        %v1743 = vunpack.c.0.s8 %v1742
        %v1744 = vlaneseq
        %v1745 = vshrl.u32 %v1744, 7
        %v1746 = vsub.s32 %v1743, %v1745
        %v1747 = vrot.slane %v1733, %v1746
        %v1748 = vcombine.low %v1713, %v1721
        %v1749 = vcombine.high %v1713, %v1721
        %v1751 = vunpack.c.l.s4 1983009808
        %v1752 = vunpack.c.0.s8 %v1751
        %v1753 = vlaneseq
        %v1754 = vshrl.u32 %v1753, 7
        %v1755 = vsub.s32 %v1752, %v1754
        %v1756 = vrot.slane %v1748, %v1755
        %v1758 = vunpack.c.l.s4 1983009808
        %v1759 = vunpack.c.0.s8 %v1758
        %v1760 = vlaneseq
        %v1761 = vshrl.u32 %v1760, 7
        %v1762 = vsub.s32 %v1759, %v1761
        %v1763 = vrot.slane %v1749, %v1762
        %v1764 = vcombine.low %v1740, %v1756
        %v1765 = vcombine.high %v1740, %v1756
        %v1767 = vunpack.c.l.s4 1934713408
        %v1768 = vunpack.c.0.s8 %v1767
        %v1769 = vlaneseq
        %v1770 = vshrl.u32 %v1769, 7
        %v1771 = vsub.s32 %v1768, %v1770
        %v1772 = vrot.slane %v1764, %v1771
        %v1774 = vunpack.c.l.s4 1934713408
        %v1775 = vunpack.c.0.s8 %v1774
        %v1776 = vlaneseq
        %v1777 = vshrl.u32 %v1776, 7
        %v1778 = vsub.s32 %v1775, %v1777
        %v1779 = vrot.slane %v1765, %v1778
        %v1780 = vcombine.low %v1747, %v1763
        %v1781 = vcombine.high %v1747, %v1763
        %v1783 = vunpack.c.l.s4 1934713408
        %v1784 = vunpack.c.0.s8 %v1783
        %v1785 = vlaneseq
        %v1786 = vshrl.u32 %v1785, 7
        %v1787 = vsub.s32 %v1784, %v1786
        %v1788 = vrot.slane %v1780, %v1787
        %v1790 = vunpack.c.l.s4 1934713408
        %v1791 = vunpack.c.0.s8 %v1790
        %v1792 = vlaneseq
        %v1793 = vshrl.u32 %v1792, 7
        %v1794 = vsub.s32 %v1791, %v1793
        %v1795 = vrot.slane %v1781, %v1794
        %v1796 = vcombine.high %v1772, 0.0
        %v1797 = vcombine.high %v1779, 0.0
        %v1798 = vcombine.high %v1788, 0.0
        %v1799 = vcombine.high %v1795, 0.0
        %v1800 = vcombine.low %v1711, %v1719
        %v1801 = vcombine.high %v1711, %v1719
        %v1803 = vunpack.c.l.s4 1983009808
        %v1804 = vunpack.c.0.s8 %v1803
        %v1805 = vlaneseq
        %v1806 = vshrl.u32 %v1805, 7
        %v1807 = vsub.s32 %v1804, %v1806
        %v1808 = vrot.slane %v1800, %v1807
        %v1810 = vunpack.c.l.s4 1983009808
        %v1811 = vunpack.c.0.s8 %v1810
        %v1812 = vlaneseq
        %v1813 = vshrl.u32 %v1812, 7
        %v1814 = vsub.s32 %v1811, %v1813
        %v1815 = vrot.slane %v1801, %v1814
        %v1816 = vcombine.low %v1715, %v1723
        %v1817 = vcombine.high %v1715, %v1723
        %v1819 = vunpack.c.l.s4 1983009808
        %v1820 = vunpack.c.0.s8 %v1819
        %v1821 = vlaneseq
        %v1822 = vshrl.u32 %v1821, 7
        %v1823 = vsub.s32 %v1820, %v1822
        %v1824 = vrot.slane %v1816, %v1823
        %v1826 = vunpack.c.l.s4 1983009808
        %v1827 = vunpack.c.0.s8 %v1826
        %v1828 = vlaneseq
        %v1829 = vshrl.u32 %v1828, 7
        %v1830 = vsub.s32 %v1827, %v1829
        %v1831 = vrot.slane %v1817, %v1830
        %v1832 = vcombine.low %v1808, %v1824
        %v1833 = vcombine.high %v1808, %v1824
        %v1835 = vunpack.c.l.s4 1934713408
        %v1836 = vunpack.c.0.s8 %v1835
        %v1837 = vlaneseq
        %v1838 = vshrl.u32 %v1837, 7
        %v1839 = vsub.s32 %v1836, %v1838
        %v1840 = vrot.slane %v1832, %v1839
        %v1842 = vunpack.c.l.s4 1934713408
        %v1843 = vunpack.c.0.s8 %v1842
        %v1844 = vlaneseq
        %v1845 = vshrl.u32 %v1844, 7
        %v1846 = vsub.s32 %v1843, %v1845
        %v1847 = vrot.slane %v1833, %v1846
        %v1848 = vcombine.low %v1815, %v1831
        %v1849 = vcombine.high %v1815, %v1831
        %v1851 = vunpack.c.l.s4 1934713408
        %v1852 = vunpack.c.0.s8 %v1851
        %v1853 = vlaneseq
        %v1854 = vshrl.u32 %v1853, 7
        %v1855 = vsub.s32 %v1852, %v1854
        %v1856 = vrot.slane %v1848, %v1855
        %v1858 = vunpack.c.l.s4 1934713408
        %v1859 = vunpack.c.0.s8 %v1858
        %v1860 = vlaneseq
        %v1861 = vshrl.u32 %v1860, 7
        %v1862 = vsub.s32 %v1859, %v1861
        %v1863 = vrot.slane %v1849, %v1862
        %v1864 = vcombine.high %v1840, 0.0
        %v1865 = vcombine.high %v1847, 0.0
        %v1866 = vcombine.high %v1856, 0.0
        %v1867 = vcombine.high %v1863, 0.0
        %1869 = vrot.lane.b32.xlu0 %v1796, 16
        %v1870 = vpop.permute.xlu0 %1869
        %1873 = vrot.lane.b32.xlu0 %v1779, 32
        %v1874 = vpop.permute.xlu0 %1873
        %1877 = vrot.lane.b32.xlu0 %v1797, 48
        %v1878 = vpop.permute.xlu0 %1877
        %1881 = vrot.lane.b32.xlu0 %v1788, 64
        %v1882 = vpop.permute.xlu0 %1881
        %1885 = vrot.lane.b32.xlu0 %v1798, 80
        %v1886 = vpop.permute.xlu0 %1885
        %1889 = vrot.lane.b32.xlu0 %v1795, 96
        %v1890 = vpop.permute.xlu0 %1889
        %1893 = vrot.lane.b32.xlu0 %v1799, 112
        %v1894 = vpop.permute.xlu0 %1893
        %1897 = vrot.lane.b32.xlu0 %v1864, 16
        %v1898 = vpop.permute.xlu0 %1897
        %1901 = vrot.lane.b32.xlu0 %v1847, 32
        %v1902 = vpop.permute.xlu0 %1901
        %1905 = vrot.lane.b32.xlu0 %v1865, 48
        %v1906 = vpop.permute.xlu0 %1905
        %1909 = vrot.lane.b32.xlu0 %v1856, 64
        %v1910 = vpop.permute.xlu0 %1909
        %1913 = vrot.lane.b32.xlu0 %v1866, 80
        %v1914 = vpop.permute.xlu0 %1913
        %1917 = vrot.lane.b32.xlu0 %v1863, 96
        %v1918 = vpop.permute.xlu0 %1917
        %1921 = vrot.lane.b32.xlu0 %v1867, 112
        %v1922 = vpop.permute.xlu0 %1921
        %v1924 = vsel %vm767, %v1772, %v1870
        %v1925 = vsel %vm769, %v1924, %v1874
        %v1926 = vsel %vm771, %v1925, %v1878
        %v1927 = vsel %vm773, %v1926, %v1882
        %v1928 = vsel %vm775, %v1927, %v1886
        %v1929 = vsel %vm777, %v1928, %v1890
        %v1930 = vsel %vm779, %v1929, %v1894
        %v1931 = vsel %vm767, %v1840, %v1898
        %v1932 = vsel %vm769, %v1931, %v1902
        %v1933 = vsel %vm771, %v1932, %v1906
        %v1934 = vsel %vm773, %v1933, %v1910
        %v1935 = vsel %vm775, %v1934, %v1914
        %v1936 = vsel %vm777, %v1935, %v1918
        %v1937 = vsel %vm779, %v1936, %v1922
        %v1938 = vld [vmem:[#allocation2 + $0x2] sm:$0xff]
        %v1939 = vld [vmem:[#allocation2 + $0xa] sm:$0xff]
        %v1940 = vld [vmem:[#allocation2 + $0x1a] sm:$0xff]
        %v1941 = vld [vmem:[#allocation2 + $0x22] sm:$0xff]
        %v1942 = vld [vmem:[#allocation2 + $0x32] sm:$0xff]
        %v1943 = vld [vmem:[#allocation2 + $0x3a] sm:$0xff]
        %v1944 = vld [vmem:[#allocation2 + $0x4a] sm:$0xff]
        %v1945 = vld [vmem:[#allocation2 + $0x52] sm:$0xff]
        %v1946 = vcombine.low %v1938, %v1942
        %v1947 = vcombine.high %v1938, %v1942
        %v1949 = vunpack.c.l.s4 1983009808
        %v1950 = vunpack.c.0.s8 %v1949
        %v1951 = vlaneseq
        %v1952 = vshrl.u32 %v1951, 7
        %v1953 = vsub.s32 %v1950, %v1952
        %v1954 = vrot.slane %v1946, %v1953
        %v1956 = vunpack.c.l.s4 1983009808
        %v1957 = vunpack.c.0.s8 %v1956
        %v1958 = vlaneseq
        %v1959 = vshrl.u32 %v1958, 7
        %v1960 = vsub.s32 %v1957, %v1959
        %v1961 = vrot.slane %v1947, %v1960
        %v1962 = vcombine.low %v1940, %v1944
        %v1963 = vcombine.high %v1940, %v1944
        %v1965 = vunpack.c.l.s4 1983009808
        %v1966 = vunpack.c.0.s8 %v1965
        %v1967 = vlaneseq
        %v1968 = vshrl.u32 %v1967, 7
        %v1969 = vsub.s32 %v1966, %v1968
        %v1970 = vrot.slane %v1962, %v1969
        %v1972 = vunpack.c.l.s4 1983009808
        %v1973 = vunpack.c.0.s8 %v1972
        %v1974 = vlaneseq
        %v1975 = vshrl.u32 %v1974, 7
        %v1976 = vsub.s32 %v1973, %v1975
        %v1977 = vrot.slane %v1963, %v1976
        %v1978 = vcombine.low %v1954, %v1970
        %v1979 = vcombine.high %v1954, %v1970
        %v1981 = vunpack.c.l.s4 1934713408
        %v1982 = vunpack.c.0.s8 %v1981
        %v1983 = vlaneseq
        %v1984 = vshrl.u32 %v1983, 7
        %v1985 = vsub.s32 %v1982, %v1984
        %v1986 = vrot.slane %v1978, %v1985
        %v1988 = vunpack.c.l.s4 1934713408
        %v1989 = vunpack.c.0.s8 %v1988
        %v1990 = vlaneseq
        %v1991 = vshrl.u32 %v1990, 7
        %v1992 = vsub.s32 %v1989, %v1991
        %v1993 = vrot.slane %v1979, %v1992
        %v1994 = vcombine.low %v1961, %v1977
        %v1995 = vcombine.high %v1961, %v1977
        %v1997 = vunpack.c.l.s4 1934713408
        %v1998 = vunpack.c.0.s8 %v1997
        %v1999 = vlaneseq
        %v2000 = vshrl.u32 %v1999, 7
        %v2001 = vsub.s32 %v1998, %v2000
        %v2002 = vrot.slane %v1994, %v2001
        %v2004 = vunpack.c.l.s4 1934713408
        %v2005 = vunpack.c.0.s8 %v2004
        %v2006 = vlaneseq
        %v2007 = vshrl.u32 %v2006, 7
        %v2008 = vsub.s32 %v2005, %v2007
        %v2009 = vrot.slane %v1995, %v2008
        %v2010 = vcombine.high %v1986, 0.0
        %v2011 = vcombine.high %v1993, 0.0
        %v2012 = vcombine.high %v2002, 0.0
        %v2013 = vcombine.high %v2009, 0.0
        %v2014 = vcombine.low %v1939, %v1943
        %v2015 = vcombine.high %v1939, %v1943
        %v2017 = vunpack.c.l.s4 1983009808
        %v2018 = vunpack.c.0.s8 %v2017
        %v2019 = vlaneseq
        %v2020 = vshrl.u32 %v2019, 7
        %v2021 = vsub.s32 %v2018, %v2020
        %v2022 = vrot.slane %v2014, %v2021
        %v2024 = vunpack.c.l.s4 1983009808
        %v2025 = vunpack.c.0.s8 %v2024
        %v2026 = vlaneseq
        %v2027 = vshrl.u32 %v2026, 7
        %v2028 = vsub.s32 %v2025, %v2027
        %v2029 = vrot.slane %v2015, %v2028
        %v2030 = vcombine.low %v1941, %v1945
        %v2031 = vcombine.high %v1941, %v1945
        %v2033 = vunpack.c.l.s4 1983009808
        %v2034 = vunpack.c.0.s8 %v2033
        %v2035 = vlaneseq
        %v2036 = vshrl.u32 %v2035, 7
        %v2037 = vsub.s32 %v2034, %v2036
        %v2038 = vrot.slane %v2030, %v2037
        %v2040 = vunpack.c.l.s4 1983009808
        %v2041 = vunpack.c.0.s8 %v2040
        %v2042 = vlaneseq
        %v2043 = vshrl.u32 %v2042, 7
        %v2044 = vsub.s32 %v2041, %v2043
        %v2045 = vrot.slane %v2031, %v2044
        %v2046 = vcombine.low %v2022, %v2038
        %v2047 = vcombine.high %v2022, %v2038
        %v2049 = vunpack.c.l.s4 1934713408
        %v2050 = vunpack.c.0.s8 %v2049
        %v2051 = vlaneseq
        %v2052 = vshrl.u32 %v2051, 7
        %v2053 = vsub.s32 %v2050, %v2052
        %v2054 = vrot.slane %v2046, %v2053
        %v2056 = vunpack.c.l.s4 1934713408
        %v2057 = vunpack.c.0.s8 %v2056
        %v2058 = vlaneseq
        %v2059 = vshrl.u32 %v2058, 7
        %v2060 = vsub.s32 %v2057, %v2059
        %v2061 = vrot.slane %v2047, %v2060
        %v2062 = vcombine.low %v2029, %v2045
        %v2063 = vcombine.high %v2029, %v2045
        %v2065 = vunpack.c.l.s4 1934713408
        %v2066 = vunpack.c.0.s8 %v2065
        %v2067 = vlaneseq
        %v2068 = vshrl.u32 %v2067, 7
        %v2069 = vsub.s32 %v2066, %v2068
        %v2070 = vrot.slane %v2062, %v2069
        %v2072 = vunpack.c.l.s4 1934713408
        %v2073 = vunpack.c.0.s8 %v2072
        %v2074 = vlaneseq
        %v2075 = vshrl.u32 %v2074, 7
        %v2076 = vsub.s32 %v2073, %v2075
        %v2077 = vrot.slane %v2063, %v2076
        %v2078 = vcombine.high %v2054, 0.0
        %v2079 = vcombine.high %v2061, 0.0
        %v2080 = vcombine.high %v2070, 0.0
        %v2081 = vcombine.high %v2077, 0.0
        %2083 = vrot.lane.b32.xlu0 %v2010, 16
        %v2084 = vpop.permute.xlu0 %2083
        %2087 = vrot.lane.b32.xlu0 %v1993, 32
        %v2088 = vpop.permute.xlu0 %2087
        %2091 = vrot.lane.b32.xlu0 %v2011, 48
        %v2092 = vpop.permute.xlu0 %2091
        %2095 = vrot.lane.b32.xlu0 %v2002, 64
        %v2096 = vpop.permute.xlu0 %2095
        %2099 = vrot.lane.b32.xlu0 %v2012, 80
        %v2100 = vpop.permute.xlu0 %2099
        %2103 = vrot.lane.b32.xlu0 %v2009, 96
        %v2104 = vpop.permute.xlu0 %2103
        %2107 = vrot.lane.b32.xlu0 %v2013, 112
        %v2108 = vpop.permute.xlu0 %2107
        %2111 = vrot.lane.b32.xlu0 %v2078, 16
        %v2112 = vpop.permute.xlu0 %2111
        %2115 = vrot.lane.b32.xlu0 %v2061, 32
        %v2116 = vpop.permute.xlu0 %2115
        %2119 = vrot.lane.b32.xlu0 %v2079, 48
        %v2120 = vpop.permute.xlu0 %2119
        %2123 = vrot.lane.b32.xlu0 %v2070, 64
        %v2124 = vpop.permute.xlu0 %2123
        %2127 = vrot.lane.b32.xlu0 %v2080, 80
        %v2128 = vpop.permute.xlu0 %2127
        %2131 = vrot.lane.b32.xlu0 %v2077, 96
        %v2132 = vpop.permute.xlu0 %2131
        %2135 = vrot.lane.b32.xlu0 %v2081, 112
        %v2136 = vpop.permute.xlu0 %2135
        %v2138 = vsel %vm767, %v1986, %v2084
        %v2139 = vsel %vm769, %v2138, %v2088
        %v2140 = vsel %vm771, %v2139, %v2092
        %v2141 = vsel %vm773, %v2140, %v2096
        %v2142 = vsel %vm775, %v2141, %v2100
        %v2143 = vsel %vm777, %v2142, %v2104
        %v2144 = vsel %vm779, %v2143, %v2108
        %v2145 = vsel %vm767, %v2054, %v2112
        %v2146 = vsel %vm769, %v2145, %v2116
        %v2147 = vsel %vm771, %v2146, %v2120
        %v2148 = vsel %vm773, %v2147, %v2124
        %v2149 = vsel %vm775, %v2148, %v2128
        %v2150 = vsel %vm777, %v2149, %v2132
        %v2151 = vsel %vm779, %v2150, %v2136
        %2160 = vrot.lane.b32.xlu0 %v1938, 127
        %v2161 = vpop.permute.xlu0 %2160
        %2162 = vrot.lane.b32.xlu0 %v1939, 127
        %v2163 = vpop.permute.xlu0 %2162
        %2164 = vrot.lane.b32.xlu0 %v1940, 127
        %v2165 = vpop.permute.xlu0 %2164
        %2166 = vrot.lane.b32.xlu0 %v1941, 127
        %v2167 = vpop.permute.xlu0 %2166
        %2168 = vrot.lane.b32.xlu0 %v1942, 127
        %v2169 = vpop.permute.xlu0 %2168
        %2170 = vrot.lane.b32.xlu0 %v1943, 127
        %v2171 = vpop.permute.xlu0 %2170
        %2172 = vrot.lane.b32.xlu0 %v1944, 127
        %v2173 = vpop.permute.xlu0 %2172
        %2174 = vrot.lane.b32.xlu0 %v1945, 127
        %v2175 = vpop.permute.xlu0 %2174
        %v2184 = vcombine.low %v2161, %v2169
        %v2185 = vcombine.high %v2161, %v2169
        %v2187 = vunpack.c.l.s4 1983009808
        %v2188 = vunpack.c.0.s8 %v2187
        %v2189 = vlaneseq
        %v2190 = vshrl.u32 %v2189, 7
        %v2191 = vsub.s32 %v2188, %v2190
        %v2192 = vrot.slane %v2184, %v2191
        %v2194 = vunpack.c.l.s4 1983009808
        %v2195 = vunpack.c.0.s8 %v2194
        %v2196 = vlaneseq
        %v2197 = vshrl.u32 %v2196, 7
        %v2198 = vsub.s32 %v2195, %v2197
        %v2199 = vrot.slane %v2185, %v2198
        %v2200 = vcombine.low %v2165, %v2173
        %v2201 = vcombine.high %v2165, %v2173
        %v2203 = vunpack.c.l.s4 1983009808
        %v2204 = vunpack.c.0.s8 %v2203
        %v2205 = vlaneseq
        %v2206 = vshrl.u32 %v2205, 7
        %v2207 = vsub.s32 %v2204, %v2206
        %v2208 = vrot.slane %v2200, %v2207
        %v2210 = vunpack.c.l.s4 1983009808
        %v2211 = vunpack.c.0.s8 %v2210
        %v2212 = vlaneseq
        %v2213 = vshrl.u32 %v2212, 7
        %v2214 = vsub.s32 %v2211, %v2213
        %v2215 = vrot.slane %v2201, %v2214
        %v2216 = vcombine.low %v2192, %v2208
        %v2217 = vcombine.high %v2192, %v2208
        %v2219 = vunpack.c.l.s4 1934713408
        %v2220 = vunpack.c.0.s8 %v2219
        %v2221 = vlaneseq
        %v2222 = vshrl.u32 %v2221, 7
        %v2223 = vsub.s32 %v2220, %v2222
        %v2224 = vrot.slane %v2216, %v2223
        %v2226 = vunpack.c.l.s4 1934713408
        %v2227 = vunpack.c.0.s8 %v2226
        %v2228 = vlaneseq
        %v2229 = vshrl.u32 %v2228, 7
        %v2230 = vsub.s32 %v2227, %v2229
        %v2231 = vrot.slane %v2217, %v2230
        %v2232 = vcombine.low %v2199, %v2215
        %v2233 = vcombine.high %v2199, %v2215
        %v2235 = vunpack.c.l.s4 1934713408
        %v2236 = vunpack.c.0.s8 %v2235
        %v2237 = vlaneseq
        %v2238 = vshrl.u32 %v2237, 7
        %v2239 = vsub.s32 %v2236, %v2238
        %v2240 = vrot.slane %v2232, %v2239
        %v2242 = vunpack.c.l.s4 1934713408
        %v2243 = vunpack.c.0.s8 %v2242
        %v2244 = vlaneseq
        %v2245 = vshrl.u32 %v2244, 7
        %v2246 = vsub.s32 %v2243, %v2245
        %v2247 = vrot.slane %v2233, %v2246
        %v2248 = vcombine.high %v2224, 0.0
        %v2249 = vcombine.high %v2231, 0.0
        %v2250 = vcombine.high %v2240, 0.0
        %v2251 = vcombine.high %v2247, 0.0
        %v2252 = vcombine.low %v2163, %v2171
        %v2253 = vcombine.high %v2163, %v2171
        %v2255 = vunpack.c.l.s4 1983009808
        %v2256 = vunpack.c.0.s8 %v2255
        %v2257 = vlaneseq
        %v2258 = vshrl.u32 %v2257, 7
        %v2259 = vsub.s32 %v2256, %v2258
        %v2260 = vrot.slane %v2252, %v2259
        %v2262 = vunpack.c.l.s4 1983009808
        %v2263 = vunpack.c.0.s8 %v2262
        %v2264 = vlaneseq
        %v2265 = vshrl.u32 %v2264, 7
        %v2266 = vsub.s32 %v2263, %v2265
        %v2267 = vrot.slane %v2253, %v2266
        %v2268 = vcombine.low %v2167, %v2175
        %v2269 = vcombine.high %v2167, %v2175
        %v2271 = vunpack.c.l.s4 1983009808
        %v2272 = vunpack.c.0.s8 %v2271
        %v2273 = vlaneseq
        %v2274 = vshrl.u32 %v2273, 7
        %v2275 = vsub.s32 %v2272, %v2274
        %v2276 = vrot.slane %v2268, %v2275
        %v2278 = vunpack.c.l.s4 1983009808
        %v2279 = vunpack.c.0.s8 %v2278
        %v2280 = vlaneseq
        %v2281 = vshrl.u32 %v2280, 7
        %v2282 = vsub.s32 %v2279, %v2281
        %v2283 = vrot.slane %v2269, %v2282
        %v2284 = vcombine.low %v2260, %v2276
        %v2285 = vcombine.high %v2260, %v2276
        %v2287 = vunpack.c.l.s4 1934713408
        %v2288 = vunpack.c.0.s8 %v2287
        %v2289 = vlaneseq
        %v2290 = vshrl.u32 %v2289, 7
        %v2291 = vsub.s32 %v2288, %v2290
        %v2292 = vrot.slane %v2284, %v2291
        %v2294 = vunpack.c.l.s4 1934713408
        %v2295 = vunpack.c.0.s8 %v2294
        %v2296 = vlaneseq
        %v2297 = vshrl.u32 %v2296, 7
        %v2298 = vsub.s32 %v2295, %v2297
        %v2299 = vrot.slane %v2285, %v2298
        %v2300 = vcombine.low %v2267, %v2283
        %v2301 = vcombine.high %v2267, %v2283
        %v2303 = vunpack.c.l.s4 1934713408
        %v2304 = vunpack.c.0.s8 %v2303
        %v2305 = vlaneseq
        %v2306 = vshrl.u32 %v2305, 7
        %v2307 = vsub.s32 %v2304, %v2306
        %v2308 = vrot.slane %v2300, %v2307
        %v2310 = vunpack.c.l.s4 1934713408
        %v2311 = vunpack.c.0.s8 %v2310
        %v2312 = vlaneseq
        %v2313 = vshrl.u32 %v2312, 7
        %v2314 = vsub.s32 %v2311, %v2313
        %v2315 = vrot.slane %v2301, %v2314
        %v2316 = vcombine.high %v2292, 0.0
        %v2317 = vcombine.high %v2299, 0.0
        %v2318 = vcombine.high %v2308, 0.0
        %v2319 = vcombine.high %v2315, 0.0
        %2321 = vrot.lane.b32.xlu0 %v2248, 16
        %v2322 = vpop.permute.xlu0 %2321
        %2325 = vrot.lane.b32.xlu0 %v2231, 32
        %v2326 = vpop.permute.xlu0 %2325
        %2329 = vrot.lane.b32.xlu0 %v2249, 48
        %v2330 = vpop.permute.xlu0 %2329
        %2333 = vrot.lane.b32.xlu0 %v2240, 64
        %v2334 = vpop.permute.xlu0 %2333
        %2337 = vrot.lane.b32.xlu0 %v2250, 80
        %v2338 = vpop.permute.xlu0 %2337
        %2341 = vrot.lane.b32.xlu0 %v2247, 96
        %v2342 = vpop.permute.xlu0 %2341
        %2345 = vrot.lane.b32.xlu0 %v2251, 112
        %v2346 = vpop.permute.xlu0 %2345
        %2349 = vrot.lane.b32.xlu0 %v2316, 16
        %v2350 = vpop.permute.xlu0 %2349
        %2353 = vrot.lane.b32.xlu0 %v2299, 32
        %v2354 = vpop.permute.xlu0 %2353
        %2357 = vrot.lane.b32.xlu0 %v2317, 48
        %v2358 = vpop.permute.xlu0 %2357
        %2361 = vrot.lane.b32.xlu0 %v2308, 64
        %v2362 = vpop.permute.xlu0 %2361
        %2365 = vrot.lane.b32.xlu0 %v2318, 80
        %v2366 = vpop.permute.xlu0 %2365
        %2369 = vrot.lane.b32.xlu0 %v2315, 96
        %v2370 = vpop.permute.xlu0 %2369
        %2373 = vrot.lane.b32.xlu0 %v2319, 112
        %v2374 = vpop.permute.xlu0 %2373
        %v2376 = vsel %vm767, %v2224, %v2322
        %v2377 = vsel %vm769, %v2376, %v2326
        %v2378 = vsel %vm771, %v2377, %v2330
        %v2379 = vsel %vm773, %v2378, %v2334
        %v2380 = vsel %vm775, %v2379, %v2338
        %v2381 = vsel %vm777, %v2380, %v2342
        %v2382 = vsel %vm779, %v2381, %v2346
        %v2383 = vsel %vm767, %v2292, %v2350
        %v2384 = vsel %vm769, %v2383, %v2354
        %v2385 = vsel %vm771, %v2384, %v2358
        %v2386 = vsel %vm773, %v2385, %v2362
        %v2387 = vsel %vm775, %v2386, %v2366
        %v2388 = vsel %vm777, %v2387, %v2370
        %v2389 = vsel %vm779, %v2388, %v2374
        %2390 = vrot.lane.b32.xlu0 %v1938, 126
        %v2391 = vpop.permute.xlu0 %2390
        %2392 = vrot.lane.b32.xlu0 %v1939, 126
        %v2393 = vpop.permute.xlu0 %2392
        %2394 = vrot.lane.b32.xlu0 %v1940, 126
        %v2395 = vpop.permute.xlu0 %2394
        %2396 = vrot.lane.b32.xlu0 %v1941, 126
        %v2397 = vpop.permute.xlu0 %2396
        %2398 = vrot.lane.b32.xlu0 %v1942, 126
        %v2399 = vpop.permute.xlu0 %2398
        %2400 = vrot.lane.b32.xlu0 %v1943, 126
        %v2401 = vpop.permute.xlu0 %2400
        %2402 = vrot.lane.b32.xlu0 %v1944, 126
        %v2403 = vpop.permute.xlu0 %2402
        %2404 = vrot.lane.b32.xlu0 %v1945, 126
        %v2405 = vpop.permute.xlu0 %2404
        %v2414 = vcombine.low %v2391, %v2399
        %v2415 = vcombine.high %v2391, %v2399
        %v2417 = vunpack.c.l.s4 1983009808
        %v2418 = vunpack.c.0.s8 %v2417
        %v2419 = vlaneseq
        %v2420 = vshrl.u32 %v2419, 7
        %v2421 = vsub.s32 %v2418, %v2420
        %v2422 = vrot.slane %v2414, %v2421
        %v2424 = vunpack.c.l.s4 1983009808
        %v2425 = vunpack.c.0.s8 %v2424
        %v2426 = vlaneseq
        %v2427 = vshrl.u32 %v2426, 7
        %v2428 = vsub.s32 %v2425, %v2427
        %v2429 = vrot.slane %v2415, %v2428
        %v2430 = vcombine.low %v2395, %v2403
        %v2431 = vcombine.high %v2395, %v2403
        %v2433 = vunpack.c.l.s4 1983009808
        %v2434 = vunpack.c.0.s8 %v2433
        %v2435 = vlaneseq
        %v2436 = vshrl.u32 %v2435, 7
        %v2437 = vsub.s32 %v2434, %v2436
        %v2438 = vrot.slane %v2430, %v2437
        %v2440 = vunpack.c.l.s4 1983009808
        %v2441 = vunpack.c.0.s8 %v2440
        %v2442 = vlaneseq
        %v2443 = vshrl.u32 %v2442, 7
        %v2444 = vsub.s32 %v2441, %v2443
        %v2445 = vrot.slane %v2431, %v2444
        %v2446 = vcombine.low %v2422, %v2438
        %v2447 = vcombine.high %v2422, %v2438
        %v2449 = vunpack.c.l.s4 1934713408
        %v2450 = vunpack.c.0.s8 %v2449
        %v2451 = vlaneseq
        %v2452 = vshrl.u32 %v2451, 7
        %v2453 = vsub.s32 %v2450, %v2452
        %v2454 = vrot.slane %v2446, %v2453
        %v2456 = vunpack.c.l.s4 1934713408
        %v2457 = vunpack.c.0.s8 %v2456
        %v2458 = vlaneseq
        %v2459 = vshrl.u32 %v2458, 7
        %v2460 = vsub.s32 %v2457, %v2459
        %v2461 = vrot.slane %v2447, %v2460
        %v2462 = vcombine.low %v2429, %v2445
        %v2463 = vcombine.high %v2429, %v2445
        %v2465 = vunpack.c.l.s4 1934713408
        %v2466 = vunpack.c.0.s8 %v2465
        %v2467 = vlaneseq
        %v2468 = vshrl.u32 %v2467, 7
        %v2469 = vsub.s32 %v2466, %v2468
        %v2470 = vrot.slane %v2462, %v2469
        %v2472 = vunpack.c.l.s4 1934713408
        %v2473 = vunpack.c.0.s8 %v2472
        %v2474 = vlaneseq
        %v2475 = vshrl.u32 %v2474, 7
        %v2476 = vsub.s32 %v2473, %v2475
        %v2477 = vrot.slane %v2463, %v2476
        %v2478 = vcombine.high %v2454, 0.0
        %v2479 = vcombine.high %v2461, 0.0
        %v2480 = vcombine.high %v2470, 0.0
        %v2481 = vcombine.high %v2477, 0.0
        %v2482 = vcombine.low %v2393, %v2401
        %v2483 = vcombine.high %v2393, %v2401
        %v2485 = vunpack.c.l.s4 1983009808
        %v2486 = vunpack.c.0.s8 %v2485
        %v2487 = vlaneseq
        %v2488 = vshrl.u32 %v2487, 7
        %v2489 = vsub.s32 %v2486, %v2488
        %v2490 = vrot.slane %v2482, %v2489
        %v2492 = vunpack.c.l.s4 1983009808
        %v2493 = vunpack.c.0.s8 %v2492
        %v2494 = vlaneseq
        %v2495 = vshrl.u32 %v2494, 7
        %v2496 = vsub.s32 %v2493, %v2495
        %v2497 = vrot.slane %v2483, %v2496
        %v2498 = vcombine.low %v2397, %v2405
        %v2499 = vcombine.high %v2397, %v2405
        %v2501 = vunpack.c.l.s4 1983009808
        %v2502 = vunpack.c.0.s8 %v2501
        %v2503 = vlaneseq
        %v2504 = vshrl.u32 %v2503, 7
        %v2505 = vsub.s32 %v2502, %v2504
        %v2506 = vrot.slane %v2498, %v2505
        %v2508 = vunpack.c.l.s4 1983009808
        %v2509 = vunpack.c.0.s8 %v2508
        %v2510 = vlaneseq
        %v2511 = vshrl.u32 %v2510, 7
        %v2512 = vsub.s32 %v2509, %v2511
        %v2513 = vrot.slane %v2499, %v2512
        %v2514 = vcombine.low %v2490, %v2506
        %v2515 = vcombine.high %v2490, %v2506
        %v2517 = vunpack.c.l.s4 1934713408
        %v2518 = vunpack.c.0.s8 %v2517
        %v2519 = vlaneseq
        %v2520 = vshrl.u32 %v2519, 7
        %v2521 = vsub.s32 %v2518, %v2520
        %v2522 = vrot.slane %v2514, %v2521
        %v2524 = vunpack.c.l.s4 1934713408
        %v2525 = vunpack.c.0.s8 %v2524
        %v2526 = vlaneseq
        %v2527 = vshrl.u32 %v2526, 7
        %v2528 = vsub.s32 %v2525, %v2527
        %v2529 = vrot.slane %v2515, %v2528
        %v2530 = vcombine.low %v2497, %v2513
        %v2531 = vcombine.high %v2497, %v2513
        %v2533 = vunpack.c.l.s4 1934713408
        %v2534 = vunpack.c.0.s8 %v2533
        %v2535 = vlaneseq
        %v2536 = vshrl.u32 %v2535, 7
        %v2537 = vsub.s32 %v2534, %v2536
        %v2538 = vrot.slane %v2530, %v2537
        %v2540 = vunpack.c.l.s4 1934713408
        %v2541 = vunpack.c.0.s8 %v2540
        %v2542 = vlaneseq
        %v2543 = vshrl.u32 %v2542, 7
        %v2544 = vsub.s32 %v2541, %v2543
        %v2545 = vrot.slane %v2531, %v2544
        %v2546 = vcombine.high %v2522, 0.0
        %v2547 = vcombine.high %v2529, 0.0
        %v2548 = vcombine.high %v2538, 0.0
        %v2549 = vcombine.high %v2545, 0.0
        %2551 = vrot.lane.b32.xlu0 %v2478, 16
        %v2552 = vpop.permute.xlu0 %2551
        %2555 = vrot.lane.b32.xlu0 %v2461, 32
        %v2556 = vpop.permute.xlu0 %2555
        %2559 = vrot.lane.b32.xlu0 %v2479, 48
        %v2560 = vpop.permute.xlu0 %2559
        %2563 = vrot.lane.b32.xlu0 %v2470, 64
        %v2564 = vpop.permute.xlu0 %2563
        %2567 = vrot.lane.b32.xlu0 %v2480, 80
        %v2568 = vpop.permute.xlu0 %2567
        %2571 = vrot.lane.b32.xlu0 %v2477, 96
        %v2572 = vpop.permute.xlu0 %2571
        %2575 = vrot.lane.b32.xlu0 %v2481, 112
        %v2576 = vpop.permute.xlu0 %2575
        %2579 = vrot.lane.b32.xlu0 %v2546, 16
        %v2580 = vpop.permute.xlu0 %2579
        %2583 = vrot.lane.b32.xlu0 %v2529, 32
        %v2584 = vpop.permute.xlu0 %2583
        %2587 = vrot.lane.b32.xlu0 %v2547, 48
        %v2588 = vpop.permute.xlu0 %2587
        %2591 = vrot.lane.b32.xlu0 %v2538, 64
        %v2592 = vpop.permute.xlu0 %2591
        %2595 = vrot.lane.b32.xlu0 %v2548, 80
        %v2596 = vpop.permute.xlu0 %2595
        %2599 = vrot.lane.b32.xlu0 %v2545, 96
        %v2600 = vpop.permute.xlu0 %2599
        %2603 = vrot.lane.b32.xlu0 %v2549, 112
        %v2604 = vpop.permute.xlu0 %2603
        %v2606 = vsel %vm767, %v2454, %v2552
        %v2607 = vsel %vm769, %v2606, %v2556
        %v2608 = vsel %vm771, %v2607, %v2560
        %v2609 = vsel %vm773, %v2608, %v2564
        %v2610 = vsel %vm775, %v2609, %v2568
        %v2611 = vsel %vm777, %v2610, %v2572
        %v2612 = vsel %vm779, %v2611, %v2576
        %v2613 = vsel %vm767, %v2522, %v2580
        %v2614 = vsel %vm769, %v2613, %v2584
        %v2615 = vsel %vm771, %v2614, %v2588
        %v2616 = vsel %vm773, %v2615, %v2592
        %v2617 = vsel %vm775, %v2616, %v2596
        %v2618 = vsel %vm777, %v2617, %v2600
        %v2619 = vsel %vm779, %v2618, %v2604
        %v2622 = vrot.slane %v1018, 4
        %v2623 = vrot.slane %v1025, 4
        %v2628 = vrot.slane %v1462, 4
        %v2629 = vrot.slane %v1469, 4
        %v2634 = vrot.slane %v1930, 4
        %v2635 = vrot.slane %v1937, 4
        %v2640 = vrot.slane %v2382, 4
        %v2641 = vrot.slane %v2389, 4
        %vm2644 = vcmask 1043456
        %v2645 = vsel %vm2644, %v780, %v2622
        %v2646 = vsel %vm2644, %v787, %v2623
        %v2647 = vsel %vm2644, %v1248, %v2628
        %v2648 = vsel %vm2644, %v1255, %v2629
        %v2649 = vsel %vm2644, %v1700, %v2634
        %v2650 = vsel %vm2644, %v1707, %v2635
        %v2651 = vsel %vm2644, %v2144, %v2640
        %v2652 = vsel %vm2644, %v2151, %v2641
        %2654 = vset.pattern.permute.xlu0 0
        %2655 = vperm.xlu0 %2654, %v564
        %v2656 = vpop.permute.xlu0 %2655
        %vm2658 = vcmask 293888
        %v2660 = vsel %vm2658, %v563, 0
        %v2663 = vsel %vm2644, %v2612, 0
        %v2666 = vsel %vm2644, %v2619, 0
        %2668 = vmatprep.subr.mxu0 %v2646
        %2669 = vmatpush1.msra.mxu0 %v2645
        %2670 = vmatprep.subr.mxu0 %v2648
        %2671 = vmatpush1.msra.mxu0 %v2647
        %2672 = vmatprep.subr.mxu0 %v2650
        %2673 = vmatpush1.msra.mxu0 %v2649
        %2674 = vmatprep.subr.mxu0 %v2652
        %2675 = vmatpush1.msra.mxu0 %v2651
        %2676 = vmatprep.subr.mxu0 %v2666
        %2677 = vmatpush1.msra.mxu0 %v2663
        %2678 = vmatprep.subr.mxu0 0.0
        %2679 = vmatpush1.msra.mxu0 0.0
        %2680 = vmatprep.subr.mxu0 0.0
        %2681 = vmatpush1.msra.mxu0 0.0
        %2682 = vmatprep.subr.mxu0 0.0
        %2683 = vmatpush1.msra.mxu0 0.0
        %2684 = vmatprep.subr.mxu0 0.0
        %2685 = vmatpush1.msra.mxu0 0.0
        %2686 = vmatprep.subr.mxu0 0.0
        %2687 = vmatpush1.msra.mxu0 0.0
        %2688 = vmatprep.subr.mxu0 0.0
        %2689 = vmatpush1.msra.mxu0 0.0
        %2690 = vmatprep.subr.mxu0 0.0
        %2691 = vmatpush1.msra.mxu0 0.0
        %2692 = vmatprep.subr.mxu0 0.0
        %2693 = vmatpush1.msra.mxu0 0.0
        %2694 = vmatprep.subr.mxu0 0.0
        %2695 = vmatpush1.msra.mxu0 0.0
        %2696 = vmatprep.subr.mxu0 0.0
        %2697 = vmatpush1.msra.mxu0 0.0
        %2698 = vmatprep.subr.mxu0 0.0
        %2699 = vmatpush1.msra.mxu0 0.0
        %2700 = vmatprep.subr.mxu0 0.0
        %2701 = vmatpush1.msra.mxu0 0.0
        %2702 = vmatprep.subr.mxu0 0.0
        %2703 = vmatpush1.msra.mxu0 0.0
        %2704 = vmatprep.subr.mxu0 0.0
        %2705 = vmatpush1.msra.mxu0 0.0
        %2706 = vmatprep.subr.mxu0 0.0
        %2707 = vmatpush1.msra.mxu0 0.0
        %2708 = vmatprep.subr.mxu0 0.0
        %2709 = vmatpush1.msra.mxu0 0.0
        %2710 = vmatprep.subr.mxu0 0.0
        %2711 = vmatpush1.msra.mxu0 0.0
        %2712 = vmatprep.subr.mxu0 0.0
        %2713 = vmatpush1.msra.mxu0 0.0
        %2714 = vmatprep.subr.mxu0 0.0
        %2715 = vmatpush1.msra.mxu0 0.0
        %2716 = vmatprep.subr.mxu0 0.0
        %2717 = vmatpush1.msra.mxu0 0.0
        %2718 = vmatprep.subr.mxu0 0.0
        %2719 = vmatpush1.msra.mxu0 0.0
        %2720 = vmatprep.subr.mxu0 0.0
        %2721 = vmatpush1.msra.mxu0 0.0
        %2722 = vmatprep.subr.mxu0 0.0
        %2723 = vmatpush1.msra.mxu0 0.0
        %2724 = vmatprep.subr.mxu0 0.0
        %2725 = vmatpush1.msra.mxu0 0.0
        %2726 = vmatprep.subr.mxu0 0.0
        %2727 = vmatpush1.msra.mxu0 0.0
        %2728 = vmatprep.subr.mxu0 0.0
        %2729 = vmatpush1.msra.mxu0 0.0
        %2730 = vmatprep.subr.mxu0 0.0
        %2731 = vmatpush1.msra.mxu0 0.0
        %2732 = vmatprep.mubr.f32.mxu0 0.0
        %2733 = vmatmul.mubr.f32.gmra.mrb[0].mxu0 %v2660
        %v2734 = vpop.f32.mrb[0].mxu0
        %v2735 = vadd.f32 %v2656, %v2734
        %v2736 = vpop.f32.mrb[0].mxu0
        %v2737 = vadd.f32 %v2656, %v2736
        %2738 = vdwg.mxu0
        %v2739 = vadd.f32 %v2735, %v2737
        %2740 = vadd.xlane.f32.xlu0 %v2739
        %v2741 = vpop.xlane.xlu0 %2740
        %v2742 = vmul.f32 %v2735, %v2735
        %v2743 = vmul.f32 %v2737, %v2737
        %v2744 = vadd.f32 %v2742, %v2743
        %2745 = vadd.xlane.f32.xlu0 %v2744
        %v2746 = vpop.xlane.xlu0 %2745
        %v2747 = vmul.f32 %v2741, 0.00390625
        %v2748 = vmul.f32 %v2746, 0.00390625
        %v2749 = vmul.f32 %v2747, %v2747
        %v2750 = vsub.f32 %v2748, %v2749
        %v2751 = vmax.f32 %v2750, 0.0
        %v2752 = vsub.f32 %v2735, %v2747
        %v2753 = vsub.f32 %v2737, %v2747
        %v2754 = vadd.f32 %v2751, 1e-05
        %v2755 = vrsqrt.pop %v2754
        %v2756 = vmul.f32 %v2752, %v2755
        %v2757 = vmul.f32 %v2753, %v2755
        %2759 = vset.pattern.permute.xlu0 0
        %2760 = vperm.xlu0 %2759, %v565
        %v2761 = vpop.permute.xlu0 %2760
        %v2763 = vmul.f32 %v2756, %v2761
        %v2764 = vmul.f32 %v2757, %v2761
        %2766 = vset.pattern.permute.xlu0 0
        %2767 = vperm.xlu0 %2766, %v566
        %v2768 = vpop.permute.xlu0 %2767
        %v2770 = vadd.f32 %v2763, %v2768
        %v2771 = vadd.f32 %v2764, %v2768
        %vm2772 = vcmp.ge.f32.partialorder %v2770, 0.0
        %vm2773 = vcmp.ge.f32.partialorder %v2771, 0.0
        %v2774 = vmul.f32 %v2770, 0.01
        %v2775 = vmul.f32 %v2771, 0.01
        %v2776 = vsel %vm2772, %v2770, %v2774
        %v2777 = vsel %vm2773, %v2771, %v2775
        %s2778 = sld [smem:[#allocation4]]
        %v2779 = vstv %s2778
        %v2780 = vmul.f32 %v2779, %v2776
        %v2781 = vmul.f32 %v2779, %v2777
        %2783 = vrot.lane.b32.xlu0 %v2776, 112
        %v2784 = vpop.permute.xlu0 %2783
        %2786 = vrot.lane.b32.xlu0 %v2776, 96
        %v2787 = vpop.permute.xlu0 %2786
        %2789 = vrot.lane.b32.xlu0 %v2776, 80
        %v2790 = vpop.permute.xlu0 %2789
        %2792 = vrot.lane.b32.xlu0 %v2776, 64
        %v2793 = vpop.permute.xlu0 %2792
        %2795 = vrot.lane.b32.xlu0 %v2776, 48
        %v2796 = vpop.permute.xlu0 %2795
        %2798 = vrot.lane.b32.xlu0 %v2776, 32
        %v2799 = vpop.permute.xlu0 %2798
        %2801 = vrot.lane.b32.xlu0 %v2776, 16
        %v2802 = vpop.permute.xlu0 %2801
        %2805 = vrot.lane.b32.xlu0 %v2777, 112
        %v2806 = vpop.permute.xlu0 %2805
        %2808 = vrot.lane.b32.xlu0 %v2777, 96
        %v2809 = vpop.permute.xlu0 %2808
        %2811 = vrot.lane.b32.xlu0 %v2777, 80
        %v2812 = vpop.permute.xlu0 %2811
        %2814 = vrot.lane.b32.xlu0 %v2777, 64
        %v2815 = vpop.permute.xlu0 %2814
        %2817 = vrot.lane.b32.xlu0 %v2777, 48
        %v2818 = vpop.permute.xlu0 %2817
        %2820 = vrot.lane.b32.xlu0 %v2777, 32
        %v2821 = vpop.permute.xlu0 %2820
        %2823 = vrot.lane.b32.xlu0 %v2777, 16
        %v2824 = vpop.permute.xlu0 %2823
        %v2826 = vcombine.low %v2776, %v2787
        %v2827 = vcombine.high %v2776, %v2787
        %v2829 = vunpack.c.l.s4 1983009808
        %v2830 = vunpack.c.0.s8 %v2829
        %v2831 = vlaneseq
        %v2832 = vshrl.u32 %v2831, 7
        %v2833 = vsub.s32 %v2830, %v2832
        %v2834 = vrot.slane %v2826, %v2833
        %v2836 = vunpack.c.l.s4 1983009808
        %v2837 = vunpack.c.0.s8 %v2836
        %v2838 = vlaneseq
        %v2839 = vshrl.u32 %v2838, 7
        %v2840 = vsub.s32 %v2837, %v2839
        %v2841 = vrot.slane %v2827, %v2840
        %v2842 = vcombine.low %v2784, %v2790
        %v2843 = vcombine.high %v2784, %v2790
        %v2845 = vunpack.c.l.s4 1983009808
        %v2846 = vunpack.c.0.s8 %v2845
        %v2847 = vlaneseq
        %v2848 = vshrl.u32 %v2847, 7
        %v2849 = vsub.s32 %v2846, %v2848
        %v2850 = vrot.slane %v2842, %v2849
        %v2852 = vunpack.c.l.s4 1983009808
        %v2853 = vunpack.c.0.s8 %v2852
        %v2854 = vlaneseq
        %v2855 = vshrl.u32 %v2854, 7
        %v2856 = vsub.s32 %v2853, %v2855
        %v2857 = vrot.slane %v2843, %v2856
        %v2858 = vcombine.low %v2793, %v2799
        %v2859 = vcombine.high %v2793, %v2799
        %v2861 = vunpack.c.l.s4 1983009808
        %v2862 = vunpack.c.0.s8 %v2861
        %v2863 = vlaneseq
        %v2864 = vshrl.u32 %v2863, 7
        %v2865 = vsub.s32 %v2862, %v2864
        %v2866 = vrot.slane %v2858, %v2865
        %v2868 = vunpack.c.l.s4 1983009808
        %v2869 = vunpack.c.0.s8 %v2868
        %v2870 = vlaneseq
        %v2871 = vshrl.u32 %v2870, 7
        %v2872 = vsub.s32 %v2869, %v2871
        %v2873 = vrot.slane %v2859, %v2872
        %v2874 = vcombine.low %v2796, %v2802
        %v2875 = vcombine.high %v2796, %v2802
        %v2877 = vunpack.c.l.s4 1983009808
        %v2878 = vunpack.c.0.s8 %v2877
        %v2879 = vlaneseq
        %v2880 = vshrl.u32 %v2879, 7
        %v2881 = vsub.s32 %v2878, %v2880
        %v2882 = vrot.slane %v2874, %v2881
        %v2884 = vunpack.c.l.s4 1983009808
        %v2885 = vunpack.c.0.s8 %v2884
        %v2886 = vlaneseq
        %v2887 = vshrl.u32 %v2886, 7
        %v2888 = vsub.s32 %v2885, %v2887
        %v2889 = vrot.slane %v2875, %v2888
        %v2890 = vcombine.low %v2834, %v2850
        %v2891 = vcombine.high %v2834, %v2850
        %v2893 = vunpack.c.l.s4 1934713408
        %v2894 = vunpack.c.0.s8 %v2893
        %v2895 = vlaneseq
        %v2896 = vshrl.u32 %v2895, 7
        %v2897 = vsub.s32 %v2894, %v2896
        %v2898 = vrot.slane %v2890, %v2897
        %v2900 = vunpack.c.l.s4 1934713408
        %v2901 = vunpack.c.0.s8 %v2900
        %v2902 = vlaneseq
        %v2903 = vshrl.u32 %v2902, 7
        %v2904 = vsub.s32 %v2901, %v2903
        %v2905 = vrot.slane %v2891, %v2904
        %v2906 = vcombine.low %v2841, %v2857
        %v2907 = vcombine.high %v2841, %v2857
        %v2909 = vunpack.c.l.s4 1934713408
        %v2910 = vunpack.c.0.s8 %v2909
        %v2911 = vlaneseq
        %v2912 = vshrl.u32 %v2911, 7
        %v2913 = vsub.s32 %v2910, %v2912
        %v2914 = vrot.slane %v2906, %v2913
        %v2916 = vunpack.c.l.s4 1934713408
        %v2917 = vunpack.c.0.s8 %v2916
        %v2918 = vlaneseq
        %v2919 = vshrl.u32 %v2918, 7
        %v2920 = vsub.s32 %v2917, %v2919
        %v2921 = vrot.slane %v2907, %v2920
        %v2922 = vcombine.low %v2866, %v2882
        %v2923 = vcombine.high %v2866, %v2882
        %v2925 = vunpack.c.l.s4 1934713408
        %v2926 = vunpack.c.0.s8 %v2925
        %v2927 = vlaneseq
        %v2928 = vshrl.u32 %v2927, 7
        %v2929 = vsub.s32 %v2926, %v2928
        %v2930 = vrot.slane %v2922, %v2929
        %v2932 = vunpack.c.l.s4 1934713408
        %v2933 = vunpack.c.0.s8 %v2932
        %v2934 = vlaneseq
        %v2935 = vshrl.u32 %v2934, 7
        %v2936 = vsub.s32 %v2933, %v2935
        %v2937 = vrot.slane %v2923, %v2936
        %v2938 = vcombine.low %v2873, %v2889
        %v2939 = vcombine.high %v2873, %v2889
        %v2941 = vunpack.c.l.s4 1934713408
        %v2942 = vunpack.c.0.s8 %v2941
        %v2943 = vlaneseq
        %v2944 = vshrl.u32 %v2943, 7
        %v2945 = vsub.s32 %v2942, %v2944
        %v2946 = vrot.slane %v2938, %v2945
        %v2948 = vunpack.c.l.s4 1934713408
        %v2949 = vunpack.c.0.s8 %v2948
        %v2950 = vlaneseq
        %v2951 = vshrl.u32 %v2950, 7
        %v2952 = vsub.s32 %v2949, %v2951
        %v2953 = vrot.slane %v2939, %v2952
        %v2954 = vcombine.low %v2898, %v2930
        %v2955 = vcombine.high %v2898, %v2930
        %v2956 = vcombine.low %v2905, %v2937
        %v2957 = vcombine.high %v2905, %v2937
        %v2958 = vcombine.low %v2914, %v2946
        %v2959 = vcombine.high %v2914, %v2946
        %v2960 = vcombine.low %v2921, %v2953
        %v2961 = vcombine.high %v2921, %v2953
        %v2962 = vcombine.low %v2777, %v2809
        %v2963 = vcombine.high %v2777, %v2809
        %v2965 = vunpack.c.l.s4 1983009808
        %v2966 = vunpack.c.0.s8 %v2965
        %v2967 = vlaneseq
        %v2968 = vshrl.u32 %v2967, 7
        %v2969 = vsub.s32 %v2966, %v2968
        %v2970 = vrot.slane %v2962, %v2969
        %v2972 = vunpack.c.l.s4 1983009808
        %v2973 = vunpack.c.0.s8 %v2972
        %v2974 = vlaneseq
        %v2975 = vshrl.u32 %v2974, 7
        %v2976 = vsub.s32 %v2973, %v2975
        %v2977 = vrot.slane %v2963, %v2976
        %v2978 = vcombine.low %v2806, %v2812
        %v2979 = vcombine.high %v2806, %v2812
        %v2981 = vunpack.c.l.s4 1983009808
        %v2982 = vunpack.c.0.s8 %v2981
        %v2983 = vlaneseq
        %v2984 = vshrl.u32 %v2983, 7
        %v2985 = vsub.s32 %v2982, %v2984
        %v2986 = vrot.slane %v2978, %v2985
        %v2988 = vunpack.c.l.s4 1983009808
        %v2989 = vunpack.c.0.s8 %v2988
        %v2990 = vlaneseq
        %v2991 = vshrl.u32 %v2990, 7
        %v2992 = vsub.s32 %v2989, %v2991
        %v2993 = vrot.slane %v2979, %v2992
        %v2994 = vcombine.low %v2815, %v2821
        %v2995 = vcombine.high %v2815, %v2821
        %v2997 = vunpack.c.l.s4 1983009808
        %v2998 = vunpack.c.0.s8 %v2997
        %v2999 = vlaneseq
        %v3000 = vshrl.u32 %v2999, 7
        %v3001 = vsub.s32 %v2998, %v3000
        %v3002 = vrot.slane %v2994, %v3001
        %v3004 = vunpack.c.l.s4 1983009808
        %v3005 = vunpack.c.0.s8 %v3004
        %v3006 = vlaneseq
        %v3007 = vshrl.u32 %v3006, 7
        %v3008 = vsub.s32 %v3005, %v3007
        %v3009 = vrot.slane %v2995, %v3008
        %v3010 = vcombine.low %v2818, %v2824
        %v3011 = vcombine.high %v2818, %v2824
        %v3013 = vunpack.c.l.s4 1983009808
        %v3014 = vunpack.c.0.s8 %v3013
        %v3015 = vlaneseq
        %v3016 = vshrl.u32 %v3015, 7
        %v3017 = vsub.s32 %v3014, %v3016
        %v3018 = vrot.slane %v3010, %v3017
        %v3020 = vunpack.c.l.s4 1983009808
        %v3021 = vunpack.c.0.s8 %v3020
        %v3022 = vlaneseq
        %v3023 = vshrl.u32 %v3022, 7
        %v3024 = vsub.s32 %v3021, %v3023
        %v3025 = vrot.slane %v3011, %v3024
        %v3026 = vcombine.low %v2970, %v2986
        %v3027 = vcombine.high %v2970, %v2986
        %v3029 = vunpack.c.l.s4 1934713408
        %v3030 = vunpack.c.0.s8 %v3029
        %v3031 = vlaneseq
        %v3032 = vshrl.u32 %v3031, 7
        %v3033 = vsub.s32 %v3030, %v3032
        %v3034 = vrot.slane %v3026, %v3033
        %v3036 = vunpack.c.l.s4 1934713408
        %v3037 = vunpack.c.0.s8 %v3036
        %v3038 = vlaneseq
        %v3039 = vshrl.u32 %v3038, 7
        %v3040 = vsub.s32 %v3037, %v3039
        %v3041 = vrot.slane %v3027, %v3040
        %v3042 = vcombine.low %v2977, %v2993
        %v3043 = vcombine.high %v2977, %v2993
        %v3045 = vunpack.c.l.s4 1934713408
        %v3046 = vunpack.c.0.s8 %v3045
        %v3047 = vlaneseq
        %v3048 = vshrl.u32 %v3047, 7
        %v3049 = vsub.s32 %v3046, %v3048
        %v3050 = vrot.slane %v3042, %v3049
        %v3052 = vunpack.c.l.s4 1934713408
        %v3053 = vunpack.c.0.s8 %v3052
        %v3054 = vlaneseq
        %v3055 = vshrl.u32 %v3054, 7
        %v3056 = vsub.s32 %v3053, %v3055
        %v3057 = vrot.slane %v3043, %v3056
        %v3058 = vcombine.low %v3002, %v3018
        %v3059 = vcombine.high %v3002, %v3018
        %v3061 = vunpack.c.l.s4 1934713408
        %v3062 = vunpack.c.0.s8 %v3061
        %v3063 = vlaneseq
        %v3064 = vshrl.u32 %v3063, 7
        %v3065 = vsub.s32 %v3062, %v3064
        %v3066 = vrot.slane %v3058, %v3065
        %v3068 = vunpack.c.l.s4 1934713408
        %v3069 = vunpack.c.0.s8 %v3068
        %v3070 = vlaneseq
        %v3071 = vshrl.u32 %v3070, 7
        %v3072 = vsub.s32 %v3069, %v3071
        %v3073 = vrot.slane %v3059, %v3072
        %v3074 = vcombine.low %v3009, %v3025
        %v3075 = vcombine.high %v3009, %v3025
        %v3077 = vunpack.c.l.s4 1934713408
        %v3078 = vunpack.c.0.s8 %v3077
        %v3079 = vlaneseq
        %v3080 = vshrl.u32 %v3079, 7
        %v3081 = vsub.s32 %v3078, %v3080
        %v3082 = vrot.slane %v3074, %v3081
        %v3084 = vunpack.c.l.s4 1934713408
        %v3085 = vunpack.c.0.s8 %v3084
        %v3086 = vlaneseq
        %v3087 = vshrl.u32 %v3086, 7
        %v3088 = vsub.s32 %v3085, %v3087
        %v3089 = vrot.slane %v3075, %v3088
        %v3090 = vcombine.low %v3034, %v3066
        %v3091 = vcombine.high %v3034, %v3066
        %v3092 = vcombine.low %v3041, %v3073
        %v3093 = vcombine.high %v3041, %v3073
        %v3094 = vcombine.low %v3050, %v3082
        %v3095 = vcombine.high %v3050, %v3082
        %v3096 = vcombine.low %v3057, %v3089
        %v3097 = vcombine.high %v3057, %v3089
        %3114 = vrot.lane.b32.xlu0 %v2954, 1
        %v3115 = vpop.permute.xlu0 %3114
        %3116 = vrot.lane.b32.xlu0 %v3090, 1
        %v3117 = vpop.permute.xlu0 %3116
        %3118 = vrot.lane.b32.xlu0 %v2955, 1
        %v3119 = vpop.permute.xlu0 %3118
        %3120 = vrot.lane.b32.xlu0 %v3091, 1
        %v3121 = vpop.permute.xlu0 %3120
        %3122 = vrot.lane.b32.xlu0 %v2956, 1
        %v3123 = vpop.permute.xlu0 %3122
        %3124 = vrot.lane.b32.xlu0 %v3092, 1
        %v3125 = vpop.permute.xlu0 %3124
        %3126 = vrot.lane.b32.xlu0 %v2957, 1
        %v3127 = vpop.permute.xlu0 %3126
        %3128 = vrot.lane.b32.xlu0 %v3093, 1
        %v3129 = vpop.permute.xlu0 %3128
        %3130 = vrot.lane.b32.xlu0 %v2958, 1
        %v3131 = vpop.permute.xlu0 %3130
        %3132 = vrot.lane.b32.xlu0 %v3094, 1
        %v3133 = vpop.permute.xlu0 %3132
        %3134 = vrot.lane.b32.xlu0 %v2959, 1
        %v3135 = vpop.permute.xlu0 %3134
        %3136 = vrot.lane.b32.xlu0 %v3095, 1
        %v3137 = vpop.permute.xlu0 %3136
        %3138 = vrot.lane.b32.xlu0 %v2960, 1
        %v3139 = vpop.permute.xlu0 %3138
        %3140 = vrot.lane.b32.xlu0 %v3096, 1
        %v3141 = vpop.permute.xlu0 %3140
        %3142 = vrot.lane.b32.xlu0 %v2961, 1
        %v3143 = vpop.permute.xlu0 %3142
        %3144 = vrot.lane.b32.xlu0 %v3097, 1
        %v3145 = vpop.permute.xlu0 %3144
        %3162 = vst.msk [vmem:[#allocation3 + $0x1] sm:$0xff] %vm554, %v3115
        %3163 = vst.msk [vmem:[#allocation3 + $0x9] sm:$0xff] %vm554, %v3117
        %3164 = vst.msk [vmem:[#allocation3 + $0x19] sm:$0xff] %vm554, %v3119
        %3165 = vst.msk [vmem:[#allocation3 + $0x21] sm:$0xff] %vm554, %v3121
        %3166 = vst.msk [vmem:[#allocation3 + $0x31] sm:$0xff] %vm554, %v3123
        %3167 = vst.msk [vmem:[#allocation3 + $0x39] sm:$0xff] %vm554, %v3125
        %3168 = vst.msk [vmem:[#allocation3 + $0x49] sm:$0xff] %vm554, %v3127
        %3169 = vst.msk [vmem:[#allocation3 + $0x51] sm:$0xff] %vm554, %v3129
        %3170 = vst.msk [vmem:[#allocation3 + $0x61] sm:$0xff] %vm554, %v3131
        %3171 = vst.msk [vmem:[#allocation3 + $0x69] sm:$0xff] %vm554, %v3133
        %3172 = vst.msk [vmem:[#allocation3 + $0x79] sm:$0xff] %vm554, %v3135
        %3173 = vst.msk [vmem:[#allocation3 + $0x81] sm:$0xff] %vm554, %v3137
        %3174 = vst.msk [vmem:[#allocation3 + $0x91] sm:$0xff] %vm554, %v3139
        %3175 = vst.msk [vmem:[#allocation3 + $0x99] sm:$0xff] %vm554, %v3141
        %3176 = vst.msk [vmem:[#allocation3 + $0xa9] sm:$0xff] %vm554, %v3143
        %3177 = vst.msk [vmem:[#allocation3 + $0xb1] sm:$0xff] %vm554, %v3145
        %v3178 = vld [vmem:[%s3] sm:$0xff]
        %s3179 = scalar_lea.vmem %s4, 8
        %v3180 = vld [vmem:[%s3179] sm:$0xff]
        %s3181 = scalar_lea.vmem %s5, 8
        %v3182 = vld [vmem:[%s3181] sm:$0xff]
        %s3183 = scalar_lea.vmem %s6, 8
        %v3184 = vld [vmem:[%s3183] sm:$0xff]
        %v3185 = vld [vmem:[#allocation3] sm:$0xff]
        %v3186 = vld [vmem:[#allocation3 + $0x8] sm:$0xff]
        %v3187 = vld [vmem:[#allocation3 + $0x18] sm:$0xff]
        %v3188 = vld [vmem:[#allocation3 + $0x20] sm:$0xff]
        %v3189 = vld [vmem:[#allocation3 + $0x30] sm:$0xff]
        %v3190 = vld [vmem:[#allocation3 + $0x38] sm:$0xff]
        %v3191 = vld [vmem:[#allocation3 + $0x48] sm:$0xff]
        %v3192 = vld [vmem:[#allocation3 + $0x50] sm:$0xff]
        %v3193 = vld [vmem:[#allocation3 + $0x60] sm:$0xff]
        %v3194 = vld [vmem:[#allocation3 + $0x68] sm:$0xff]
        %v3195 = vld [vmem:[#allocation3 + $0x78] sm:$0xff]
        %v3196 = vld [vmem:[#allocation3 + $0x80] sm:$0xff]
        %v3197 = vld [vmem:[#allocation3 + $0x90] sm:$0xff]
        %v3198 = vld [vmem:[#allocation3 + $0x98] sm:$0xff]
        %v3199 = vld [vmem:[#allocation3 + $0xa8] sm:$0xff]
        %v3200 = vld [vmem:[#allocation3 + $0xb0] sm:$0xff]
        %v3201 = vcombine.low %v3185, %v3189
        %v3202 = vcombine.high %v3185, %v3189
        %v3204 = vunpack.c.l.s4 1983009808
        %v3205 = vunpack.c.0.s8 %v3204
        %v3206 = vlaneseq
        %v3207 = vshrl.u32 %v3206, 7
        %v3208 = vsub.s32 %v3205, %v3207
        %v3209 = vrot.slane %v3201, %v3208
        %v3211 = vunpack.c.l.s4 1983009808
        %v3212 = vunpack.c.0.s8 %v3211
        %v3213 = vlaneseq
        %v3214 = vshrl.u32 %v3213, 7
        %v3215 = vsub.s32 %v3212, %v3214
        %v3216 = vrot.slane %v3202, %v3215
        %v3217 = vcombine.low %v3187, %v3191
        %v3218 = vcombine.high %v3187, %v3191
        %v3220 = vunpack.c.l.s4 1983009808
        %v3221 = vunpack.c.0.s8 %v3220
        %v3222 = vlaneseq
        %v3223 = vshrl.u32 %v3222, 7
        %v3224 = vsub.s32 %v3221, %v3223
        %v3225 = vrot.slane %v3217, %v3224
        %v3227 = vunpack.c.l.s4 1983009808
        %v3228 = vunpack.c.0.s8 %v3227
        %v3229 = vlaneseq
        %v3230 = vshrl.u32 %v3229, 7
        %v3231 = vsub.s32 %v3228, %v3230
        %v3232 = vrot.slane %v3218, %v3231
        %v3233 = vcombine.low %v3193, %v3197
        %v3234 = vcombine.high %v3193, %v3197
        %v3236 = vunpack.c.l.s4 1983009808
        %v3237 = vunpack.c.0.s8 %v3236
        %v3238 = vlaneseq
        %v3239 = vshrl.u32 %v3238, 7
        %v3240 = vsub.s32 %v3237, %v3239
        %v3241 = vrot.slane %v3233, %v3240
        %v3243 = vunpack.c.l.s4 1983009808
        %v3244 = vunpack.c.0.s8 %v3243
        %v3245 = vlaneseq
        %v3246 = vshrl.u32 %v3245, 7
        %v3247 = vsub.s32 %v3244, %v3246
        %v3248 = vrot.slane %v3234, %v3247
        %v3249 = vcombine.low %v3195, %v3199
        %v3250 = vcombine.high %v3195, %v3199
        %v3252 = vunpack.c.l.s4 1983009808
        %v3253 = vunpack.c.0.s8 %v3252
        %v3254 = vlaneseq
        %v3255 = vshrl.u32 %v3254, 7
        %v3256 = vsub.s32 %v3253, %v3255
        %v3257 = vrot.slane %v3249, %v3256
        %v3259 = vunpack.c.l.s4 1983009808
        %v3260 = vunpack.c.0.s8 %v3259
        %v3261 = vlaneseq
        %v3262 = vshrl.u32 %v3261, 7
        %v3263 = vsub.s32 %v3260, %v3262
        %v3264 = vrot.slane %v3250, %v3263
        %v3265 = vcombine.low %v3209, %v3225
        %v3266 = vcombine.high %v3209, %v3225
        %v3268 = vunpack.c.l.s4 1934713408
        %v3269 = vunpack.c.0.s8 %v3268
        %v3270 = vlaneseq
        %v3271 = vshrl.u32 %v3270, 7
        %v3272 = vsub.s32 %v3269, %v3271
        %v3273 = vrot.slane %v3265, %v3272
        %v3275 = vunpack.c.l.s4 1934713408
        %v3276 = vunpack.c.0.s8 %v3275
        %v3277 = vlaneseq
        %v3278 = vshrl.u32 %v3277, 7
        %v3279 = vsub.s32 %v3276, %v3278
        %v3280 = vrot.slane %v3266, %v3279
        %v3281 = vcombine.low %v3216, %v3232
        %v3282 = vcombine.high %v3216, %v3232
        %v3284 = vunpack.c.l.s4 1934713408
        %v3285 = vunpack.c.0.s8 %v3284
        %v3286 = vlaneseq
        %v3287 = vshrl.u32 %v3286, 7
        %v3288 = vsub.s32 %v3285, %v3287
        %v3289 = vrot.slane %v3281, %v3288
        %v3291 = vunpack.c.l.s4 1934713408
        %v3292 = vunpack.c.0.s8 %v3291
        %v3293 = vlaneseq
        %v3294 = vshrl.u32 %v3293, 7
        %v3295 = vsub.s32 %v3292, %v3294
        %v3296 = vrot.slane %v3282, %v3295
        %v3297 = vcombine.low %v3241, %v3257
        %v3298 = vcombine.high %v3241, %v3257
        %v3300 = vunpack.c.l.s4 1934713408
        %v3301 = vunpack.c.0.s8 %v3300
        %v3302 = vlaneseq
        %v3303 = vshrl.u32 %v3302, 7
        %v3304 = vsub.s32 %v3301, %v3303
        %v3305 = vrot.slane %v3297, %v3304
        %v3307 = vunpack.c.l.s4 1934713408
        %v3308 = vunpack.c.0.s8 %v3307
        %v3309 = vlaneseq
        %v3310 = vshrl.u32 %v3309, 7
        %v3311 = vsub.s32 %v3308, %v3310
        %v3312 = vrot.slane %v3298, %v3311
        %v3313 = vcombine.low %v3248, %v3264
        %v3314 = vcombine.high %v3248, %v3264
        %v3316 = vunpack.c.l.s4 1934713408
        %v3317 = vunpack.c.0.s8 %v3316
        %v3318 = vlaneseq
        %v3319 = vshrl.u32 %v3318, 7
        %v3320 = vsub.s32 %v3317, %v3319
        %v3321 = vrot.slane %v3313, %v3320
        %v3323 = vunpack.c.l.s4 1934713408
        %v3324 = vunpack.c.0.s8 %v3323
        %v3325 = vlaneseq
        %v3326 = vshrl.u32 %v3325, 7
        %v3327 = vsub.s32 %v3324, %v3326
        %v3328 = vrot.slane %v3314, %v3327
        %v3329 = vcombine.low %v3273, %v3305
        %v3330 = vcombine.high %v3273, %v3305
        %v3331 = vcombine.low %v3280, %v3312
        %v3332 = vcombine.high %v3280, %v3312
        %v3333 = vcombine.low %v3289, %v3321
        %v3334 = vcombine.high %v3289, %v3321
        %v3335 = vcombine.low %v3296, %v3328
        %v3336 = vcombine.high %v3296, %v3328
        %v3337 = vcombine.low %v3186, %v3190
        %v3338 = vcombine.high %v3186, %v3190
        %v3340 = vunpack.c.l.s4 1983009808
        %v3341 = vunpack.c.0.s8 %v3340
        %v3342 = vlaneseq
        %v3343 = vshrl.u32 %v3342, 7
        %v3344 = vsub.s32 %v3341, %v3343
        %v3345 = vrot.slane %v3337, %v3344
        %v3347 = vunpack.c.l.s4 1983009808
        %v3348 = vunpack.c.0.s8 %v3347
        %v3349 = vlaneseq
        %v3350 = vshrl.u32 %v3349, 7
        %v3351 = vsub.s32 %v3348, %v3350
        %v3352 = vrot.slane %v3338, %v3351
        %v3353 = vcombine.low %v3188, %v3192
        %v3354 = vcombine.high %v3188, %v3192
        %v3356 = vunpack.c.l.s4 1983009808
        %v3357 = vunpack.c.0.s8 %v3356
        %v3358 = vlaneseq
        %v3359 = vshrl.u32 %v3358, 7
        %v3360 = vsub.s32 %v3357, %v3359
        %v3361 = vrot.slane %v3353, %v3360
        %v3363 = vunpack.c.l.s4 1983009808
        %v3364 = vunpack.c.0.s8 %v3363
        %v3365 = vlaneseq
        %v3366 = vshrl.u32 %v3365, 7
        %v3367 = vsub.s32 %v3364, %v3366
        %v3368 = vrot.slane %v3354, %v3367
        %v3369 = vcombine.low %v3194, %v3198
        %v3370 = vcombine.high %v3194, %v3198
        %v3372 = vunpack.c.l.s4 1983009808
        %v3373 = vunpack.c.0.s8 %v3372
        %v3374 = vlaneseq
        %v3375 = vshrl.u32 %v3374, 7
        %v3376 = vsub.s32 %v3373, %v3375
        %v3377 = vrot.slane %v3369, %v3376
        %v3379 = vunpack.c.l.s4 1983009808
        %v3380 = vunpack.c.0.s8 %v3379
        %v3381 = vlaneseq
        %v3382 = vshrl.u32 %v3381, 7
        %v3383 = vsub.s32 %v3380, %v3382
        %v3384 = vrot.slane %v3370, %v3383
        %v3385 = vcombine.low %v3196, %v3200
        %v3386 = vcombine.high %v3196, %v3200
        %v3388 = vunpack.c.l.s4 1983009808
        %v3389 = vunpack.c.0.s8 %v3388
        %v3390 = vlaneseq
        %v3391 = vshrl.u32 %v3390, 7
        %v3392 = vsub.s32 %v3389, %v3391
        %v3393 = vrot.slane %v3385, %v3392
        %v3395 = vunpack.c.l.s4 1983009808
        %v3396 = vunpack.c.0.s8 %v3395
        %v3397 = vlaneseq
        %v3398 = vshrl.u32 %v3397, 7
        %v3399 = vsub.s32 %v3396, %v3398
        %v3400 = vrot.slane %v3386, %v3399
        %v3401 = vcombine.low %v3345, %v3361
        %v3402 = vcombine.high %v3345, %v3361
        %v3404 = vunpack.c.l.s4 1934713408
        %v3405 = vunpack.c.0.s8 %v3404
        %v3406 = vlaneseq
        %v3407 = vshrl.u32 %v3406, 7
        %v3408 = vsub.s32 %v3405, %v3407
        %v3409 = vrot.slane %v3401, %v3408
        %v3411 = vunpack.c.l.s4 1934713408
        %v3412 = vunpack.c.0.s8 %v3411
        %v3413 = vlaneseq
        %v3414 = vshrl.u32 %v3413, 7
        %v3415 = vsub.s32 %v3412, %v3414
        %v3416 = vrot.slane %v3402, %v3415
        %v3417 = vcombine.low %v3352, %v3368
        %v3418 = vcombine.high %v3352, %v3368
        %v3420 = vunpack.c.l.s4 1934713408
        %v3421 = vunpack.c.0.s8 %v3420
        %v3422 = vlaneseq
        %v3423 = vshrl.u32 %v3422, 7
        %v3424 = vsub.s32 %v3421, %v3423
        %v3425 = vrot.slane %v3417, %v3424
        %v3427 = vunpack.c.l.s4 1934713408
        %v3428 = vunpack.c.0.s8 %v3427
        %v3429 = vlaneseq
        %v3430 = vshrl.u32 %v3429, 7
        %v3431 = vsub.s32 %v3428, %v3430
        %v3432 = vrot.slane %v3418, %v3431
        %v3433 = vcombine.low %v3377, %v3393
        %v3434 = vcombine.high %v3377, %v3393
        %v3436 = vunpack.c.l.s4 1934713408
        %v3437 = vunpack.c.0.s8 %v3436
        %v3438 = vlaneseq
        %v3439 = vshrl.u32 %v3438, 7
        %v3440 = vsub.s32 %v3437, %v3439
        %v3441 = vrot.slane %v3433, %v3440
        %v3443 = vunpack.c.l.s4 1934713408
        %v3444 = vunpack.c.0.s8 %v3443
        %v3445 = vlaneseq
        %v3446 = vshrl.u32 %v3445, 7
        %v3447 = vsub.s32 %v3444, %v3446
        %v3448 = vrot.slane %v3434, %v3447
        %v3449 = vcombine.low %v3384, %v3400
        %v3450 = vcombine.high %v3384, %v3400
        %v3452 = vunpack.c.l.s4 1934713408
        %v3453 = vunpack.c.0.s8 %v3452
        %v3454 = vlaneseq
        %v3455 = vshrl.u32 %v3454, 7
        %v3456 = vsub.s32 %v3453, %v3455
        %v3457 = vrot.slane %v3449, %v3456
        %v3459 = vunpack.c.l.s4 1934713408
        %v3460 = vunpack.c.0.s8 %v3459
        %v3461 = vlaneseq
        %v3462 = vshrl.u32 %v3461, 7
        %v3463 = vsub.s32 %v3460, %v3462
        %v3464 = vrot.slane %v3450, %v3463
        %v3465 = vcombine.low %v3409, %v3441
        %v3466 = vcombine.high %v3409, %v3441
        %v3467 = vcombine.low %v3416, %v3448
        %v3468 = vcombine.high %v3416, %v3448
        %v3469 = vcombine.low %v3425, %v3457
        %v3470 = vcombine.high %v3425, %v3457
        %v3471 = vcombine.low %v3432, %v3464
        %v3472 = vcombine.high %v3432, %v3464
        %3474 = vrot.lane.b32.xlu0 %v3330, 16
        %v3475 = vpop.permute.xlu0 %3474
        %3478 = vrot.lane.b32.xlu0 %v3331, 32
        %v3479 = vpop.permute.xlu0 %3478
        %3482 = vrot.lane.b32.xlu0 %v3332, 48
        %v3483 = vpop.permute.xlu0 %3482
        %3486 = vrot.lane.b32.xlu0 %v3333, 64
        %v3487 = vpop.permute.xlu0 %3486
        %3490 = vrot.lane.b32.xlu0 %v3334, 80
        %v3491 = vpop.permute.xlu0 %3490
        %3494 = vrot.lane.b32.xlu0 %v3335, 96
        %v3495 = vpop.permute.xlu0 %3494
        %3498 = vrot.lane.b32.xlu0 %v3336, 112
        %v3499 = vpop.permute.xlu0 %3498
        %3502 = vrot.lane.b32.xlu0 %v3466, 16
        %v3503 = vpop.permute.xlu0 %3502
        %3506 = vrot.lane.b32.xlu0 %v3467, 32
        %v3507 = vpop.permute.xlu0 %3506
        %3510 = vrot.lane.b32.xlu0 %v3468, 48
        %v3511 = vpop.permute.xlu0 %3510
        %3514 = vrot.lane.b32.xlu0 %v3469, 64
        %v3515 = vpop.permute.xlu0 %3514
        %3518 = vrot.lane.b32.xlu0 %v3470, 80
        %v3519 = vpop.permute.xlu0 %3518
        %3522 = vrot.lane.b32.xlu0 %v3471, 96
        %v3523 = vpop.permute.xlu0 %3522
        %3526 = vrot.lane.b32.xlu0 %v3472, 112
        %v3527 = vpop.permute.xlu0 %3526
        %v3529 = vsel %vm767, %v3329, %v3475
        %v3530 = vsel %vm769, %v3529, %v3479
        %v3531 = vsel %vm771, %v3530, %v3483
        %v3532 = vsel %vm773, %v3531, %v3487
        %v3533 = vsel %vm775, %v3532, %v3491
        %v3534 = vsel %vm777, %v3533, %v3495
        %v3535 = vsel %vm779, %v3534, %v3499
        %v3536 = vsel %vm767, %v3465, %v3503
        %v3537 = vsel %vm769, %v3536, %v3507
        %v3538 = vsel %vm771, %v3537, %v3511
        %v3539 = vsel %vm773, %v3538, %v3515
        %v3540 = vsel %vm775, %v3539, %v3519
        %v3541 = vsel %vm777, %v3540, %v3523
        %v3542 = vsel %vm779, %v3541, %v3527
        %3559 = vrot.lane.b32.xlu0 %v3185, 127
        %v3560 = vpop.permute.xlu0 %3559
        %3561 = vrot.lane.b32.xlu0 %v3186, 127
        %v3562 = vpop.permute.xlu0 %3561
        %3563 = vrot.lane.b32.xlu0 %v3187, 127
        %v3564 = vpop.permute.xlu0 %3563
        %3565 = vrot.lane.b32.xlu0 %v3188, 127
        %v3566 = vpop.permute.xlu0 %3565
        %3567 = vrot.lane.b32.xlu0 %v3189, 127
        %v3568 = vpop.permute.xlu0 %3567
        %3569 = vrot.lane.b32.xlu0 %v3190, 127
        %v3570 = vpop.permute.xlu0 %3569
        %3571 = vrot.lane.b32.xlu0 %v3191, 127
        %v3572 = vpop.permute.xlu0 %3571
        %3573 = vrot.lane.b32.xlu0 %v3192, 127
        %v3574 = vpop.permute.xlu0 %3573
        %3575 = vrot.lane.b32.xlu0 %v3193, 127
        %v3576 = vpop.permute.xlu0 %3575
        %3577 = vrot.lane.b32.xlu0 %v3194, 127
        %v3578 = vpop.permute.xlu0 %3577
        %3579 = vrot.lane.b32.xlu0 %v3195, 127
        %v3580 = vpop.permute.xlu0 %3579
        %3581 = vrot.lane.b32.xlu0 %v3196, 127
        %v3582 = vpop.permute.xlu0 %3581
        %3583 = vrot.lane.b32.xlu0 %v3197, 127
        %v3584 = vpop.permute.xlu0 %3583
        %3585 = vrot.lane.b32.xlu0 %v3198, 127
        %v3586 = vpop.permute.xlu0 %3585
        %3587 = vrot.lane.b32.xlu0 %v3199, 127
        %v3588 = vpop.permute.xlu0 %3587
        %3589 = vrot.lane.b32.xlu0 %v3200, 127
        %v3590 = vpop.permute.xlu0 %3589
        %v3607 = vcombine.low %v3560, %v3568
        %v3608 = vcombine.high %v3560, %v3568
        %v3610 = vunpack.c.l.s4 1983009808
        %v3611 = vunpack.c.0.s8 %v3610
        %v3612 = vlaneseq
        %v3613 = vshrl.u32 %v3612, 7
        %v3614 = vsub.s32 %v3611, %v3613
        %v3615 = vrot.slane %v3607, %v3614
        %v3617 = vunpack.c.l.s4 1983009808
        %v3618 = vunpack.c.0.s8 %v3617
        %v3619 = vlaneseq
        %v3620 = vshrl.u32 %v3619, 7
        %v3621 = vsub.s32 %v3618, %v3620
        %v3622 = vrot.slane %v3608, %v3621
        %v3623 = vcombine.low %v3564, %v3572
        %v3624 = vcombine.high %v3564, %v3572
        %v3626 = vunpack.c.l.s4 1983009808
        %v3627 = vunpack.c.0.s8 %v3626
        %v3628 = vlaneseq
        %v3629 = vshrl.u32 %v3628, 7
        %v3630 = vsub.s32 %v3627, %v3629
        %v3631 = vrot.slane %v3623, %v3630
        %v3633 = vunpack.c.l.s4 1983009808
        %v3634 = vunpack.c.0.s8 %v3633
        %v3635 = vlaneseq
        %v3636 = vshrl.u32 %v3635, 7
        %v3637 = vsub.s32 %v3634, %v3636
        %v3638 = vrot.slane %v3624, %v3637
        %v3639 = vcombine.low %v3576, %v3584
        %v3640 = vcombine.high %v3576, %v3584
        %v3642 = vunpack.c.l.s4 1983009808
        %v3643 = vunpack.c.0.s8 %v3642
        %v3644 = vlaneseq
        %v3645 = vshrl.u32 %v3644, 7
        %v3646 = vsub.s32 %v3643, %v3645
        %v3647 = vrot.slane %v3639, %v3646
        %v3649 = vunpack.c.l.s4 1983009808
        %v3650 = vunpack.c.0.s8 %v3649
        %v3651 = vlaneseq
        %v3652 = vshrl.u32 %v3651, 7
        %v3653 = vsub.s32 %v3650, %v3652
        %v3654 = vrot.slane %v3640, %v3653
        %v3655 = vcombine.low %v3580, %v3588
        %v3656 = vcombine.high %v3580, %v3588
        %v3658 = vunpack.c.l.s4 1983009808
        %v3659 = vunpack.c.0.s8 %v3658
        %v3660 = vlaneseq
        %v3661 = vshrl.u32 %v3660, 7
        %v3662 = vsub.s32 %v3659, %v3661
        %v3663 = vrot.slane %v3655, %v3662
        %v3665 = vunpack.c.l.s4 1983009808
        %v3666 = vunpack.c.0.s8 %v3665
        %v3667 = vlaneseq
        %v3668 = vshrl.u32 %v3667, 7
        %v3669 = vsub.s32 %v3666, %v3668
        %v3670 = vrot.slane %v3656, %v3669
        %v3671 = vcombine.low %v3615, %v3631
        %v3672 = vcombine.high %v3615, %v3631
        %v3674 = vunpack.c.l.s4 1934713408
        %v3675 = vunpack.c.0.s8 %v3674
        %v3676 = vlaneseq
        %v3677 = vshrl.u32 %v3676, 7
        %v3678 = vsub.s32 %v3675, %v3677
        %v3679 = vrot.slane %v3671, %v3678
        %v3681 = vunpack.c.l.s4 1934713408
        %v3682 = vunpack.c.0.s8 %v3681
        %v3683 = vlaneseq
        %v3684 = vshrl.u32 %v3683, 7
        %v3685 = vsub.s32 %v3682, %v3684
        %v3686 = vrot.slane %v3672, %v3685
        %v3687 = vcombine.low %v3622, %v3638
        %v3688 = vcombine.high %v3622, %v3638
        %v3690 = vunpack.c.l.s4 1934713408
        %v3691 = vunpack.c.0.s8 %v3690
        %v3692 = vlaneseq
        %v3693 = vshrl.u32 %v3692, 7
        %v3694 = vsub.s32 %v3691, %v3693
        %v3695 = vrot.slane %v3687, %v3694
        %v3697 = vunpack.c.l.s4 1934713408
        %v3698 = vunpack.c.0.s8 %v3697
        %v3699 = vlaneseq
        %v3700 = vshrl.u32 %v3699, 7
        %v3701 = vsub.s32 %v3698, %v3700
        %v3702 = vrot.slane %v3688, %v3701
        %v3703 = vcombine.low %v3647, %v3663
        %v3704 = vcombine.high %v3647, %v3663
        %v3706 = vunpack.c.l.s4 1934713408
        %v3707 = vunpack.c.0.s8 %v3706
        %v3708 = vlaneseq
        %v3709 = vshrl.u32 %v3708, 7
        %v3710 = vsub.s32 %v3707, %v3709
        %v3711 = vrot.slane %v3703, %v3710
        %v3713 = vunpack.c.l.s4 1934713408
        %v3714 = vunpack.c.0.s8 %v3713
        %v3715 = vlaneseq
        %v3716 = vshrl.u32 %v3715, 7
        %v3717 = vsub.s32 %v3714, %v3716
        %v3718 = vrot.slane %v3704, %v3717
        %v3719 = vcombine.low %v3654, %v3670
        %v3720 = vcombine.high %v3654, %v3670
        %v3722 = vunpack.c.l.s4 1934713408
        %v3723 = vunpack.c.0.s8 %v3722
        %v3724 = vlaneseq
        %v3725 = vshrl.u32 %v3724, 7
        %v3726 = vsub.s32 %v3723, %v3725
        %v3727 = vrot.slane %v3719, %v3726
        %v3729 = vunpack.c.l.s4 1934713408
        %v3730 = vunpack.c.0.s8 %v3729
        %v3731 = vlaneseq
        %v3732 = vshrl.u32 %v3731, 7
        %v3733 = vsub.s32 %v3730, %v3732
        %v3734 = vrot.slane %v3720, %v3733
        %v3735 = vcombine.low %v3679, %v3711
        %v3736 = vcombine.high %v3679, %v3711
        %v3737 = vcombine.low %v3686, %v3718
        %v3738 = vcombine.high %v3686, %v3718
        %v3739 = vcombine.low %v3695, %v3727
        %v3740 = vcombine.high %v3695, %v3727
        %v3741 = vcombine.low %v3702, %v3734
        %v3742 = vcombine.high %v3702, %v3734
        %v3743 = vcombine.low %v3562, %v3570
        %v3744 = vcombine.high %v3562, %v3570
        %v3746 = vunpack.c.l.s4 1983009808
        %v3747 = vunpack.c.0.s8 %v3746
        %v3748 = vlaneseq
        %v3749 = vshrl.u32 %v3748, 7
        %v3750 = vsub.s32 %v3747, %v3749
        %v3751 = vrot.slane %v3743, %v3750
        %v3753 = vunpack.c.l.s4 1983009808
        %v3754 = vunpack.c.0.s8 %v3753
        %v3755 = vlaneseq
        %v3756 = vshrl.u32 %v3755, 7
        %v3757 = vsub.s32 %v3754, %v3756
        %v3758 = vrot.slane %v3744, %v3757
        %v3759 = vcombine.low %v3566, %v3574
        %v3760 = vcombine.high %v3566, %v3574
        %v3762 = vunpack.c.l.s4 1983009808
        %v3763 = vunpack.c.0.s8 %v3762
        %v3764 = vlaneseq
        %v3765 = vshrl.u32 %v3764, 7
        %v3766 = vsub.s32 %v3763, %v3765
        %v3767 = vrot.slane %v3759, %v3766
        %v3769 = vunpack.c.l.s4 1983009808
        %v3770 = vunpack.c.0.s8 %v3769
        %v3771 = vlaneseq
        %v3772 = vshrl.u32 %v3771, 7
        %v3773 = vsub.s32 %v3770, %v3772
        %v3774 = vrot.slane %v3760, %v3773
        %v3775 = vcombine.low %v3578, %v3586
        %v3776 = vcombine.high %v3578, %v3586
        %v3778 = vunpack.c.l.s4 1983009808
        %v3779 = vunpack.c.0.s8 %v3778
        %v3780 = vlaneseq
        %v3781 = vshrl.u32 %v3780, 7
        %v3782 = vsub.s32 %v3779, %v3781
        %v3783 = vrot.slane %v3775, %v3782
        %v3785 = vunpack.c.l.s4 1983009808
        %v3786 = vunpack.c.0.s8 %v3785
        %v3787 = vlaneseq
        %v3788 = vshrl.u32 %v3787, 7
        %v3789 = vsub.s32 %v3786, %v3788
        %v3790 = vrot.slane %v3776, %v3789
        %v3791 = vcombine.low %v3582, %v3590
        %v3792 = vcombine.high %v3582, %v3590
        %v3794 = vunpack.c.l.s4 1983009808
        %v3795 = vunpack.c.0.s8 %v3794
        %v3796 = vlaneseq
        %v3797 = vshrl.u32 %v3796, 7
        %v3798 = vsub.s32 %v3795, %v3797
        %v3799 = vrot.slane %v3791, %v3798
        %v3801 = vunpack.c.l.s4 1983009808
        %v3802 = vunpack.c.0.s8 %v3801
        %v3803 = vlaneseq
        %v3804 = vshrl.u32 %v3803, 7
        %v3805 = vsub.s32 %v3802, %v3804
        %v3806 = vrot.slane %v3792, %v3805
        %v3807 = vcombine.low %v3751, %v3767
        %v3808 = vcombine.high %v3751, %v3767
        %v3810 = vunpack.c.l.s4 1934713408
        %v3811 = vunpack.c.0.s8 %v3810
        %v3812 = vlaneseq
        %v3813 = vshrl.u32 %v3812, 7
        %v3814 = vsub.s32 %v3811, %v3813
        %v3815 = vrot.slane %v3807, %v3814
        %v3817 = vunpack.c.l.s4 1934713408
        %v3818 = vunpack.c.0.s8 %v3817
        %v3819 = vlaneseq
        %v3820 = vshrl.u32 %v3819, 7
        %v3821 = vsub.s32 %v3818, %v3820
        %v3822 = vrot.slane %v3808, %v3821
        %v3823 = vcombine.low %v3758, %v3774
        %v3824 = vcombine.high %v3758, %v3774
        %v3826 = vunpack.c.l.s4 1934713408
        %v3827 = vunpack.c.0.s8 %v3826
        %v3828 = vlaneseq
        %v3829 = vshrl.u32 %v3828, 7
        %v3830 = vsub.s32 %v3827, %v3829
        %v3831 = vrot.slane %v3823, %v3830
        %v3833 = vunpack.c.l.s4 1934713408
        %v3834 = vunpack.c.0.s8 %v3833
        %v3835 = vlaneseq
        %v3836 = vshrl.u32 %v3835, 7
        %v3837 = vsub.s32 %v3834, %v3836
        %v3838 = vrot.slane %v3824, %v3837
        %v3839 = vcombine.low %v3783, %v3799
        %v3840 = vcombine.high %v3783, %v3799
        %v3842 = vunpack.c.l.s4 1934713408
        %v3843 = vunpack.c.0.s8 %v3842
        %v3844 = vlaneseq
        %v3845 = vshrl.u32 %v3844, 7
        %v3846 = vsub.s32 %v3843, %v3845
        %v3847 = vrot.slane %v3839, %v3846
        %v3849 = vunpack.c.l.s4 1934713408
        %v3850 = vunpack.c.0.s8 %v3849
        %v3851 = vlaneseq
        %v3852 = vshrl.u32 %v3851, 7
        %v3853 = vsub.s32 %v3850, %v3852
        %v3854 = vrot.slane %v3840, %v3853
        %v3855 = vcombine.low %v3790, %v3806
        %v3856 = vcombine.high %v3790, %v3806
        %v3858 = vunpack.c.l.s4 1934713408
        %v3859 = vunpack.c.0.s8 %v3858
        %v3860 = vlaneseq
        %v3861 = vshrl.u32 %v3860, 7
        %v3862 = vsub.s32 %v3859, %v3861
        %v3863 = vrot.slane %v3855, %v3862
        %v3865 = vunpack.c.l.s4 1934713408
        %v3866 = vunpack.c.0.s8 %v3865
        %v3867 = vlaneseq
        %v3868 = vshrl.u32 %v3867, 7
        %v3869 = vsub.s32 %v3866, %v3868
        %v3870 = vrot.slane %v3856, %v3869
        %v3871 = vcombine.low %v3815, %v3847
        %v3872 = vcombine.high %v3815, %v3847
        %v3873 = vcombine.low %v3822, %v3854
        %v3874 = vcombine.high %v3822, %v3854
        %v3875 = vcombine.low %v3831, %v3863
        %v3876 = vcombine.high %v3831, %v3863
        %v3877 = vcombine.low %v3838, %v3870
        %v3878 = vcombine.high %v3838, %v3870
        %3880 = vrot.lane.b32.xlu0 %v3736, 16
        %v3881 = vpop.permute.xlu0 %3880
        %3884 = vrot.lane.b32.xlu0 %v3737, 32
        %v3885 = vpop.permute.xlu0 %3884
        %3888 = vrot.lane.b32.xlu0 %v3738, 48
        %v3889 = vpop.permute.xlu0 %3888
        %3892 = vrot.lane.b32.xlu0 %v3739, 64
        %v3893 = vpop.permute.xlu0 %3892
        %3896 = vrot.lane.b32.xlu0 %v3740, 80
        %v3897 = vpop.permute.xlu0 %3896
        %3900 = vrot.lane.b32.xlu0 %v3741, 96
        %v3901 = vpop.permute.xlu0 %3900
        %3904 = vrot.lane.b32.xlu0 %v3742, 112
        %v3905 = vpop.permute.xlu0 %3904
        %3908 = vrot.lane.b32.xlu0 %v3872, 16
        %v3909 = vpop.permute.xlu0 %3908
        %3912 = vrot.lane.b32.xlu0 %v3873, 32
        %v3913 = vpop.permute.xlu0 %3912
        %3916 = vrot.lane.b32.xlu0 %v3874, 48
        %v3917 = vpop.permute.xlu0 %3916
        %3920 = vrot.lane.b32.xlu0 %v3875, 64
        %v3921 = vpop.permute.xlu0 %3920
        %3924 = vrot.lane.b32.xlu0 %v3876, 80
        %v3925 = vpop.permute.xlu0 %3924
        %3928 = vrot.lane.b32.xlu0 %v3877, 96
        %v3929 = vpop.permute.xlu0 %3928
        %3932 = vrot.lane.b32.xlu0 %v3878, 112
        %v3933 = vpop.permute.xlu0 %3932
        %v3935 = vsel %vm767, %v3735, %v3881
        %v3936 = vsel %vm769, %v3935, %v3885
        %v3937 = vsel %vm771, %v3936, %v3889
        %v3938 = vsel %vm773, %v3937, %v3893
        %v3939 = vsel %vm775, %v3938, %v3897
        %v3940 = vsel %vm777, %v3939, %v3901
        %v3941 = vsel %vm779, %v3940, %v3905
        %v3942 = vsel %vm767, %v3871, %v3909
        %v3943 = vsel %vm769, %v3942, %v3913
        %v3944 = vsel %vm771, %v3943, %v3917
        %v3945 = vsel %vm773, %v3944, %v3921
        %v3946 = vsel %vm775, %v3945, %v3925
        %v3947 = vsel %vm777, %v3946, %v3929
        %v3948 = vsel %vm779, %v3947, %v3933
        %3949 = vrot.lane.b32.xlu0 %v3185, 126
        %v3950 = vpop.permute.xlu0 %3949
        %3951 = vrot.lane.b32.xlu0 %v3186, 126
        %v3952 = vpop.permute.xlu0 %3951
        %3953 = vrot.lane.b32.xlu0 %v3187, 126
        %v3954 = vpop.permute.xlu0 %3953
        %3955 = vrot.lane.b32.xlu0 %v3188, 126
        %v3956 = vpop.permute.xlu0 %3955
        %3957 = vrot.lane.b32.xlu0 %v3189, 126
        %v3958 = vpop.permute.xlu0 %3957
        %3959 = vrot.lane.b32.xlu0 %v3190, 126
        %v3960 = vpop.permute.xlu0 %3959
        %3961 = vrot.lane.b32.xlu0 %v3191, 126
        %v3962 = vpop.permute.xlu0 %3961
        %3963 = vrot.lane.b32.xlu0 %v3192, 126
        %v3964 = vpop.permute.xlu0 %3963
        %3965 = vrot.lane.b32.xlu0 %v3193, 126
        %v3966 = vpop.permute.xlu0 %3965
        %3967 = vrot.lane.b32.xlu0 %v3194, 126
        %v3968 = vpop.permute.xlu0 %3967
        %3969 = vrot.lane.b32.xlu0 %v3195, 126
        %v3970 = vpop.permute.xlu0 %3969
        %3971 = vrot.lane.b32.xlu0 %v3196, 126
        %v3972 = vpop.permute.xlu0 %3971
        %3973 = vrot.lane.b32.xlu0 %v3197, 126
        %v3974 = vpop.permute.xlu0 %3973
        %3975 = vrot.lane.b32.xlu0 %v3198, 126
        %v3976 = vpop.permute.xlu0 %3975
        %3977 = vrot.lane.b32.xlu0 %v3199, 126
        %v3978 = vpop.permute.xlu0 %3977
        %3979 = vrot.lane.b32.xlu0 %v3200, 126
        %v3980 = vpop.permute.xlu0 %3979
        %v3997 = vcombine.low %v3950, %v3958
        %v3998 = vcombine.high %v3950, %v3958
        %v4000 = vunpack.c.l.s4 1983009808
        %v4001 = vunpack.c.0.s8 %v4000
        %v4002 = vlaneseq
        %v4003 = vshrl.u32 %v4002, 7
        %v4004 = vsub.s32 %v4001, %v4003
        %v4005 = vrot.slane %v3997, %v4004
        %v4007 = vunpack.c.l.s4 1983009808
        %v4008 = vunpack.c.0.s8 %v4007
        %v4009 = vlaneseq
        %v4010 = vshrl.u32 %v4009, 7
        %v4011 = vsub.s32 %v4008, %v4010
        %v4012 = vrot.slane %v3998, %v4011
        %v4013 = vcombine.low %v3954, %v3962
        %v4014 = vcombine.high %v3954, %v3962
        %v4016 = vunpack.c.l.s4 1983009808
        %v4017 = vunpack.c.0.s8 %v4016
        %v4018 = vlaneseq
        %v4019 = vshrl.u32 %v4018, 7
        %v4020 = vsub.s32 %v4017, %v4019
        %v4021 = vrot.slane %v4013, %v4020
        %v4023 = vunpack.c.l.s4 1983009808
        %v4024 = vunpack.c.0.s8 %v4023
        %v4025 = vlaneseq
        %v4026 = vshrl.u32 %v4025, 7
        %v4027 = vsub.s32 %v4024, %v4026
        %v4028 = vrot.slane %v4014, %v4027
        %v4029 = vcombine.low %v3966, %v3974
        %v4030 = vcombine.high %v3966, %v3974
        %v4032 = vunpack.c.l.s4 1983009808
        %v4033 = vunpack.c.0.s8 %v4032
        %v4034 = vlaneseq
        %v4035 = vshrl.u32 %v4034, 7
        %v4036 = vsub.s32 %v4033, %v4035
        %v4037 = vrot.slane %v4029, %v4036
        %v4039 = vunpack.c.l.s4 1983009808
        %v4040 = vunpack.c.0.s8 %v4039
        %v4041 = vlaneseq
        %v4042 = vshrl.u32 %v4041, 7
        %v4043 = vsub.s32 %v4040, %v4042
        %v4044 = vrot.slane %v4030, %v4043
        %v4045 = vcombine.low %v3970, %v3978
        %v4046 = vcombine.high %v3970, %v3978
        %v4048 = vunpack.c.l.s4 1983009808
        %v4049 = vunpack.c.0.s8 %v4048
        %v4050 = vlaneseq
        %v4051 = vshrl.u32 %v4050, 7
        %v4052 = vsub.s32 %v4049, %v4051
        %v4053 = vrot.slane %v4045, %v4052
        %v4055 = vunpack.c.l.s4 1983009808
        %v4056 = vunpack.c.0.s8 %v4055
        %v4057 = vlaneseq
        %v4058 = vshrl.u32 %v4057, 7
        %v4059 = vsub.s32 %v4056, %v4058
        %v4060 = vrot.slane %v4046, %v4059
        %v4061 = vcombine.low %v4005, %v4021
        %v4062 = vcombine.high %v4005, %v4021
        %v4064 = vunpack.c.l.s4 1934713408
        %v4065 = vunpack.c.0.s8 %v4064
        %v4066 = vlaneseq
        %v4067 = vshrl.u32 %v4066, 7
        %v4068 = vsub.s32 %v4065, %v4067
        %v4069 = vrot.slane %v4061, %v4068
        %v4071 = vunpack.c.l.s4 1934713408
        %v4072 = vunpack.c.0.s8 %v4071
        %v4073 = vlaneseq
        %v4074 = vshrl.u32 %v4073, 7
        %v4075 = vsub.s32 %v4072, %v4074
        %v4076 = vrot.slane %v4062, %v4075
        %v4077 = vcombine.low %v4012, %v4028
        %v4078 = vcombine.high %v4012, %v4028
        %v4080 = vunpack.c.l.s4 1934713408
        %v4081 = vunpack.c.0.s8 %v4080
        %v4082 = vlaneseq
        %v4083 = vshrl.u32 %v4082, 7
        %v4084 = vsub.s32 %v4081, %v4083
        %v4085 = vrot.slane %v4077, %v4084
        %v4087 = vunpack.c.l.s4 1934713408
        %v4088 = vunpack.c.0.s8 %v4087
        %v4089 = vlaneseq
        %v4090 = vshrl.u32 %v4089, 7
        %v4091 = vsub.s32 %v4088, %v4090
        %v4092 = vrot.slane %v4078, %v4091
        %v4093 = vcombine.low %v4037, %v4053
        %v4094 = vcombine.high %v4037, %v4053
        %v4096 = vunpack.c.l.s4 1934713408
        %v4097 = vunpack.c.0.s8 %v4096
        %v4098 = vlaneseq
        %v4099 = vshrl.u32 %v4098, 7
        %v4100 = vsub.s32 %v4097, %v4099
        %v4101 = vrot.slane %v4093, %v4100
        %v4103 = vunpack.c.l.s4 1934713408
        %v4104 = vunpack.c.0.s8 %v4103
        %v4105 = vlaneseq
        %v4106 = vshrl.u32 %v4105, 7
        %v4107 = vsub.s32 %v4104, %v4106
        %v4108 = vrot.slane %v4094, %v4107
        %v4109 = vcombine.low %v4044, %v4060
        %v4110 = vcombine.high %v4044, %v4060
        %v4112 = vunpack.c.l.s4 1934713408
        %v4113 = vunpack.c.0.s8 %v4112
        %v4114 = vlaneseq
        %v4115 = vshrl.u32 %v4114, 7
        %v4116 = vsub.s32 %v4113, %v4115
        %v4117 = vrot.slane %v4109, %v4116
        %v4119 = vunpack.c.l.s4 1934713408
        %v4120 = vunpack.c.0.s8 %v4119
        %v4121 = vlaneseq
        %v4122 = vshrl.u32 %v4121, 7
        %v4123 = vsub.s32 %v4120, %v4122
        %v4124 = vrot.slane %v4110, %v4123
        %v4125 = vcombine.low %v4069, %v4101
        %v4126 = vcombine.high %v4069, %v4101
        %v4127 = vcombine.low %v4076, %v4108
        %v4128 = vcombine.high %v4076, %v4108
        %v4129 = vcombine.low %v4085, %v4117
        %v4130 = vcombine.high %v4085, %v4117
        %v4131 = vcombine.low %v4092, %v4124
        %v4132 = vcombine.high %v4092, %v4124
        %v4133 = vcombine.low %v3952, %v3960
        %v4134 = vcombine.high %v3952, %v3960
        %v4136 = vunpack.c.l.s4 1983009808
        %v4137 = vunpack.c.0.s8 %v4136
        %v4138 = vlaneseq
        %v4139 = vshrl.u32 %v4138, 7
        %v4140 = vsub.s32 %v4137, %v4139
        %v4141 = vrot.slane %v4133, %v4140
        %v4143 = vunpack.c.l.s4 1983009808
        %v4144 = vunpack.c.0.s8 %v4143
        %v4145 = vlaneseq
        %v4146 = vshrl.u32 %v4145, 7
        %v4147 = vsub.s32 %v4144, %v4146
        %v4148 = vrot.slane %v4134, %v4147
        %v4149 = vcombine.low %v3956, %v3964
        %v4150 = vcombine.high %v3956, %v3964
        %v4152 = vunpack.c.l.s4 1983009808
        %v4153 = vunpack.c.0.s8 %v4152
        %v4154 = vlaneseq
        %v4155 = vshrl.u32 %v4154, 7
        %v4156 = vsub.s32 %v4153, %v4155
        %v4157 = vrot.slane %v4149, %v4156
        %v4159 = vunpack.c.l.s4 1983009808
        %v4160 = vunpack.c.0.s8 %v4159
        %v4161 = vlaneseq
        %v4162 = vshrl.u32 %v4161, 7
        %v4163 = vsub.s32 %v4160, %v4162
        %v4164 = vrot.slane %v4150, %v4163
        %v4165 = vcombine.low %v3968, %v3976
        %v4166 = vcombine.high %v3968, %v3976
        %v4168 = vunpack.c.l.s4 1983009808
        %v4169 = vunpack.c.0.s8 %v4168
        %v4170 = vlaneseq
        %v4171 = vshrl.u32 %v4170, 7
        %v4172 = vsub.s32 %v4169, %v4171
        %v4173 = vrot.slane %v4165, %v4172
        %v4175 = vunpack.c.l.s4 1983009808
        %v4176 = vunpack.c.0.s8 %v4175
        %v4177 = vlaneseq
        %v4178 = vshrl.u32 %v4177, 7
        %v4179 = vsub.s32 %v4176, %v4178
        %v4180 = vrot.slane %v4166, %v4179
        %v4181 = vcombine.low %v3972, %v3980
        %v4182 = vcombine.high %v3972, %v3980
        %v4184 = vunpack.c.l.s4 1983009808
        %v4185 = vunpack.c.0.s8 %v4184
        %v4186 = vlaneseq
        %v4187 = vshrl.u32 %v4186, 7
        %v4188 = vsub.s32 %v4185, %v4187
        %v4189 = vrot.slane %v4181, %v4188
        %v4191 = vunpack.c.l.s4 1983009808
        %v4192 = vunpack.c.0.s8 %v4191
        %v4193 = vlaneseq
        %v4194 = vshrl.u32 %v4193, 7
        %v4195 = vsub.s32 %v4192, %v4194
        %v4196 = vrot.slane %v4182, %v4195
        %v4197 = vcombine.low %v4141, %v4157
        %v4198 = vcombine.high %v4141, %v4157
        %v4200 = vunpack.c.l.s4 1934713408
        %v4201 = vunpack.c.0.s8 %v4200
        %v4202 = vlaneseq
        %v4203 = vshrl.u32 %v4202, 7
        %v4204 = vsub.s32 %v4201, %v4203
        %v4205 = vrot.slane %v4197, %v4204
        %v4207 = vunpack.c.l.s4 1934713408
        %v4208 = vunpack.c.0.s8 %v4207
        %v4209 = vlaneseq
        %v4210 = vshrl.u32 %v4209, 7
        %v4211 = vsub.s32 %v4208, %v4210
        %v4212 = vrot.slane %v4198, %v4211
        %v4213 = vcombine.low %v4148, %v4164
        %v4214 = vcombine.high %v4148, %v4164
        %v4216 = vunpack.c.l.s4 1934713408
        %v4217 = vunpack.c.0.s8 %v4216
        %v4218 = vlaneseq
        %v4219 = vshrl.u32 %v4218, 7
        %v4220 = vsub.s32 %v4217, %v4219
        %v4221 = vrot.slane %v4213, %v4220
        %v4223 = vunpack.c.l.s4 1934713408
        %v4224 = vunpack.c.0.s8 %v4223
        %v4225 = vlaneseq
        %v4226 = vshrl.u32 %v4225, 7
        %v4227 = vsub.s32 %v4224, %v4226
        %v4228 = vrot.slane %v4214, %v4227
        %v4229 = vcombine.low %v4173, %v4189
        %v4230 = vcombine.high %v4173, %v4189
        %v4232 = vunpack.c.l.s4 1934713408
        %v4233 = vunpack.c.0.s8 %v4232
        %v4234 = vlaneseq
        %v4235 = vshrl.u32 %v4234, 7
        %v4236 = vsub.s32 %v4233, %v4235
        %v4237 = vrot.slane %v4229, %v4236
        %v4239 = vunpack.c.l.s4 1934713408
        %v4240 = vunpack.c.0.s8 %v4239
        %v4241 = vlaneseq
        %v4242 = vshrl.u32 %v4241, 7
        %v4243 = vsub.s32 %v4240, %v4242
        %v4244 = vrot.slane %v4230, %v4243
        %v4245 = vcombine.low %v4180, %v4196
        %v4246 = vcombine.high %v4180, %v4196
        %v4248 = vunpack.c.l.s4 1934713408
        %v4249 = vunpack.c.0.s8 %v4248
        %v4250 = vlaneseq
        %v4251 = vshrl.u32 %v4250, 7
        %v4252 = vsub.s32 %v4249, %v4251
        %v4253 = vrot.slane %v4245, %v4252
        %v4255 = vunpack.c.l.s4 1934713408
        %v4256 = vunpack.c.0.s8 %v4255
        %v4257 = vlaneseq
        %v4258 = vshrl.u32 %v4257, 7
        %v4259 = vsub.s32 %v4256, %v4258
        %v4260 = vrot.slane %v4246, %v4259
        %v4261 = vcombine.low %v4205, %v4237
        %v4262 = vcombine.high %v4205, %v4237
        %v4263 = vcombine.low %v4212, %v4244
        %v4264 = vcombine.high %v4212, %v4244
        %v4265 = vcombine.low %v4221, %v4253
        %v4266 = vcombine.high %v4221, %v4253
        %v4267 = vcombine.low %v4228, %v4260
        %v4268 = vcombine.high %v4228, %v4260
        %4270 = vrot.lane.b32.xlu0 %v4126, 16
        %v4271 = vpop.permute.xlu0 %4270
        %4274 = vrot.lane.b32.xlu0 %v4127, 32
        %v4275 = vpop.permute.xlu0 %4274
        %4278 = vrot.lane.b32.xlu0 %v4128, 48
        %v4279 = vpop.permute.xlu0 %4278
        %4282 = vrot.lane.b32.xlu0 %v4129, 64
        %v4283 = vpop.permute.xlu0 %4282
        %4286 = vrot.lane.b32.xlu0 %v4130, 80
        %v4287 = vpop.permute.xlu0 %4286
        %4290 = vrot.lane.b32.xlu0 %v4131, 96
        %v4291 = vpop.permute.xlu0 %4290
        %4294 = vrot.lane.b32.xlu0 %v4132, 112
        %v4295 = vpop.permute.xlu0 %4294
        %4298 = vrot.lane.b32.xlu0 %v4262, 16
        %v4299 = vpop.permute.xlu0 %4298
        %4302 = vrot.lane.b32.xlu0 %v4263, 32
        %v4303 = vpop.permute.xlu0 %4302
        %4306 = vrot.lane.b32.xlu0 %v4264, 48
        %v4307 = vpop.permute.xlu0 %4306
        %4310 = vrot.lane.b32.xlu0 %v4265, 64
        %v4311 = vpop.permute.xlu0 %4310
        %4314 = vrot.lane.b32.xlu0 %v4266, 80
        %v4315 = vpop.permute.xlu0 %4314
        %4318 = vrot.lane.b32.xlu0 %v4267, 96
        %v4319 = vpop.permute.xlu0 %4318
        %4322 = vrot.lane.b32.xlu0 %v4268, 112
        %v4323 = vpop.permute.xlu0 %4322
        %v4325 = vsel %vm767, %v4125, %v4271
        %v4326 = vsel %vm769, %v4325, %v4275
        %v4327 = vsel %vm771, %v4326, %v4279
        %v4328 = vsel %vm773, %v4327, %v4283
        %v4329 = vsel %vm775, %v4328, %v4287
        %v4330 = vsel %vm777, %v4329, %v4291
        %v4331 = vsel %vm779, %v4330, %v4295
        %v4332 = vsel %vm767, %v4261, %v4299
        %v4333 = vsel %vm769, %v4332, %v4303
        %v4334 = vsel %vm771, %v4333, %v4307
        %v4335 = vsel %vm773, %v4334, %v4311
        %v4336 = vsel %vm775, %v4335, %v4315
        %v4337 = vsel %vm777, %v4336, %v4319
        %v4338 = vsel %vm779, %v4337, %v4323
        %v4339 = vld [vmem:[#allocation3 + $0x1] sm:$0xff]
        %v4340 = vld [vmem:[#allocation3 + $0x9] sm:$0xff]
        %v4341 = vld [vmem:[#allocation3 + $0x19] sm:$0xff]
        %v4342 = vld [vmem:[#allocation3 + $0x21] sm:$0xff]
        %v4343 = vld [vmem:[#allocation3 + $0x31] sm:$0xff]
        %v4344 = vld [vmem:[#allocation3 + $0x39] sm:$0xff]
        %v4345 = vld [vmem:[#allocation3 + $0x49] sm:$0xff]
        %v4346 = vld [vmem:[#allocation3 + $0x51] sm:$0xff]
        %v4347 = vld [vmem:[#allocation3 + $0x61] sm:$0xff]
        %v4348 = vld [vmem:[#allocation3 + $0x69] sm:$0xff]
        %v4349 = vld [vmem:[#allocation3 + $0x79] sm:$0xff]
        %v4350 = vld [vmem:[#allocation3 + $0x81] sm:$0xff]
        %v4351 = vld [vmem:[#allocation3 + $0x91] sm:$0xff]
        %v4352 = vld [vmem:[#allocation3 + $0x99] sm:$0xff]
        %v4353 = vld [vmem:[#allocation3 + $0xa9] sm:$0xff]
        %v4354 = vld [vmem:[#allocation3 + $0xb1] sm:$0xff]
        %v4355 = vcombine.low %v4339, %v4343
        %v4356 = vcombine.high %v4339, %v4343
        %v4358 = vunpack.c.l.s4 1983009808
        %v4359 = vunpack.c.0.s8 %v4358
        %v4360 = vlaneseq
        %v4361 = vshrl.u32 %v4360, 7
        %v4362 = vsub.s32 %v4359, %v4361
        %v4363 = vrot.slane %v4355, %v4362
        %v4365 = vunpack.c.l.s4 1983009808
        %v4366 = vunpack.c.0.s8 %v4365
        %v4367 = vlaneseq
        %v4368 = vshrl.u32 %v4367, 7
        %v4369 = vsub.s32 %v4366, %v4368
        %v4370 = vrot.slane %v4356, %v4369
        %v4371 = vcombine.low %v4341, %v4345
        %v4372 = vcombine.high %v4341, %v4345
        %v4374 = vunpack.c.l.s4 1983009808
        %v4375 = vunpack.c.0.s8 %v4374
        %v4376 = vlaneseq
        %v4377 = vshrl.u32 %v4376, 7
        %v4378 = vsub.s32 %v4375, %v4377
        %v4379 = vrot.slane %v4371, %v4378
        %v4381 = vunpack.c.l.s4 1983009808
        %v4382 = vunpack.c.0.s8 %v4381
        %v4383 = vlaneseq
        %v4384 = vshrl.u32 %v4383, 7
        %v4385 = vsub.s32 %v4382, %v4384
        %v4386 = vrot.slane %v4372, %v4385
        %v4387 = vcombine.low %v4347, %v4351
        %v4388 = vcombine.high %v4347, %v4351
        %v4390 = vunpack.c.l.s4 1983009808
        %v4391 = vunpack.c.0.s8 %v4390
        %v4392 = vlaneseq
        %v4393 = vshrl.u32 %v4392, 7
        %v4394 = vsub.s32 %v4391, %v4393
        %v4395 = vrot.slane %v4387, %v4394
        %v4397 = vunpack.c.l.s4 1983009808
        %v4398 = vunpack.c.0.s8 %v4397
        %v4399 = vlaneseq
        %v4400 = vshrl.u32 %v4399, 7
        %v4401 = vsub.s32 %v4398, %v4400
        %v4402 = vrot.slane %v4388, %v4401
        %v4403 = vcombine.low %v4349, %v4353
        %v4404 = vcombine.high %v4349, %v4353
        %v4406 = vunpack.c.l.s4 1983009808
        %v4407 = vunpack.c.0.s8 %v4406
        %v4408 = vlaneseq
        %v4409 = vshrl.u32 %v4408, 7
        %v4410 = vsub.s32 %v4407, %v4409
        %v4411 = vrot.slane %v4403, %v4410
        %v4413 = vunpack.c.l.s4 1983009808
        %v4414 = vunpack.c.0.s8 %v4413
        %v4415 = vlaneseq
        %v4416 = vshrl.u32 %v4415, 7
        %v4417 = vsub.s32 %v4414, %v4416
        %v4418 = vrot.slane %v4404, %v4417
        %v4419 = vcombine.low %v4363, %v4379
        %v4420 = vcombine.high %v4363, %v4379
        %v4422 = vunpack.c.l.s4 1934713408
        %v4423 = vunpack.c.0.s8 %v4422
        %v4424 = vlaneseq
        %v4425 = vshrl.u32 %v4424, 7
        %v4426 = vsub.s32 %v4423, %v4425
        %v4427 = vrot.slane %v4419, %v4426
        %v4429 = vunpack.c.l.s4 1934713408
        %v4430 = vunpack.c.0.s8 %v4429
        %v4431 = vlaneseq
        %v4432 = vshrl.u32 %v4431, 7
        %v4433 = vsub.s32 %v4430, %v4432
        %v4434 = vrot.slane %v4420, %v4433
        %v4435 = vcombine.low %v4370, %v4386
        %v4436 = vcombine.high %v4370, %v4386
        %v4438 = vunpack.c.l.s4 1934713408
        %v4439 = vunpack.c.0.s8 %v4438
        %v4440 = vlaneseq
        %v4441 = vshrl.u32 %v4440, 7
        %v4442 = vsub.s32 %v4439, %v4441
        %v4443 = vrot.slane %v4435, %v4442
        %v4445 = vunpack.c.l.s4 1934713408
        %v4446 = vunpack.c.0.s8 %v4445
        %v4447 = vlaneseq
        %v4448 = vshrl.u32 %v4447, 7
        %v4449 = vsub.s32 %v4446, %v4448
        %v4450 = vrot.slane %v4436, %v4449
        %v4451 = vcombine.low %v4395, %v4411
        %v4452 = vcombine.high %v4395, %v4411
        %v4454 = vunpack.c.l.s4 1934713408
        %v4455 = vunpack.c.0.s8 %v4454
        %v4456 = vlaneseq
        %v4457 = vshrl.u32 %v4456, 7
        %v4458 = vsub.s32 %v4455, %v4457
        %v4459 = vrot.slane %v4451, %v4458
        %v4461 = vunpack.c.l.s4 1934713408
        %v4462 = vunpack.c.0.s8 %v4461
        %v4463 = vlaneseq
        %v4464 = vshrl.u32 %v4463, 7
        %v4465 = vsub.s32 %v4462, %v4464
        %v4466 = vrot.slane %v4452, %v4465
        %v4467 = vcombine.low %v4402, %v4418
        %v4468 = vcombine.high %v4402, %v4418
        %v4470 = vunpack.c.l.s4 1934713408
        %v4471 = vunpack.c.0.s8 %v4470
        %v4472 = vlaneseq
        %v4473 = vshrl.u32 %v4472, 7
        %v4474 = vsub.s32 %v4471, %v4473
        %v4475 = vrot.slane %v4467, %v4474
        %v4477 = vunpack.c.l.s4 1934713408
        %v4478 = vunpack.c.0.s8 %v4477
        %v4479 = vlaneseq
        %v4480 = vshrl.u32 %v4479, 7
        %v4481 = vsub.s32 %v4478, %v4480
        %v4482 = vrot.slane %v4468, %v4481
        %v4483 = vcombine.low %v4427, %v4459
        %v4484 = vcombine.high %v4427, %v4459
        %v4485 = vcombine.low %v4434, %v4466
        %v4486 = vcombine.high %v4434, %v4466
        %v4487 = vcombine.low %v4443, %v4475
        %v4488 = vcombine.high %v4443, %v4475
        %v4489 = vcombine.low %v4450, %v4482
        %v4490 = vcombine.high %v4450, %v4482
        %v4491 = vcombine.low %v4340, %v4344
        %v4492 = vcombine.high %v4340, %v4344
        %v4494 = vunpack.c.l.s4 1983009808
        %v4495 = vunpack.c.0.s8 %v4494
        %v4496 = vlaneseq
        %v4497 = vshrl.u32 %v4496, 7
        %v4498 = vsub.s32 %v4495, %v4497
        %v4499 = vrot.slane %v4491, %v4498
        %v4501 = vunpack.c.l.s4 1983009808
        %v4502 = vunpack.c.0.s8 %v4501
        %v4503 = vlaneseq
        %v4504 = vshrl.u32 %v4503, 7
        %v4505 = vsub.s32 %v4502, %v4504
        %v4506 = vrot.slane %v4492, %v4505
        %v4507 = vcombine.low %v4342, %v4346
        %v4508 = vcombine.high %v4342, %v4346
        %v4510 = vunpack.c.l.s4 1983009808
        %v4511 = vunpack.c.0.s8 %v4510
        %v4512 = vlaneseq
        %v4513 = vshrl.u32 %v4512, 7
        %v4514 = vsub.s32 %v4511, %v4513
        %v4515 = vrot.slane %v4507, %v4514
        %v4517 = vunpack.c.l.s4 1983009808
        %v4518 = vunpack.c.0.s8 %v4517
        %v4519 = vlaneseq
        %v4520 = vshrl.u32 %v4519, 7
        %v4521 = vsub.s32 %v4518, %v4520
        %v4522 = vrot.slane %v4508, %v4521
        %v4523 = vcombine.low %v4348, %v4352
        %v4524 = vcombine.high %v4348, %v4352
        %v4526 = vunpack.c.l.s4 1983009808
        %v4527 = vunpack.c.0.s8 %v4526
        %v4528 = vlaneseq
        %v4529 = vshrl.u32 %v4528, 7
        %v4530 = vsub.s32 %v4527, %v4529
        %v4531 = vrot.slane %v4523, %v4530
        %v4533 = vunpack.c.l.s4 1983009808
        %v4534 = vunpack.c.0.s8 %v4533
        %v4535 = vlaneseq
        %v4536 = vshrl.u32 %v4535, 7
        %v4537 = vsub.s32 %v4534, %v4536
        %v4538 = vrot.slane %v4524, %v4537
        %v4539 = vcombine.low %v4350, %v4354
        %v4540 = vcombine.high %v4350, %v4354
        %v4542 = vunpack.c.l.s4 1983009808
        %v4543 = vunpack.c.0.s8 %v4542
        %v4544 = vlaneseq
        %v4545 = vshrl.u32 %v4544, 7
        %v4546 = vsub.s32 %v4543, %v4545
        %v4547 = vrot.slane %v4539, %v4546
        %v4549 = vunpack.c.l.s4 1983009808
        %v4550 = vunpack.c.0.s8 %v4549
        %v4551 = vlaneseq
        %v4552 = vshrl.u32 %v4551, 7
        %v4553 = vsub.s32 %v4550, %v4552
        %v4554 = vrot.slane %v4540, %v4553
        %v4555 = vcombine.low %v4499, %v4515
        %v4556 = vcombine.high %v4499, %v4515
        %v4558 = vunpack.c.l.s4 1934713408
        %v4559 = vunpack.c.0.s8 %v4558
        %v4560 = vlaneseq
        %v4561 = vshrl.u32 %v4560, 7
        %v4562 = vsub.s32 %v4559, %v4561
        %v4563 = vrot.slane %v4555, %v4562
        %v4565 = vunpack.c.l.s4 1934713408
        %v4566 = vunpack.c.0.s8 %v4565
        %v4567 = vlaneseq
        %v4568 = vshrl.u32 %v4567, 7
        %v4569 = vsub.s32 %v4566, %v4568
        %v4570 = vrot.slane %v4556, %v4569
        %v4571 = vcombine.low %v4506, %v4522
        %v4572 = vcombine.high %v4506, %v4522
        %v4574 = vunpack.c.l.s4 1934713408
        %v4575 = vunpack.c.0.s8 %v4574
        %v4576 = vlaneseq
        %v4577 = vshrl.u32 %v4576, 7
        %v4578 = vsub.s32 %v4575, %v4577
        %v4579 = vrot.slane %v4571, %v4578
        %v4581 = vunpack.c.l.s4 1934713408
        %v4582 = vunpack.c.0.s8 %v4581
        %v4583 = vlaneseq
        %v4584 = vshrl.u32 %v4583, 7
        %v4585 = vsub.s32 %v4582, %v4584
        %v4586 = vrot.slane %v4572, %v4585
        %v4587 = vcombine.low %v4531, %v4547
        %v4588 = vcombine.high %v4531, %v4547
        %v4590 = vunpack.c.l.s4 1934713408
        %v4591 = vunpack.c.0.s8 %v4590
        %v4592 = vlaneseq
        %v4593 = vshrl.u32 %v4592, 7
        %v4594 = vsub.s32 %v4591, %v4593
        %v4595 = vrot.slane %v4587, %v4594
        %v4597 = vunpack.c.l.s4 1934713408
        %v4598 = vunpack.c.0.s8 %v4597
        %v4599 = vlaneseq
        %v4600 = vshrl.u32 %v4599, 7
        %v4601 = vsub.s32 %v4598, %v4600
        %v4602 = vrot.slane %v4588, %v4601
        %v4603 = vcombine.low %v4538, %v4554
        %v4604 = vcombine.high %v4538, %v4554
        %v4606 = vunpack.c.l.s4 1934713408
        %v4607 = vunpack.c.0.s8 %v4606
        %v4608 = vlaneseq
        %v4609 = vshrl.u32 %v4608, 7
        %v4610 = vsub.s32 %v4607, %v4609
        %v4611 = vrot.slane %v4603, %v4610
        %v4613 = vunpack.c.l.s4 1934713408
        %v4614 = vunpack.c.0.s8 %v4613
        %v4615 = vlaneseq
        %v4616 = vshrl.u32 %v4615, 7
        %v4617 = vsub.s32 %v4614, %v4616
        %v4618 = vrot.slane %v4604, %v4617
        %v4619 = vcombine.low %v4563, %v4595
        %v4620 = vcombine.high %v4563, %v4595
        %v4621 = vcombine.low %v4570, %v4602
        %v4622 = vcombine.high %v4570, %v4602
        %v4623 = vcombine.low %v4579, %v4611
        %v4624 = vcombine.high %v4579, %v4611
        %v4625 = vcombine.low %v4586, %v4618
        %v4626 = vcombine.high %v4586, %v4618
        %4628 = vrot.lane.b32.xlu0 %v4484, 16
        %v4629 = vpop.permute.xlu0 %4628
        %4632 = vrot.lane.b32.xlu0 %v4485, 32
        %v4633 = vpop.permute.xlu0 %4632
        %4636 = vrot.lane.b32.xlu0 %v4486, 48
        %v4637 = vpop.permute.xlu0 %4636
        %4640 = vrot.lane.b32.xlu0 %v4487, 64
        %v4641 = vpop.permute.xlu0 %4640
        %4644 = vrot.lane.b32.xlu0 %v4488, 80
        %v4645 = vpop.permute.xlu0 %4644
        %4648 = vrot.lane.b32.xlu0 %v4489, 96
        %v4649 = vpop.permute.xlu0 %4648
        %4652 = vrot.lane.b32.xlu0 %v4490, 112
        %v4653 = vpop.permute.xlu0 %4652
        %4656 = vrot.lane.b32.xlu0 %v4620, 16
        %v4657 = vpop.permute.xlu0 %4656
        %4660 = vrot.lane.b32.xlu0 %v4621, 32
        %v4661 = vpop.permute.xlu0 %4660
        %4664 = vrot.lane.b32.xlu0 %v4622, 48
        %v4665 = vpop.permute.xlu0 %4664
        %4668 = vrot.lane.b32.xlu0 %v4623, 64
        %v4669 = vpop.permute.xlu0 %4668
        %4672 = vrot.lane.b32.xlu0 %v4624, 80
        %v4673 = vpop.permute.xlu0 %4672
        %4676 = vrot.lane.b32.xlu0 %v4625, 96
        %v4677 = vpop.permute.xlu0 %4676
        %4680 = vrot.lane.b32.xlu0 %v4626, 112
        %v4681 = vpop.permute.xlu0 %4680
        %v4683 = vsel %vm767, %v4483, %v4629
        %v4684 = vsel %vm769, %v4683, %v4633
        %v4685 = vsel %vm771, %v4684, %v4637
        %v4686 = vsel %vm773, %v4685, %v4641
        %v4687 = vsel %vm775, %v4686, %v4645
        %v4688 = vsel %vm777, %v4687, %v4649
        %v4689 = vsel %vm779, %v4688, %v4653
        %v4690 = vsel %vm767, %v4619, %v4657
        %v4691 = vsel %vm769, %v4690, %v4661
        %v4692 = vsel %vm771, %v4691, %v4665
        %v4693 = vsel %vm773, %v4692, %v4669
        %v4694 = vsel %vm775, %v4693, %v4673
        %v4695 = vsel %vm777, %v4694, %v4677
        %v4696 = vsel %vm779, %v4695, %v4681
        %4713 = vrot.lane.b32.xlu0 %v4339, 127
        %v4714 = vpop.permute.xlu0 %4713
        %4715 = vrot.lane.b32.xlu0 %v4340, 127
        %v4716 = vpop.permute.xlu0 %4715
        %4717 = vrot.lane.b32.xlu0 %v4341, 127
        %v4718 = vpop.permute.xlu0 %4717
        %4719 = vrot.lane.b32.xlu0 %v4342, 127
        %v4720 = vpop.permute.xlu0 %4719
        %4721 = vrot.lane.b32.xlu0 %v4343, 127
        %v4722 = vpop.permute.xlu0 %4721
        %4723 = vrot.lane.b32.xlu0 %v4344, 127
        %v4724 = vpop.permute.xlu0 %4723
        %4725 = vrot.lane.b32.xlu0 %v4345, 127
        %v4726 = vpop.permute.xlu0 %4725
        %4727 = vrot.lane.b32.xlu0 %v4346, 127
        %v4728 = vpop.permute.xlu0 %4727
        %4729 = vrot.lane.b32.xlu0 %v4347, 127
        %v4730 = vpop.permute.xlu0 %4729
        %4731 = vrot.lane.b32.xlu0 %v4348, 127
        %v4732 = vpop.permute.xlu0 %4731
        %4733 = vrot.lane.b32.xlu0 %v4349, 127
        %v4734 = vpop.permute.xlu0 %4733
        %4735 = vrot.lane.b32.xlu0 %v4350, 127
        %v4736 = vpop.permute.xlu0 %4735
        %4737 = vrot.lane.b32.xlu0 %v4351, 127
        %v4738 = vpop.permute.xlu0 %4737
        %4739 = vrot.lane.b32.xlu0 %v4352, 127
        %v4740 = vpop.permute.xlu0 %4739
        %4741 = vrot.lane.b32.xlu0 %v4353, 127
        %v4742 = vpop.permute.xlu0 %4741
        %4743 = vrot.lane.b32.xlu0 %v4354, 127
        %v4744 = vpop.permute.xlu0 %4743
        %v4761 = vcombine.low %v4714, %v4722
        %v4762 = vcombine.high %v4714, %v4722
        %v4764 = vunpack.c.l.s4 1983009808
        %v4765 = vunpack.c.0.s8 %v4764
        %v4766 = vlaneseq
        %v4767 = vshrl.u32 %v4766, 7
        %v4768 = vsub.s32 %v4765, %v4767
        %v4769 = vrot.slane %v4761, %v4768
        %v4771 = vunpack.c.l.s4 1983009808
        %v4772 = vunpack.c.0.s8 %v4771
        %v4773 = vlaneseq
        %v4774 = vshrl.u32 %v4773, 7
        %v4775 = vsub.s32 %v4772, %v4774
        %v4776 = vrot.slane %v4762, %v4775
        %v4777 = vcombine.low %v4718, %v4726
        %v4778 = vcombine.high %v4718, %v4726
        %v4780 = vunpack.c.l.s4 1983009808
        %v4781 = vunpack.c.0.s8 %v4780
        %v4782 = vlaneseq
        %v4783 = vshrl.u32 %v4782, 7
        %v4784 = vsub.s32 %v4781, %v4783
        %v4785 = vrot.slane %v4777, %v4784
        %v4787 = vunpack.c.l.s4 1983009808
        %v4788 = vunpack.c.0.s8 %v4787
        %v4789 = vlaneseq
        %v4790 = vshrl.u32 %v4789, 7
        %v4791 = vsub.s32 %v4788, %v4790
        %v4792 = vrot.slane %v4778, %v4791
        %v4793 = vcombine.low %v4730, %v4738
        %v4794 = vcombine.high %v4730, %v4738
        %v4796 = vunpack.c.l.s4 1983009808
        %v4797 = vunpack.c.0.s8 %v4796
        %v4798 = vlaneseq
        %v4799 = vshrl.u32 %v4798, 7
        %v4800 = vsub.s32 %v4797, %v4799
        %v4801 = vrot.slane %v4793, %v4800
        %v4803 = vunpack.c.l.s4 1983009808
        %v4804 = vunpack.c.0.s8 %v4803
        %v4805 = vlaneseq
        %v4806 = vshrl.u32 %v4805, 7
        %v4807 = vsub.s32 %v4804, %v4806
        %v4808 = vrot.slane %v4794, %v4807
        %v4809 = vcombine.low %v4734, %v4742
        %v4810 = vcombine.high %v4734, %v4742
        %v4812 = vunpack.c.l.s4 1983009808
        %v4813 = vunpack.c.0.s8 %v4812
        %v4814 = vlaneseq
        %v4815 = vshrl.u32 %v4814, 7
        %v4816 = vsub.s32 %v4813, %v4815
        %v4817 = vrot.slane %v4809, %v4816
        %v4819 = vunpack.c.l.s4 1983009808
        %v4820 = vunpack.c.0.s8 %v4819
        %v4821 = vlaneseq
        %v4822 = vshrl.u32 %v4821, 7
        %v4823 = vsub.s32 %v4820, %v4822
        %v4824 = vrot.slane %v4810, %v4823
        %v4825 = vcombine.low %v4769, %v4785
        %v4826 = vcombine.high %v4769, %v4785
        %v4828 = vunpack.c.l.s4 1934713408
        %v4829 = vunpack.c.0.s8 %v4828
        %v4830 = vlaneseq
        %v4831 = vshrl.u32 %v4830, 7
        %v4832 = vsub.s32 %v4829, %v4831
        %v4833 = vrot.slane %v4825, %v4832
        %v4835 = vunpack.c.l.s4 1934713408
        %v4836 = vunpack.c.0.s8 %v4835
        %v4837 = vlaneseq
        %v4838 = vshrl.u32 %v4837, 7
        %v4839 = vsub.s32 %v4836, %v4838
        %v4840 = vrot.slane %v4826, %v4839
        %v4841 = vcombine.low %v4776, %v4792
        %v4842 = vcombine.high %v4776, %v4792
        %v4844 = vunpack.c.l.s4 1934713408
        %v4845 = vunpack.c.0.s8 %v4844
        %v4846 = vlaneseq
        %v4847 = vshrl.u32 %v4846, 7
        %v4848 = vsub.s32 %v4845, %v4847
        %v4849 = vrot.slane %v4841, %v4848
        %v4851 = vunpack.c.l.s4 1934713408
        %v4852 = vunpack.c.0.s8 %v4851
        %v4853 = vlaneseq
        %v4854 = vshrl.u32 %v4853, 7
        %v4855 = vsub.s32 %v4852, %v4854
        %v4856 = vrot.slane %v4842, %v4855
        %v4857 = vcombine.low %v4801, %v4817
        %v4858 = vcombine.high %v4801, %v4817
        %v4860 = vunpack.c.l.s4 1934713408
        %v4861 = vunpack.c.0.s8 %v4860
        %v4862 = vlaneseq
        %v4863 = vshrl.u32 %v4862, 7
        %v4864 = vsub.s32 %v4861, %v4863
        %v4865 = vrot.slane %v4857, %v4864
        %v4867 = vunpack.c.l.s4 1934713408
        %v4868 = vunpack.c.0.s8 %v4867
        %v4869 = vlaneseq
        %v4870 = vshrl.u32 %v4869, 7
        %v4871 = vsub.s32 %v4868, %v4870
        %v4872 = vrot.slane %v4858, %v4871
        %v4873 = vcombine.low %v4808, %v4824
        %v4874 = vcombine.high %v4808, %v4824
        %v4876 = vunpack.c.l.s4 1934713408
        %v4877 = vunpack.c.0.s8 %v4876
        %v4878 = vlaneseq
        %v4879 = vshrl.u32 %v4878, 7
        %v4880 = vsub.s32 %v4877, %v4879
        %v4881 = vrot.slane %v4873, %v4880
        %v4883 = vunpack.c.l.s4 1934713408
        %v4884 = vunpack.c.0.s8 %v4883
        %v4885 = vlaneseq
        %v4886 = vshrl.u32 %v4885, 7
        %v4887 = vsub.s32 %v4884, %v4886
        %v4888 = vrot.slane %v4874, %v4887
        %v4889 = vcombine.low %v4833, %v4865
        %v4890 = vcombine.high %v4833, %v4865
        %v4891 = vcombine.low %v4840, %v4872
        %v4892 = vcombine.high %v4840, %v4872
        %v4893 = vcombine.low %v4849, %v4881
        %v4894 = vcombine.high %v4849, %v4881
        %v4895 = vcombine.low %v4856, %v4888
        %v4896 = vcombine.high %v4856, %v4888
        %v4897 = vcombine.low %v4716, %v4724
        %v4898 = vcombine.high %v4716, %v4724
        %v4900 = vunpack.c.l.s4 1983009808
        %v4901 = vunpack.c.0.s8 %v4900
        %v4902 = vlaneseq
        %v4903 = vshrl.u32 %v4902, 7
        %v4904 = vsub.s32 %v4901, %v4903
        %v4905 = vrot.slane %v4897, %v4904
        %v4907 = vunpack.c.l.s4 1983009808
        %v4908 = vunpack.c.0.s8 %v4907
        %v4909 = vlaneseq
        %v4910 = vshrl.u32 %v4909, 7
        %v4911 = vsub.s32 %v4908, %v4910
        %v4912 = vrot.slane %v4898, %v4911
        %v4913 = vcombine.low %v4720, %v4728
        %v4914 = vcombine.high %v4720, %v4728
        %v4916 = vunpack.c.l.s4 1983009808
        %v4917 = vunpack.c.0.s8 %v4916
        %v4918 = vlaneseq
        %v4919 = vshrl.u32 %v4918, 7
        %v4920 = vsub.s32 %v4917, %v4919
        %v4921 = vrot.slane %v4913, %v4920
        %v4923 = vunpack.c.l.s4 1983009808
        %v4924 = vunpack.c.0.s8 %v4923
        %v4925 = vlaneseq
        %v4926 = vshrl.u32 %v4925, 7
        %v4927 = vsub.s32 %v4924, %v4926
        %v4928 = vrot.slane %v4914, %v4927
        %v4929 = vcombine.low %v4732, %v4740
        %v4930 = vcombine.high %v4732, %v4740
        %v4932 = vunpack.c.l.s4 1983009808
        %v4933 = vunpack.c.0.s8 %v4932
        %v4934 = vlaneseq
        %v4935 = vshrl.u32 %v4934, 7
        %v4936 = vsub.s32 %v4933, %v4935
        %v4937 = vrot.slane %v4929, %v4936
        %v4939 = vunpack.c.l.s4 1983009808
        %v4940 = vunpack.c.0.s8 %v4939
        %v4941 = vlaneseq
        %v4942 = vshrl.u32 %v4941, 7
        %v4943 = vsub.s32 %v4940, %v4942
        %v4944 = vrot.slane %v4930, %v4943
        %v4945 = vcombine.low %v4736, %v4744
        %v4946 = vcombine.high %v4736, %v4744
        %v4948 = vunpack.c.l.s4 1983009808
        %v4949 = vunpack.c.0.s8 %v4948
        %v4950 = vlaneseq
        %v4951 = vshrl.u32 %v4950, 7
        %v4952 = vsub.s32 %v4949, %v4951
        %v4953 = vrot.slane %v4945, %v4952
        %v4955 = vunpack.c.l.s4 1983009808
        %v4956 = vunpack.c.0.s8 %v4955
        %v4957 = vlaneseq
        %v4958 = vshrl.u32 %v4957, 7
        %v4959 = vsub.s32 %v4956, %v4958
        %v4960 = vrot.slane %v4946, %v4959
        %v4961 = vcombine.low %v4905, %v4921
        %v4962 = vcombine.high %v4905, %v4921
        %v4964 = vunpack.c.l.s4 1934713408
        %v4965 = vunpack.c.0.s8 %v4964
        %v4966 = vlaneseq
        %v4967 = vshrl.u32 %v4966, 7
        %v4968 = vsub.s32 %v4965, %v4967
        %v4969 = vrot.slane %v4961, %v4968
        %v4971 = vunpack.c.l.s4 1934713408
        %v4972 = vunpack.c.0.s8 %v4971
        %v4973 = vlaneseq
        %v4974 = vshrl.u32 %v4973, 7
        %v4975 = vsub.s32 %v4972, %v4974
        %v4976 = vrot.slane %v4962, %v4975
        %v4977 = vcombine.low %v4912, %v4928
        %v4978 = vcombine.high %v4912, %v4928
        %v4980 = vunpack.c.l.s4 1934713408
        %v4981 = vunpack.c.0.s8 %v4980
        %v4982 = vlaneseq
        %v4983 = vshrl.u32 %v4982, 7
        %v4984 = vsub.s32 %v4981, %v4983
        %v4985 = vrot.slane %v4977, %v4984
        %v4987 = vunpack.c.l.s4 1934713408
        %v4988 = vunpack.c.0.s8 %v4987
        %v4989 = vlaneseq
        %v4990 = vshrl.u32 %v4989, 7
        %v4991 = vsub.s32 %v4988, %v4990
        %v4992 = vrot.slane %v4978, %v4991
        %v4993 = vcombine.low %v4937, %v4953
        %v4994 = vcombine.high %v4937, %v4953
        %v4996 = vunpack.c.l.s4 1934713408
        %v4997 = vunpack.c.0.s8 %v4996
        %v4998 = vlaneseq
        %v4999 = vshrl.u32 %v4998, 7
        %v5000 = vsub.s32 %v4997, %v4999
        %v5001 = vrot.slane %v4993, %v5000
        %v5003 = vunpack.c.l.s4 1934713408
        %v5004 = vunpack.c.0.s8 %v5003
        %v5005 = vlaneseq
        %v5006 = vshrl.u32 %v5005, 7
        %v5007 = vsub.s32 %v5004, %v5006
        %v5008 = vrot.slane %v4994, %v5007
        %v5009 = vcombine.low %v4944, %v4960
        %v5010 = vcombine.high %v4944, %v4960
        %v5012 = vunpack.c.l.s4 1934713408
        %v5013 = vunpack.c.0.s8 %v5012
        %v5014 = vlaneseq
        %v5015 = vshrl.u32 %v5014, 7
        %v5016 = vsub.s32 %v5013, %v5015
        %v5017 = vrot.slane %v5009, %v5016
        %v5019 = vunpack.c.l.s4 1934713408
        %v5020 = vunpack.c.0.s8 %v5019
        %v5021 = vlaneseq
        %v5022 = vshrl.u32 %v5021, 7
        %v5023 = vsub.s32 %v5020, %v5022
        %v5024 = vrot.slane %v5010, %v5023
        %v5025 = vcombine.low %v4969, %v5001
        %v5026 = vcombine.high %v4969, %v5001
        %v5027 = vcombine.low %v4976, %v5008
        %v5028 = vcombine.high %v4976, %v5008
        %v5029 = vcombine.low %v4985, %v5017
        %v5030 = vcombine.high %v4985, %v5017
        %v5031 = vcombine.low %v4992, %v5024
        %v5032 = vcombine.high %v4992, %v5024
        %5034 = vrot.lane.b32.xlu0 %v4890, 16
        %v5035 = vpop.permute.xlu0 %5034
        %5038 = vrot.lane.b32.xlu0 %v4891, 32
        %v5039 = vpop.permute.xlu0 %5038
        %5042 = vrot.lane.b32.xlu0 %v4892, 48
        %v5043 = vpop.permute.xlu0 %5042
        %5046 = vrot.lane.b32.xlu0 %v4893, 64
        %v5047 = vpop.permute.xlu0 %5046
        %5050 = vrot.lane.b32.xlu0 %v4894, 80
        %v5051 = vpop.permute.xlu0 %5050
        %5054 = vrot.lane.b32.xlu0 %v4895, 96
        %v5055 = vpop.permute.xlu0 %5054
        %5058 = vrot.lane.b32.xlu0 %v4896, 112
        %v5059 = vpop.permute.xlu0 %5058
        %5062 = vrot.lane.b32.xlu0 %v5026, 16
        %v5063 = vpop.permute.xlu0 %5062
        %5066 = vrot.lane.b32.xlu0 %v5027, 32
        %v5067 = vpop.permute.xlu0 %5066
        %5070 = vrot.lane.b32.xlu0 %v5028, 48
        %v5071 = vpop.permute.xlu0 %5070
        %5074 = vrot.lane.b32.xlu0 %v5029, 64
        %v5075 = vpop.permute.xlu0 %5074
        %5078 = vrot.lane.b32.xlu0 %v5030, 80
        %v5079 = vpop.permute.xlu0 %5078
        %5082 = vrot.lane.b32.xlu0 %v5031, 96
        %v5083 = vpop.permute.xlu0 %5082
        %5086 = vrot.lane.b32.xlu0 %v5032, 112
        %v5087 = vpop.permute.xlu0 %5086
        %v5089 = vsel %vm767, %v4889, %v5035
        %v5090 = vsel %vm769, %v5089, %v5039
        %v5091 = vsel %vm771, %v5090, %v5043
        %v5092 = vsel %vm773, %v5091, %v5047
        %v5093 = vsel %vm775, %v5092, %v5051
        %v5094 = vsel %vm777, %v5093, %v5055
        %v5095 = vsel %vm779, %v5094, %v5059
        %v5096 = vsel %vm767, %v5025, %v5063
        %v5097 = vsel %vm769, %v5096, %v5067
        %v5098 = vsel %vm771, %v5097, %v5071
        %v5099 = vsel %vm773, %v5098, %v5075
        %v5100 = vsel %vm775, %v5099, %v5079
        %v5101 = vsel %vm777, %v5100, %v5083
        %v5102 = vsel %vm779, %v5101, %v5087
        %5103 = vrot.lane.b32.xlu0 %v4339, 126
        %v5104 = vpop.permute.xlu0 %5103
        %5105 = vrot.lane.b32.xlu0 %v4340, 126
        %v5106 = vpop.permute.xlu0 %5105
        %5107 = vrot.lane.b32.xlu0 %v4341, 126
        %v5108 = vpop.permute.xlu0 %5107
        %5109 = vrot.lane.b32.xlu0 %v4342, 126
        %v5110 = vpop.permute.xlu0 %5109
        %5111 = vrot.lane.b32.xlu0 %v4343, 126
        %v5112 = vpop.permute.xlu0 %5111
        %5113 = vrot.lane.b32.xlu0 %v4344, 126
        %v5114 = vpop.permute.xlu0 %5113
        %5115 = vrot.lane.b32.xlu0 %v4345, 126
        %v5116 = vpop.permute.xlu0 %5115
        %5117 = vrot.lane.b32.xlu0 %v4346, 126
        %v5118 = vpop.permute.xlu0 %5117
        %5119 = vrot.lane.b32.xlu0 %v4347, 126
        %v5120 = vpop.permute.xlu0 %5119
        %5121 = vrot.lane.b32.xlu0 %v4348, 126
        %v5122 = vpop.permute.xlu0 %5121
        %5123 = vrot.lane.b32.xlu0 %v4349, 126
        %v5124 = vpop.permute.xlu0 %5123
        %5125 = vrot.lane.b32.xlu0 %v4350, 126
        %v5126 = vpop.permute.xlu0 %5125
        %5127 = vrot.lane.b32.xlu0 %v4351, 126
        %v5128 = vpop.permute.xlu0 %5127
        %5129 = vrot.lane.b32.xlu0 %v4352, 126
        %v5130 = vpop.permute.xlu0 %5129
        %5131 = vrot.lane.b32.xlu0 %v4353, 126
        %v5132 = vpop.permute.xlu0 %5131
        %5133 = vrot.lane.b32.xlu0 %v4354, 126
        %v5134 = vpop.permute.xlu0 %5133
        %v5151 = vcombine.low %v5104, %v5112
        %v5152 = vcombine.high %v5104, %v5112
        %v5154 = vunpack.c.l.s4 1983009808
        %v5155 = vunpack.c.0.s8 %v5154
        %v5156 = vlaneseq
        %v5157 = vshrl.u32 %v5156, 7
        %v5158 = vsub.s32 %v5155, %v5157
        %v5159 = vrot.slane %v5151, %v5158
        %v5161 = vunpack.c.l.s4 1983009808
        %v5162 = vunpack.c.0.s8 %v5161
        %v5163 = vlaneseq
        %v5164 = vshrl.u32 %v5163, 7
        %v5165 = vsub.s32 %v5162, %v5164
        %v5166 = vrot.slane %v5152, %v5165
        %v5167 = vcombine.low %v5108, %v5116
        %v5168 = vcombine.high %v5108, %v5116
        %v5170 = vunpack.c.l.s4 1983009808
        %v5171 = vunpack.c.0.s8 %v5170
        %v5172 = vlaneseq
        %v5173 = vshrl.u32 %v5172, 7
        %v5174 = vsub.s32 %v5171, %v5173
        %v5175 = vrot.slane %v5167, %v5174
        %v5177 = vunpack.c.l.s4 1983009808
        %v5178 = vunpack.c.0.s8 %v5177
        %v5179 = vlaneseq
        %v5180 = vshrl.u32 %v5179, 7
        %v5181 = vsub.s32 %v5178, %v5180
        %v5182 = vrot.slane %v5168, %v5181
        %v5183 = vcombine.low %v5120, %v5128
        %v5184 = vcombine.high %v5120, %v5128
        %v5186 = vunpack.c.l.s4 1983009808
        %v5187 = vunpack.c.0.s8 %v5186
        %v5188 = vlaneseq
        %v5189 = vshrl.u32 %v5188, 7
        %v5190 = vsub.s32 %v5187, %v5189
        %v5191 = vrot.slane %v5183, %v5190
        %v5193 = vunpack.c.l.s4 1983009808
        %v5194 = vunpack.c.0.s8 %v5193
        %v5195 = vlaneseq
        %v5196 = vshrl.u32 %v5195, 7
        %v5197 = vsub.s32 %v5194, %v5196
        %v5198 = vrot.slane %v5184, %v5197
        %v5199 = vcombine.low %v5124, %v5132
        %v5200 = vcombine.high %v5124, %v5132
        %v5202 = vunpack.c.l.s4 1983009808
        %v5203 = vunpack.c.0.s8 %v5202
        %v5204 = vlaneseq
        %v5205 = vshrl.u32 %v5204, 7
        %v5206 = vsub.s32 %v5203, %v5205
        %v5207 = vrot.slane %v5199, %v5206
        %v5209 = vunpack.c.l.s4 1983009808
        %v5210 = vunpack.c.0.s8 %v5209
        %v5211 = vlaneseq
        %v5212 = vshrl.u32 %v5211, 7
        %v5213 = vsub.s32 %v5210, %v5212
        %v5214 = vrot.slane %v5200, %v5213
        %v5215 = vcombine.low %v5159, %v5175
        %v5216 = vcombine.high %v5159, %v5175
        %v5218 = vunpack.c.l.s4 1934713408
        %v5219 = vunpack.c.0.s8 %v5218
        %v5220 = vlaneseq
        %v5221 = vshrl.u32 %v5220, 7
        %v5222 = vsub.s32 %v5219, %v5221
        %v5223 = vrot.slane %v5215, %v5222
        %v5225 = vunpack.c.l.s4 1934713408
        %v5226 = vunpack.c.0.s8 %v5225
        %v5227 = vlaneseq
        %v5228 = vshrl.u32 %v5227, 7
        %v5229 = vsub.s32 %v5226, %v5228
        %v5230 = vrot.slane %v5216, %v5229
        %v5231 = vcombine.low %v5166, %v5182
        %v5232 = vcombine.high %v5166, %v5182
        %v5234 = vunpack.c.l.s4 1934713408
        %v5235 = vunpack.c.0.s8 %v5234
        %v5236 = vlaneseq
        %v5237 = vshrl.u32 %v5236, 7
        %v5238 = vsub.s32 %v5235, %v5237
        %v5239 = vrot.slane %v5231, %v5238
        %v5241 = vunpack.c.l.s4 1934713408
        %v5242 = vunpack.c.0.s8 %v5241
        %v5243 = vlaneseq
        %v5244 = vshrl.u32 %v5243, 7
        %v5245 = vsub.s32 %v5242, %v5244
        %v5246 = vrot.slane %v5232, %v5245
        %v5247 = vcombine.low %v5191, %v5207
        %v5248 = vcombine.high %v5191, %v5207
        %v5250 = vunpack.c.l.s4 1934713408
        %v5251 = vunpack.c.0.s8 %v5250
        %v5252 = vlaneseq
        %v5253 = vshrl.u32 %v5252, 7
        %v5254 = vsub.s32 %v5251, %v5253
        %v5255 = vrot.slane %v5247, %v5254
        %v5257 = vunpack.c.l.s4 1934713408
        %v5258 = vunpack.c.0.s8 %v5257
        %v5259 = vlaneseq
        %v5260 = vshrl.u32 %v5259, 7
        %v5261 = vsub.s32 %v5258, %v5260
        %v5262 = vrot.slane %v5248, %v5261
        %v5263 = vcombine.low %v5198, %v5214
        %v5264 = vcombine.high %v5198, %v5214
        %v5266 = vunpack.c.l.s4 1934713408
        %v5267 = vunpack.c.0.s8 %v5266
        %v5268 = vlaneseq
        %v5269 = vshrl.u32 %v5268, 7
        %v5270 = vsub.s32 %v5267, %v5269
        %v5271 = vrot.slane %v5263, %v5270
        %v5273 = vunpack.c.l.s4 1934713408
        %v5274 = vunpack.c.0.s8 %v5273
        %v5275 = vlaneseq
        %v5276 = vshrl.u32 %v5275, 7
        %v5277 = vsub.s32 %v5274, %v5276
        %v5278 = vrot.slane %v5264, %v5277
        %v5279 = vcombine.low %v5223, %v5255
        %v5280 = vcombine.high %v5223, %v5255
        %v5281 = vcombine.low %v5230, %v5262
        %v5282 = vcombine.high %v5230, %v5262
        %v5283 = vcombine.low %v5239, %v5271
        %v5284 = vcombine.high %v5239, %v5271
        %v5285 = vcombine.low %v5246, %v5278
        %v5286 = vcombine.high %v5246, %v5278
        %v5287 = vcombine.low %v5106, %v5114
        %v5288 = vcombine.high %v5106, %v5114
        %v5290 = vunpack.c.l.s4 1983009808
        %v5291 = vunpack.c.0.s8 %v5290
        %v5292 = vlaneseq
        %v5293 = vshrl.u32 %v5292, 7
        %v5294 = vsub.s32 %v5291, %v5293
        %v5295 = vrot.slane %v5287, %v5294
        %v5297 = vunpack.c.l.s4 1983009808
        %v5298 = vunpack.c.0.s8 %v5297
        %v5299 = vlaneseq
        %v5300 = vshrl.u32 %v5299, 7
        %v5301 = vsub.s32 %v5298, %v5300
        %v5302 = vrot.slane %v5288, %v5301
        %v5303 = vcombine.low %v5110, %v5118
        %v5304 = vcombine.high %v5110, %v5118
        %v5306 = vunpack.c.l.s4 1983009808
        %v5307 = vunpack.c.0.s8 %v5306
        %v5308 = vlaneseq
        %v5309 = vshrl.u32 %v5308, 7
        %v5310 = vsub.s32 %v5307, %v5309
        %v5311 = vrot.slane %v5303, %v5310
        %v5313 = vunpack.c.l.s4 1983009808
        %v5314 = vunpack.c.0.s8 %v5313
        %v5315 = vlaneseq
        %v5316 = vshrl.u32 %v5315, 7
        %v5317 = vsub.s32 %v5314, %v5316
        %v5318 = vrot.slane %v5304, %v5317
        %v5319 = vcombine.low %v5122, %v5130
        %v5320 = vcombine.high %v5122, %v5130
        %v5322 = vunpack.c.l.s4 1983009808
        %v5323 = vunpack.c.0.s8 %v5322
        %v5324 = vlaneseq
        %v5325 = vshrl.u32 %v5324, 7
        %v5326 = vsub.s32 %v5323, %v5325
        %v5327 = vrot.slane %v5319, %v5326
        %v5329 = vunpack.c.l.s4 1983009808
        %v5330 = vunpack.c.0.s8 %v5329
        %v5331 = vlaneseq
        %v5332 = vshrl.u32 %v5331, 7
        %v5333 = vsub.s32 %v5330, %v5332
        %v5334 = vrot.slane %v5320, %v5333
        %v5335 = vcombine.low %v5126, %v5134
        %v5336 = vcombine.high %v5126, %v5134
        %v5338 = vunpack.c.l.s4 1983009808
        %v5339 = vunpack.c.0.s8 %v5338
        %v5340 = vlaneseq
        %v5341 = vshrl.u32 %v5340, 7
        %v5342 = vsub.s32 %v5339, %v5341
        %v5343 = vrot.slane %v5335, %v5342
        %v5345 = vunpack.c.l.s4 1983009808
        %v5346 = vunpack.c.0.s8 %v5345
        %v5347 = vlaneseq
        %v5348 = vshrl.u32 %v5347, 7
        %v5349 = vsub.s32 %v5346, %v5348
        %v5350 = vrot.slane %v5336, %v5349
        %v5351 = vcombine.low %v5295, %v5311
        %v5352 = vcombine.high %v5295, %v5311
        %v5354 = vunpack.c.l.s4 1934713408
        %v5355 = vunpack.c.0.s8 %v5354
        %v5356 = vlaneseq
        %v5357 = vshrl.u32 %v5356, 7
        %v5358 = vsub.s32 %v5355, %v5357
        %v5359 = vrot.slane %v5351, %v5358
        %v5361 = vunpack.c.l.s4 1934713408
        %v5362 = vunpack.c.0.s8 %v5361
        %v5363 = vlaneseq
        %v5364 = vshrl.u32 %v5363, 7
        %v5365 = vsub.s32 %v5362, %v5364
        %v5366 = vrot.slane %v5352, %v5365
        %v5367 = vcombine.low %v5302, %v5318
        %v5368 = vcombine.high %v5302, %v5318
        %v5370 = vunpack.c.l.s4 1934713408
        %v5371 = vunpack.c.0.s8 %v5370
        %v5372 = vlaneseq
        %v5373 = vshrl.u32 %v5372, 7
        %v5374 = vsub.s32 %v5371, %v5373
        %v5375 = vrot.slane %v5367, %v5374
        %v5377 = vunpack.c.l.s4 1934713408
        %v5378 = vunpack.c.0.s8 %v5377
        %v5379 = vlaneseq
        %v5380 = vshrl.u32 %v5379, 7
        %v5381 = vsub.s32 %v5378, %v5380
        %v5382 = vrot.slane %v5368, %v5381
        %v5383 = vcombine.low %v5327, %v5343
        %v5384 = vcombine.high %v5327, %v5343
        %v5386 = vunpack.c.l.s4 1934713408
        %v5387 = vunpack.c.0.s8 %v5386
        %v5388 = vlaneseq
        %v5389 = vshrl.u32 %v5388, 7
        %v5390 = vsub.s32 %v5387, %v5389
        %v5391 = vrot.slane %v5383, %v5390
        %v5393 = vunpack.c.l.s4 1934713408
        %v5394 = vunpack.c.0.s8 %v5393
        %v5395 = vlaneseq
        %v5396 = vshrl.u32 %v5395, 7
        %v5397 = vsub.s32 %v5394, %v5396
        %v5398 = vrot.slane %v5384, %v5397
        %v5399 = vcombine.low %v5334, %v5350
        %v5400 = vcombine.high %v5334, %v5350
        %v5402 = vunpack.c.l.s4 1934713408
        %v5403 = vunpack.c.0.s8 %v5402
        %v5404 = vlaneseq
        %v5405 = vshrl.u32 %v5404, 7
        %v5406 = vsub.s32 %v5403, %v5405
        %v5407 = vrot.slane %v5399, %v5406
        %v5409 = vunpack.c.l.s4 1934713408
        %v5410 = vunpack.c.0.s8 %v5409
        %v5411 = vlaneseq
        %v5412 = vshrl.u32 %v5411, 7
        %v5413 = vsub.s32 %v5410, %v5412
        %v5414 = vrot.slane %v5400, %v5413
        %v5415 = vcombine.low %v5359, %v5391
        %v5416 = vcombine.high %v5359, %v5391
        %v5417 = vcombine.low %v5366, %v5398
        %v5418 = vcombine.high %v5366, %v5398
        %v5419 = vcombine.low %v5375, %v5407
        %v5420 = vcombine.high %v5375, %v5407
        %v5421 = vcombine.low %v5382, %v5414
        %v5422 = vcombine.high %v5382, %v5414
        %5424 = vrot.lane.b32.xlu0 %v5280, 16
        %v5425 = vpop.permute.xlu0 %5424
        %5428 = vrot.lane.b32.xlu0 %v5281, 32
        %v5429 = vpop.permute.xlu0 %5428
        %5432 = vrot.lane.b32.xlu0 %v5282, 48
        %v5433 = vpop.permute.xlu0 %5432
        %5436 = vrot.lane.b32.xlu0 %v5283, 64
        %v5437 = vpop.permute.xlu0 %5436
        %5440 = vrot.lane.b32.xlu0 %v5284, 80
        %v5441 = vpop.permute.xlu0 %5440
        %5444 = vrot.lane.b32.xlu0 %v5285, 96
        %v5445 = vpop.permute.xlu0 %5444
        %5448 = vrot.lane.b32.xlu0 %v5286, 112
        %v5449 = vpop.permute.xlu0 %5448
        %5452 = vrot.lane.b32.xlu0 %v5416, 16
        %v5453 = vpop.permute.xlu0 %5452
        %5456 = vrot.lane.b32.xlu0 %v5417, 32
        %v5457 = vpop.permute.xlu0 %5456
        %5460 = vrot.lane.b32.xlu0 %v5418, 48
        %v5461 = vpop.permute.xlu0 %5460
        %5464 = vrot.lane.b32.xlu0 %v5419, 64
        %v5465 = vpop.permute.xlu0 %5464
        %5468 = vrot.lane.b32.xlu0 %v5420, 80
        %v5469 = vpop.permute.xlu0 %5468
        %5472 = vrot.lane.b32.xlu0 %v5421, 96
        %v5473 = vpop.permute.xlu0 %5472
        %5476 = vrot.lane.b32.xlu0 %v5422, 112
        %v5477 = vpop.permute.xlu0 %5476
        %v5479 = vsel %vm767, %v5279, %v5425
        %v5480 = vsel %vm769, %v5479, %v5429
        %v5481 = vsel %vm771, %v5480, %v5433
        %v5482 = vsel %vm773, %v5481, %v5437
        %v5483 = vsel %vm775, %v5482, %v5441
        %v5484 = vsel %vm777, %v5483, %v5445
        %v5485 = vsel %vm779, %v5484, %v5449
        %v5486 = vsel %vm767, %v5415, %v5453
        %v5487 = vsel %vm769, %v5486, %v5457
        %v5488 = vsel %vm771, %v5487, %v5461
        %v5489 = vsel %vm773, %v5488, %v5465
        %v5490 = vsel %vm775, %v5489, %v5469
        %v5491 = vsel %vm777, %v5490, %v5473
        %v5492 = vsel %vm779, %v5491, %v5477
        %v5493 = vld [vmem:[#allocation3 + $0x2] sm:$0xff]
        %v5494 = vld [vmem:[#allocation3 + $0xa] sm:$0xff]
        %v5495 = vld [vmem:[#allocation3 + $0x1a] sm:$0xff]
        %v5496 = vld [vmem:[#allocation3 + $0x22] sm:$0xff]
        %v5497 = vld [vmem:[#allocation3 + $0x32] sm:$0xff]
        %v5498 = vld [vmem:[#allocation3 + $0x3a] sm:$0xff]
        %v5499 = vld [vmem:[#allocation3 + $0x4a] sm:$0xff]
        %v5500 = vld [vmem:[#allocation3 + $0x52] sm:$0xff]
        %v5501 = vld [vmem:[#allocation3 + $0x62] sm:$0xff]
        %v5502 = vld [vmem:[#allocation3 + $0x6a] sm:$0xff]
        %v5503 = vld [vmem:[#allocation3 + $0x7a] sm:$0xff]
        %v5504 = vld [vmem:[#allocation3 + $0x82] sm:$0xff]
        %v5505 = vld [vmem:[#allocation3 + $0x92] sm:$0xff]
        %v5506 = vld [vmem:[#allocation3 + $0x9a] sm:$0xff]
        %v5507 = vld [vmem:[#allocation3 + $0xaa] sm:$0xff]
        %v5508 = vld [vmem:[#allocation3 + $0xb2] sm:$0xff]
        %v5509 = vcombine.low %v5493, %v5497
        %v5510 = vcombine.high %v5493, %v5497
        %v5512 = vunpack.c.l.s4 1983009808
        %v5513 = vunpack.c.0.s8 %v5512
        %v5514 = vlaneseq
        %v5515 = vshrl.u32 %v5514, 7
        %v5516 = vsub.s32 %v5513, %v5515
        %v5517 = vrot.slane %v5509, %v5516
        %v5519 = vunpack.c.l.s4 1983009808
        %v5520 = vunpack.c.0.s8 %v5519
        %v5521 = vlaneseq
        %v5522 = vshrl.u32 %v5521, 7
        %v5523 = vsub.s32 %v5520, %v5522
        %v5524 = vrot.slane %v5510, %v5523
        %v5525 = vcombine.low %v5495, %v5499
        %v5526 = vcombine.high %v5495, %v5499
        %v5528 = vunpack.c.l.s4 1983009808
        %v5529 = vunpack.c.0.s8 %v5528
        %v5530 = vlaneseq
        %v5531 = vshrl.u32 %v5530, 7
        %v5532 = vsub.s32 %v5529, %v5531
        %v5533 = vrot.slane %v5525, %v5532
        %v5535 = vunpack.c.l.s4 1983009808
        %v5536 = vunpack.c.0.s8 %v5535
        %v5537 = vlaneseq
        %v5538 = vshrl.u32 %v5537, 7
        %v5539 = vsub.s32 %v5536, %v5538
        %v5540 = vrot.slane %v5526, %v5539
        %v5541 = vcombine.low %v5501, %v5505
        %v5542 = vcombine.high %v5501, %v5505
        %v5544 = vunpack.c.l.s4 1983009808
        %v5545 = vunpack.c.0.s8 %v5544
        %v5546 = vlaneseq
        %v5547 = vshrl.u32 %v5546, 7
        %v5548 = vsub.s32 %v5545, %v5547
        %v5549 = vrot.slane %v5541, %v5548
        %v5551 = vunpack.c.l.s4 1983009808
        %v5552 = vunpack.c.0.s8 %v5551
        %v5553 = vlaneseq
        %v5554 = vshrl.u32 %v5553, 7
        %v5555 = vsub.s32 %v5552, %v5554
        %v5556 = vrot.slane %v5542, %v5555
        %v5557 = vcombine.low %v5503, %v5507
        %v5558 = vcombine.high %v5503, %v5507
        %v5560 = vunpack.c.l.s4 1983009808
        %v5561 = vunpack.c.0.s8 %v5560
        %v5562 = vlaneseq
        %v5563 = vshrl.u32 %v5562, 7
        %v5564 = vsub.s32 %v5561, %v5563
        %v5565 = vrot.slane %v5557, %v5564
        %v5567 = vunpack.c.l.s4 1983009808
        %v5568 = vunpack.c.0.s8 %v5567
        %v5569 = vlaneseq
        %v5570 = vshrl.u32 %v5569, 7
        %v5571 = vsub.s32 %v5568, %v5570
        %v5572 = vrot.slane %v5558, %v5571
        %v5573 = vcombine.low %v5517, %v5533
        %v5574 = vcombine.high %v5517, %v5533
        %v5576 = vunpack.c.l.s4 1934713408
        %v5577 = vunpack.c.0.s8 %v5576
        %v5578 = vlaneseq
        %v5579 = vshrl.u32 %v5578, 7
        %v5580 = vsub.s32 %v5577, %v5579
        %v5581 = vrot.slane %v5573, %v5580
        %v5583 = vunpack.c.l.s4 1934713408
        %v5584 = vunpack.c.0.s8 %v5583
        %v5585 = vlaneseq
        %v5586 = vshrl.u32 %v5585, 7
        %v5587 = vsub.s32 %v5584, %v5586
        %v5588 = vrot.slane %v5574, %v5587
        %v5589 = vcombine.low %v5524, %v5540
        %v5590 = vcombine.high %v5524, %v5540
        %v5592 = vunpack.c.l.s4 1934713408
        %v5593 = vunpack.c.0.s8 %v5592
        %v5594 = vlaneseq
        %v5595 = vshrl.u32 %v5594, 7
        %v5596 = vsub.s32 %v5593, %v5595
        %v5597 = vrot.slane %v5589, %v5596
        %v5599 = vunpack.c.l.s4 1934713408
        %v5600 = vunpack.c.0.s8 %v5599
        %v5601 = vlaneseq
        %v5602 = vshrl.u32 %v5601, 7
        %v5603 = vsub.s32 %v5600, %v5602
        %v5604 = vrot.slane %v5590, %v5603
        %v5605 = vcombine.low %v5549, %v5565
        %v5606 = vcombine.high %v5549, %v5565
        %v5608 = vunpack.c.l.s4 1934713408
        %v5609 = vunpack.c.0.s8 %v5608
        %v5610 = vlaneseq
        %v5611 = vshrl.u32 %v5610, 7
        %v5612 = vsub.s32 %v5609, %v5611
        %v5613 = vrot.slane %v5605, %v5612
        %v5615 = vunpack.c.l.s4 1934713408
        %v5616 = vunpack.c.0.s8 %v5615
        %v5617 = vlaneseq
        %v5618 = vshrl.u32 %v5617, 7
        %v5619 = vsub.s32 %v5616, %v5618
        %v5620 = vrot.slane %v5606, %v5619
        %v5621 = vcombine.low %v5556, %v5572
        %v5622 = vcombine.high %v5556, %v5572
        %v5624 = vunpack.c.l.s4 1934713408
        %v5625 = vunpack.c.0.s8 %v5624
        %v5626 = vlaneseq
        %v5627 = vshrl.u32 %v5626, 7
        %v5628 = vsub.s32 %v5625, %v5627
        %v5629 = vrot.slane %v5621, %v5628
        %v5631 = vunpack.c.l.s4 1934713408
        %v5632 = vunpack.c.0.s8 %v5631
        %v5633 = vlaneseq
        %v5634 = vshrl.u32 %v5633, 7
        %v5635 = vsub.s32 %v5632, %v5634
        %v5636 = vrot.slane %v5622, %v5635
        %v5637 = vcombine.low %v5581, %v5613
        %v5638 = vcombine.high %v5581, %v5613
        %v5639 = vcombine.low %v5588, %v5620
        %v5640 = vcombine.high %v5588, %v5620
        %v5641 = vcombine.low %v5597, %v5629
        %v5642 = vcombine.high %v5597, %v5629
        %v5643 = vcombine.low %v5604, %v5636
        %v5644 = vcombine.high %v5604, %v5636
        %v5645 = vcombine.low %v5494, %v5498
        %v5646 = vcombine.high %v5494, %v5498
        %v5648 = vunpack.c.l.s4 1983009808
        %v5649 = vunpack.c.0.s8 %v5648
        %v5650 = vlaneseq
        %v5651 = vshrl.u32 %v5650, 7
        %v5652 = vsub.s32 %v5649, %v5651
        %v5653 = vrot.slane %v5645, %v5652
        %v5655 = vunpack.c.l.s4 1983009808
        %v5656 = vunpack.c.0.s8 %v5655
        %v5657 = vlaneseq
        %v5658 = vshrl.u32 %v5657, 7
        %v5659 = vsub.s32 %v5656, %v5658
        %v5660 = vrot.slane %v5646, %v5659
        %v5661 = vcombine.low %v5496, %v5500
        %v5662 = vcombine.high %v5496, %v5500
        %v5664 = vunpack.c.l.s4 1983009808
        %v5665 = vunpack.c.0.s8 %v5664
        %v5666 = vlaneseq
        %v5667 = vshrl.u32 %v5666, 7
        %v5668 = vsub.s32 %v5665, %v5667
        %v5669 = vrot.slane %v5661, %v5668
        %v5671 = vunpack.c.l.s4 1983009808
        %v5672 = vunpack.c.0.s8 %v5671
        %v5673 = vlaneseq
        %v5674 = vshrl.u32 %v5673, 7
        %v5675 = vsub.s32 %v5672, %v5674
        %v5676 = vrot.slane %v5662, %v5675
        %v5677 = vcombine.low %v5502, %v5506
        %v5678 = vcombine.high %v5502, %v5506
        %v5680 = vunpack.c.l.s4 1983009808
        %v5681 = vunpack.c.0.s8 %v5680
        %v5682 = vlaneseq
        %v5683 = vshrl.u32 %v5682, 7
        %v5684 = vsub.s32 %v5681, %v5683
        %v5685 = vrot.slane %v5677, %v5684
        %v5687 = vunpack.c.l.s4 1983009808
        %v5688 = vunpack.c.0.s8 %v5687
        %v5689 = vlaneseq
        %v5690 = vshrl.u32 %v5689, 7
        %v5691 = vsub.s32 %v5688, %v5690
        %v5692 = vrot.slane %v5678, %v5691
        %v5693 = vcombine.low %v5504, %v5508
        %v5694 = vcombine.high %v5504, %v5508
        %v5696 = vunpack.c.l.s4 1983009808
        %v5697 = vunpack.c.0.s8 %v5696
        %v5698 = vlaneseq
        %v5699 = vshrl.u32 %v5698, 7
        %v5700 = vsub.s32 %v5697, %v5699
        %v5701 = vrot.slane %v5693, %v5700
        %v5703 = vunpack.c.l.s4 1983009808
        %v5704 = vunpack.c.0.s8 %v5703
        %v5705 = vlaneseq
        %v5706 = vshrl.u32 %v5705, 7
        %v5707 = vsub.s32 %v5704, %v5706
        %v5708 = vrot.slane %v5694, %v5707
        %v5709 = vcombine.low %v5653, %v5669
        %v5710 = vcombine.high %v5653, %v5669
        %v5712 = vunpack.c.l.s4 1934713408
        %v5713 = vunpack.c.0.s8 %v5712
        %v5714 = vlaneseq
        %v5715 = vshrl.u32 %v5714, 7
        %v5716 = vsub.s32 %v5713, %v5715
        %v5717 = vrot.slane %v5709, %v5716
        %v5719 = vunpack.c.l.s4 1934713408
        %v5720 = vunpack.c.0.s8 %v5719
        %v5721 = vlaneseq
        %v5722 = vshrl.u32 %v5721, 7
        %v5723 = vsub.s32 %v5720, %v5722
        %v5724 = vrot.slane %v5710, %v5723
        %v5725 = vcombine.low %v5660, %v5676
        %v5726 = vcombine.high %v5660, %v5676
        %v5728 = vunpack.c.l.s4 1934713408
        %v5729 = vunpack.c.0.s8 %v5728
        %v5730 = vlaneseq
        %v5731 = vshrl.u32 %v5730, 7
        %v5732 = vsub.s32 %v5729, %v5731
        %v5733 = vrot.slane %v5725, %v5732
        %v5735 = vunpack.c.l.s4 1934713408
        %v5736 = vunpack.c.0.s8 %v5735
        %v5737 = vlaneseq
        %v5738 = vshrl.u32 %v5737, 7
        %v5739 = vsub.s32 %v5736, %v5738
        %v5740 = vrot.slane %v5726, %v5739
        %v5741 = vcombine.low %v5685, %v5701
        %v5742 = vcombine.high %v5685, %v5701
        %v5744 = vunpack.c.l.s4 1934713408
        %v5745 = vunpack.c.0.s8 %v5744
        %v5746 = vlaneseq
        %v5747 = vshrl.u32 %v5746, 7
        %v5748 = vsub.s32 %v5745, %v5747
        %v5749 = vrot.slane %v5741, %v5748
        %v5751 = vunpack.c.l.s4 1934713408
        %v5752 = vunpack.c.0.s8 %v5751
        %v5753 = vlaneseq
        %v5754 = vshrl.u32 %v5753, 7
        %v5755 = vsub.s32 %v5752, %v5754
        %v5756 = vrot.slane %v5742, %v5755
        %v5757 = vcombine.low %v5692, %v5708
        %v5758 = vcombine.high %v5692, %v5708
        %v5760 = vunpack.c.l.s4 1934713408
        %v5761 = vunpack.c.0.s8 %v5760
        %v5762 = vlaneseq
        %v5763 = vshrl.u32 %v5762, 7
        %v5764 = vsub.s32 %v5761, %v5763
        %v5765 = vrot.slane %v5757, %v5764
        %v5767 = vunpack.c.l.s4 1934713408
        %v5768 = vunpack.c.0.s8 %v5767
        %v5769 = vlaneseq
        %v5770 = vshrl.u32 %v5769, 7
        %v5771 = vsub.s32 %v5768, %v5770
        %v5772 = vrot.slane %v5758, %v5771
        %v5773 = vcombine.low %v5717, %v5749
        %v5774 = vcombine.high %v5717, %v5749
        %v5775 = vcombine.low %v5724, %v5756
        %v5776 = vcombine.high %v5724, %v5756
        %v5777 = vcombine.low %v5733, %v5765
        %v5778 = vcombine.high %v5733, %v5765
        %v5779 = vcombine.low %v5740, %v5772
        %v5780 = vcombine.high %v5740, %v5772
        %5782 = vrot.lane.b32.xlu0 %v5638, 16
        %v5783 = vpop.permute.xlu0 %5782
        %5786 = vrot.lane.b32.xlu0 %v5639, 32
        %v5787 = vpop.permute.xlu0 %5786
        %5790 = vrot.lane.b32.xlu0 %v5640, 48
        %v5791 = vpop.permute.xlu0 %5790
        %5794 = vrot.lane.b32.xlu0 %v5641, 64
        %v5795 = vpop.permute.xlu0 %5794
        %5798 = vrot.lane.b32.xlu0 %v5642, 80
        %v5799 = vpop.permute.xlu0 %5798
        %5802 = vrot.lane.b32.xlu0 %v5643, 96
        %v5803 = vpop.permute.xlu0 %5802
        %5806 = vrot.lane.b32.xlu0 %v5644, 112
        %v5807 = vpop.permute.xlu0 %5806
        %5810 = vrot.lane.b32.xlu0 %v5774, 16
        %v5811 = vpop.permute.xlu0 %5810
        %5814 = vrot.lane.b32.xlu0 %v5775, 32
        %v5815 = vpop.permute.xlu0 %5814
        %5818 = vrot.lane.b32.xlu0 %v5776, 48
        %v5819 = vpop.permute.xlu0 %5818
        %5822 = vrot.lane.b32.xlu0 %v5777, 64
        %v5823 = vpop.permute.xlu0 %5822
        %5826 = vrot.lane.b32.xlu0 %v5778, 80
        %v5827 = vpop.permute.xlu0 %5826
        %5830 = vrot.lane.b32.xlu0 %v5779, 96
        %v5831 = vpop.permute.xlu0 %5830
        %5834 = vrot.lane.b32.xlu0 %v5780, 112
        %v5835 = vpop.permute.xlu0 %5834
        %v5837 = vsel %vm767, %v5637, %v5783
        %v5838 = vsel %vm769, %v5837, %v5787
        %v5839 = vsel %vm771, %v5838, %v5791
        %v5840 = vsel %vm773, %v5839, %v5795
        %v5841 = vsel %vm775, %v5840, %v5799
        %v5842 = vsel %vm777, %v5841, %v5803
        %v5843 = vsel %vm779, %v5842, %v5807
        %v5844 = vsel %vm767, %v5773, %v5811
        %v5845 = vsel %vm769, %v5844, %v5815
        %v5846 = vsel %vm771, %v5845, %v5819
        %v5847 = vsel %vm773, %v5846, %v5823
        %v5848 = vsel %vm775, %v5847, %v5827
        %v5849 = vsel %vm777, %v5848, %v5831
        %v5850 = vsel %vm779, %v5849, %v5835
        %5867 = vrot.lane.b32.xlu0 %v5493, 127
        %v5868 = vpop.permute.xlu0 %5867
        %5869 = vrot.lane.b32.xlu0 %v5494, 127
        %v5870 = vpop.permute.xlu0 %5869
        %5871 = vrot.lane.b32.xlu0 %v5495, 127
        %v5872 = vpop.permute.xlu0 %5871
        %5873 = vrot.lane.b32.xlu0 %v5496, 127
        %v5874 = vpop.permute.xlu0 %5873
        %5875 = vrot.lane.b32.xlu0 %v5497, 127
        %v5876 = vpop.permute.xlu0 %5875
        %5877 = vrot.lane.b32.xlu0 %v5498, 127
        %v5878 = vpop.permute.xlu0 %5877
        %5879 = vrot.lane.b32.xlu0 %v5499, 127
        %v5880 = vpop.permute.xlu0 %5879
        %5881 = vrot.lane.b32.xlu0 %v5500, 127
        %v5882 = vpop.permute.xlu0 %5881
        %5883 = vrot.lane.b32.xlu0 %v5501, 127
        %v5884 = vpop.permute.xlu0 %5883
        %5885 = vrot.lane.b32.xlu0 %v5502, 127
        %v5886 = vpop.permute.xlu0 %5885
        %5887 = vrot.lane.b32.xlu0 %v5503, 127
        %v5888 = vpop.permute.xlu0 %5887
        %5889 = vrot.lane.b32.xlu0 %v5504, 127
        %v5890 = vpop.permute.xlu0 %5889
        %5891 = vrot.lane.b32.xlu0 %v5505, 127
        %v5892 = vpop.permute.xlu0 %5891
        %5893 = vrot.lane.b32.xlu0 %v5506, 127
        %v5894 = vpop.permute.xlu0 %5893
        %5895 = vrot.lane.b32.xlu0 %v5507, 127
        %v5896 = vpop.permute.xlu0 %5895
        %5897 = vrot.lane.b32.xlu0 %v5508, 127
        %v5898 = vpop.permute.xlu0 %5897
        %v5915 = vcombine.low %v5868, %v5876
        %v5916 = vcombine.high %v5868, %v5876
        %v5918 = vunpack.c.l.s4 1983009808
        %v5919 = vunpack.c.0.s8 %v5918
        %v5920 = vlaneseq
        %v5921 = vshrl.u32 %v5920, 7
        %v5922 = vsub.s32 %v5919, %v5921
        %v5923 = vrot.slane %v5915, %v5922
        %v5925 = vunpack.c.l.s4 1983009808
        %v5926 = vunpack.c.0.s8 %v5925
        %v5927 = vlaneseq
        %v5928 = vshrl.u32 %v5927, 7
        %v5929 = vsub.s32 %v5926, %v5928
        %v5930 = vrot.slane %v5916, %v5929
        %v5931 = vcombine.low %v5872, %v5880
        %v5932 = vcombine.high %v5872, %v5880
        %v5934 = vunpack.c.l.s4 1983009808
        %v5935 = vunpack.c.0.s8 %v5934
        %v5936 = vlaneseq
        %v5937 = vshrl.u32 %v5936, 7
        %v5938 = vsub.s32 %v5935, %v5937
        %v5939 = vrot.slane %v5931, %v5938
        %v5941 = vunpack.c.l.s4 1983009808
        %v5942 = vunpack.c.0.s8 %v5941
        %v5943 = vlaneseq
        %v5944 = vshrl.u32 %v5943, 7
        %v5945 = vsub.s32 %v5942, %v5944
        %v5946 = vrot.slane %v5932, %v5945
        %v5947 = vcombine.low %v5884, %v5892
        %v5948 = vcombine.high %v5884, %v5892
        %v5950 = vunpack.c.l.s4 1983009808
        %v5951 = vunpack.c.0.s8 %v5950
        %v5952 = vlaneseq
        %v5953 = vshrl.u32 %v5952, 7
        %v5954 = vsub.s32 %v5951, %v5953
        %v5955 = vrot.slane %v5947, %v5954
        %v5957 = vunpack.c.l.s4 1983009808
        %v5958 = vunpack.c.0.s8 %v5957
        %v5959 = vlaneseq
        %v5960 = vshrl.u32 %v5959, 7
        %v5961 = vsub.s32 %v5958, %v5960
        %v5962 = vrot.slane %v5948, %v5961
        %v5963 = vcombine.low %v5888, %v5896
        %v5964 = vcombine.high %v5888, %v5896
        %v5966 = vunpack.c.l.s4 1983009808
        %v5967 = vunpack.c.0.s8 %v5966
        %v5968 = vlaneseq
        %v5969 = vshrl.u32 %v5968, 7
        %v5970 = vsub.s32 %v5967, %v5969
        %v5971 = vrot.slane %v5963, %v5970
        %v5973 = vunpack.c.l.s4 1983009808
        %v5974 = vunpack.c.0.s8 %v5973
        %v5975 = vlaneseq
        %v5976 = vshrl.u32 %v5975, 7
        %v5977 = vsub.s32 %v5974, %v5976
        %v5978 = vrot.slane %v5964, %v5977
        %v5979 = vcombine.low %v5923, %v5939
        %v5980 = vcombine.high %v5923, %v5939
        %v5982 = vunpack.c.l.s4 1934713408
        %v5983 = vunpack.c.0.s8 %v5982
        %v5984 = vlaneseq
        %v5985 = vshrl.u32 %v5984, 7
        %v5986 = vsub.s32 %v5983, %v5985
        %v5987 = vrot.slane %v5979, %v5986
        %v5989 = vunpack.c.l.s4 1934713408
        %v5990 = vunpack.c.0.s8 %v5989
        %v5991 = vlaneseq
        %v5992 = vshrl.u32 %v5991, 7
        %v5993 = vsub.s32 %v5990, %v5992
        %v5994 = vrot.slane %v5980, %v5993
        %v5995 = vcombine.low %v5930, %v5946
        %v5996 = vcombine.high %v5930, %v5946
        %v5998 = vunpack.c.l.s4 1934713408
        %v5999 = vunpack.c.0.s8 %v5998
        %v6000 = vlaneseq
        %v6001 = vshrl.u32 %v6000, 7
        %v6002 = vsub.s32 %v5999, %v6001
        %v6003 = vrot.slane %v5995, %v6002
        %v6005 = vunpack.c.l.s4 1934713408
        %v6006 = vunpack.c.0.s8 %v6005
        %v6007 = vlaneseq
        %v6008 = vshrl.u32 %v6007, 7
        %v6009 = vsub.s32 %v6006, %v6008
        %v6010 = vrot.slane %v5996, %v6009
        %v6011 = vcombine.low %v5955, %v5971
        %v6012 = vcombine.high %v5955, %v5971
        %v6014 = vunpack.c.l.s4 1934713408
        %v6015 = vunpack.c.0.s8 %v6014
        %v6016 = vlaneseq
        %v6017 = vshrl.u32 %v6016, 7
        %v6018 = vsub.s32 %v6015, %v6017
        %v6019 = vrot.slane %v6011, %v6018
        %v6021 = vunpack.c.l.s4 1934713408
        %v6022 = vunpack.c.0.s8 %v6021
        %v6023 = vlaneseq
        %v6024 = vshrl.u32 %v6023, 7
        %v6025 = vsub.s32 %v6022, %v6024
        %v6026 = vrot.slane %v6012, %v6025
        %v6027 = vcombine.low %v5962, %v5978
        %v6028 = vcombine.high %v5962, %v5978
        %v6030 = vunpack.c.l.s4 1934713408
        %v6031 = vunpack.c.0.s8 %v6030
        %v6032 = vlaneseq
        %v6033 = vshrl.u32 %v6032, 7
        %v6034 = vsub.s32 %v6031, %v6033
        %v6035 = vrot.slane %v6027, %v6034
        %v6037 = vunpack.c.l.s4 1934713408
        %v6038 = vunpack.c.0.s8 %v6037
        %v6039 = vlaneseq
        %v6040 = vshrl.u32 %v6039, 7
        %v6041 = vsub.s32 %v6038, %v6040
        %v6042 = vrot.slane %v6028, %v6041
        %v6043 = vcombine.low %v5987, %v6019
        %v6044 = vcombine.high %v5987, %v6019
        %v6045 = vcombine.low %v5994, %v6026
        %v6046 = vcombine.high %v5994, %v6026
        %v6047 = vcombine.low %v6003, %v6035
        %v6048 = vcombine.high %v6003, %v6035
        %v6049 = vcombine.low %v6010, %v6042
        %v6050 = vcombine.high %v6010, %v6042
        %v6051 = vcombine.low %v5870, %v5878
        %v6052 = vcombine.high %v5870, %v5878
        %v6054 = vunpack.c.l.s4 1983009808
        %v6055 = vunpack.c.0.s8 %v6054
        %v6056 = vlaneseq
        %v6057 = vshrl.u32 %v6056, 7
        %v6058 = vsub.s32 %v6055, %v6057
        %v6059 = vrot.slane %v6051, %v6058
        %v6061 = vunpack.c.l.s4 1983009808
        %v6062 = vunpack.c.0.s8 %v6061
        %v6063 = vlaneseq
        %v6064 = vshrl.u32 %v6063, 7
        %v6065 = vsub.s32 %v6062, %v6064
        %v6066 = vrot.slane %v6052, %v6065
        %v6067 = vcombine.low %v5874, %v5882
        %v6068 = vcombine.high %v5874, %v5882
        %v6070 = vunpack.c.l.s4 1983009808
        %v6071 = vunpack.c.0.s8 %v6070
        %v6072 = vlaneseq
        %v6073 = vshrl.u32 %v6072, 7
        %v6074 = vsub.s32 %v6071, %v6073
        %v6075 = vrot.slane %v6067, %v6074
        %v6077 = vunpack.c.l.s4 1983009808
        %v6078 = vunpack.c.0.s8 %v6077
        %v6079 = vlaneseq
        %v6080 = vshrl.u32 %v6079, 7
        %v6081 = vsub.s32 %v6078, %v6080
        %v6082 = vrot.slane %v6068, %v6081
        %v6083 = vcombine.low %v5886, %v5894
        %v6084 = vcombine.high %v5886, %v5894
        %v6086 = vunpack.c.l.s4 1983009808
        %v6087 = vunpack.c.0.s8 %v6086
        %v6088 = vlaneseq
        %v6089 = vshrl.u32 %v6088, 7
        %v6090 = vsub.s32 %v6087, %v6089
        %v6091 = vrot.slane %v6083, %v6090
        %v6093 = vunpack.c.l.s4 1983009808
        %v6094 = vunpack.c.0.s8 %v6093
        %v6095 = vlaneseq
        %v6096 = vshrl.u32 %v6095, 7
        %v6097 = vsub.s32 %v6094, %v6096
        %v6098 = vrot.slane %v6084, %v6097
        %v6099 = vcombine.low %v5890, %v5898
        %v6100 = vcombine.high %v5890, %v5898
        %v6102 = vunpack.c.l.s4 1983009808
        %v6103 = vunpack.c.0.s8 %v6102
        %v6104 = vlaneseq
        %v6105 = vshrl.u32 %v6104, 7
        %v6106 = vsub.s32 %v6103, %v6105
        %v6107 = vrot.slane %v6099, %v6106
        %v6109 = vunpack.c.l.s4 1983009808
        %v6110 = vunpack.c.0.s8 %v6109
        %v6111 = vlaneseq
        %v6112 = vshrl.u32 %v6111, 7
        %v6113 = vsub.s32 %v6110, %v6112
        %v6114 = vrot.slane %v6100, %v6113
        %v6115 = vcombine.low %v6059, %v6075
        %v6116 = vcombine.high %v6059, %v6075
        %v6118 = vunpack.c.l.s4 1934713408
        %v6119 = vunpack.c.0.s8 %v6118
        %v6120 = vlaneseq
        %v6121 = vshrl.u32 %v6120, 7
        %v6122 = vsub.s32 %v6119, %v6121
        %v6123 = vrot.slane %v6115, %v6122
        %v6125 = vunpack.c.l.s4 1934713408
        %v6126 = vunpack.c.0.s8 %v6125
        %v6127 = vlaneseq
        %v6128 = vshrl.u32 %v6127, 7
        %v6129 = vsub.s32 %v6126, %v6128
        %v6130 = vrot.slane %v6116, %v6129
        %v6131 = vcombine.low %v6066, %v6082
        %v6132 = vcombine.high %v6066, %v6082
        %v6134 = vunpack.c.l.s4 1934713408
        %v6135 = vunpack.c.0.s8 %v6134
        %v6136 = vlaneseq
        %v6137 = vshrl.u32 %v6136, 7
        %v6138 = vsub.s32 %v6135, %v6137
        %v6139 = vrot.slane %v6131, %v6138
        %v6141 = vunpack.c.l.s4 1934713408
        %v6142 = vunpack.c.0.s8 %v6141
        %v6143 = vlaneseq
        %v6144 = vshrl.u32 %v6143, 7
        %v6145 = vsub.s32 %v6142, %v6144
        %v6146 = vrot.slane %v6132, %v6145
        %v6147 = vcombine.low %v6091, %v6107
        %v6148 = vcombine.high %v6091, %v6107
        %v6150 = vunpack.c.l.s4 1934713408
        %v6151 = vunpack.c.0.s8 %v6150
        %v6152 = vlaneseq
        %v6153 = vshrl.u32 %v6152, 7
        %v6154 = vsub.s32 %v6151, %v6153
        %v6155 = vrot.slane %v6147, %v6154
        %v6157 = vunpack.c.l.s4 1934713408
        %v6158 = vunpack.c.0.s8 %v6157
        %v6159 = vlaneseq
        %v6160 = vshrl.u32 %v6159, 7
        %v6161 = vsub.s32 %v6158, %v6160
        %v6162 = vrot.slane %v6148, %v6161
        %v6163 = vcombine.low %v6098, %v6114
        %v6164 = vcombine.high %v6098, %v6114
        %v6166 = vunpack.c.l.s4 1934713408
        %v6167 = vunpack.c.0.s8 %v6166
        %v6168 = vlaneseq
        %v6169 = vshrl.u32 %v6168, 7
        %v6170 = vsub.s32 %v6167, %v6169
        %v6171 = vrot.slane %v6163, %v6170
        %v6173 = vunpack.c.l.s4 1934713408
        %v6174 = vunpack.c.0.s8 %v6173
        %v6175 = vlaneseq
        %v6176 = vshrl.u32 %v6175, 7
        %v6177 = vsub.s32 %v6174, %v6176
        %v6178 = vrot.slane %v6164, %v6177
        %v6179 = vcombine.low %v6123, %v6155
        %v6180 = vcombine.high %v6123, %v6155
        %v6181 = vcombine.low %v6130, %v6162
        %v6182 = vcombine.high %v6130, %v6162
        %v6183 = vcombine.low %v6139, %v6171
        %v6184 = vcombine.high %v6139, %v6171
        %v6185 = vcombine.low %v6146, %v6178
        %v6186 = vcombine.high %v6146, %v6178
        %6188 = vrot.lane.b32.xlu0 %v6044, 16
        %v6189 = vpop.permute.xlu0 %6188
        %6192 = vrot.lane.b32.xlu0 %v6045, 32
        %v6193 = vpop.permute.xlu0 %6192
        %6196 = vrot.lane.b32.xlu0 %v6046, 48
        %v6197 = vpop.permute.xlu0 %6196
        %6200 = vrot.lane.b32.xlu0 %v6047, 64
        %v6201 = vpop.permute.xlu0 %6200
        %6204 = vrot.lane.b32.xlu0 %v6048, 80
        %v6205 = vpop.permute.xlu0 %6204
        %6208 = vrot.lane.b32.xlu0 %v6049, 96
        %v6209 = vpop.permute.xlu0 %6208
        %6212 = vrot.lane.b32.xlu0 %v6050, 112
        %v6213 = vpop.permute.xlu0 %6212
        %6216 = vrot.lane.b32.xlu0 %v6180, 16
        %v6217 = vpop.permute.xlu0 %6216
        %6220 = vrot.lane.b32.xlu0 %v6181, 32
        %v6221 = vpop.permute.xlu0 %6220
        %6224 = vrot.lane.b32.xlu0 %v6182, 48
        %v6225 = vpop.permute.xlu0 %6224
        %6228 = vrot.lane.b32.xlu0 %v6183, 64
        %v6229 = vpop.permute.xlu0 %6228
        %6232 = vrot.lane.b32.xlu0 %v6184, 80
        %v6233 = vpop.permute.xlu0 %6232
        %6236 = vrot.lane.b32.xlu0 %v6185, 96
        %v6237 = vpop.permute.xlu0 %6236
        %6240 = vrot.lane.b32.xlu0 %v6186, 112
        %v6241 = vpop.permute.xlu0 %6240
        %v6243 = vsel %vm767, %v6043, %v6189
        %v6244 = vsel %vm769, %v6243, %v6193
        %v6245 = vsel %vm771, %v6244, %v6197
        %v6246 = vsel %vm773, %v6245, %v6201
        %v6247 = vsel %vm775, %v6246, %v6205
        %v6248 = vsel %vm777, %v6247, %v6209
        %v6249 = vsel %vm779, %v6248, %v6213
        %v6250 = vsel %vm767, %v6179, %v6217
        %v6251 = vsel %vm769, %v6250, %v6221
        %v6252 = vsel %vm771, %v6251, %v6225
        %v6253 = vsel %vm773, %v6252, %v6229
        %v6254 = vsel %vm775, %v6253, %v6233
        %v6255 = vsel %vm777, %v6254, %v6237
        %v6256 = vsel %vm779, %v6255, %v6241
        %6257 = vrot.lane.b32.xlu0 %v5493, 126
        %v6258 = vpop.permute.xlu0 %6257
        %6259 = vrot.lane.b32.xlu0 %v5494, 126
        %v6260 = vpop.permute.xlu0 %6259
        %6261 = vrot.lane.b32.xlu0 %v5495, 126
        %v6262 = vpop.permute.xlu0 %6261
        %6263 = vrot.lane.b32.xlu0 %v5496, 126
        %v6264 = vpop.permute.xlu0 %6263
        %6265 = vrot.lane.b32.xlu0 %v5497, 126
        %v6266 = vpop.permute.xlu0 %6265
        %6267 = vrot.lane.b32.xlu0 %v5498, 126
        %v6268 = vpop.permute.xlu0 %6267
        %6269 = vrot.lane.b32.xlu0 %v5499, 126
        %v6270 = vpop.permute.xlu0 %6269
        %6271 = vrot.lane.b32.xlu0 %v5500, 126
        %v6272 = vpop.permute.xlu0 %6271
        %6273 = vrot.lane.b32.xlu0 %v5501, 126
        %v6274 = vpop.permute.xlu0 %6273
        %6275 = vrot.lane.b32.xlu0 %v5502, 126
        %v6276 = vpop.permute.xlu0 %6275
        %6277 = vrot.lane.b32.xlu0 %v5503, 126
        %v6278 = vpop.permute.xlu0 %6277
        %6279 = vrot.lane.b32.xlu0 %v5504, 126
        %v6280 = vpop.permute.xlu0 %6279
        %6281 = vrot.lane.b32.xlu0 %v5505, 126
        %v6282 = vpop.permute.xlu0 %6281
        %6283 = vrot.lane.b32.xlu0 %v5506, 126
        %v6284 = vpop.permute.xlu0 %6283
        %6285 = vrot.lane.b32.xlu0 %v5507, 126
        %v6286 = vpop.permute.xlu0 %6285
        %6287 = vrot.lane.b32.xlu0 %v5508, 126
        %v6288 = vpop.permute.xlu0 %6287
        %v6305 = vcombine.low %v6258, %v6266
        %v6306 = vcombine.high %v6258, %v6266
        %v6308 = vunpack.c.l.s4 1983009808
        %v6309 = vunpack.c.0.s8 %v6308
        %v6310 = vlaneseq
        %v6311 = vshrl.u32 %v6310, 7
        %v6312 = vsub.s32 %v6309, %v6311
        %v6313 = vrot.slane %v6305, %v6312
        %v6315 = vunpack.c.l.s4 1983009808
        %v6316 = vunpack.c.0.s8 %v6315
        %v6317 = vlaneseq
        %v6318 = vshrl.u32 %v6317, 7
        %v6319 = vsub.s32 %v6316, %v6318
        %v6320 = vrot.slane %v6306, %v6319
        %v6321 = vcombine.low %v6262, %v6270
        %v6322 = vcombine.high %v6262, %v6270
        %v6324 = vunpack.c.l.s4 1983009808
        %v6325 = vunpack.c.0.s8 %v6324
        %v6326 = vlaneseq
        %v6327 = vshrl.u32 %v6326, 7
        %v6328 = vsub.s32 %v6325, %v6327
        %v6329 = vrot.slane %v6321, %v6328
        %v6331 = vunpack.c.l.s4 1983009808
        %v6332 = vunpack.c.0.s8 %v6331
        %v6333 = vlaneseq
        %v6334 = vshrl.u32 %v6333, 7
        %v6335 = vsub.s32 %v6332, %v6334
        %v6336 = vrot.slane %v6322, %v6335
        %v6337 = vcombine.low %v6274, %v6282
        %v6338 = vcombine.high %v6274, %v6282
        %v6340 = vunpack.c.l.s4 1983009808
        %v6341 = vunpack.c.0.s8 %v6340
        %v6342 = vlaneseq
        %v6343 = vshrl.u32 %v6342, 7
        %v6344 = vsub.s32 %v6341, %v6343
        %v6345 = vrot.slane %v6337, %v6344
        %v6347 = vunpack.c.l.s4 1983009808
        %v6348 = vunpack.c.0.s8 %v6347
        %v6349 = vlaneseq
        %v6350 = vshrl.u32 %v6349, 7
        %v6351 = vsub.s32 %v6348, %v6350
        %v6352 = vrot.slane %v6338, %v6351
        %v6353 = vcombine.low %v6278, %v6286
        %v6354 = vcombine.high %v6278, %v6286
        %v6356 = vunpack.c.l.s4 1983009808
        %v6357 = vunpack.c.0.s8 %v6356
        %v6358 = vlaneseq
        %v6359 = vshrl.u32 %v6358, 7
        %v6360 = vsub.s32 %v6357, %v6359
        %v6361 = vrot.slane %v6353, %v6360
        %v6363 = vunpack.c.l.s4 1983009808
        %v6364 = vunpack.c.0.s8 %v6363
        %v6365 = vlaneseq
        %v6366 = vshrl.u32 %v6365, 7
        %v6367 = vsub.s32 %v6364, %v6366
        %v6368 = vrot.slane %v6354, %v6367
        %v6369 = vcombine.low %v6313, %v6329
        %v6370 = vcombine.high %v6313, %v6329
        %v6372 = vunpack.c.l.s4 1934713408
        %v6373 = vunpack.c.0.s8 %v6372
        %v6374 = vlaneseq
        %v6375 = vshrl.u32 %v6374, 7
        %v6376 = vsub.s32 %v6373, %v6375
        %v6377 = vrot.slane %v6369, %v6376
        %v6379 = vunpack.c.l.s4 1934713408
        %v6380 = vunpack.c.0.s8 %v6379
        %v6381 = vlaneseq
        %v6382 = vshrl.u32 %v6381, 7
        %v6383 = vsub.s32 %v6380, %v6382
        %v6384 = vrot.slane %v6370, %v6383
        %v6385 = vcombine.low %v6320, %v6336
        %v6386 = vcombine.high %v6320, %v6336
        %v6388 = vunpack.c.l.s4 1934713408
        %v6389 = vunpack.c.0.s8 %v6388
        %v6390 = vlaneseq
        %v6391 = vshrl.u32 %v6390, 7
        %v6392 = vsub.s32 %v6389, %v6391
        %v6393 = vrot.slane %v6385, %v6392
        %v6395 = vunpack.c.l.s4 1934713408
        %v6396 = vunpack.c.0.s8 %v6395
        %v6397 = vlaneseq
        %v6398 = vshrl.u32 %v6397, 7
        %v6399 = vsub.s32 %v6396, %v6398
        %v6400 = vrot.slane %v6386, %v6399
        %v6401 = vcombine.low %v6345, %v6361
        %v6402 = vcombine.high %v6345, %v6361
        %v6404 = vunpack.c.l.s4 1934713408
        %v6405 = vunpack.c.0.s8 %v6404
        %v6406 = vlaneseq
        %v6407 = vshrl.u32 %v6406, 7
        %v6408 = vsub.s32 %v6405, %v6407
        %v6409 = vrot.slane %v6401, %v6408
        %v6411 = vunpack.c.l.s4 1934713408
        %v6412 = vunpack.c.0.s8 %v6411
        %v6413 = vlaneseq
        %v6414 = vshrl.u32 %v6413, 7
        %v6415 = vsub.s32 %v6412, %v6414
        %v6416 = vrot.slane %v6402, %v6415
        %v6417 = vcombine.low %v6352, %v6368
        %v6418 = vcombine.high %v6352, %v6368
        %v6420 = vunpack.c.l.s4 1934713408
        %v6421 = vunpack.c.0.s8 %v6420
        %v6422 = vlaneseq
        %v6423 = vshrl.u32 %v6422, 7
        %v6424 = vsub.s32 %v6421, %v6423
        %v6425 = vrot.slane %v6417, %v6424
        %v6427 = vunpack.c.l.s4 1934713408
        %v6428 = vunpack.c.0.s8 %v6427
        %v6429 = vlaneseq
        %v6430 = vshrl.u32 %v6429, 7
        %v6431 = vsub.s32 %v6428, %v6430
        %v6432 = vrot.slane %v6418, %v6431
        %v6433 = vcombine.low %v6377, %v6409
        %v6434 = vcombine.high %v6377, %v6409
        %v6435 = vcombine.low %v6384, %v6416
        %v6436 = vcombine.high %v6384, %v6416
        %v6437 = vcombine.low %v6393, %v6425
        %v6438 = vcombine.high %v6393, %v6425
        %v6439 = vcombine.low %v6400, %v6432
        %v6440 = vcombine.high %v6400, %v6432
        %v6441 = vcombine.low %v6260, %v6268
        %v6442 = vcombine.high %v6260, %v6268
        %v6444 = vunpack.c.l.s4 1983009808
        %v6445 = vunpack.c.0.s8 %v6444
        %v6446 = vlaneseq
        %v6447 = vshrl.u32 %v6446, 7
        %v6448 = vsub.s32 %v6445, %v6447
        %v6449 = vrot.slane %v6441, %v6448
        %v6451 = vunpack.c.l.s4 1983009808
        %v6452 = vunpack.c.0.s8 %v6451
        %v6453 = vlaneseq
        %v6454 = vshrl.u32 %v6453, 7
        %v6455 = vsub.s32 %v6452, %v6454
        %v6456 = vrot.slane %v6442, %v6455
        %v6457 = vcombine.low %v6264, %v6272
        %v6458 = vcombine.high %v6264, %v6272
        %v6460 = vunpack.c.l.s4 1983009808
        %v6461 = vunpack.c.0.s8 %v6460
        %v6462 = vlaneseq
        %v6463 = vshrl.u32 %v6462, 7
        %v6464 = vsub.s32 %v6461, %v6463
        %v6465 = vrot.slane %v6457, %v6464
        %v6467 = vunpack.c.l.s4 1983009808
        %v6468 = vunpack.c.0.s8 %v6467
        %v6469 = vlaneseq
        %v6470 = vshrl.u32 %v6469, 7
        %v6471 = vsub.s32 %v6468, %v6470
        %v6472 = vrot.slane %v6458, %v6471
        %v6473 = vcombine.low %v6276, %v6284
        %v6474 = vcombine.high %v6276, %v6284
        %v6476 = vunpack.c.l.s4 1983009808
        %v6477 = vunpack.c.0.s8 %v6476
        %v6478 = vlaneseq
        %v6479 = vshrl.u32 %v6478, 7
        %v6480 = vsub.s32 %v6477, %v6479
        %v6481 = vrot.slane %v6473, %v6480
        %v6483 = vunpack.c.l.s4 1983009808
        %v6484 = vunpack.c.0.s8 %v6483
        %v6485 = vlaneseq
        %v6486 = vshrl.u32 %v6485, 7
        %v6487 = vsub.s32 %v6484, %v6486
        %v6488 = vrot.slane %v6474, %v6487
        %v6489 = vcombine.low %v6280, %v6288
        %v6490 = vcombine.high %v6280, %v6288
        %v6492 = vunpack.c.l.s4 1983009808
        %v6493 = vunpack.c.0.s8 %v6492
        %v6494 = vlaneseq
        %v6495 = vshrl.u32 %v6494, 7
        %v6496 = vsub.s32 %v6493, %v6495
        %v6497 = vrot.slane %v6489, %v6496
        %v6499 = vunpack.c.l.s4 1983009808
        %v6500 = vunpack.c.0.s8 %v6499
        %v6501 = vlaneseq
        %v6502 = vshrl.u32 %v6501, 7
        %v6503 = vsub.s32 %v6500, %v6502
        %v6504 = vrot.slane %v6490, %v6503
        %v6505 = vcombine.low %v6449, %v6465
        %v6506 = vcombine.high %v6449, %v6465
        %v6508 = vunpack.c.l.s4 1934713408
        %v6509 = vunpack.c.0.s8 %v6508
        %v6510 = vlaneseq
        %v6511 = vshrl.u32 %v6510, 7
        %v6512 = vsub.s32 %v6509, %v6511
        %v6513 = vrot.slane %v6505, %v6512
        %v6515 = vunpack.c.l.s4 1934713408
        %v6516 = vunpack.c.0.s8 %v6515
        %v6517 = vlaneseq
        %v6518 = vshrl.u32 %v6517, 7
        %v6519 = vsub.s32 %v6516, %v6518
        %v6520 = vrot.slane %v6506, %v6519
        %v6521 = vcombine.low %v6456, %v6472
        %v6522 = vcombine.high %v6456, %v6472
        %v6524 = vunpack.c.l.s4 1934713408
        %v6525 = vunpack.c.0.s8 %v6524
        %v6526 = vlaneseq
        %v6527 = vshrl.u32 %v6526, 7
        %v6528 = vsub.s32 %v6525, %v6527
        %v6529 = vrot.slane %v6521, %v6528
        %v6531 = vunpack.c.l.s4 1934713408
        %v6532 = vunpack.c.0.s8 %v6531
        %v6533 = vlaneseq
        %v6534 = vshrl.u32 %v6533, 7
        %v6535 = vsub.s32 %v6532, %v6534
        %v6536 = vrot.slane %v6522, %v6535
        %v6537 = vcombine.low %v6481, %v6497
        %v6538 = vcombine.high %v6481, %v6497
        %v6540 = vunpack.c.l.s4 1934713408
        %v6541 = vunpack.c.0.s8 %v6540
        %v6542 = vlaneseq
        %v6543 = vshrl.u32 %v6542, 7
        %v6544 = vsub.s32 %v6541, %v6543
        %v6545 = vrot.slane %v6537, %v6544
        %v6547 = vunpack.c.l.s4 1934713408
        %v6548 = vunpack.c.0.s8 %v6547
        %v6549 = vlaneseq
        %v6550 = vshrl.u32 %v6549, 7
        %v6551 = vsub.s32 %v6548, %v6550
        %v6552 = vrot.slane %v6538, %v6551
        %v6553 = vcombine.low %v6488, %v6504
        %v6554 = vcombine.high %v6488, %v6504
        %v6556 = vunpack.c.l.s4 1934713408
        %v6557 = vunpack.c.0.s8 %v6556
        %v6558 = vlaneseq
        %v6559 = vshrl.u32 %v6558, 7
        %v6560 = vsub.s32 %v6557, %v6559
        %v6561 = vrot.slane %v6553, %v6560
        %v6563 = vunpack.c.l.s4 1934713408
        %v6564 = vunpack.c.0.s8 %v6563
        %v6565 = vlaneseq
        %v6566 = vshrl.u32 %v6565, 7
        %v6567 = vsub.s32 %v6564, %v6566
        %v6568 = vrot.slane %v6554, %v6567
        %v6569 = vcombine.low %v6513, %v6545
        %v6570 = vcombine.high %v6513, %v6545
        %v6571 = vcombine.low %v6520, %v6552
        %v6572 = vcombine.high %v6520, %v6552
        %v6573 = vcombine.low %v6529, %v6561
        %v6574 = vcombine.high %v6529, %v6561
        %v6575 = vcombine.low %v6536, %v6568
        %v6576 = vcombine.high %v6536, %v6568
        %6578 = vrot.lane.b32.xlu0 %v6434, 16
        %v6579 = vpop.permute.xlu0 %6578
        %6582 = vrot.lane.b32.xlu0 %v6435, 32
        %v6583 = vpop.permute.xlu0 %6582
        %6586 = vrot.lane.b32.xlu0 %v6436, 48
        %v6587 = vpop.permute.xlu0 %6586
        %6590 = vrot.lane.b32.xlu0 %v6437, 64
        %v6591 = vpop.permute.xlu0 %6590
        %6594 = vrot.lane.b32.xlu0 %v6438, 80
        %v6595 = vpop.permute.xlu0 %6594
        %6598 = vrot.lane.b32.xlu0 %v6439, 96
        %v6599 = vpop.permute.xlu0 %6598
        %6602 = vrot.lane.b32.xlu0 %v6440, 112
        %v6603 = vpop.permute.xlu0 %6602
        %6606 = vrot.lane.b32.xlu0 %v6570, 16
        %v6607 = vpop.permute.xlu0 %6606
        %6610 = vrot.lane.b32.xlu0 %v6571, 32
        %v6611 = vpop.permute.xlu0 %6610
        %6614 = vrot.lane.b32.xlu0 %v6572, 48
        %v6615 = vpop.permute.xlu0 %6614
        %6618 = vrot.lane.b32.xlu0 %v6573, 64
        %v6619 = vpop.permute.xlu0 %6618
        %6622 = vrot.lane.b32.xlu0 %v6574, 80
        %v6623 = vpop.permute.xlu0 %6622
        %6626 = vrot.lane.b32.xlu0 %v6575, 96
        %v6627 = vpop.permute.xlu0 %6626
        %6630 = vrot.lane.b32.xlu0 %v6576, 112
        %v6631 = vpop.permute.xlu0 %6630
        %v6633 = vsel %vm767, %v6433, %v6579
        %v6634 = vsel %vm769, %v6633, %v6583
        %v6635 = vsel %vm771, %v6634, %v6587
        %v6636 = vsel %vm773, %v6635, %v6591
        %v6637 = vsel %vm775, %v6636, %v6595
        %v6638 = vsel %vm777, %v6637, %v6599
        %v6639 = vsel %vm779, %v6638, %v6603
        %v6640 = vsel %vm767, %v6569, %v6607
        %v6641 = vsel %vm769, %v6640, %v6611
        %v6642 = vsel %vm771, %v6641, %v6615
        %v6643 = vsel %vm773, %v6642, %v6619
        %v6644 = vsel %vm775, %v6643, %v6623
        %v6645 = vsel %vm777, %v6644, %v6627
        %v6646 = vsel %vm779, %v6645, %v6631
        %6648 = vset.pattern.permute.xlu0 0
        %6649 = vperm.xlu0 %6648, %v3180
        %v6650 = vpop.permute.xlu0 %6649
        %vm6652 = vcmask 588800
        %v6654 = vsel %vm6652, %v3178, 0
        %6656 = vmatprep.subr.mxu0 %v3542
        %6657 = vmatpush1.msra.mxu0 %v3535
        %6658 = vmatprep.subr.mxu0 %v3948
        %6659 = vmatpush1.msra.mxu0 %v3941
        %6660 = vmatprep.subr.mxu0 %v4338
        %6661 = vmatpush1.msra.mxu0 %v4331
        %6662 = vmatprep.subr.mxu0 %v4696
        %6663 = vmatpush1.msra.mxu0 %v4689
        %6664 = vmatprep.subr.mxu0 %v5102
        %6665 = vmatpush1.msra.mxu0 %v5095
        %6666 = vmatprep.subr.mxu0 %v5492
        %6667 = vmatpush1.msra.mxu0 %v5485
        %6668 = vmatprep.subr.mxu0 %v5850
        %6669 = vmatpush1.msra.mxu0 %v5843
        %6670 = vmatprep.subr.mxu0 %v6256
        %6671 = vmatpush1.msra.mxu0 %v6249
        %6672 = vmatprep.subr.mxu0 %v6646
        %6673 = vmatpush1.msra.mxu0 %v6639
        %6674 = vmatprep.subr.mxu0 0.0
        %6675 = vmatpush1.msra.mxu0 0.0
        %6676 = vmatprep.subr.mxu0 0.0
        %6677 = vmatpush1.msra.mxu0 0.0
        %6678 = vmatprep.subr.mxu0 0.0
        %6679 = vmatpush1.msra.mxu0 0.0
        %6680 = vmatprep.subr.mxu0 0.0
        %6681 = vmatpush1.msra.mxu0 0.0
        %6682 = vmatprep.subr.mxu0 0.0
        %6683 = vmatpush1.msra.mxu0 0.0
        %6684 = vmatprep.subr.mxu0 0.0
        %6685 = vmatpush1.msra.mxu0 0.0
        %6686 = vmatprep.subr.mxu0 0.0
        %6687 = vmatpush1.msra.mxu0 0.0
        %6688 = vmatprep.subr.mxu0 0.0
        %6689 = vmatpush1.msra.mxu0 0.0
        %6690 = vmatprep.subr.mxu0 0.0
        %6691 = vmatpush1.msra.mxu0 0.0
        %6692 = vmatprep.subr.mxu0 0.0
        %6693 = vmatpush1.msra.mxu0 0.0
        %6694 = vmatprep.subr.mxu0 0.0
        %6695 = vmatpush1.msra.mxu0 0.0
        %6696 = vmatprep.subr.mxu0 0.0
        %6697 = vmatpush1.msra.mxu0 0.0
        %6698 = vmatprep.subr.mxu0 0.0
        %6699 = vmatpush1.msra.mxu0 0.0
        %6700 = vmatprep.subr.mxu0 0.0
        %6701 = vmatpush1.msra.mxu0 0.0
        %6702 = vmatprep.subr.mxu0 0.0
        %6703 = vmatpush1.msra.mxu0 0.0
        %6704 = vmatprep.subr.mxu0 0.0
        %6705 = vmatpush1.msra.mxu0 0.0
        %6706 = vmatprep.subr.mxu0 0.0
        %6707 = vmatpush1.msra.mxu0 0.0
        %6708 = vmatprep.subr.mxu0 0.0
        %6709 = vmatpush1.msra.mxu0 0.0
        %6710 = vmatprep.subr.mxu0 0.0
        %6711 = vmatpush1.msra.mxu0 0.0
        %6712 = vmatprep.subr.mxu0 0.0
        %6713 = vmatpush1.msra.mxu0 0.0
        %6714 = vmatprep.subr.mxu0 0.0
        %6715 = vmatpush1.msra.mxu0 0.0
        %6716 = vmatprep.subr.mxu0 0.0
        %6717 = vmatpush1.msra.mxu0 0.0
        %6718 = vmatprep.subr.mxu0 0.0
        %6719 = vmatpush1.msra.mxu0 0.0
        %6720 = vmatprep.mubr.f32.mxu0 0.0
        %6721 = vmatmul.mubr.f32.gmra.mrb[0].mxu0 %v6654
        %v6722 = vpop.f32.mrb[0].mxu0
        %v6723 = vadd.f32 %v6650, %v6722
        %v6724 = vpop.f32.mrb[0].mxu0
        %v6725 = vadd.f32 %v6650, %v6724
        %6726 = vdwg.mxu0
        %v6727 = vadd.f32 %v6723, %v6725
        %6728 = vadd.xlane.f32.xlu0 %v6727
        %v6729 = vpop.xlane.xlu0 %6728
        %v6730 = vmul.f32 %v6723, %v6723
        %v6731 = vmul.f32 %v6725, %v6725
        %v6732 = vadd.f32 %v6730, %v6731
        %6733 = vadd.xlane.f32.xlu0 %v6732
        %v6734 = vpop.xlane.xlu0 %6733
        %v6735 = vmul.f32 %v6729, 0.00390625
        %v6736 = vmul.f32 %v6734, 0.00390625
        %v6737 = vmul.f32 %v6735, %v6735
        %v6738 = vsub.f32 %v6736, %v6737
        %v6739 = vmax.f32 %v6738, 0.0
        %v6740 = vsub.f32 %v6723, %v6735
        %v6741 = vsub.f32 %v6725, %v6735
        %v6742 = vadd.f32 %v6739, 1e-05
        %v6743 = vrsqrt.pop %v6742
        %v6744 = vmul.f32 %v6740, %v6743
        %v6745 = vmul.f32 %v6741, %v6743
        %6747 = vset.pattern.permute.xlu0 0
        %6748 = vperm.xlu0 %6747, %v3182
        %v6749 = vpop.permute.xlu0 %6748
        %v6751 = vmul.f32 %v6744, %v6749
        %v6752 = vmul.f32 %v6745, %v6749
        %6754 = vset.pattern.permute.xlu0 0
        %6755 = vperm.xlu0 %6754, %v3184
        %v6756 = vpop.permute.xlu0 %6755
        %v6758 = vadd.f32 %v6751, %v6756
        %v6759 = vadd.f32 %v6752, %v6756
        %vm6760 = vcmp.ge.f32.partialorder %v6758, 0.0
        %vm6761 = vcmp.ge.f32.partialorder %v6759, 0.0
        %v6762 = vmul.f32 %v6758, 0.01
        %v6763 = vmul.f32 %v6759, 0.01
        %v6764 = vsel %vm6760, %v6758, %v6762
        %v6765 = vsel %vm6761, %v6759, %v6763
        %s6766 = sld [smem:[#allocation4 + $0x1]]
        %v6767 = vstv %s6766
        %v6768 = vmul.f32 %v6767, %v6764
        %v6769 = vmul.f32 %v6767, %v6765
        %v6770 = vadd.f32 %v2780, %v6768
        %v6771 = vadd.f32 %v2781, %v6769
        %6773 = vrot.lane.b32.xlu0 %v6764, 112
        %v6774 = vpop.permute.xlu0 %6773
        %6776 = vrot.lane.b32.xlu0 %v6764, 96
        %v6777 = vpop.permute.xlu0 %6776
        %6779 = vrot.lane.b32.xlu0 %v6764, 80
        %v6780 = vpop.permute.xlu0 %6779
        %6782 = vrot.lane.b32.xlu0 %v6764, 64
        %v6783 = vpop.permute.xlu0 %6782
        %6785 = vrot.lane.b32.xlu0 %v6764, 48
        %v6786 = vpop.permute.xlu0 %6785
        %6788 = vrot.lane.b32.xlu0 %v6764, 32
        %v6789 = vpop.permute.xlu0 %6788
        %6791 = vrot.lane.b32.xlu0 %v6764, 16
        %v6792 = vpop.permute.xlu0 %6791
        %6795 = vrot.lane.b32.xlu0 %v6765, 112
        %v6796 = vpop.permute.xlu0 %6795
        %6798 = vrot.lane.b32.xlu0 %v6765, 96
        %v6799 = vpop.permute.xlu0 %6798
        %6801 = vrot.lane.b32.xlu0 %v6765, 80
        %v6802 = vpop.permute.xlu0 %6801
        %6804 = vrot.lane.b32.xlu0 %v6765, 64
        %v6805 = vpop.permute.xlu0 %6804
        %6807 = vrot.lane.b32.xlu0 %v6765, 48
        %v6808 = vpop.permute.xlu0 %6807
        %6810 = vrot.lane.b32.xlu0 %v6765, 32
        %v6811 = vpop.permute.xlu0 %6810
        %6813 = vrot.lane.b32.xlu0 %v6765, 16
        %v6814 = vpop.permute.xlu0 %6813
        %v6816 = vcombine.low %v6764, %v6777
        %v6817 = vcombine.high %v6764, %v6777
        %v6819 = vunpack.c.l.s4 1983009808
        %v6820 = vunpack.c.0.s8 %v6819
        %v6821 = vlaneseq
        %v6822 = vshrl.u32 %v6821, 7
        %v6823 = vsub.s32 %v6820, %v6822
        %v6824 = vrot.slane %v6816, %v6823
        %v6826 = vunpack.c.l.s4 1983009808
        %v6827 = vunpack.c.0.s8 %v6826
        %v6828 = vlaneseq
        %v6829 = vshrl.u32 %v6828, 7
        %v6830 = vsub.s32 %v6827, %v6829
        %v6831 = vrot.slane %v6817, %v6830
        %v6832 = vcombine.low %v6774, %v6780
        %v6833 = vcombine.high %v6774, %v6780
        %v6835 = vunpack.c.l.s4 1983009808
        %v6836 = vunpack.c.0.s8 %v6835
        %v6837 = vlaneseq
        %v6838 = vshrl.u32 %v6837, 7
        %v6839 = vsub.s32 %v6836, %v6838
        %v6840 = vrot.slane %v6832, %v6839
        %v6842 = vunpack.c.l.s4 1983009808
        %v6843 = vunpack.c.0.s8 %v6842
        %v6844 = vlaneseq
        %v6845 = vshrl.u32 %v6844, 7
        %v6846 = vsub.s32 %v6843, %v6845
        %v6847 = vrot.slane %v6833, %v6846
        %v6848 = vcombine.low %v6783, %v6789
        %v6849 = vcombine.high %v6783, %v6789
        %v6851 = vunpack.c.l.s4 1983009808
        %v6852 = vunpack.c.0.s8 %v6851
        %v6853 = vlaneseq
        %v6854 = vshrl.u32 %v6853, 7
        %v6855 = vsub.s32 %v6852, %v6854
        %v6856 = vrot.slane %v6848, %v6855
        %v6858 = vunpack.c.l.s4 1983009808
        %v6859 = vunpack.c.0.s8 %v6858
        %v6860 = vlaneseq
        %v6861 = vshrl.u32 %v6860, 7
        %v6862 = vsub.s32 %v6859, %v6861
        %v6863 = vrot.slane %v6849, %v6862
        %v6864 = vcombine.low %v6786, %v6792
        %v6865 = vcombine.high %v6786, %v6792
        %v6867 = vunpack.c.l.s4 1983009808
        %v6868 = vunpack.c.0.s8 %v6867
        %v6869 = vlaneseq
        %v6870 = vshrl.u32 %v6869, 7
        %v6871 = vsub.s32 %v6868, %v6870
        %v6872 = vrot.slane %v6864, %v6871
        %v6874 = vunpack.c.l.s4 1983009808
        %v6875 = vunpack.c.0.s8 %v6874
        %v6876 = vlaneseq
        %v6877 = vshrl.u32 %v6876, 7
        %v6878 = vsub.s32 %v6875, %v6877
        %v6879 = vrot.slane %v6865, %v6878
        %v6880 = vcombine.low %v6824, %v6840
        %v6881 = vcombine.high %v6824, %v6840
        %v6883 = vunpack.c.l.s4 1934713408
        %v6884 = vunpack.c.0.s8 %v6883
        %v6885 = vlaneseq
        %v6886 = vshrl.u32 %v6885, 7
        %v6887 = vsub.s32 %v6884, %v6886
        %v6888 = vrot.slane %v6880, %v6887
        %v6890 = vunpack.c.l.s4 1934713408
        %v6891 = vunpack.c.0.s8 %v6890
        %v6892 = vlaneseq
        %v6893 = vshrl.u32 %v6892, 7
        %v6894 = vsub.s32 %v6891, %v6893
        %v6895 = vrot.slane %v6881, %v6894
        %v6896 = vcombine.low %v6831, %v6847
        %v6897 = vcombine.high %v6831, %v6847
        %v6899 = vunpack.c.l.s4 1934713408
        %v6900 = vunpack.c.0.s8 %v6899
        %v6901 = vlaneseq
        %v6902 = vshrl.u32 %v6901, 7
        %v6903 = vsub.s32 %v6900, %v6902
        %v6904 = vrot.slane %v6896, %v6903
        %v6906 = vunpack.c.l.s4 1934713408
        %v6907 = vunpack.c.0.s8 %v6906
        %v6908 = vlaneseq
        %v6909 = vshrl.u32 %v6908, 7
        %v6910 = vsub.s32 %v6907, %v6909
        %v6911 = vrot.slane %v6897, %v6910
        %v6912 = vcombine.low %v6856, %v6872
        %v6913 = vcombine.high %v6856, %v6872
        %v6915 = vunpack.c.l.s4 1934713408
        %v6916 = vunpack.c.0.s8 %v6915
        %v6917 = vlaneseq
        %v6918 = vshrl.u32 %v6917, 7
        %v6919 = vsub.s32 %v6916, %v6918
        %v6920 = vrot.slane %v6912, %v6919
        %v6922 = vunpack.c.l.s4 1934713408
        %v6923 = vunpack.c.0.s8 %v6922
        %v6924 = vlaneseq
        %v6925 = vshrl.u32 %v6924, 7
        %v6926 = vsub.s32 %v6923, %v6925
        %v6927 = vrot.slane %v6913, %v6926
        %v6928 = vcombine.low %v6863, %v6879
        %v6929 = vcombine.high %v6863, %v6879
        %v6931 = vunpack.c.l.s4 1934713408
        %v6932 = vunpack.c.0.s8 %v6931
        %v6933 = vlaneseq
        %v6934 = vshrl.u32 %v6933, 7
        %v6935 = vsub.s32 %v6932, %v6934
        %v6936 = vrot.slane %v6928, %v6935
        %v6938 = vunpack.c.l.s4 1934713408
        %v6939 = vunpack.c.0.s8 %v6938
        %v6940 = vlaneseq
        %v6941 = vshrl.u32 %v6940, 7
        %v6942 = vsub.s32 %v6939, %v6941
        %v6943 = vrot.slane %v6929, %v6942
        %v6944 = vcombine.low %v6888, %v6920
        %v6945 = vcombine.high %v6888, %v6920
        %v6946 = vcombine.low %v6895, %v6927
        %v6947 = vcombine.high %v6895, %v6927
        %v6948 = vcombine.low %v6904, %v6936
        %v6949 = vcombine.high %v6904, %v6936
        %v6950 = vcombine.low %v6911, %v6943
        %v6951 = vcombine.high %v6911, %v6943
        %v6952 = vcombine.low %v6765, %v6799
        %v6953 = vcombine.high %v6765, %v6799
        %v6955 = vunpack.c.l.s4 1983009808
        %v6956 = vunpack.c.0.s8 %v6955
        %v6957 = vlaneseq
        %v6958 = vshrl.u32 %v6957, 7
        %v6959 = vsub.s32 %v6956, %v6958
        %v6960 = vrot.slane %v6952, %v6959
        %v6962 = vunpack.c.l.s4 1983009808
        %v6963 = vunpack.c.0.s8 %v6962
        %v6964 = vlaneseq
        %v6965 = vshrl.u32 %v6964, 7
        %v6966 = vsub.s32 %v6963, %v6965
        %v6967 = vrot.slane %v6953, %v6966
        %v6968 = vcombine.low %v6796, %v6802
        %v6969 = vcombine.high %v6796, %v6802
        %v6971 = vunpack.c.l.s4 1983009808
        %v6972 = vunpack.c.0.s8 %v6971
        %v6973 = vlaneseq
        %v6974 = vshrl.u32 %v6973, 7
        %v6975 = vsub.s32 %v6972, %v6974
        %v6976 = vrot.slane %v6968, %v6975
        %v6978 = vunpack.c.l.s4 1983009808
        %v6979 = vunpack.c.0.s8 %v6978
        %v6980 = vlaneseq
        %v6981 = vshrl.u32 %v6980, 7
        %v6982 = vsub.s32 %v6979, %v6981
        %v6983 = vrot.slane %v6969, %v6982
        %v6984 = vcombine.low %v6805, %v6811
        %v6985 = vcombine.high %v6805, %v6811
        %v6987 = vunpack.c.l.s4 1983009808
        %v6988 = vunpack.c.0.s8 %v6987
        %v6989 = vlaneseq
        %v6990 = vshrl.u32 %v6989, 7
        %v6991 = vsub.s32 %v6988, %v6990
        %v6992 = vrot.slane %v6984, %v6991
        %v6994 = vunpack.c.l.s4 1983009808
        %v6995 = vunpack.c.0.s8 %v6994
        %v6996 = vlaneseq
        %v6997 = vshrl.u32 %v6996, 7
        %v6998 = vsub.s32 %v6995, %v6997
        %v6999 = vrot.slane %v6985, %v6998
        %v7000 = vcombine.low %v6808, %v6814
        %v7001 = vcombine.high %v6808, %v6814
        %v7003 = vunpack.c.l.s4 1983009808
        %v7004 = vunpack.c.0.s8 %v7003
        %v7005 = vlaneseq
        %v7006 = vshrl.u32 %v7005, 7
        %v7007 = vsub.s32 %v7004, %v7006
        %v7008 = vrot.slane %v7000, %v7007
        %v7010 = vunpack.c.l.s4 1983009808
        %v7011 = vunpack.c.0.s8 %v7010
        %v7012 = vlaneseq
        %v7013 = vshrl.u32 %v7012, 7
        %v7014 = vsub.s32 %v7011, %v7013
        %v7015 = vrot.slane %v7001, %v7014
        %v7016 = vcombine.low %v6960, %v6976
        %v7017 = vcombine.high %v6960, %v6976
        %v7019 = vunpack.c.l.s4 1934713408
        %v7020 = vunpack.c.0.s8 %v7019
        %v7021 = vlaneseq
        %v7022 = vshrl.u32 %v7021, 7
        %v7023 = vsub.s32 %v7020, %v7022
        %v7024 = vrot.slane %v7016, %v7023
        %v7026 = vunpack.c.l.s4 1934713408
        %v7027 = vunpack.c.0.s8 %v7026
        %v7028 = vlaneseq
        %v7029 = vshrl.u32 %v7028, 7
        %v7030 = vsub.s32 %v7027, %v7029
        %v7031 = vrot.slane %v7017, %v7030
        %v7032 = vcombine.low %v6967, %v6983
        %v7033 = vcombine.high %v6967, %v6983
        %v7035 = vunpack.c.l.s4 1934713408
        %v7036 = vunpack.c.0.s8 %v7035
        %v7037 = vlaneseq
        %v7038 = vshrl.u32 %v7037, 7
        %v7039 = vsub.s32 %v7036, %v7038
        %v7040 = vrot.slane %v7032, %v7039
        %v7042 = vunpack.c.l.s4 1934713408
        %v7043 = vunpack.c.0.s8 %v7042
        %v7044 = vlaneseq
        %v7045 = vshrl.u32 %v7044, 7
        %v7046 = vsub.s32 %v7043, %v7045
        %v7047 = vrot.slane %v7033, %v7046
        %v7048 = vcombine.low %v6992, %v7008
        %v7049 = vcombine.high %v6992, %v7008
        %v7051 = vunpack.c.l.s4 1934713408
        %v7052 = vunpack.c.0.s8 %v7051
        %v7053 = vlaneseq
        %v7054 = vshrl.u32 %v7053, 7
        %v7055 = vsub.s32 %v7052, %v7054
        %v7056 = vrot.slane %v7048, %v7055
        %v7058 = vunpack.c.l.s4 1934713408
        %v7059 = vunpack.c.0.s8 %v7058
        %v7060 = vlaneseq
        %v7061 = vshrl.u32 %v7060, 7
        %v7062 = vsub.s32 %v7059, %v7061
        %v7063 = vrot.slane %v7049, %v7062
        %v7064 = vcombine.low %v6999, %v7015
        %v7065 = vcombine.high %v6999, %v7015
        %v7067 = vunpack.c.l.s4 1934713408
        %v7068 = vunpack.c.0.s8 %v7067
        %v7069 = vlaneseq
        %v7070 = vshrl.u32 %v7069, 7
        %v7071 = vsub.s32 %v7068, %v7070
        %v7072 = vrot.slane %v7064, %v7071
        %v7074 = vunpack.c.l.s4 1934713408
        %v7075 = vunpack.c.0.s8 %v7074
        %v7076 = vlaneseq
        %v7077 = vshrl.u32 %v7076, 7
        %v7078 = vsub.s32 %v7075, %v7077
        %v7079 = vrot.slane %v7065, %v7078
        %v7080 = vcombine.low %v7024, %v7056
        %v7081 = vcombine.high %v7024, %v7056
        %v7082 = vcombine.low %v7031, %v7063
        %v7083 = vcombine.high %v7031, %v7063
        %v7084 = vcombine.low %v7040, %v7072
        %v7085 = vcombine.high %v7040, %v7072
        %v7086 = vcombine.low %v7047, %v7079
        %v7087 = vcombine.high %v7047, %v7079
        %7104 = vrot.lane.b32.xlu0 %v6944, 1
        %v7105 = vpop.permute.xlu0 %7104
        %7106 = vrot.lane.b32.xlu0 %v7080, 1
        %v7107 = vpop.permute.xlu0 %7106
        %7108 = vrot.lane.b32.xlu0 %v6945, 1
        %v7109 = vpop.permute.xlu0 %7108
        %7110 = vrot.lane.b32.xlu0 %v7081, 1
        %v7111 = vpop.permute.xlu0 %7110
        %7112 = vrot.lane.b32.xlu0 %v6946, 1
        %v7113 = vpop.permute.xlu0 %7112
        %7114 = vrot.lane.b32.xlu0 %v7082, 1
        %v7115 = vpop.permute.xlu0 %7114
        %7116 = vrot.lane.b32.xlu0 %v6947, 1
        %v7117 = vpop.permute.xlu0 %7116
        %7118 = vrot.lane.b32.xlu0 %v7083, 1
        %v7119 = vpop.permute.xlu0 %7118
        %7120 = vrot.lane.b32.xlu0 %v6948, 1
        %v7121 = vpop.permute.xlu0 %7120
        %7122 = vrot.lane.b32.xlu0 %v7084, 1
        %v7123 = vpop.permute.xlu0 %7122
        %7124 = vrot.lane.b32.xlu0 %v6949, 1
        %v7125 = vpop.permute.xlu0 %7124
        %7126 = vrot.lane.b32.xlu0 %v7085, 1
        %v7127 = vpop.permute.xlu0 %7126
        %7128 = vrot.lane.b32.xlu0 %v6950, 1
        %v7129 = vpop.permute.xlu0 %7128
        %7130 = vrot.lane.b32.xlu0 %v7086, 1
        %v7131 = vpop.permute.xlu0 %7130
        %7132 = vrot.lane.b32.xlu0 %v6951, 1
        %v7133 = vpop.permute.xlu0 %7132
        %7134 = vrot.lane.b32.xlu0 %v7087, 1
        %v7135 = vpop.permute.xlu0 %7134
        %7152 = vst.msk [vmem:[#allocation3 + $0x1] sm:$0xff] %vm554, %v7105
        %7153 = vst.msk [vmem:[#allocation3 + $0x9] sm:$0xff] %vm554, %v7107
        %7154 = vst.msk [vmem:[#allocation3 + $0x19] sm:$0xff] %vm554, %v7109
        %7155 = vst.msk [vmem:[#allocation3 + $0x21] sm:$0xff] %vm554, %v7111
        %7156 = vst.msk [vmem:[#allocation3 + $0x31] sm:$0xff] %vm554, %v7113
        %7157 = vst.msk [vmem:[#allocation3 + $0x39] sm:$0xff] %vm554, %v7115
        %7158 = vst.msk [vmem:[#allocation3 + $0x49] sm:$0xff] %vm554, %v7117
        %7159 = vst.msk [vmem:[#allocation3 + $0x51] sm:$0xff] %vm554, %v7119
        %7160 = vst.msk [vmem:[#allocation3 + $0x61] sm:$0xff] %vm554, %v7121
        %7161 = vst.msk [vmem:[#allocation3 + $0x69] sm:$0xff] %vm554, %v7123
        %7162 = vst.msk [vmem:[#allocation3 + $0x79] sm:$0xff] %vm554, %v7125
        %7163 = vst.msk [vmem:[#allocation3 + $0x81] sm:$0xff] %vm554, %v7127
        %7164 = vst.msk [vmem:[#allocation3 + $0x91] sm:$0xff] %vm554, %v7129
        %7165 = vst.msk [vmem:[#allocation3 + $0x99] sm:$0xff] %vm554, %v7131
        %7166 = vst.msk [vmem:[#allocation3 + $0xa9] sm:$0xff] %vm554, %v7133
        %7167 = vst.msk [vmem:[#allocation3 + $0xb1] sm:$0xff] %vm554, %v7135
        %s7168 = scalar_lea.vmem %s3, 8
        %v7169 = vld [vmem:[%s7168] sm:$0xff]
        %s7170 = scalar_lea.vmem %s4, 16
        %v7171 = vld [vmem:[%s7170] sm:$0xff]
        %s7172 = scalar_lea.vmem %s5, 16
        %v7173 = vld [vmem:[%s7172] sm:$0xff]
        %s7174 = scalar_lea.vmem %s6, 16
        %v7175 = vld [vmem:[%s7174] sm:$0xff]
        %v7176 = vld [vmem:[#allocation3] sm:$0xff]
        %v7177 = vld [vmem:[#allocation3 + $0x8] sm:$0xff]
        %v7178 = vld [vmem:[#allocation3 + $0x18] sm:$0xff]
        %v7179 = vld [vmem:[#allocation3 + $0x20] sm:$0xff]
        %v7180 = vld [vmem:[#allocation3 + $0x30] sm:$0xff]
        %v7181 = vld [vmem:[#allocation3 + $0x38] sm:$0xff]
        %v7182 = vld [vmem:[#allocation3 + $0x48] sm:$0xff]
        %v7183 = vld [vmem:[#allocation3 + $0x50] sm:$0xff]
        %v7184 = vld [vmem:[#allocation3 + $0x60] sm:$0xff]
        %v7185 = vld [vmem:[#allocation3 + $0x68] sm:$0xff]
        %v7186 = vld [vmem:[#allocation3 + $0x78] sm:$0xff]
        %v7187 = vld [vmem:[#allocation3 + $0x80] sm:$0xff]
        %v7188 = vld [vmem:[#allocation3 + $0x90] sm:$0xff]
        %v7189 = vld [vmem:[#allocation3 + $0x98] sm:$0xff]
        %v7190 = vld [vmem:[#allocation3 + $0xa8] sm:$0xff]
        %v7191 = vld [vmem:[#allocation3 + $0xb0] sm:$0xff]
        %v7192 = vcombine.low %v7176, %v7180
        %v7193 = vcombine.high %v7176, %v7180
        %v7195 = vunpack.c.l.s4 1983009808
        %v7196 = vunpack.c.0.s8 %v7195
        %v7197 = vlaneseq
        %v7198 = vshrl.u32 %v7197, 7
        %v7199 = vsub.s32 %v7196, %v7198
        %v7200 = vrot.slane %v7192, %v7199
        %v7202 = vunpack.c.l.s4 1983009808
        %v7203 = vunpack.c.0.s8 %v7202
        %v7204 = vlaneseq
        %v7205 = vshrl.u32 %v7204, 7
        %v7206 = vsub.s32 %v7203, %v7205
        %v7207 = vrot.slane %v7193, %v7206
        %v7208 = vcombine.low %v7178, %v7182
        %v7209 = vcombine.high %v7178, %v7182
        %v7211 = vunpack.c.l.s4 1983009808
        %v7212 = vunpack.c.0.s8 %v7211
        %v7213 = vlaneseq
        %v7214 = vshrl.u32 %v7213, 7
        %v7215 = vsub.s32 %v7212, %v7214
        %v7216 = vrot.slane %v7208, %v7215
        %v7218 = vunpack.c.l.s4 1983009808
        %v7219 = vunpack.c.0.s8 %v7218
        %v7220 = vlaneseq
        %v7221 = vshrl.u32 %v7220, 7
        %v7222 = vsub.s32 %v7219, %v7221
        %v7223 = vrot.slane %v7209, %v7222
        %v7224 = vcombine.low %v7184, %v7188
        %v7225 = vcombine.high %v7184, %v7188
        %v7227 = vunpack.c.l.s4 1983009808
        %v7228 = vunpack.c.0.s8 %v7227
        %v7229 = vlaneseq
        %v7230 = vshrl.u32 %v7229, 7
        %v7231 = vsub.s32 %v7228, %v7230
        %v7232 = vrot.slane %v7224, %v7231
        %v7234 = vunpack.c.l.s4 1983009808
        %v7235 = vunpack.c.0.s8 %v7234
        %v7236 = vlaneseq
        %v7237 = vshrl.u32 %v7236, 7
        %v7238 = vsub.s32 %v7235, %v7237
        %v7239 = vrot.slane %v7225, %v7238
        %v7240 = vcombine.low %v7186, %v7190
        %v7241 = vcombine.high %v7186, %v7190
        %v7243 = vunpack.c.l.s4 1983009808
        %v7244 = vunpack.c.0.s8 %v7243
        %v7245 = vlaneseq
        %v7246 = vshrl.u32 %v7245, 7
        %v7247 = vsub.s32 %v7244, %v7246
        %v7248 = vrot.slane %v7240, %v7247
        %v7250 = vunpack.c.l.s4 1983009808
        %v7251 = vunpack.c.0.s8 %v7250
        %v7252 = vlaneseq
        %v7253 = vshrl.u32 %v7252, 7
        %v7254 = vsub.s32 %v7251, %v7253
        %v7255 = vrot.slane %v7241, %v7254
        %v7256 = vcombine.low %v7200, %v7216
        %v7257 = vcombine.high %v7200, %v7216
        %v7259 = vunpack.c.l.s4 1934713408
        %v7260 = vunpack.c.0.s8 %v7259
        %v7261 = vlaneseq
        %v7262 = vshrl.u32 %v7261, 7
        %v7263 = vsub.s32 %v7260, %v7262
        %v7264 = vrot.slane %v7256, %v7263
        %v7266 = vunpack.c.l.s4 1934713408
        %v7267 = vunpack.c.0.s8 %v7266
        %v7268 = vlaneseq
        %v7269 = vshrl.u32 %v7268, 7
        %v7270 = vsub.s32 %v7267, %v7269
        %v7271 = vrot.slane %v7257, %v7270
        %v7272 = vcombine.low %v7207, %v7223
        %v7273 = vcombine.high %v7207, %v7223
        %v7275 = vunpack.c.l.s4 1934713408
        %v7276 = vunpack.c.0.s8 %v7275
        %v7277 = vlaneseq
        %v7278 = vshrl.u32 %v7277, 7
        %v7279 = vsub.s32 %v7276, %v7278
        %v7280 = vrot.slane %v7272, %v7279
        %v7282 = vunpack.c.l.s4 1934713408
        %v7283 = vunpack.c.0.s8 %v7282
        %v7284 = vlaneseq
        %v7285 = vshrl.u32 %v7284, 7
        %v7286 = vsub.s32 %v7283, %v7285
        %v7287 = vrot.slane %v7273, %v7286
        %v7288 = vcombine.low %v7232, %v7248
        %v7289 = vcombine.high %v7232, %v7248
        %v7291 = vunpack.c.l.s4 1934713408
        %v7292 = vunpack.c.0.s8 %v7291
        %v7293 = vlaneseq
        %v7294 = vshrl.u32 %v7293, 7
        %v7295 = vsub.s32 %v7292, %v7294
        %v7296 = vrot.slane %v7288, %v7295
        %v7298 = vunpack.c.l.s4 1934713408
        %v7299 = vunpack.c.0.s8 %v7298
        %v7300 = vlaneseq
        %v7301 = vshrl.u32 %v7300, 7
        %v7302 = vsub.s32 %v7299, %v7301
        %v7303 = vrot.slane %v7289, %v7302
        %v7304 = vcombine.low %v7239, %v7255
        %v7305 = vcombine.high %v7239, %v7255
        %v7307 = vunpack.c.l.s4 1934713408
        %v7308 = vunpack.c.0.s8 %v7307
        %v7309 = vlaneseq
        %v7310 = vshrl.u32 %v7309, 7
        %v7311 = vsub.s32 %v7308, %v7310
        %v7312 = vrot.slane %v7304, %v7311
        %v7314 = vunpack.c.l.s4 1934713408
        %v7315 = vunpack.c.0.s8 %v7314
        %v7316 = vlaneseq
        %v7317 = vshrl.u32 %v7316, 7
        %v7318 = vsub.s32 %v7315, %v7317
        %v7319 = vrot.slane %v7305, %v7318
        %v7320 = vcombine.low %v7264, %v7296
        %v7321 = vcombine.high %v7264, %v7296
        %v7322 = vcombine.low %v7271, %v7303
        %v7323 = vcombine.high %v7271, %v7303
        %v7324 = vcombine.low %v7280, %v7312
        %v7325 = vcombine.high %v7280, %v7312
        %v7326 = vcombine.low %v7287, %v7319
        %v7327 = vcombine.high %v7287, %v7319
        %v7328 = vcombine.low %v7177, %v7181
        %v7329 = vcombine.high %v7177, %v7181
        %v7331 = vunpack.c.l.s4 1983009808
        %v7332 = vunpack.c.0.s8 %v7331
        %v7333 = vlaneseq
        %v7334 = vshrl.u32 %v7333, 7
        %v7335 = vsub.s32 %v7332, %v7334
        %v7336 = vrot.slane %v7328, %v7335
        %v7338 = vunpack.c.l.s4 1983009808
        %v7339 = vunpack.c.0.s8 %v7338
        %v7340 = vlaneseq
        %v7341 = vshrl.u32 %v7340, 7
        %v7342 = vsub.s32 %v7339, %v7341
        %v7343 = vrot.slane %v7329, %v7342
        %v7344 = vcombine.low %v7179, %v7183
        %v7345 = vcombine.high %v7179, %v7183
        %v7347 = vunpack.c.l.s4 1983009808
        %v7348 = vunpack.c.0.s8 %v7347
        %v7349 = vlaneseq
        %v7350 = vshrl.u32 %v7349, 7
        %v7351 = vsub.s32 %v7348, %v7350
        %v7352 = vrot.slane %v7344, %v7351
        %v7354 = vunpack.c.l.s4 1983009808
        %v7355 = vunpack.c.0.s8 %v7354
        %v7356 = vlaneseq
        %v7357 = vshrl.u32 %v7356, 7
        %v7358 = vsub.s32 %v7355, %v7357
        %v7359 = vrot.slane %v7345, %v7358
        %v7360 = vcombine.low %v7185, %v7189
        %v7361 = vcombine.high %v7185, %v7189
        %v7363 = vunpack.c.l.s4 1983009808
        %v7364 = vunpack.c.0.s8 %v7363
        %v7365 = vlaneseq
        %v7366 = vshrl.u32 %v7365, 7
        %v7367 = vsub.s32 %v7364, %v7366
        %v7368 = vrot.slane %v7360, %v7367
        %v7370 = vunpack.c.l.s4 1983009808
        %v7371 = vunpack.c.0.s8 %v7370
        %v7372 = vlaneseq
        %v7373 = vshrl.u32 %v7372, 7
        %v7374 = vsub.s32 %v7371, %v7373
        %v7375 = vrot.slane %v7361, %v7374
        %v7376 = vcombine.low %v7187, %v7191
        %v7377 = vcombine.high %v7187, %v7191
        %v7379 = vunpack.c.l.s4 1983009808
        %v7380 = vunpack.c.0.s8 %v7379
        %v7381 = vlaneseq
        %v7382 = vshrl.u32 %v7381, 7
        %v7383 = vsub.s32 %v7380, %v7382
        %v7384 = vrot.slane %v7376, %v7383
        %v7386 = vunpack.c.l.s4 1983009808
        %v7387 = vunpack.c.0.s8 %v7386
        %v7388 = vlaneseq
        %v7389 = vshrl.u32 %v7388, 7
        %v7390 = vsub.s32 %v7387, %v7389
        %v7391 = vrot.slane %v7377, %v7390
        %v7392 = vcombine.low %v7336, %v7352
        %v7393 = vcombine.high %v7336, %v7352
        %v7395 = vunpack.c.l.s4 1934713408
        %v7396 = vunpack.c.0.s8 %v7395
        %v7397 = vlaneseq
        %v7398 = vshrl.u32 %v7397, 7
        %v7399 = vsub.s32 %v7396, %v7398
        %v7400 = vrot.slane %v7392, %v7399
        %v7402 = vunpack.c.l.s4 1934713408
        %v7403 = vunpack.c.0.s8 %v7402
        %v7404 = vlaneseq
        %v7405 = vshrl.u32 %v7404, 7
        %v7406 = vsub.s32 %v7403, %v7405
        %v7407 = vrot.slane %v7393, %v7406
        %v7408 = vcombine.low %v7343, %v7359
        %v7409 = vcombine.high %v7343, %v7359
        %v7411 = vunpack.c.l.s4 1934713408
        %v7412 = vunpack.c.0.s8 %v7411
        %v7413 = vlaneseq
        %v7414 = vshrl.u32 %v7413, 7
        %v7415 = vsub.s32 %v7412, %v7414
        %v7416 = vrot.slane %v7408, %v7415
        %v7418 = vunpack.c.l.s4 1934713408
        %v7419 = vunpack.c.0.s8 %v7418
        %v7420 = vlaneseq
        %v7421 = vshrl.u32 %v7420, 7
        %v7422 = vsub.s32 %v7419, %v7421
        %v7423 = vrot.slane %v7409, %v7422
        %v7424 = vcombine.low %v7368, %v7384
        %v7425 = vcombine.high %v7368, %v7384
        %v7427 = vunpack.c.l.s4 1934713408
        %v7428 = vunpack.c.0.s8 %v7427
        %v7429 = vlaneseq
        %v7430 = vshrl.u32 %v7429, 7
        %v7431 = vsub.s32 %v7428, %v7430
        %v7432 = vrot.slane %v7424, %v7431
        %v7434 = vunpack.c.l.s4 1934713408
        %v7435 = vunpack.c.0.s8 %v7434
        %v7436 = vlaneseq
        %v7437 = vshrl.u32 %v7436, 7
        %v7438 = vsub.s32 %v7435, %v7437
        %v7439 = vrot.slane %v7425, %v7438
        %v7440 = vcombine.low %v7375, %v7391
        %v7441 = vcombine.high %v7375, %v7391
        %v7443 = vunpack.c.l.s4 1934713408
        %v7444 = vunpack.c.0.s8 %v7443
        %v7445 = vlaneseq
        %v7446 = vshrl.u32 %v7445, 7
        %v7447 = vsub.s32 %v7444, %v7446
        %v7448 = vrot.slane %v7440, %v7447
        %v7450 = vunpack.c.l.s4 1934713408
        %v7451 = vunpack.c.0.s8 %v7450
        %v7452 = vlaneseq
        %v7453 = vshrl.u32 %v7452, 7
        %v7454 = vsub.s32 %v7451, %v7453
        %v7455 = vrot.slane %v7441, %v7454
        %v7456 = vcombine.low %v7400, %v7432
        %v7457 = vcombine.high %v7400, %v7432
        %v7458 = vcombine.low %v7407, %v7439
        %v7459 = vcombine.high %v7407, %v7439
        %v7460 = vcombine.low %v7416, %v7448
        %v7461 = vcombine.high %v7416, %v7448
        %v7462 = vcombine.low %v7423, %v7455
        %v7463 = vcombine.high %v7423, %v7455
        %7465 = vrot.lane.b32.xlu0 %v7321, 16
        %v7466 = vpop.permute.xlu0 %7465
        %7469 = vrot.lane.b32.xlu0 %v7322, 32
        %v7470 = vpop.permute.xlu0 %7469
        %7473 = vrot.lane.b32.xlu0 %v7323, 48
        %v7474 = vpop.permute.xlu0 %7473
        %7477 = vrot.lane.b32.xlu0 %v7324, 64
        %v7478 = vpop.permute.xlu0 %7477
        %7481 = vrot.lane.b32.xlu0 %v7325, 80
        %v7482 = vpop.permute.xlu0 %7481
        %7485 = vrot.lane.b32.xlu0 %v7326, 96
        %v7486 = vpop.permute.xlu0 %7485
        %7489 = vrot.lane.b32.xlu0 %v7327, 112
        %v7490 = vpop.permute.xlu0 %7489
        %7493 = vrot.lane.b32.xlu0 %v7457, 16
        %v7494 = vpop.permute.xlu0 %7493
        %7497 = vrot.lane.b32.xlu0 %v7458, 32
        %v7498 = vpop.permute.xlu0 %7497
        %7501 = vrot.lane.b32.xlu0 %v7459, 48
        %v7502 = vpop.permute.xlu0 %7501
        %7505 = vrot.lane.b32.xlu0 %v7460, 64
        %v7506 = vpop.permute.xlu0 %7505
        %7509 = vrot.lane.b32.xlu0 %v7461, 80
        %v7510 = vpop.permute.xlu0 %7509
        %7513 = vrot.lane.b32.xlu0 %v7462, 96
        %v7514 = vpop.permute.xlu0 %7513
        %7517 = vrot.lane.b32.xlu0 %v7463, 112
        %v7518 = vpop.permute.xlu0 %7517
        %v7520 = vsel %vm767, %v7320, %v7466
        %v7521 = vsel %vm769, %v7520, %v7470
        %v7522 = vsel %vm771, %v7521, %v7474
        %v7523 = vsel %vm773, %v7522, %v7478
        %v7524 = vsel %vm775, %v7523, %v7482
        %v7525 = vsel %vm777, %v7524, %v7486
        %v7526 = vsel %vm779, %v7525, %v7490
        %v7527 = vsel %vm767, %v7456, %v7494
        %v7528 = vsel %vm769, %v7527, %v7498
        %v7529 = vsel %vm771, %v7528, %v7502
        %v7530 = vsel %vm773, %v7529, %v7506
        %v7531 = vsel %vm775, %v7530, %v7510
        %v7532 = vsel %vm777, %v7531, %v7514
        %v7533 = vsel %vm779, %v7532, %v7518
        %7550 = vrot.lane.b32.xlu0 %v7176, 127
        %v7551 = vpop.permute.xlu0 %7550
        %7552 = vrot.lane.b32.xlu0 %v7177, 127
        %v7553 = vpop.permute.xlu0 %7552
        %7554 = vrot.lane.b32.xlu0 %v7178, 127
        %v7555 = vpop.permute.xlu0 %7554
        %7556 = vrot.lane.b32.xlu0 %v7179, 127
        %v7557 = vpop.permute.xlu0 %7556
        %7558 = vrot.lane.b32.xlu0 %v7180, 127
        %v7559 = vpop.permute.xlu0 %7558
        %7560 = vrot.lane.b32.xlu0 %v7181, 127
        %v7561 = vpop.permute.xlu0 %7560
        %7562 = vrot.lane.b32.xlu0 %v7182, 127
        %v7563 = vpop.permute.xlu0 %7562
        %7564 = vrot.lane.b32.xlu0 %v7183, 127
        %v7565 = vpop.permute.xlu0 %7564
        %7566 = vrot.lane.b32.xlu0 %v7184, 127
        %v7567 = vpop.permute.xlu0 %7566
        %7568 = vrot.lane.b32.xlu0 %v7185, 127
        %v7569 = vpop.permute.xlu0 %7568
        %7570 = vrot.lane.b32.xlu0 %v7186, 127
        %v7571 = vpop.permute.xlu0 %7570
        %7572 = vrot.lane.b32.xlu0 %v7187, 127
        %v7573 = vpop.permute.xlu0 %7572
        %7574 = vrot.lane.b32.xlu0 %v7188, 127
        %v7575 = vpop.permute.xlu0 %7574
        %7576 = vrot.lane.b32.xlu0 %v7189, 127
        %v7577 = vpop.permute.xlu0 %7576
        %7578 = vrot.lane.b32.xlu0 %v7190, 127
        %v7579 = vpop.permute.xlu0 %7578
        %7580 = vrot.lane.b32.xlu0 %v7191, 127
        %v7581 = vpop.permute.xlu0 %7580
        %v7598 = vcombine.low %v7551, %v7559
        %v7599 = vcombine.high %v7551, %v7559
        %v7601 = vunpack.c.l.s4 1983009808
        %v7602 = vunpack.c.0.s8 %v7601
        %v7603 = vlaneseq
        %v7604 = vshrl.u32 %v7603, 7
        %v7605 = vsub.s32 %v7602, %v7604
        %v7606 = vrot.slane %v7598, %v7605
        %v7608 = vunpack.c.l.s4 1983009808
        %v7609 = vunpack.c.0.s8 %v7608
        %v7610 = vlaneseq
        %v7611 = vshrl.u32 %v7610, 7
        %v7612 = vsub.s32 %v7609, %v7611
        %v7613 = vrot.slane %v7599, %v7612
        %v7614 = vcombine.low %v7555, %v7563
        %v7615 = vcombine.high %v7555, %v7563
        %v7617 = vunpack.c.l.s4 1983009808
        %v7618 = vunpack.c.0.s8 %v7617
        %v7619 = vlaneseq
        %v7620 = vshrl.u32 %v7619, 7
        %v7621 = vsub.s32 %v7618, %v7620
        %v7622 = vrot.slane %v7614, %v7621
        %v7624 = vunpack.c.l.s4 1983009808
        %v7625 = vunpack.c.0.s8 %v7624
        %v7626 = vlaneseq
        %v7627 = vshrl.u32 %v7626, 7
        %v7628 = vsub.s32 %v7625, %v7627
        %v7629 = vrot.slane %v7615, %v7628
        %v7630 = vcombine.low %v7567, %v7575
        %v7631 = vcombine.high %v7567, %v7575
        %v7633 = vunpack.c.l.s4 1983009808
        %v7634 = vunpack.c.0.s8 %v7633
        %v7635 = vlaneseq
        %v7636 = vshrl.u32 %v7635, 7
        %v7637 = vsub.s32 %v7634, %v7636
        %v7638 = vrot.slane %v7630, %v7637
        %v7640 = vunpack.c.l.s4 1983009808
        %v7641 = vunpack.c.0.s8 %v7640
        %v7642 = vlaneseq
        %v7643 = vshrl.u32 %v7642, 7
        %v7644 = vsub.s32 %v7641, %v7643
        %v7645 = vrot.slane %v7631, %v7644
        %v7646 = vcombine.low %v7571, %v7579
        %v7647 = vcombine.high %v7571, %v7579
        %v7649 = vunpack.c.l.s4 1983009808
        %v7650 = vunpack.c.0.s8 %v7649
        %v7651 = vlaneseq
        %v7652 = vshrl.u32 %v7651, 7
        %v7653 = vsub.s32 %v7650, %v7652
        %v7654 = vrot.slane %v7646, %v7653
        %v7656 = vunpack.c.l.s4 1983009808
        %v7657 = vunpack.c.0.s8 %v7656
        %v7658 = vlaneseq
        %v7659 = vshrl.u32 %v7658, 7
        %v7660 = vsub.s32 %v7657, %v7659
        %v7661 = vrot.slane %v7647, %v7660
        %v7662 = vcombine.low %v7606, %v7622
        %v7663 = vcombine.high %v7606, %v7622
        %v7665 = vunpack.c.l.s4 1934713408
        %v7666 = vunpack.c.0.s8 %v7665
        %v7667 = vlaneseq
        %v7668 = vshrl.u32 %v7667, 7
        %v7669 = vsub.s32 %v7666, %v7668
        %v7670 = vrot.slane %v7662, %v7669
        %v7672 = vunpack.c.l.s4 1934713408
        %v7673 = vunpack.c.0.s8 %v7672
        %v7674 = vlaneseq
        %v7675 = vshrl.u32 %v7674, 7
        %v7676 = vsub.s32 %v7673, %v7675
        %v7677 = vrot.slane %v7663, %v7676
        %v7678 = vcombine.low %v7613, %v7629
        %v7679 = vcombine.high %v7613, %v7629
        %v7681 = vunpack.c.l.s4 1934713408
        %v7682 = vunpack.c.0.s8 %v7681
        %v7683 = vlaneseq
        %v7684 = vshrl.u32 %v7683, 7
        %v7685 = vsub.s32 %v7682, %v7684
        %v7686 = vrot.slane %v7678, %v7685
        %v7688 = vunpack.c.l.s4 1934713408
        %v7689 = vunpack.c.0.s8 %v7688
        %v7690 = vlaneseq
        %v7691 = vshrl.u32 %v7690, 7
        %v7692 = vsub.s32 %v7689, %v7691
        %v7693 = vrot.slane %v7679, %v7692
        %v7694 = vcombine.low %v7638, %v7654
        %v7695 = vcombine.high %v7638, %v7654
        %v7697 = vunpack.c.l.s4 1934713408
        %v7698 = vunpack.c.0.s8 %v7697
        %v7699 = vlaneseq
        %v7700 = vshrl.u32 %v7699, 7
        %v7701 = vsub.s32 %v7698, %v7700
        %v7702 = vrot.slane %v7694, %v7701
        %v7704 = vunpack.c.l.s4 1934713408
        %v7705 = vunpack.c.0.s8 %v7704
        %v7706 = vlaneseq
        %v7707 = vshrl.u32 %v7706, 7
        %v7708 = vsub.s32 %v7705, %v7707
        %v7709 = vrot.slane %v7695, %v7708
        %v7710 = vcombine.low %v7645, %v7661
        %v7711 = vcombine.high %v7645, %v7661
        %v7713 = vunpack.c.l.s4 1934713408
        %v7714 = vunpack.c.0.s8 %v7713
        %v7715 = vlaneseq
        %v7716 = vshrl.u32 %v7715, 7
        %v7717 = vsub.s32 %v7714, %v7716
        %v7718 = vrot.slane %v7710, %v7717
        %v7720 = vunpack.c.l.s4 1934713408
        %v7721 = vunpack.c.0.s8 %v7720
        %v7722 = vlaneseq
        %v7723 = vshrl.u32 %v7722, 7
        %v7724 = vsub.s32 %v7721, %v7723
        %v7725 = vrot.slane %v7711, %v7724
        %v7726 = vcombine.low %v7670, %v7702
        %v7727 = vcombine.high %v7670, %v7702
        %v7728 = vcombine.low %v7677, %v7709
        %v7729 = vcombine.high %v7677, %v7709
        %v7730 = vcombine.low %v7686, %v7718
        %v7731 = vcombine.high %v7686, %v7718
        %v7732 = vcombine.low %v7693, %v7725
        %v7733 = vcombine.high %v7693, %v7725
        %v7734 = vcombine.low %v7553, %v7561
        %v7735 = vcombine.high %v7553, %v7561
        %v7737 = vunpack.c.l.s4 1983009808
        %v7738 = vunpack.c.0.s8 %v7737
        %v7739 = vlaneseq
        %v7740 = vshrl.u32 %v7739, 7
        %v7741 = vsub.s32 %v7738, %v7740
        %v7742 = vrot.slane %v7734, %v7741
        %v7744 = vunpack.c.l.s4 1983009808
        %v7745 = vunpack.c.0.s8 %v7744
        %v7746 = vlaneseq
        %v7747 = vshrl.u32 %v7746, 7
        %v7748 = vsub.s32 %v7745, %v7747
        %v7749 = vrot.slane %v7735, %v7748
        %v7750 = vcombine.low %v7557, %v7565
        %v7751 = vcombine.high %v7557, %v7565
        %v7753 = vunpack.c.l.s4 1983009808
        %v7754 = vunpack.c.0.s8 %v7753
        %v7755 = vlaneseq
        %v7756 = vshrl.u32 %v7755, 7
        %v7757 = vsub.s32 %v7754, %v7756
        %v7758 = vrot.slane %v7750, %v7757
        %v7760 = vunpack.c.l.s4 1983009808
        %v7761 = vunpack.c.0.s8 %v7760
        %v7762 = vlaneseq
        %v7763 = vshrl.u32 %v7762, 7
        %v7764 = vsub.s32 %v7761, %v7763
        %v7765 = vrot.slane %v7751, %v7764
        %v7766 = vcombine.low %v7569, %v7577
        %v7767 = vcombine.high %v7569, %v7577
        %v7769 = vunpack.c.l.s4 1983009808
        %v7770 = vunpack.c.0.s8 %v7769
        %v7771 = vlaneseq
        %v7772 = vshrl.u32 %v7771, 7
        %v7773 = vsub.s32 %v7770, %v7772
        %v7774 = vrot.slane %v7766, %v7773
        %v7776 = vunpack.c.l.s4 1983009808
        %v7777 = vunpack.c.0.s8 %v7776
        %v7778 = vlaneseq
        %v7779 = vshrl.u32 %v7778, 7
        %v7780 = vsub.s32 %v7777, %v7779
        %v7781 = vrot.slane %v7767, %v7780
        %v7782 = vcombine.low %v7573, %v7581
        %v7783 = vcombine.high %v7573, %v7581
        %v7785 = vunpack.c.l.s4 1983009808
        %v7786 = vunpack.c.0.s8 %v7785
        %v7787 = vlaneseq
        %v7788 = vshrl.u32 %v7787, 7
        %v7789 = vsub.s32 %v7786, %v7788
        %v7790 = vrot.slane %v7782, %v7789
        %v7792 = vunpack.c.l.s4 1983009808
        %v7793 = vunpack.c.0.s8 %v7792
        %v7794 = vlaneseq
        %v7795 = vshrl.u32 %v7794, 7
        %v7796 = vsub.s32 %v7793, %v7795
        %v7797 = vrot.slane %v7783, %v7796
        %v7798 = vcombine.low %v7742, %v7758
        %v7799 = vcombine.high %v7742, %v7758
        %v7801 = vunpack.c.l.s4 1934713408
        %v7802 = vunpack.c.0.s8 %v7801
        %v7803 = vlaneseq
        %v7804 = vshrl.u32 %v7803, 7
        %v7805 = vsub.s32 %v7802, %v7804
        %v7806 = vrot.slane %v7798, %v7805
        %v7808 = vunpack.c.l.s4 1934713408
        %v7809 = vunpack.c.0.s8 %v7808
        %v7810 = vlaneseq
        %v7811 = vshrl.u32 %v7810, 7
        %v7812 = vsub.s32 %v7809, %v7811
        %v7813 = vrot.slane %v7799, %v7812
        %v7814 = vcombine.low %v7749, %v7765
        %v7815 = vcombine.high %v7749, %v7765
        %v7817 = vunpack.c.l.s4 1934713408
        %v7818 = vunpack.c.0.s8 %v7817
        %v7819 = vlaneseq
        %v7820 = vshrl.u32 %v7819, 7
        %v7821 = vsub.s32 %v7818, %v7820
        %v7822 = vrot.slane %v7814, %v7821
        %v7824 = vunpack.c.l.s4 1934713408
        %v7825 = vunpack.c.0.s8 %v7824
        %v7826 = vlaneseq
        %v7827 = vshrl.u32 %v7826, 7
        %v7828 = vsub.s32 %v7825, %v7827
        %v7829 = vrot.slane %v7815, %v7828
        %v7830 = vcombine.low %v7774, %v7790
        %v7831 = vcombine.high %v7774, %v7790
        %v7833 = vunpack.c.l.s4 1934713408
        %v7834 = vunpack.c.0.s8 %v7833
        %v7835 = vlaneseq
        %v7836 = vshrl.u32 %v7835, 7
        %v7837 = vsub.s32 %v7834, %v7836
        %v7838 = vrot.slane %v7830, %v7837
        %v7840 = vunpack.c.l.s4 1934713408
        %v7841 = vunpack.c.0.s8 %v7840
        %v7842 = vlaneseq
        %v7843 = vshrl.u32 %v7842, 7
        %v7844 = vsub.s32 %v7841, %v7843
        %v7845 = vrot.slane %v7831, %v7844
        %v7846 = vcombine.low %v7781, %v7797
        %v7847 = vcombine.high %v7781, %v7797
        %v7849 = vunpack.c.l.s4 1934713408
        %v7850 = vunpack.c.0.s8 %v7849
        %v7851 = vlaneseq
        %v7852 = vshrl.u32 %v7851, 7
        %v7853 = vsub.s32 %v7850, %v7852
        %v7854 = vrot.slane %v7846, %v7853
        %v7856 = vunpack.c.l.s4 1934713408
        %v7857 = vunpack.c.0.s8 %v7856
        %v7858 = vlaneseq
        %v7859 = vshrl.u32 %v7858, 7
        %v7860 = vsub.s32 %v7857, %v7859
        %v7861 = vrot.slane %v7847, %v7860
        %v7862 = vcombine.low %v7806, %v7838
        %v7863 = vcombine.high %v7806, %v7838
        %v7864 = vcombine.low %v7813, %v7845
        %v7865 = vcombine.high %v7813, %v7845
        %v7866 = vcombine.low %v7822, %v7854
        %v7867 = vcombine.high %v7822, %v7854
        %v7868 = vcombine.low %v7829, %v7861
        %v7869 = vcombine.high %v7829, %v7861
        %7871 = vrot.lane.b32.xlu0 %v7727, 16
        %v7872 = vpop.permute.xlu0 %7871
        %7875 = vrot.lane.b32.xlu0 %v7728, 32
        %v7876 = vpop.permute.xlu0 %7875
        %7879 = vrot.lane.b32.xlu0 %v7729, 48
        %v7880 = vpop.permute.xlu0 %7879
        %7883 = vrot.lane.b32.xlu0 %v7730, 64
        %v7884 = vpop.permute.xlu0 %7883
        %7887 = vrot.lane.b32.xlu0 %v7731, 80
        %v7888 = vpop.permute.xlu0 %7887
        %7891 = vrot.lane.b32.xlu0 %v7732, 96
        %v7892 = vpop.permute.xlu0 %7891
        %7895 = vrot.lane.b32.xlu0 %v7733, 112
        %v7896 = vpop.permute.xlu0 %7895
        %7899 = vrot.lane.b32.xlu0 %v7863, 16
        %v7900 = vpop.permute.xlu0 %7899
        %7903 = vrot.lane.b32.xlu0 %v7864, 32
        %v7904 = vpop.permute.xlu0 %7903
        %7907 = vrot.lane.b32.xlu0 %v7865, 48
        %v7908 = vpop.permute.xlu0 %7907
        %7911 = vrot.lane.b32.xlu0 %v7866, 64
        %v7912 = vpop.permute.xlu0 %7911
        %7915 = vrot.lane.b32.xlu0 %v7867, 80
        %v7916 = vpop.permute.xlu0 %7915
        %7919 = vrot.lane.b32.xlu0 %v7868, 96
        %v7920 = vpop.permute.xlu0 %7919
        %7923 = vrot.lane.b32.xlu0 %v7869, 112
        %v7924 = vpop.permute.xlu0 %7923
        %v7926 = vsel %vm767, %v7726, %v7872
        %v7927 = vsel %vm769, %v7926, %v7876
        %v7928 = vsel %vm771, %v7927, %v7880
        %v7929 = vsel %vm773, %v7928, %v7884
        %v7930 = vsel %vm775, %v7929, %v7888
        %v7931 = vsel %vm777, %v7930, %v7892
        %v7932 = vsel %vm779, %v7931, %v7896
        %v7933 = vsel %vm767, %v7862, %v7900
        %v7934 = vsel %vm769, %v7933, %v7904
        %v7935 = vsel %vm771, %v7934, %v7908
        %v7936 = vsel %vm773, %v7935, %v7912
        %v7937 = vsel %vm775, %v7936, %v7916
        %v7938 = vsel %vm777, %v7937, %v7920
        %v7939 = vsel %vm779, %v7938, %v7924
        %7940 = vrot.lane.b32.xlu0 %v7176, 126
        %v7941 = vpop.permute.xlu0 %7940
        %7942 = vrot.lane.b32.xlu0 %v7177, 126
        %v7943 = vpop.permute.xlu0 %7942
        %7944 = vrot.lane.b32.xlu0 %v7178, 126
        %v7945 = vpop.permute.xlu0 %7944
        %7946 = vrot.lane.b32.xlu0 %v7179, 126
        %v7947 = vpop.permute.xlu0 %7946
        %7948 = vrot.lane.b32.xlu0 %v7180, 126
        %v7949 = vpop.permute.xlu0 %7948
        %7950 = vrot.lane.b32.xlu0 %v7181, 126
        %v7951 = vpop.permute.xlu0 %7950
        %7952 = vrot.lane.b32.xlu0 %v7182, 126
        %v7953 = vpop.permute.xlu0 %7952
        %7954 = vrot.lane.b32.xlu0 %v7183, 126
        %v7955 = vpop.permute.xlu0 %7954
        %7956 = vrot.lane.b32.xlu0 %v7184, 126
        %v7957 = vpop.permute.xlu0 %7956
        %7958 = vrot.lane.b32.xlu0 %v7185, 126
        %v7959 = vpop.permute.xlu0 %7958
        %7960 = vrot.lane.b32.xlu0 %v7186, 126
        %v7961 = vpop.permute.xlu0 %7960
        %7962 = vrot.lane.b32.xlu0 %v7187, 126
        %v7963 = vpop.permute.xlu0 %7962
        %7964 = vrot.lane.b32.xlu0 %v7188, 126
        %v7965 = vpop.permute.xlu0 %7964
        %7966 = vrot.lane.b32.xlu0 %v7189, 126
        %v7967 = vpop.permute.xlu0 %7966
        %7968 = vrot.lane.b32.xlu0 %v7190, 126
        %v7969 = vpop.permute.xlu0 %7968
        %7970 = vrot.lane.b32.xlu0 %v7191, 126
        %v7971 = vpop.permute.xlu0 %7970
        %v7988 = vcombine.low %v7941, %v7949
        %v7989 = vcombine.high %v7941, %v7949
        %v7991 = vunpack.c.l.s4 1983009808
        %v7992 = vunpack.c.0.s8 %v7991
        %v7993 = vlaneseq
        %v7994 = vshrl.u32 %v7993, 7
        %v7995 = vsub.s32 %v7992, %v7994
        %v7996 = vrot.slane %v7988, %v7995
        %v7998 = vunpack.c.l.s4 1983009808
        %v7999 = vunpack.c.0.s8 %v7998
        %v8000 = vlaneseq
        %v8001 = vshrl.u32 %v8000, 7
        %v8002 = vsub.s32 %v7999, %v8001
        %v8003 = vrot.slane %v7989, %v8002
        %v8004 = vcombine.low %v7945, %v7953
        %v8005 = vcombine.high %v7945, %v7953
        %v8007 = vunpack.c.l.s4 1983009808
        %v8008 = vunpack.c.0.s8 %v8007
        %v8009 = vlaneseq
        %v8010 = vshrl.u32 %v8009, 7
        %v8011 = vsub.s32 %v8008, %v8010
        %v8012 = vrot.slane %v8004, %v8011
        %v8014 = vunpack.c.l.s4 1983009808
        %v8015 = vunpack.c.0.s8 %v8014
        %v8016 = vlaneseq
        %v8017 = vshrl.u32 %v8016, 7
        %v8018 = vsub.s32 %v8015, %v8017
        %v8019 = vrot.slane %v8005, %v8018
        %v8020 = vcombine.low %v7957, %v7965
        %v8021 = vcombine.high %v7957, %v7965
        %v8023 = vunpack.c.l.s4 1983009808
        %v8024 = vunpack.c.0.s8 %v8023
        %v8025 = vlaneseq
        %v8026 = vshrl.u32 %v8025, 7
        %v8027 = vsub.s32 %v8024, %v8026
        %v8028 = vrot.slane %v8020, %v8027
        %v8030 = vunpack.c.l.s4 1983009808
        %v8031 = vunpack.c.0.s8 %v8030
        %v8032 = vlaneseq
        %v8033 = vshrl.u32 %v8032, 7
        %v8034 = vsub.s32 %v8031, %v8033
        %v8035 = vrot.slane %v8021, %v8034
        %v8036 = vcombine.low %v7961, %v7969
        %v8037 = vcombine.high %v7961, %v7969
        %v8039 = vunpack.c.l.s4 1983009808
        %v8040 = vunpack.c.0.s8 %v8039
        %v8041 = vlaneseq
        %v8042 = vshrl.u32 %v8041, 7
        %v8043 = vsub.s32 %v8040, %v8042
        %v8044 = vrot.slane %v8036, %v8043
        %v8046 = vunpack.c.l.s4 1983009808
        %v8047 = vunpack.c.0.s8 %v8046
        %v8048 = vlaneseq
        %v8049 = vshrl.u32 %v8048, 7
        %v8050 = vsub.s32 %v8047, %v8049
        %v8051 = vrot.slane %v8037, %v8050
        %v8052 = vcombine.low %v7996, %v8012
        %v8053 = vcombine.high %v7996, %v8012
        %v8055 = vunpack.c.l.s4 1934713408
        %v8056 = vunpack.c.0.s8 %v8055
        %v8057 = vlaneseq
        %v8058 = vshrl.u32 %v8057, 7
        %v8059 = vsub.s32 %v8056, %v8058
        %v8060 = vrot.slane %v8052, %v8059
        %v8062 = vunpack.c.l.s4 1934713408
        %v8063 = vunpack.c.0.s8 %v8062
        %v8064 = vlaneseq
        %v8065 = vshrl.u32 %v8064, 7
        %v8066 = vsub.s32 %v8063, %v8065
        %v8067 = vrot.slane %v8053, %v8066
        %v8068 = vcombine.low %v8003, %v8019
        %v8069 = vcombine.high %v8003, %v8019
        %v8071 = vunpack.c.l.s4 1934713408
        %v8072 = vunpack.c.0.s8 %v8071
        %v8073 = vlaneseq
        %v8074 = vshrl.u32 %v8073, 7
        %v8075 = vsub.s32 %v8072, %v8074
        %v8076 = vrot.slane %v8068, %v8075
        %v8078 = vunpack.c.l.s4 1934713408
        %v8079 = vunpack.c.0.s8 %v8078
        %v8080 = vlaneseq
        %v8081 = vshrl.u32 %v8080, 7
        %v8082 = vsub.s32 %v8079, %v8081
        %v8083 = vrot.slane %v8069, %v8082
        %v8084 = vcombine.low %v8028, %v8044
        %v8085 = vcombine.high %v8028, %v8044
        %v8087 = vunpack.c.l.s4 1934713408
        %v8088 = vunpack.c.0.s8 %v8087
        %v8089 = vlaneseq
        %v8090 = vshrl.u32 %v8089, 7
        %v8091 = vsub.s32 %v8088, %v8090
        %v8092 = vrot.slane %v8084, %v8091
        %v8094 = vunpack.c.l.s4 1934713408
        %v8095 = vunpack.c.0.s8 %v8094
        %v8096 = vlaneseq
        %v8097 = vshrl.u32 %v8096, 7
        %v8098 = vsub.s32 %v8095, %v8097
        %v8099 = vrot.slane %v8085, %v8098
        %v8100 = vcombine.low %v8035, %v8051
        %v8101 = vcombine.high %v8035, %v8051
        %v8103 = vunpack.c.l.s4 1934713408
        %v8104 = vunpack.c.0.s8 %v8103
        %v8105 = vlaneseq
        %v8106 = vshrl.u32 %v8105, 7
        %v8107 = vsub.s32 %v8104, %v8106
        %v8108 = vrot.slane %v8100, %v8107
        %v8110 = vunpack.c.l.s4 1934713408
        %v8111 = vunpack.c.0.s8 %v8110
        %v8112 = vlaneseq
        %v8113 = vshrl.u32 %v8112, 7
        %v8114 = vsub.s32 %v8111, %v8113
        %v8115 = vrot.slane %v8101, %v8114
        %v8116 = vcombine.low %v8060, %v8092
        %v8117 = vcombine.high %v8060, %v8092
        %v8118 = vcombine.low %v8067, %v8099
        %v8119 = vcombine.high %v8067, %v8099
        %v8120 = vcombine.low %v8076, %v8108
        %v8121 = vcombine.high %v8076, %v8108
        %v8122 = vcombine.low %v8083, %v8115
        %v8123 = vcombine.high %v8083, %v8115
        %v8124 = vcombine.low %v7943, %v7951
        %v8125 = vcombine.high %v7943, %v7951
        %v8127 = vunpack.c.l.s4 1983009808
        %v8128 = vunpack.c.0.s8 %v8127
        %v8129 = vlaneseq
        %v8130 = vshrl.u32 %v8129, 7
        %v8131 = vsub.s32 %v8128, %v8130
        %v8132 = vrot.slane %v8124, %v8131
        %v8134 = vunpack.c.l.s4 1983009808
        %v8135 = vunpack.c.0.s8 %v8134
        %v8136 = vlaneseq
        %v8137 = vshrl.u32 %v8136, 7
        %v8138 = vsub.s32 %v8135, %v8137
        %v8139 = vrot.slane %v8125, %v8138
        %v8140 = vcombine.low %v7947, %v7955
        %v8141 = vcombine.high %v7947, %v7955
        %v8143 = vunpack.c.l.s4 1983009808
        %v8144 = vunpack.c.0.s8 %v8143
        %v8145 = vlaneseq
        %v8146 = vshrl.u32 %v8145, 7
        %v8147 = vsub.s32 %v8144, %v8146
        %v8148 = vrot.slane %v8140, %v8147
        %v8150 = vunpack.c.l.s4 1983009808
        %v8151 = vunpack.c.0.s8 %v8150
        %v8152 = vlaneseq
        %v8153 = vshrl.u32 %v8152, 7
        %v8154 = vsub.s32 %v8151, %v8153
        %v8155 = vrot.slane %v8141, %v8154
        %v8156 = vcombine.low %v7959, %v7967
        %v8157 = vcombine.high %v7959, %v7967
        %v8159 = vunpack.c.l.s4 1983009808
        %v8160 = vunpack.c.0.s8 %v8159
        %v8161 = vlaneseq
        %v8162 = vshrl.u32 %v8161, 7
        %v8163 = vsub.s32 %v8160, %v8162
        %v8164 = vrot.slane %v8156, %v8163
        %v8166 = vunpack.c.l.s4 1983009808
        %v8167 = vunpack.c.0.s8 %v8166
        %v8168 = vlaneseq
        %v8169 = vshrl.u32 %v8168, 7
        %v8170 = vsub.s32 %v8167, %v8169
        %v8171 = vrot.slane %v8157, %v8170
        %v8172 = vcombine.low %v7963, %v7971
        %v8173 = vcombine.high %v7963, %v7971
        %v8175 = vunpack.c.l.s4 1983009808
        %v8176 = vunpack.c.0.s8 %v8175
        %v8177 = vlaneseq
        %v8178 = vshrl.u32 %v8177, 7
        %v8179 = vsub.s32 %v8176, %v8178
        %v8180 = vrot.slane %v8172, %v8179
        %v8182 = vunpack.c.l.s4 1983009808
        %v8183 = vunpack.c.0.s8 %v8182
        %v8184 = vlaneseq
        %v8185 = vshrl.u32 %v8184, 7
        %v8186 = vsub.s32 %v8183, %v8185
        %v8187 = vrot.slane %v8173, %v8186
        %v8188 = vcombine.low %v8132, %v8148
        %v8189 = vcombine.high %v8132, %v8148
        %v8191 = vunpack.c.l.s4 1934713408
        %v8192 = vunpack.c.0.s8 %v8191
        %v8193 = vlaneseq
        %v8194 = vshrl.u32 %v8193, 7
        %v8195 = vsub.s32 %v8192, %v8194
        %v8196 = vrot.slane %v8188, %v8195
        %v8198 = vunpack.c.l.s4 1934713408
        %v8199 = vunpack.c.0.s8 %v8198
        %v8200 = vlaneseq
        %v8201 = vshrl.u32 %v8200, 7
        %v8202 = vsub.s32 %v8199, %v8201
        %v8203 = vrot.slane %v8189, %v8202
        %v8204 = vcombine.low %v8139, %v8155
        %v8205 = vcombine.high %v8139, %v8155
        %v8207 = vunpack.c.l.s4 1934713408
        %v8208 = vunpack.c.0.s8 %v8207
        %v8209 = vlaneseq
        %v8210 = vshrl.u32 %v8209, 7
        %v8211 = vsub.s32 %v8208, %v8210
        %v8212 = vrot.slane %v8204, %v8211
        %v8214 = vunpack.c.l.s4 1934713408
        %v8215 = vunpack.c.0.s8 %v8214
        %v8216 = vlaneseq
        %v8217 = vshrl.u32 %v8216, 7
        %v8218 = vsub.s32 %v8215, %v8217
        %v8219 = vrot.slane %v8205, %v8218
        %v8220 = vcombine.low %v8164, %v8180
        %v8221 = vcombine.high %v8164, %v8180
        %v8223 = vunpack.c.l.s4 1934713408
        %v8224 = vunpack.c.0.s8 %v8223
        %v8225 = vlaneseq
        %v8226 = vshrl.u32 %v8225, 7
        %v8227 = vsub.s32 %v8224, %v8226
        %v8228 = vrot.slane %v8220, %v8227
        %v8230 = vunpack.c.l.s4 1934713408
        %v8231 = vunpack.c.0.s8 %v8230
        %v8232 = vlaneseq
        %v8233 = vshrl.u32 %v8232, 7
        %v8234 = vsub.s32 %v8231, %v8233
        %v8235 = vrot.slane %v8221, %v8234
        %v8236 = vcombine.low %v8171, %v8187
        %v8237 = vcombine.high %v8171, %v8187
        %v8239 = vunpack.c.l.s4 1934713408
        %v8240 = vunpack.c.0.s8 %v8239
        %v8241 = vlaneseq
        %v8242 = vshrl.u32 %v8241, 7
        %v8243 = vsub.s32 %v8240, %v8242
        %v8244 = vrot.slane %v8236, %v8243
        %v8246 = vunpack.c.l.s4 1934713408
        %v8247 = vunpack.c.0.s8 %v8246
        %v8248 = vlaneseq
        %v8249 = vshrl.u32 %v8248, 7
        %v8250 = vsub.s32 %v8247, %v8249
        %v8251 = vrot.slane %v8237, %v8250
        %v8252 = vcombine.low %v8196, %v8228
        %v8253 = vcombine.high %v8196, %v8228
        %v8254 = vcombine.low %v8203, %v8235
        %v8255 = vcombine.high %v8203, %v8235
        %v8256 = vcombine.low %v8212, %v8244
        %v8257 = vcombine.high %v8212, %v8244
        %v8258 = vcombine.low %v8219, %v8251
        %v8259 = vcombine.high %v8219, %v8251
        %8261 = vrot.lane.b32.xlu0 %v8117, 16
        %v8262 = vpop.permute.xlu0 %8261
        %8265 = vrot.lane.b32.xlu0 %v8118, 32
        %v8266 = vpop.permute.xlu0 %8265
        %8269 = vrot.lane.b32.xlu0 %v8119, 48
        %v8270 = vpop.permute.xlu0 %8269
        %8273 = vrot.lane.b32.xlu0 %v8120, 64
        %v8274 = vpop.permute.xlu0 %8273
        %8277 = vrot.lane.b32.xlu0 %v8121, 80
        %v8278 = vpop.permute.xlu0 %8277
        %8281 = vrot.lane.b32.xlu0 %v8122, 96
        %v8282 = vpop.permute.xlu0 %8281
        %8285 = vrot.lane.b32.xlu0 %v8123, 112
        %v8286 = vpop.permute.xlu0 %8285
        %8289 = vrot.lane.b32.xlu0 %v8253, 16
        %v8290 = vpop.permute.xlu0 %8289
        %8293 = vrot.lane.b32.xlu0 %v8254, 32
        %v8294 = vpop.permute.xlu0 %8293
        %8297 = vrot.lane.b32.xlu0 %v8255, 48
        %v8298 = vpop.permute.xlu0 %8297
        %8301 = vrot.lane.b32.xlu0 %v8256, 64
        %v8302 = vpop.permute.xlu0 %8301
        %8305 = vrot.lane.b32.xlu0 %v8257, 80
        %v8306 = vpop.permute.xlu0 %8305
        %8309 = vrot.lane.b32.xlu0 %v8258, 96
        %v8310 = vpop.permute.xlu0 %8309
        %8313 = vrot.lane.b32.xlu0 %v8259, 112
        %v8314 = vpop.permute.xlu0 %8313
        %v8316 = vsel %vm767, %v8116, %v8262
        %v8317 = vsel %vm769, %v8316, %v8266
        %v8318 = vsel %vm771, %v8317, %v8270
        %v8319 = vsel %vm773, %v8318, %v8274
        %v8320 = vsel %vm775, %v8319, %v8278
        %v8321 = vsel %vm777, %v8320, %v8282
        %v8322 = vsel %vm779, %v8321, %v8286
        %v8323 = vsel %vm767, %v8252, %v8290
        %v8324 = vsel %vm769, %v8323, %v8294
        %v8325 = vsel %vm771, %v8324, %v8298
        %v8326 = vsel %vm773, %v8325, %v8302
        %v8327 = vsel %vm775, %v8326, %v8306
        %v8328 = vsel %vm777, %v8327, %v8310
        %v8329 = vsel %vm779, %v8328, %v8314
        %v8330 = vld [vmem:[#allocation3 + $0x1] sm:$0xff]
        %v8331 = vld [vmem:[#allocation3 + $0x9] sm:$0xff]
        %v8332 = vld [vmem:[#allocation3 + $0x19] sm:$0xff]
        %v8333 = vld [vmem:[#allocation3 + $0x21] sm:$0xff]
        %v8334 = vld [vmem:[#allocation3 + $0x31] sm:$0xff]
        %v8335 = vld [vmem:[#allocation3 + $0x39] sm:$0xff]
        %v8336 = vld [vmem:[#allocation3 + $0x49] sm:$0xff]
        %v8337 = vld [vmem:[#allocation3 + $0x51] sm:$0xff]
        %v8338 = vld [vmem:[#allocation3 + $0x61] sm:$0xff]
        %v8339 = vld [vmem:[#allocation3 + $0x69] sm:$0xff]
        %v8340 = vld [vmem:[#allocation3 + $0x79] sm:$0xff]
        %v8341 = vld [vmem:[#allocation3 + $0x81] sm:$0xff]
        %v8342 = vld [vmem:[#allocation3 + $0x91] sm:$0xff]
        %v8343 = vld [vmem:[#allocation3 + $0x99] sm:$0xff]
        %v8344 = vld [vmem:[#allocation3 + $0xa9] sm:$0xff]
        %v8345 = vld [vmem:[#allocation3 + $0xb1] sm:$0xff]
        %v8346 = vcombine.low %v8330, %v8334
        %v8347 = vcombine.high %v8330, %v8334
        %v8349 = vunpack.c.l.s4 1983009808
        %v8350 = vunpack.c.0.s8 %v8349
        %v8351 = vlaneseq
        %v8352 = vshrl.u32 %v8351, 7
        %v8353 = vsub.s32 %v8350, %v8352
        %v8354 = vrot.slane %v8346, %v8353
        %v8356 = vunpack.c.l.s4 1983009808
        %v8357 = vunpack.c.0.s8 %v8356
        %v8358 = vlaneseq
        %v8359 = vshrl.u32 %v8358, 7
        %v8360 = vsub.s32 %v8357, %v8359
        %v8361 = vrot.slane %v8347, %v8360
        %v8362 = vcombine.low %v8332, %v8336
        %v8363 = vcombine.high %v8332, %v8336
        %v8365 = vunpack.c.l.s4 1983009808
        %v8366 = vunpack.c.0.s8 %v8365
        %v8367 = vlaneseq
        %v8368 = vshrl.u32 %v8367, 7
        %v8369 = vsub.s32 %v8366, %v8368
        %v8370 = vrot.slane %v8362, %v8369
        %v8372 = vunpack.c.l.s4 1983009808
        %v8373 = vunpack.c.0.s8 %v8372
        %v8374 = vlaneseq
        %v8375 = vshrl.u32 %v8374, 7
        %v8376 = vsub.s32 %v8373, %v8375
        %v8377 = vrot.slane %v8363, %v8376
        %v8378 = vcombine.low %v8338, %v8342
        %v8379 = vcombine.high %v8338, %v8342
        %v8381 = vunpack.c.l.s4 1983009808
        %v8382 = vunpack.c.0.s8 %v8381
        %v8383 = vlaneseq
        %v8384 = vshrl.u32 %v8383, 7
        %v8385 = vsub.s32 %v8382, %v8384
        %v8386 = vrot.slane %v8378, %v8385
        %v8388 = vunpack.c.l.s4 1983009808
        %v8389 = vunpack.c.0.s8 %v8388
        %v8390 = vlaneseq
        %v8391 = vshrl.u32 %v8390, 7
        %v8392 = vsub.s32 %v8389, %v8391
        %v8393 = vrot.slane %v8379, %v8392
        %v8394 = vcombine.low %v8340, %v8344
        %v8395 = vcombine.high %v8340, %v8344
        %v8397 = vunpack.c.l.s4 1983009808
        %v8398 = vunpack.c.0.s8 %v8397
        %v8399 = vlaneseq
        %v8400 = vshrl.u32 %v8399, 7
        %v8401 = vsub.s32 %v8398, %v8400
        %v8402 = vrot.slane %v8394, %v8401
        %v8404 = vunpack.c.l.s4 1983009808
        %v8405 = vunpack.c.0.s8 %v8404
        %v8406 = vlaneseq
        %v8407 = vshrl.u32 %v8406, 7
        %v8408 = vsub.s32 %v8405, %v8407
        %v8409 = vrot.slane %v8395, %v8408
        %v8410 = vcombine.low %v8354, %v8370
        %v8411 = vcombine.high %v8354, %v8370
        %v8413 = vunpack.c.l.s4 1934713408
        %v8414 = vunpack.c.0.s8 %v8413
        %v8415 = vlaneseq
        %v8416 = vshrl.u32 %v8415, 7
        %v8417 = vsub.s32 %v8414, %v8416
        %v8418 = vrot.slane %v8410, %v8417
        %v8420 = vunpack.c.l.s4 1934713408
        %v8421 = vunpack.c.0.s8 %v8420
        %v8422 = vlaneseq
        %v8423 = vshrl.u32 %v8422, 7
        %v8424 = vsub.s32 %v8421, %v8423
        %v8425 = vrot.slane %v8411, %v8424
        %v8426 = vcombine.low %v8361, %v8377
        %v8427 = vcombine.high %v8361, %v8377
        %v8429 = vunpack.c.l.s4 1934713408
        %v8430 = vunpack.c.0.s8 %v8429
        %v8431 = vlaneseq
        %v8432 = vshrl.u32 %v8431, 7
        %v8433 = vsub.s32 %v8430, %v8432
        %v8434 = vrot.slane %v8426, %v8433
        %v8436 = vunpack.c.l.s4 1934713408
        %v8437 = vunpack.c.0.s8 %v8436
        %v8438 = vlaneseq
        %v8439 = vshrl.u32 %v8438, 7
        %v8440 = vsub.s32 %v8437, %v8439
        %v8441 = vrot.slane %v8427, %v8440
        %v8442 = vcombine.low %v8386, %v8402
        %v8443 = vcombine.high %v8386, %v8402
        %v8445 = vunpack.c.l.s4 1934713408
        %v8446 = vunpack.c.0.s8 %v8445
        %v8447 = vlaneseq
        %v8448 = vshrl.u32 %v8447, 7
        %v8449 = vsub.s32 %v8446, %v8448
        %v8450 = vrot.slane %v8442, %v8449
        %v8452 = vunpack.c.l.s4 1934713408
        %v8453 = vunpack.c.0.s8 %v8452
        %v8454 = vlaneseq
        %v8455 = vshrl.u32 %v8454, 7
        %v8456 = vsub.s32 %v8453, %v8455
        %v8457 = vrot.slane %v8443, %v8456
        %v8458 = vcombine.low %v8393, %v8409
        %v8459 = vcombine.high %v8393, %v8409
        %v8461 = vunpack.c.l.s4 1934713408
        %v8462 = vunpack.c.0.s8 %v8461
        %v8463 = vlaneseq
        %v8464 = vshrl.u32 %v8463, 7
        %v8465 = vsub.s32 %v8462, %v8464
        %v8466 = vrot.slane %v8458, %v8465
        %v8468 = vunpack.c.l.s4 1934713408
        %v8469 = vunpack.c.0.s8 %v8468
        %v8470 = vlaneseq
        %v8471 = vshrl.u32 %v8470, 7
        %v8472 = vsub.s32 %v8469, %v8471
        %v8473 = vrot.slane %v8459, %v8472
        %v8474 = vcombine.low %v8418, %v8450
        %v8475 = vcombine.high %v8418, %v8450
        %v8476 = vcombine.low %v8425, %v8457
        %v8477 = vcombine.high %v8425, %v8457
        %v8478 = vcombine.low %v8434, %v8466
        %v8479 = vcombine.high %v8434, %v8466
        %v8480 = vcombine.low %v8441, %v8473
        %v8481 = vcombine.high %v8441, %v8473
        %v8482 = vcombine.low %v8331, %v8335
        %v8483 = vcombine.high %v8331, %v8335
        %v8485 = vunpack.c.l.s4 1983009808
        %v8486 = vunpack.c.0.s8 %v8485
        %v8487 = vlaneseq
        %v8488 = vshrl.u32 %v8487, 7
        %v8489 = vsub.s32 %v8486, %v8488
        %v8490 = vrot.slane %v8482, %v8489
        %v8492 = vunpack.c.l.s4 1983009808
        %v8493 = vunpack.c.0.s8 %v8492
        %v8494 = vlaneseq
        %v8495 = vshrl.u32 %v8494, 7
        %v8496 = vsub.s32 %v8493, %v8495
        %v8497 = vrot.slane %v8483, %v8496
        %v8498 = vcombine.low %v8333, %v8337
        %v8499 = vcombine.high %v8333, %v8337
        %v8501 = vunpack.c.l.s4 1983009808
        %v8502 = vunpack.c.0.s8 %v8501
        %v8503 = vlaneseq
        %v8504 = vshrl.u32 %v8503, 7
        %v8505 = vsub.s32 %v8502, %v8504
        %v8506 = vrot.slane %v8498, %v8505
        %v8508 = vunpack.c.l.s4 1983009808
        %v8509 = vunpack.c.0.s8 %v8508
        %v8510 = vlaneseq
        %v8511 = vshrl.u32 %v8510, 7
        %v8512 = vsub.s32 %v8509, %v8511
        %v8513 = vrot.slane %v8499, %v8512
        %v8514 = vcombine.low %v8339, %v8343
        %v8515 = vcombine.high %v8339, %v8343
        %v8517 = vunpack.c.l.s4 1983009808
        %v8518 = vunpack.c.0.s8 %v8517
        %v8519 = vlaneseq
        %v8520 = vshrl.u32 %v8519, 7
        %v8521 = vsub.s32 %v8518, %v8520
        %v8522 = vrot.slane %v8514, %v8521
        %v8524 = vunpack.c.l.s4 1983009808
        %v8525 = vunpack.c.0.s8 %v8524
        %v8526 = vlaneseq
        %v8527 = vshrl.u32 %v8526, 7
        %v8528 = vsub.s32 %v8525, %v8527
        %v8529 = vrot.slane %v8515, %v8528
        %v8530 = vcombine.low %v8341, %v8345
        %v8531 = vcombine.high %v8341, %v8345
        %v8533 = vunpack.c.l.s4 1983009808
        %v8534 = vunpack.c.0.s8 %v8533
        %v8535 = vlaneseq
        %v8536 = vshrl.u32 %v8535, 7
        %v8537 = vsub.s32 %v8534, %v8536
        %v8538 = vrot.slane %v8530, %v8537
        %v8540 = vunpack.c.l.s4 1983009808
        %v8541 = vunpack.c.0.s8 %v8540
        %v8542 = vlaneseq
        %v8543 = vshrl.u32 %v8542, 7
        %v8544 = vsub.s32 %v8541, %v8543
        %v8545 = vrot.slane %v8531, %v8544
        %v8546 = vcombine.low %v8490, %v8506
        %v8547 = vcombine.high %v8490, %v8506
        %v8549 = vunpack.c.l.s4 1934713408
        %v8550 = vunpack.c.0.s8 %v8549
        %v8551 = vlaneseq
        %v8552 = vshrl.u32 %v8551, 7
        %v8553 = vsub.s32 %v8550, %v8552
        %v8554 = vrot.slane %v8546, %v8553
        %v8556 = vunpack.c.l.s4 1934713408
        %v8557 = vunpack.c.0.s8 %v8556
        %v8558 = vlaneseq
        %v8559 = vshrl.u32 %v8558, 7
        %v8560 = vsub.s32 %v8557, %v8559
        %v8561 = vrot.slane %v8547, %v8560
        %v8562 = vcombine.low %v8497, %v8513
        %v8563 = vcombine.high %v8497, %v8513
        %v8565 = vunpack.c.l.s4 1934713408
        %v8566 = vunpack.c.0.s8 %v8565
        %v8567 = vlaneseq
        %v8568 = vshrl.u32 %v8567, 7
        %v8569 = vsub.s32 %v8566, %v8568
        %v8570 = vrot.slane %v8562, %v8569
        %v8572 = vunpack.c.l.s4 1934713408
        %v8573 = vunpack.c.0.s8 %v8572
        %v8574 = vlaneseq
        %v8575 = vshrl.u32 %v8574, 7
        %v8576 = vsub.s32 %v8573, %v8575
        %v8577 = vrot.slane %v8563, %v8576
        %v8578 = vcombine.low %v8522, %v8538
        %v8579 = vcombine.high %v8522, %v8538
        %v8581 = vunpack.c.l.s4 1934713408
        %v8582 = vunpack.c.0.s8 %v8581
        %v8583 = vlaneseq
        %v8584 = vshrl.u32 %v8583, 7
        %v8585 = vsub.s32 %v8582, %v8584
        %v8586 = vrot.slane %v8578, %v8585
        %v8588 = vunpack.c.l.s4 1934713408
        %v8589 = vunpack.c.0.s8 %v8588
        %v8590 = vlaneseq
        %v8591 = vshrl.u32 %v8590, 7
        %v8592 = vsub.s32 %v8589, %v8591
        %v8593 = vrot.slane %v8579, %v8592
        %v8594 = vcombine.low %v8529, %v8545
        %v8595 = vcombine.high %v8529, %v8545
        %v8597 = vunpack.c.l.s4 1934713408
        %v8598 = vunpack.c.0.s8 %v8597
        %v8599 = vlaneseq
        %v8600 = vshrl.u32 %v8599, 7
        %v8601 = vsub.s32 %v8598, %v8600
        %v8602 = vrot.slane %v8594, %v8601
        %v8604 = vunpack.c.l.s4 1934713408
        %v8605 = vunpack.c.0.s8 %v8604
        %v8606 = vlaneseq
        %v8607 = vshrl.u32 %v8606, 7
        %v8608 = vsub.s32 %v8605, %v8607
        %v8609 = vrot.slane %v8595, %v8608
        %v8610 = vcombine.low %v8554, %v8586
        %v8611 = vcombine.high %v8554, %v8586
        %v8612 = vcombine.low %v8561, %v8593
        %v8613 = vcombine.high %v8561, %v8593
        %v8614 = vcombine.low %v8570, %v8602
        %v8615 = vcombine.high %v8570, %v8602
        %v8616 = vcombine.low %v8577, %v8609
        %v8617 = vcombine.high %v8577, %v8609
        %8619 = vrot.lane.b32.xlu0 %v8475, 16
        %v8620 = vpop.permute.xlu0 %8619
        %8623 = vrot.lane.b32.xlu0 %v8476, 32
        %v8624 = vpop.permute.xlu0 %8623
        %8627 = vrot.lane.b32.xlu0 %v8477, 48
        %v8628 = vpop.permute.xlu0 %8627
        %8631 = vrot.lane.b32.xlu0 %v8478, 64
        %v8632 = vpop.permute.xlu0 %8631
        %8635 = vrot.lane.b32.xlu0 %v8479, 80
        %v8636 = vpop.permute.xlu0 %8635
        %8639 = vrot.lane.b32.xlu0 %v8480, 96
        %v8640 = vpop.permute.xlu0 %8639
        %8643 = vrot.lane.b32.xlu0 %v8481, 112
        %v8644 = vpop.permute.xlu0 %8643
        %8647 = vrot.lane.b32.xlu0 %v8611, 16
        %v8648 = vpop.permute.xlu0 %8647
        %8651 = vrot.lane.b32.xlu0 %v8612, 32
        %v8652 = vpop.permute.xlu0 %8651
        %8655 = vrot.lane.b32.xlu0 %v8613, 48
        %v8656 = vpop.permute.xlu0 %8655
        %8659 = vrot.lane.b32.xlu0 %v8614, 64
        %v8660 = vpop.permute.xlu0 %8659
        %8663 = vrot.lane.b32.xlu0 %v8615, 80
        %v8664 = vpop.permute.xlu0 %8663
        %8667 = vrot.lane.b32.xlu0 %v8616, 96
        %v8668 = vpop.permute.xlu0 %8667
        %8671 = vrot.lane.b32.xlu0 %v8617, 112
        %v8672 = vpop.permute.xlu0 %8671
        %v8674 = vsel %vm767, %v8474, %v8620
        %v8675 = vsel %vm769, %v8674, %v8624
        %v8676 = vsel %vm771, %v8675, %v8628
        %v8677 = vsel %vm773, %v8676, %v8632
        %v8678 = vsel %vm775, %v8677, %v8636
        %v8679 = vsel %vm777, %v8678, %v8640
        %v8680 = vsel %vm779, %v8679, %v8644
        %v8681 = vsel %vm767, %v8610, %v8648
        %v8682 = vsel %vm769, %v8681, %v8652
        %v8683 = vsel %vm771, %v8682, %v8656
        %v8684 = vsel %vm773, %v8683, %v8660
        %v8685 = vsel %vm775, %v8684, %v8664
        %v8686 = vsel %vm777, %v8685, %v8668
        %v8687 = vsel %vm779, %v8686, %v8672
        %8704 = vrot.lane.b32.xlu0 %v8330, 127
        %v8705 = vpop.permute.xlu0 %8704
        %8706 = vrot.lane.b32.xlu0 %v8331, 127
        %v8707 = vpop.permute.xlu0 %8706
        %8708 = vrot.lane.b32.xlu0 %v8332, 127
        %v8709 = vpop.permute.xlu0 %8708
        %8710 = vrot.lane.b32.xlu0 %v8333, 127
        %v8711 = vpop.permute.xlu0 %8710
        %8712 = vrot.lane.b32.xlu0 %v8334, 127
        %v8713 = vpop.permute.xlu0 %8712
        %8714 = vrot.lane.b32.xlu0 %v8335, 127
        %v8715 = vpop.permute.xlu0 %8714
        %8716 = vrot.lane.b32.xlu0 %v8336, 127
        %v8717 = vpop.permute.xlu0 %8716
        %8718 = vrot.lane.b32.xlu0 %v8337, 127
        %v8719 = vpop.permute.xlu0 %8718
        %8720 = vrot.lane.b32.xlu0 %v8338, 127
        %v8721 = vpop.permute.xlu0 %8720
        %8722 = vrot.lane.b32.xlu0 %v8339, 127
        %v8723 = vpop.permute.xlu0 %8722
        %8724 = vrot.lane.b32.xlu0 %v8340, 127
        %v8725 = vpop.permute.xlu0 %8724
        %8726 = vrot.lane.b32.xlu0 %v8341, 127
        %v8727 = vpop.permute.xlu0 %8726
        %8728 = vrot.lane.b32.xlu0 %v8342, 127
        %v8729 = vpop.permute.xlu0 %8728
        %8730 = vrot.lane.b32.xlu0 %v8343, 127
        %v8731 = vpop.permute.xlu0 %8730
        %8732 = vrot.lane.b32.xlu0 %v8344, 127
        %v8733 = vpop.permute.xlu0 %8732
        %8734 = vrot.lane.b32.xlu0 %v8345, 127
        %v8735 = vpop.permute.xlu0 %8734
        %v8752 = vcombine.low %v8705, %v8713
        %v8753 = vcombine.high %v8705, %v8713
        %v8755 = vunpack.c.l.s4 1983009808
        %v8756 = vunpack.c.0.s8 %v8755
        %v8757 = vlaneseq
        %v8758 = vshrl.u32 %v8757, 7
        %v8759 = vsub.s32 %v8756, %v8758
        %v8760 = vrot.slane %v8752, %v8759
        %v8762 = vunpack.c.l.s4 1983009808
        %v8763 = vunpack.c.0.s8 %v8762
        %v8764 = vlaneseq
        %v8765 = vshrl.u32 %v8764, 7
        %v8766 = vsub.s32 %v8763, %v8765
        %v8767 = vrot.slane %v8753, %v8766
        %v8768 = vcombine.low %v8709, %v8717
        %v8769 = vcombine.high %v8709, %v8717
        %v8771 = vunpack.c.l.s4 1983009808
        %v8772 = vunpack.c.0.s8 %v8771
        %v8773 = vlaneseq
        %v8774 = vshrl.u32 %v8773, 7
        %v8775 = vsub.s32 %v8772, %v8774
        %v8776 = vrot.slane %v8768, %v8775
        %v8778 = vunpack.c.l.s4 1983009808
        %v8779 = vunpack.c.0.s8 %v8778
        %v8780 = vlaneseq
        %v8781 = vshrl.u32 %v8780, 7
        %v8782 = vsub.s32 %v8779, %v8781
        %v8783 = vrot.slane %v8769, %v8782
        %v8784 = vcombine.low %v8721, %v8729
        %v8785 = vcombine.high %v8721, %v8729
        %v8787 = vunpack.c.l.s4 1983009808
        %v8788 = vunpack.c.0.s8 %v8787
        %v8789 = vlaneseq
        %v8790 = vshrl.u32 %v8789, 7
        %v8791 = vsub.s32 %v8788, %v8790
        %v8792 = vrot.slane %v8784, %v8791
        %v8794 = vunpack.c.l.s4 1983009808
        %v8795 = vunpack.c.0.s8 %v8794
        %v8796 = vlaneseq
        %v8797 = vshrl.u32 %v8796, 7
        %v8798 = vsub.s32 %v8795, %v8797
        %v8799 = vrot.slane %v8785, %v8798
        %v8800 = vcombine.low %v8725, %v8733
        %v8801 = vcombine.high %v8725, %v8733
        %v8803 = vunpack.c.l.s4 1983009808
        %v8804 = vunpack.c.0.s8 %v8803
        %v8805 = vlaneseq
        %v8806 = vshrl.u32 %v8805, 7
        %v8807 = vsub.s32 %v8804, %v8806
        %v8808 = vrot.slane %v8800, %v8807
        %v8810 = vunpack.c.l.s4 1983009808
        %v8811 = vunpack.c.0.s8 %v8810
        %v8812 = vlaneseq
        %v8813 = vshrl.u32 %v8812, 7
        %v8814 = vsub.s32 %v8811, %v8813
        %v8815 = vrot.slane %v8801, %v8814
        %v8816 = vcombine.low %v8760, %v8776
        %v8817 = vcombine.high %v8760, %v8776
        %v8819 = vunpack.c.l.s4 1934713408
        %v8820 = vunpack.c.0.s8 %v8819
        %v8821 = vlaneseq
        %v8822 = vshrl.u32 %v8821, 7
        %v8823 = vsub.s32 %v8820, %v8822
        %v8824 = vrot.slane %v8816, %v8823
        %v8826 = vunpack.c.l.s4 1934713408
        %v8827 = vunpack.c.0.s8 %v8826
        %v8828 = vlaneseq
        %v8829 = vshrl.u32 %v8828, 7
        %v8830 = vsub.s32 %v8827, %v8829
        %v8831 = vrot.slane %v8817, %v8830
        %v8832 = vcombine.low %v8767, %v8783
        %v8833 = vcombine.high %v8767, %v8783
        %v8835 = vunpack.c.l.s4 1934713408
        %v8836 = vunpack.c.0.s8 %v8835
        %v8837 = vlaneseq
        %v8838 = vshrl.u32 %v8837, 7
        %v8839 = vsub.s32 %v8836, %v8838
        %v8840 = vrot.slane %v8832, %v8839
        %v8842 = vunpack.c.l.s4 1934713408
        %v8843 = vunpack.c.0.s8 %v8842
        %v8844 = vlaneseq
        %v8845 = vshrl.u32 %v8844, 7
        %v8846 = vsub.s32 %v8843, %v8845
        %v8847 = vrot.slane %v8833, %v8846
        %v8848 = vcombine.low %v8792, %v8808
        %v8849 = vcombine.high %v8792, %v8808
        %v8851 = vunpack.c.l.s4 1934713408
        %v8852 = vunpack.c.0.s8 %v8851
        %v8853 = vlaneseq
        %v8854 = vshrl.u32 %v8853, 7
        %v8855 = vsub.s32 %v8852, %v8854
        %v8856 = vrot.slane %v8848, %v8855
        %v8858 = vunpack.c.l.s4 1934713408
        %v8859 = vunpack.c.0.s8 %v8858
        %v8860 = vlaneseq
        %v8861 = vshrl.u32 %v8860, 7
        %v8862 = vsub.s32 %v8859, %v8861
        %v8863 = vrot.slane %v8849, %v8862
        %v8864 = vcombine.low %v8799, %v8815
        %v8865 = vcombine.high %v8799, %v8815
        %v8867 = vunpack.c.l.s4 1934713408
        %v8868 = vunpack.c.0.s8 %v8867
        %v8869 = vlaneseq
        %v8870 = vshrl.u32 %v8869, 7
        %v8871 = vsub.s32 %v8868, %v8870
        %v8872 = vrot.slane %v8864, %v8871
        %v8874 = vunpack.c.l.s4 1934713408
        %v8875 = vunpack.c.0.s8 %v8874
        %v8876 = vlaneseq
        %v8877 = vshrl.u32 %v8876, 7
        %v8878 = vsub.s32 %v8875, %v8877
        %v8879 = vrot.slane %v8865, %v8878
        %v8880 = vcombine.low %v8824, %v8856
        %v8881 = vcombine.high %v8824, %v8856
        %v8882 = vcombine.low %v8831, %v8863
        %v8883 = vcombine.high %v8831, %v8863
        %v8884 = vcombine.low %v8840, %v8872
        %v8885 = vcombine.high %v8840, %v8872
        %v8886 = vcombine.low %v8847, %v8879
        %v8887 = vcombine.high %v8847, %v8879
        %v8888 = vcombine.low %v8707, %v8715
        %v8889 = vcombine.high %v8707, %v8715
        %v8891 = vunpack.c.l.s4 1983009808
        %v8892 = vunpack.c.0.s8 %v8891
        %v8893 = vlaneseq
        %v8894 = vshrl.u32 %v8893, 7
        %v8895 = vsub.s32 %v8892, %v8894
        %v8896 = vrot.slane %v8888, %v8895
        %v8898 = vunpack.c.l.s4 1983009808
        %v8899 = vunpack.c.0.s8 %v8898
        %v8900 = vlaneseq
        %v8901 = vshrl.u32 %v8900, 7
        %v8902 = vsub.s32 %v8899, %v8901
        %v8903 = vrot.slane %v8889, %v8902
        %v8904 = vcombine.low %v8711, %v8719
        %v8905 = vcombine.high %v8711, %v8719
        %v8907 = vunpack.c.l.s4 1983009808
        %v8908 = vunpack.c.0.s8 %v8907
        %v8909 = vlaneseq
        %v8910 = vshrl.u32 %v8909, 7
        %v8911 = vsub.s32 %v8908, %v8910
        %v8912 = vrot.slane %v8904, %v8911
        %v8914 = vunpack.c.l.s4 1983009808
        %v8915 = vunpack.c.0.s8 %v8914
        %v8916 = vlaneseq
        %v8917 = vshrl.u32 %v8916, 7
        %v8918 = vsub.s32 %v8915, %v8917
        %v8919 = vrot.slane %v8905, %v8918
        %v8920 = vcombine.low %v8723, %v8731
        %v8921 = vcombine.high %v8723, %v8731
        %v8923 = vunpack.c.l.s4 1983009808
        %v8924 = vunpack.c.0.s8 %v8923
        %v8925 = vlaneseq
        %v8926 = vshrl.u32 %v8925, 7
        %v8927 = vsub.s32 %v8924, %v8926
        %v8928 = vrot.slane %v8920, %v8927
        %v8930 = vunpack.c.l.s4 1983009808
        %v8931 = vunpack.c.0.s8 %v8930
        %v8932 = vlaneseq
        %v8933 = vshrl.u32 %v8932, 7
        %v8934 = vsub.s32 %v8931, %v8933
        %v8935 = vrot.slane %v8921, %v8934
        %v8936 = vcombine.low %v8727, %v8735
        %v8937 = vcombine.high %v8727, %v8735
        %v8939 = vunpack.c.l.s4 1983009808
        %v8940 = vunpack.c.0.s8 %v8939
        %v8941 = vlaneseq
        %v8942 = vshrl.u32 %v8941, 7
        %v8943 = vsub.s32 %v8940, %v8942
        %v8944 = vrot.slane %v8936, %v8943
        %v8946 = vunpack.c.l.s4 1983009808
        %v8947 = vunpack.c.0.s8 %v8946
        %v8948 = vlaneseq
        %v8949 = vshrl.u32 %v8948, 7
        %v8950 = vsub.s32 %v8947, %v8949
        %v8951 = vrot.slane %v8937, %v8950
        %v8952 = vcombine.low %v8896, %v8912
        %v8953 = vcombine.high %v8896, %v8912
        %v8955 = vunpack.c.l.s4 1934713408
        %v8956 = vunpack.c.0.s8 %v8955
        %v8957 = vlaneseq
        %v8958 = vshrl.u32 %v8957, 7
        %v8959 = vsub.s32 %v8956, %v8958
        %v8960 = vrot.slane %v8952, %v8959
        %v8962 = vunpack.c.l.s4 1934713408
        %v8963 = vunpack.c.0.s8 %v8962
        %v8964 = vlaneseq
        %v8965 = vshrl.u32 %v8964, 7
        %v8966 = vsub.s32 %v8963, %v8965
        %v8967 = vrot.slane %v8953, %v8966
        %v8968 = vcombine.low %v8903, %v8919
        %v8969 = vcombine.high %v8903, %v8919
        %v8971 = vunpack.c.l.s4 1934713408
        %v8972 = vunpack.c.0.s8 %v8971
        %v8973 = vlaneseq
        %v8974 = vshrl.u32 %v8973, 7
        %v8975 = vsub.s32 %v8972, %v8974
        %v8976 = vrot.slane %v8968, %v8975
        %v8978 = vunpack.c.l.s4 1934713408
        %v8979 = vunpack.c.0.s8 %v8978
        %v8980 = vlaneseq
        %v8981 = vshrl.u32 %v8980, 7
        %v8982 = vsub.s32 %v8979, %v8981
        %v8983 = vrot.slane %v8969, %v8982
        %v8984 = vcombine.low %v8928, %v8944
        %v8985 = vcombine.high %v8928, %v8944
        %v8987 = vunpack.c.l.s4 1934713408
        %v8988 = vunpack.c.0.s8 %v8987
        %v8989 = vlaneseq
        %v8990 = vshrl.u32 %v8989, 7
        %v8991 = vsub.s32 %v8988, %v8990
        %v8992 = vrot.slane %v8984, %v8991
        %v8994 = vunpack.c.l.s4 1934713408
        %v8995 = vunpack.c.0.s8 %v8994
        %v8996 = vlaneseq
        %v8997 = vshrl.u32 %v8996, 7
        %v8998 = vsub.s32 %v8995, %v8997
        %v8999 = vrot.slane %v8985, %v8998
        %v9000 = vcombine.low %v8935, %v8951
        %v9001 = vcombine.high %v8935, %v8951
        %v9003 = vunpack.c.l.s4 1934713408
        %v9004 = vunpack.c.0.s8 %v9003
        %v9005 = vlaneseq
        %v9006 = vshrl.u32 %v9005, 7
        %v9007 = vsub.s32 %v9004, %v9006
        %v9008 = vrot.slane %v9000, %v9007
        %v9010 = vunpack.c.l.s4 1934713408
        %v9011 = vunpack.c.0.s8 %v9010
        %v9012 = vlaneseq
        %v9013 = vshrl.u32 %v9012, 7
        %v9014 = vsub.s32 %v9011, %v9013
        %v9015 = vrot.slane %v9001, %v9014
        %v9016 = vcombine.low %v8960, %v8992
        %v9017 = vcombine.high %v8960, %v8992
        %v9018 = vcombine.low %v8967, %v8999
        %v9019 = vcombine.high %v8967, %v8999
        %v9020 = vcombine.low %v8976, %v9008
        %v9021 = vcombine.high %v8976, %v9008
        %v9022 = vcombine.low %v8983, %v9015
        %v9023 = vcombine.high %v8983, %v9015
        %9025 = vrot.lane.b32.xlu0 %v8881, 16
        %v9026 = vpop.permute.xlu0 %9025
        %9029 = vrot.lane.b32.xlu0 %v8882, 32
        %v9030 = vpop.permute.xlu0 %9029
        %9033 = vrot.lane.b32.xlu0 %v8883, 48
        %v9034 = vpop.permute.xlu0 %9033
        %9037 = vrot.lane.b32.xlu0 %v8884, 64
        %v9038 = vpop.permute.xlu0 %9037
        %9041 = vrot.lane.b32.xlu0 %v8885, 80
        %v9042 = vpop.permute.xlu0 %9041
        %9045 = vrot.lane.b32.xlu0 %v8886, 96
        %v9046 = vpop.permute.xlu0 %9045
        %9049 = vrot.lane.b32.xlu0 %v8887, 112
        %v9050 = vpop.permute.xlu0 %9049
        %9053 = vrot.lane.b32.xlu0 %v9017, 16
        %v9054 = vpop.permute.xlu0 %9053
        %9057 = vrot.lane.b32.xlu0 %v9018, 32
        %v9058 = vpop.permute.xlu0 %9057
        %9061 = vrot.lane.b32.xlu0 %v9019, 48
        %v9062 = vpop.permute.xlu0 %9061
        %9065 = vrot.lane.b32.xlu0 %v9020, 64
        %v9066 = vpop.permute.xlu0 %9065
        %9069 = vrot.lane.b32.xlu0 %v9021, 80
        %v9070 = vpop.permute.xlu0 %9069
        %9073 = vrot.lane.b32.xlu0 %v9022, 96
        %v9074 = vpop.permute.xlu0 %9073
        %9077 = vrot.lane.b32.xlu0 %v9023, 112
        %v9078 = vpop.permute.xlu0 %9077
        %v9080 = vsel %vm767, %v8880, %v9026
        %v9081 = vsel %vm769, %v9080, %v9030
        %v9082 = vsel %vm771, %v9081, %v9034
        %v9083 = vsel %vm773, %v9082, %v9038
        %v9084 = vsel %vm775, %v9083, %v9042
        %v9085 = vsel %vm777, %v9084, %v9046
        %v9086 = vsel %vm779, %v9085, %v9050
        %v9087 = vsel %vm767, %v9016, %v9054
        %v9088 = vsel %vm769, %v9087, %v9058
        %v9089 = vsel %vm771, %v9088, %v9062
        %v9090 = vsel %vm773, %v9089, %v9066
        %v9091 = vsel %vm775, %v9090, %v9070
        %v9092 = vsel %vm777, %v9091, %v9074
        %v9093 = vsel %vm779, %v9092, %v9078
        %9094 = vrot.lane.b32.xlu0 %v8330, 126
        %v9095 = vpop.permute.xlu0 %9094
        %9096 = vrot.lane.b32.xlu0 %v8331, 126
        %v9097 = vpop.permute.xlu0 %9096
        %9098 = vrot.lane.b32.xlu0 %v8332, 126
        %v9099 = vpop.permute.xlu0 %9098
        %9100 = vrot.lane.b32.xlu0 %v8333, 126
        %v9101 = vpop.permute.xlu0 %9100
        %9102 = vrot.lane.b32.xlu0 %v8334, 126
        %v9103 = vpop.permute.xlu0 %9102
        %9104 = vrot.lane.b32.xlu0 %v8335, 126
        %v9105 = vpop.permute.xlu0 %9104
        %9106 = vrot.lane.b32.xlu0 %v8336, 126
        %v9107 = vpop.permute.xlu0 %9106
        %9108 = vrot.lane.b32.xlu0 %v8337, 126
        %v9109 = vpop.permute.xlu0 %9108
        %9110 = vrot.lane.b32.xlu0 %v8338, 126
        %v9111 = vpop.permute.xlu0 %9110
        %9112 = vrot.lane.b32.xlu0 %v8339, 126
        %v9113 = vpop.permute.xlu0 %9112
        %9114 = vrot.lane.b32.xlu0 %v8340, 126
        %v9115 = vpop.permute.xlu0 %9114
        %9116 = vrot.lane.b32.xlu0 %v8341, 126
        %v9117 = vpop.permute.xlu0 %9116
        %9118 = vrot.lane.b32.xlu0 %v8342, 126
        %v9119 = vpop.permute.xlu0 %9118
        %9120 = vrot.lane.b32.xlu0 %v8343, 126
        %v9121 = vpop.permute.xlu0 %9120
        %9122 = vrot.lane.b32.xlu0 %v8344, 126
        %v9123 = vpop.permute.xlu0 %9122
        %9124 = vrot.lane.b32.xlu0 %v8345, 126
        %v9125 = vpop.permute.xlu0 %9124
        %v9142 = vcombine.low %v9095, %v9103
        %v9143 = vcombine.high %v9095, %v9103
        %v9145 = vunpack.c.l.s4 1983009808
        %v9146 = vunpack.c.0.s8 %v9145
        %v9147 = vlaneseq
        %v9148 = vshrl.u32 %v9147, 7
        %v9149 = vsub.s32 %v9146, %v9148
        %v9150 = vrot.slane %v9142, %v9149
        %v9152 = vunpack.c.l.s4 1983009808
        %v9153 = vunpack.c.0.s8 %v9152
        %v9154 = vlaneseq
        %v9155 = vshrl.u32 %v9154, 7
        %v9156 = vsub.s32 %v9153, %v9155
        %v9157 = vrot.slane %v9143, %v9156
        %v9158 = vcombine.low %v9099, %v9107
        %v9159 = vcombine.high %v9099, %v9107
        %v9161 = vunpack.c.l.s4 1983009808
        %v9162 = vunpack.c.0.s8 %v9161
        %v9163 = vlaneseq
        %v9164 = vshrl.u32 %v9163, 7
        %v9165 = vsub.s32 %v9162, %v9164
        %v9166 = vrot.slane %v9158, %v9165
        %v9168 = vunpack.c.l.s4 1983009808
        %v9169 = vunpack.c.0.s8 %v9168
        %v9170 = vlaneseq
        %v9171 = vshrl.u32 %v9170, 7
        %v9172 = vsub.s32 %v9169, %v9171
        %v9173 = vrot.slane %v9159, %v9172
        %v9174 = vcombine.low %v9111, %v9119
        %v9175 = vcombine.high %v9111, %v9119
        %v9177 = vunpack.c.l.s4 1983009808
        %v9178 = vunpack.c.0.s8 %v9177
        %v9179 = vlaneseq
        %v9180 = vshrl.u32 %v9179, 7
        %v9181 = vsub.s32 %v9178, %v9180
        %v9182 = vrot.slane %v9174, %v9181
        %v9184 = vunpack.c.l.s4 1983009808
        %v9185 = vunpack.c.0.s8 %v9184
        %v9186 = vlaneseq
        %v9187 = vshrl.u32 %v9186, 7
        %v9188 = vsub.s32 %v9185, %v9187
        %v9189 = vrot.slane %v9175, %v9188
        %v9190 = vcombine.low %v9115, %v9123
        %v9191 = vcombine.high %v9115, %v9123
        %v9193 = vunpack.c.l.s4 1983009808
        %v9194 = vunpack.c.0.s8 %v9193
        %v9195 = vlaneseq
        %v9196 = vshrl.u32 %v9195, 7
        %v9197 = vsub.s32 %v9194, %v9196
        %v9198 = vrot.slane %v9190, %v9197
        %v9200 = vunpack.c.l.s4 1983009808
        %v9201 = vunpack.c.0.s8 %v9200
        %v9202 = vlaneseq
        %v9203 = vshrl.u32 %v9202, 7
        %v9204 = vsub.s32 %v9201, %v9203
        %v9205 = vrot.slane %v9191, %v9204
        %v9206 = vcombine.low %v9150, %v9166
        %v9207 = vcombine.high %v9150, %v9166
        %v9209 = vunpack.c.l.s4 1934713408
        %v9210 = vunpack.c.0.s8 %v9209
        %v9211 = vlaneseq
        %v9212 = vshrl.u32 %v9211, 7
        %v9213 = vsub.s32 %v9210, %v9212
        %v9214 = vrot.slane %v9206, %v9213
        %v9216 = vunpack.c.l.s4 1934713408
        %v9217 = vunpack.c.0.s8 %v9216
        %v9218 = vlaneseq
        %v9219 = vshrl.u32 %v9218, 7
        %v9220 = vsub.s32 %v9217, %v9219
        %v9221 = vrot.slane %v9207, %v9220
        %v9222 = vcombine.low %v9157, %v9173
        %v9223 = vcombine.high %v9157, %v9173
        %v9225 = vunpack.c.l.s4 1934713408
        %v9226 = vunpack.c.0.s8 %v9225
        %v9227 = vlaneseq
        %v9228 = vshrl.u32 %v9227, 7
        %v9229 = vsub.s32 %v9226, %v9228
        %v9230 = vrot.slane %v9222, %v9229
        %v9232 = vunpack.c.l.s4 1934713408
        %v9233 = vunpack.c.0.s8 %v9232
        %v9234 = vlaneseq
        %v9235 = vshrl.u32 %v9234, 7
        %v9236 = vsub.s32 %v9233, %v9235
        %v9237 = vrot.slane %v9223, %v9236
        %v9238 = vcombine.low %v9182, %v9198
        %v9239 = vcombine.high %v9182, %v9198
        %v9241 = vunpack.c.l.s4 1934713408
        %v9242 = vunpack.c.0.s8 %v9241
        %v9243 = vlaneseq
        %v9244 = vshrl.u32 %v9243, 7
        %v9245 = vsub.s32 %v9242, %v9244
        %v9246 = vrot.slane %v9238, %v9245
        %v9248 = vunpack.c.l.s4 1934713408
        %v9249 = vunpack.c.0.s8 %v9248
        %v9250 = vlaneseq
        %v9251 = vshrl.u32 %v9250, 7
        %v9252 = vsub.s32 %v9249, %v9251
        %v9253 = vrot.slane %v9239, %v9252
        %v9254 = vcombine.low %v9189, %v9205
        %v9255 = vcombine.high %v9189, %v9205
        %v9257 = vunpack.c.l.s4 1934713408
        %v9258 = vunpack.c.0.s8 %v9257
        %v9259 = vlaneseq
        %v9260 = vshrl.u32 %v9259, 7
        %v9261 = vsub.s32 %v9258, %v9260
        %v9262 = vrot.slane %v9254, %v9261
        %v9264 = vunpack.c.l.s4 1934713408
        %v9265 = vunpack.c.0.s8 %v9264
        %v9266 = vlaneseq
        %v9267 = vshrl.u32 %v9266, 7
        %v9268 = vsub.s32 %v9265, %v9267
        %v9269 = vrot.slane %v9255, %v9268
        %v9270 = vcombine.low %v9214, %v9246
        %v9271 = vcombine.high %v9214, %v9246
        %v9272 = vcombine.low %v9221, %v9253
        %v9273 = vcombine.high %v9221, %v9253
        %v9274 = vcombine.low %v9230, %v9262
        %v9275 = vcombine.high %v9230, %v9262
        %v9276 = vcombine.low %v9237, %v9269
        %v9277 = vcombine.high %v9237, %v9269
        %v9278 = vcombine.low %v9097, %v9105
        %v9279 = vcombine.high %v9097, %v9105
        %v9281 = vunpack.c.l.s4 1983009808
        %v9282 = vunpack.c.0.s8 %v9281
        %v9283 = vlaneseq
        %v9284 = vshrl.u32 %v9283, 7
        %v9285 = vsub.s32 %v9282, %v9284
        %v9286 = vrot.slane %v9278, %v9285
        %v9288 = vunpack.c.l.s4 1983009808
        %v9289 = vunpack.c.0.s8 %v9288
        %v9290 = vlaneseq
        %v9291 = vshrl.u32 %v9290, 7
        %v9292 = vsub.s32 %v9289, %v9291
        %v9293 = vrot.slane %v9279, %v9292
        %v9294 = vcombine.low %v9101, %v9109
        %v9295 = vcombine.high %v9101, %v9109
        %v9297 = vunpack.c.l.s4 1983009808
        %v9298 = vunpack.c.0.s8 %v9297
        %v9299 = vlaneseq
        %v9300 = vshrl.u32 %v9299, 7
        %v9301 = vsub.s32 %v9298, %v9300
        %v9302 = vrot.slane %v9294, %v9301
        %v9304 = vunpack.c.l.s4 1983009808
        %v9305 = vunpack.c.0.s8 %v9304
        %v9306 = vlaneseq
        %v9307 = vshrl.u32 %v9306, 7
        %v9308 = vsub.s32 %v9305, %v9307
        %v9309 = vrot.slane %v9295, %v9308
        %v9310 = vcombine.low %v9113, %v9121
        %v9311 = vcombine.high %v9113, %v9121
        %v9313 = vunpack.c.l.s4 1983009808
        %v9314 = vunpack.c.0.s8 %v9313
        %v9315 = vlaneseq
        %v9316 = vshrl.u32 %v9315, 7
        %v9317 = vsub.s32 %v9314, %v9316
        %v9318 = vrot.slane %v9310, %v9317
        %v9320 = vunpack.c.l.s4 1983009808
        %v9321 = vunpack.c.0.s8 %v9320
        %v9322 = vlaneseq
        %v9323 = vshrl.u32 %v9322, 7
        %v9324 = vsub.s32 %v9321, %v9323
        %v9325 = vrot.slane %v9311, %v9324
        %v9326 = vcombine.low %v9117, %v9125
        %v9327 = vcombine.high %v9117, %v9125
        %v9329 = vunpack.c.l.s4 1983009808
        %v9330 = vunpack.c.0.s8 %v9329
        %v9331 = vlaneseq
        %v9332 = vshrl.u32 %v9331, 7
        %v9333 = vsub.s32 %v9330, %v9332
        %v9334 = vrot.slane %v9326, %v9333
        %v9336 = vunpack.c.l.s4 1983009808
        %v9337 = vunpack.c.0.s8 %v9336
        %v9338 = vlaneseq
        %v9339 = vshrl.u32 %v9338, 7
        %v9340 = vsub.s32 %v9337, %v9339
        %v9341 = vrot.slane %v9327, %v9340
        %v9342 = vcombine.low %v9286, %v9302
        %v9343 = vcombine.high %v9286, %v9302
        %v9345 = vunpack.c.l.s4 1934713408
        %v9346 = vunpack.c.0.s8 %v9345
        %v9347 = vlaneseq
        %v9348 = vshrl.u32 %v9347, 7
        %v9349 = vsub.s32 %v9346, %v9348
        %v9350 = vrot.slane %v9342, %v9349
        %v9352 = vunpack.c.l.s4 1934713408
        %v9353 = vunpack.c.0.s8 %v9352
        %v9354 = vlaneseq
        %v9355 = vshrl.u32 %v9354, 7
        %v9356 = vsub.s32 %v9353, %v9355
        %v9357 = vrot.slane %v9343, %v9356
        %v9358 = vcombine.low %v9293, %v9309
        %v9359 = vcombine.high %v9293, %v9309
        %v9361 = vunpack.c.l.s4 1934713408
        %v9362 = vunpack.c.0.s8 %v9361
        %v9363 = vlaneseq
        %v9364 = vshrl.u32 %v9363, 7
        %v9365 = vsub.s32 %v9362, %v9364
        %v9366 = vrot.slane %v9358, %v9365
        %v9368 = vunpack.c.l.s4 1934713408
        %v9369 = vunpack.c.0.s8 %v9368
        %v9370 = vlaneseq
        %v9371 = vshrl.u32 %v9370, 7
        %v9372 = vsub.s32 %v9369, %v9371
        %v9373 = vrot.slane %v9359, %v9372
        %v9374 = vcombine.low %v9318, %v9334
        %v9375 = vcombine.high %v9318, %v9334
        %v9377 = vunpack.c.l.s4 1934713408
        %v9378 = vunpack.c.0.s8 %v9377
        %v9379 = vlaneseq
        %v9380 = vshrl.u32 %v9379, 7
        %v9381 = vsub.s32 %v9378, %v9380
        %v9382 = vrot.slane %v9374, %v9381
        %v9384 = vunpack.c.l.s4 1934713408
        %v9385 = vunpack.c.0.s8 %v9384
        %v9386 = vlaneseq
        %v9387 = vshrl.u32 %v9386, 7
        %v9388 = vsub.s32 %v9385, %v9387
        %v9389 = vrot.slane %v9375, %v9388
        %v9390 = vcombine.low %v9325, %v9341
        %v9391 = vcombine.high %v9325, %v9341
        %v9393 = vunpack.c.l.s4 1934713408
        %v9394 = vunpack.c.0.s8 %v9393
        %v9395 = vlaneseq
        %v9396 = vshrl.u32 %v9395, 7
        %v9397 = vsub.s32 %v9394, %v9396
        %v9398 = vrot.slane %v9390, %v9397
        %v9400 = vunpack.c.l.s4 1934713408
        %v9401 = vunpack.c.0.s8 %v9400
        %v9402 = vlaneseq
        %v9403 = vshrl.u32 %v9402, 7
        %v9404 = vsub.s32 %v9401, %v9403
        %v9405 = vrot.slane %v9391, %v9404
        %v9406 = vcombine.low %v9350, %v9382
        %v9407 = vcombine.high %v9350, %v9382
        %v9408 = vcombine.low %v9357, %v9389
        %v9409 = vcombine.high %v9357, %v9389
        %v9410 = vcombine.low %v9366, %v9398
        %v9411 = vcombine.high %v9366, %v9398
        %v9412 = vcombine.low %v9373, %v9405
        %v9413 = vcombine.high %v9373, %v9405
        %9415 = vrot.lane.b32.xlu0 %v9271, 16
        %v9416 = vpop.permute.xlu0 %9415
        %9419 = vrot.lane.b32.xlu0 %v9272, 32
        %v9420 = vpop.permute.xlu0 %9419
        %9423 = vrot.lane.b32.xlu0 %v9273, 48
        %v9424 = vpop.permute.xlu0 %9423
        %9427 = vrot.lane.b32.xlu0 %v9274, 64
        %v9428 = vpop.permute.xlu0 %9427
        %9431 = vrot.lane.b32.xlu0 %v9275, 80
        %v9432 = vpop.permute.xlu0 %9431
        %9435 = vrot.lane.b32.xlu0 %v9276, 96
        %v9436 = vpop.permute.xlu0 %9435
        %9439 = vrot.lane.b32.xlu0 %v9277, 112
        %v9440 = vpop.permute.xlu0 %9439
        %9443 = vrot.lane.b32.xlu0 %v9407, 16
        %v9444 = vpop.permute.xlu0 %9443
        %9447 = vrot.lane.b32.xlu0 %v9408, 32
        %v9448 = vpop.permute.xlu0 %9447
        %9451 = vrot.lane.b32.xlu0 %v9409, 48
        %v9452 = vpop.permute.xlu0 %9451
        %9455 = vrot.lane.b32.xlu0 %v9410, 64
        %v9456 = vpop.permute.xlu0 %9455
        %9459 = vrot.lane.b32.xlu0 %v9411, 80
        %v9460 = vpop.permute.xlu0 %9459
        %9463 = vrot.lane.b32.xlu0 %v9412, 96
        %v9464 = vpop.permute.xlu0 %9463
        %9467 = vrot.lane.b32.xlu0 %v9413, 112
        %v9468 = vpop.permute.xlu0 %9467
        %v9470 = vsel %vm767, %v9270, %v9416
        %v9471 = vsel %vm769, %v9470, %v9420
        %v9472 = vsel %vm771, %v9471, %v9424
        %v9473 = vsel %vm773, %v9472, %v9428
        %v9474 = vsel %vm775, %v9473, %v9432
        %v9475 = vsel %vm777, %v9474, %v9436
        %v9476 = vsel %vm779, %v9475, %v9440
        %v9477 = vsel %vm767, %v9406, %v9444
        %v9478 = vsel %vm769, %v9477, %v9448
        %v9479 = vsel %vm771, %v9478, %v9452
        %v9480 = vsel %vm773, %v9479, %v9456
        %v9481 = vsel %vm775, %v9480, %v9460
        %v9482 = vsel %vm777, %v9481, %v9464
        %v9483 = vsel %vm779, %v9482, %v9468
        %v9484 = vld [vmem:[#allocation3 + $0x2] sm:$0xff]
        %v9485 = vld [vmem:[#allocation3 + $0xa] sm:$0xff]
        %v9486 = vld [vmem:[#allocation3 + $0x1a] sm:$0xff]
        %v9487 = vld [vmem:[#allocation3 + $0x22] sm:$0xff]
        %v9488 = vld [vmem:[#allocation3 + $0x32] sm:$0xff]
        %v9489 = vld [vmem:[#allocation3 + $0x3a] sm:$0xff]
        %v9490 = vld [vmem:[#allocation3 + $0x4a] sm:$0xff]
        %v9491 = vld [vmem:[#allocation3 + $0x52] sm:$0xff]
        %v9492 = vld [vmem:[#allocation3 + $0x62] sm:$0xff]
        %v9493 = vld [vmem:[#allocation3 + $0x6a] sm:$0xff]
        %v9494 = vld [vmem:[#allocation3 + $0x7a] sm:$0xff]
        %v9495 = vld [vmem:[#allocation3 + $0x82] sm:$0xff]
        %v9496 = vld [vmem:[#allocation3 + $0x92] sm:$0xff]
        %v9497 = vld [vmem:[#allocation3 + $0x9a] sm:$0xff]
        %v9498 = vld [vmem:[#allocation3 + $0xaa] sm:$0xff]
        %v9499 = vld [vmem:[#allocation3 + $0xb2] sm:$0xff]
        %v9500 = vcombine.low %v9484, %v9488
        %v9501 = vcombine.high %v9484, %v9488
        %v9503 = vunpack.c.l.s4 1983009808
        %v9504 = vunpack.c.0.s8 %v9503
        %v9505 = vlaneseq
        %v9506 = vshrl.u32 %v9505, 7
        %v9507 = vsub.s32 %v9504, %v9506
        %v9508 = vrot.slane %v9500, %v9507
        %v9510 = vunpack.c.l.s4 1983009808
        %v9511 = vunpack.c.0.s8 %v9510
        %v9512 = vlaneseq
        %v9513 = vshrl.u32 %v9512, 7
        %v9514 = vsub.s32 %v9511, %v9513
        %v9515 = vrot.slane %v9501, %v9514
        %v9516 = vcombine.low %v9486, %v9490
        %v9517 = vcombine.high %v9486, %v9490
        %v9519 = vunpack.c.l.s4 1983009808
        %v9520 = vunpack.c.0.s8 %v9519
        %v9521 = vlaneseq
        %v9522 = vshrl.u32 %v9521, 7
        %v9523 = vsub.s32 %v9520, %v9522
        %v9524 = vrot.slane %v9516, %v9523
        %v9526 = vunpack.c.l.s4 1983009808
        %v9527 = vunpack.c.0.s8 %v9526
        %v9528 = vlaneseq
        %v9529 = vshrl.u32 %v9528, 7
        %v9530 = vsub.s32 %v9527, %v9529
        %v9531 = vrot.slane %v9517, %v9530
        %v9532 = vcombine.low %v9492, %v9496
        %v9533 = vcombine.high %v9492, %v9496
        %v9535 = vunpack.c.l.s4 1983009808
        %v9536 = vunpack.c.0.s8 %v9535
        %v9537 = vlaneseq
        %v9538 = vshrl.u32 %v9537, 7
        %v9539 = vsub.s32 %v9536, %v9538
        %v9540 = vrot.slane %v9532, %v9539
        %v9542 = vunpack.c.l.s4 1983009808
        %v9543 = vunpack.c.0.s8 %v9542
        %v9544 = vlaneseq
        %v9545 = vshrl.u32 %v9544, 7
        %v9546 = vsub.s32 %v9543, %v9545
        %v9547 = vrot.slane %v9533, %v9546
        %v9548 = vcombine.low %v9494, %v9498
        %v9549 = vcombine.high %v9494, %v9498
        %v9551 = vunpack.c.l.s4 1983009808
        %v9552 = vunpack.c.0.s8 %v9551
        %v9553 = vlaneseq
        %v9554 = vshrl.u32 %v9553, 7
        %v9555 = vsub.s32 %v9552, %v9554
        %v9556 = vrot.slane %v9548, %v9555
        %v9558 = vunpack.c.l.s4 1983009808
        %v9559 = vunpack.c.0.s8 %v9558
        %v9560 = vlaneseq
        %v9561 = vshrl.u32 %v9560, 7
        %v9562 = vsub.s32 %v9559, %v9561
        %v9563 = vrot.slane %v9549, %v9562
        %v9564 = vcombine.low %v9508, %v9524
        %v9565 = vcombine.high %v9508, %v9524
        %v9567 = vunpack.c.l.s4 1934713408
        %v9568 = vunpack.c.0.s8 %v9567
        %v9569 = vlaneseq
        %v9570 = vshrl.u32 %v9569, 7
        %v9571 = vsub.s32 %v9568, %v9570
        %v9572 = vrot.slane %v9564, %v9571
        %v9574 = vunpack.c.l.s4 1934713408
        %v9575 = vunpack.c.0.s8 %v9574
        %v9576 = vlaneseq
        %v9577 = vshrl.u32 %v9576, 7
        %v9578 = vsub.s32 %v9575, %v9577
        %v9579 = vrot.slane %v9565, %v9578
        %v9580 = vcombine.low %v9515, %v9531
        %v9581 = vcombine.high %v9515, %v9531
        %v9583 = vunpack.c.l.s4 1934713408
        %v9584 = vunpack.c.0.s8 %v9583
        %v9585 = vlaneseq
        %v9586 = vshrl.u32 %v9585, 7
        %v9587 = vsub.s32 %v9584, %v9586
        %v9588 = vrot.slane %v9580, %v9587
        %v9590 = vunpack.c.l.s4 1934713408
        %v9591 = vunpack.c.0.s8 %v9590
        %v9592 = vlaneseq
        %v9593 = vshrl.u32 %v9592, 7
        %v9594 = vsub.s32 %v9591, %v9593
        %v9595 = vrot.slane %v9581, %v9594
        %v9596 = vcombine.low %v9540, %v9556
        %v9597 = vcombine.high %v9540, %v9556
        %v9599 = vunpack.c.l.s4 1934713408
        %v9600 = vunpack.c.0.s8 %v9599
        %v9601 = vlaneseq
        %v9602 = vshrl.u32 %v9601, 7
        %v9603 = vsub.s32 %v9600, %v9602
        %v9604 = vrot.slane %v9596, %v9603
        %v9606 = vunpack.c.l.s4 1934713408
        %v9607 = vunpack.c.0.s8 %v9606
        %v9608 = vlaneseq
        %v9609 = vshrl.u32 %v9608, 7
        %v9610 = vsub.s32 %v9607, %v9609
        %v9611 = vrot.slane %v9597, %v9610
        %v9612 = vcombine.low %v9547, %v9563
        %v9613 = vcombine.high %v9547, %v9563
        %v9615 = vunpack.c.l.s4 1934713408
        %v9616 = vunpack.c.0.s8 %v9615
        %v9617 = vlaneseq
        %v9618 = vshrl.u32 %v9617, 7
        %v9619 = vsub.s32 %v9616, %v9618
        %v9620 = vrot.slane %v9612, %v9619
        %v9622 = vunpack.c.l.s4 1934713408
        %v9623 = vunpack.c.0.s8 %v9622
        %v9624 = vlaneseq
        %v9625 = vshrl.u32 %v9624, 7
        %v9626 = vsub.s32 %v9623, %v9625
        %v9627 = vrot.slane %v9613, %v9626
        %v9628 = vcombine.low %v9572, %v9604
        %v9629 = vcombine.high %v9572, %v9604
        %v9630 = vcombine.low %v9579, %v9611
        %v9631 = vcombine.high %v9579, %v9611
        %v9632 = vcombine.low %v9588, %v9620
        %v9633 = vcombine.high %v9588, %v9620
        %v9634 = vcombine.low %v9595, %v9627
        %v9635 = vcombine.high %v9595, %v9627
        %v9636 = vcombine.low %v9485, %v9489
        %v9637 = vcombine.high %v9485, %v9489
        %v9639 = vunpack.c.l.s4 1983009808
        %v9640 = vunpack.c.0.s8 %v9639
        %v9641 = vlaneseq
        %v9642 = vshrl.u32 %v9641, 7
        %v9643 = vsub.s32 %v9640, %v9642
        %v9644 = vrot.slane %v9636, %v9643
        %v9646 = vunpack.c.l.s4 1983009808
        %v9647 = vunpack.c.0.s8 %v9646
        %v9648 = vlaneseq
        %v9649 = vshrl.u32 %v9648, 7
        %v9650 = vsub.s32 %v9647, %v9649
        %v9651 = vrot.slane %v9637, %v9650
        %v9652 = vcombine.low %v9487, %v9491
        %v9653 = vcombine.high %v9487, %v9491
        %v9655 = vunpack.c.l.s4 1983009808
        %v9656 = vunpack.c.0.s8 %v9655
        %v9657 = vlaneseq
        %v9658 = vshrl.u32 %v9657, 7
        %v9659 = vsub.s32 %v9656, %v9658
        %v9660 = vrot.slane %v9652, %v9659
        %v9662 = vunpack.c.l.s4 1983009808
        %v9663 = vunpack.c.0.s8 %v9662
        %v9664 = vlaneseq
        %v9665 = vshrl.u32 %v9664, 7
        %v9666 = vsub.s32 %v9663, %v9665
        %v9667 = vrot.slane %v9653, %v9666
        %v9668 = vcombine.low %v9493, %v9497
        %v9669 = vcombine.high %v9493, %v9497
        %v9671 = vunpack.c.l.s4 1983009808
        %v9672 = vunpack.c.0.s8 %v9671
        %v9673 = vlaneseq
        %v9674 = vshrl.u32 %v9673, 7
        %v9675 = vsub.s32 %v9672, %v9674
        %v9676 = vrot.slane %v9668, %v9675
        %v9678 = vunpack.c.l.s4 1983009808
        %v9679 = vunpack.c.0.s8 %v9678
        %v9680 = vlaneseq
        %v9681 = vshrl.u32 %v9680, 7
        %v9682 = vsub.s32 %v9679, %v9681
        %v9683 = vrot.slane %v9669, %v9682
        %v9684 = vcombine.low %v9495, %v9499
        %v9685 = vcombine.high %v9495, %v9499
        %v9687 = vunpack.c.l.s4 1983009808
        %v9688 = vunpack.c.0.s8 %v9687
        %v9689 = vlaneseq
        %v9690 = vshrl.u32 %v9689, 7
        %v9691 = vsub.s32 %v9688, %v9690
        %v9692 = vrot.slane %v9684, %v9691
        %v9694 = vunpack.c.l.s4 1983009808
        %v9695 = vunpack.c.0.s8 %v9694
        %v9696 = vlaneseq
        %v9697 = vshrl.u32 %v9696, 7
        %v9698 = vsub.s32 %v9695, %v9697
        %v9699 = vrot.slane %v9685, %v9698
        %v9700 = vcombine.low %v9644, %v9660
        %v9701 = vcombine.high %v9644, %v9660
        %v9703 = vunpack.c.l.s4 1934713408
        %v9704 = vunpack.c.0.s8 %v9703
        %v9705 = vlaneseq
        %v9706 = vshrl.u32 %v9705, 7
        %v9707 = vsub.s32 %v9704, %v9706
        %v9708 = vrot.slane %v9700, %v9707
        %v9710 = vunpack.c.l.s4 1934713408
        %v9711 = vunpack.c.0.s8 %v9710
        %v9712 = vlaneseq
        %v9713 = vshrl.u32 %v9712, 7
        %v9714 = vsub.s32 %v9711, %v9713
        %v9715 = vrot.slane %v9701, %v9714
        %v9716 = vcombine.low %v9651, %v9667
        %v9717 = vcombine.high %v9651, %v9667
        %v9719 = vunpack.c.l.s4 1934713408
        %v9720 = vunpack.c.0.s8 %v9719
        %v9721 = vlaneseq
        %v9722 = vshrl.u32 %v9721, 7
        %v9723 = vsub.s32 %v9720, %v9722
        %v9724 = vrot.slane %v9716, %v9723
        %v9726 = vunpack.c.l.s4 1934713408
        %v9727 = vunpack.c.0.s8 %v9726
        %v9728 = vlaneseq
        %v9729 = vshrl.u32 %v9728, 7
        %v9730 = vsub.s32 %v9727, %v9729
        %v9731 = vrot.slane %v9717, %v9730
        %v9732 = vcombine.low %v9676, %v9692
        %v9733 = vcombine.high %v9676, %v9692
        %v9735 = vunpack.c.l.s4 1934713408
        %v9736 = vunpack.c.0.s8 %v9735
        %v9737 = vlaneseq
        %v9738 = vshrl.u32 %v9737, 7
        %v9739 = vsub.s32 %v9736, %v9738
        %v9740 = vrot.slane %v9732, %v9739
        %v9742 = vunpack.c.l.s4 1934713408
        %v9743 = vunpack.c.0.s8 %v9742
        %v9744 = vlaneseq
        %v9745 = vshrl.u32 %v9744, 7
        %v9746 = vsub.s32 %v9743, %v9745
        %v9747 = vrot.slane %v9733, %v9746
        %v9748 = vcombine.low %v9683, %v9699
        %v9749 = vcombine.high %v9683, %v9699
        %v9751 = vunpack.c.l.s4 1934713408
        %v9752 = vunpack.c.0.s8 %v9751
        %v9753 = vlaneseq
        %v9754 = vshrl.u32 %v9753, 7
        %v9755 = vsub.s32 %v9752, %v9754
        %v9756 = vrot.slane %v9748, %v9755
        %v9758 = vunpack.c.l.s4 1934713408
        %v9759 = vunpack.c.0.s8 %v9758
        %v9760 = vlaneseq
        %v9761 = vshrl.u32 %v9760, 7
        %v9762 = vsub.s32 %v9759, %v9761
        %v9763 = vrot.slane %v9749, %v9762
        %v9764 = vcombine.low %v9708, %v9740
        %v9765 = vcombine.high %v9708, %v9740
        %v9766 = vcombine.low %v9715, %v9747
        %v9767 = vcombine.high %v9715, %v9747
        %v9768 = vcombine.low %v9724, %v9756
        %v9769 = vcombine.high %v9724, %v9756
        %v9770 = vcombine.low %v9731, %v9763
        %v9771 = vcombine.high %v9731, %v9763
        %9773 = vrot.lane.b32.xlu0 %v9629, 16
        %v9774 = vpop.permute.xlu0 %9773
        %9777 = vrot.lane.b32.xlu0 %v9630, 32
        %v9778 = vpop.permute.xlu0 %9777
        %9781 = vrot.lane.b32.xlu0 %v9631, 48
        %v9782 = vpop.permute.xlu0 %9781
        %9785 = vrot.lane.b32.xlu0 %v9632, 64
        %v9786 = vpop.permute.xlu0 %9785
        %9789 = vrot.lane.b32.xlu0 %v9633, 80
        %v9790 = vpop.permute.xlu0 %9789
        %9793 = vrot.lane.b32.xlu0 %v9634, 96
        %v9794 = vpop.permute.xlu0 %9793
        %9797 = vrot.lane.b32.xlu0 %v9635, 112
        %v9798 = vpop.permute.xlu0 %9797
        %9801 = vrot.lane.b32.xlu0 %v9765, 16
        %v9802 = vpop.permute.xlu0 %9801
        %9805 = vrot.lane.b32.xlu0 %v9766, 32
        %v9806 = vpop.permute.xlu0 %9805
        %9809 = vrot.lane.b32.xlu0 %v9767, 48
        %v9810 = vpop.permute.xlu0 %9809
        %9813 = vrot.lane.b32.xlu0 %v9768, 64
        %v9814 = vpop.permute.xlu0 %9813
        %9817 = vrot.lane.b32.xlu0 %v9769, 80
        %v9818 = vpop.permute.xlu0 %9817
        %9821 = vrot.lane.b32.xlu0 %v9770, 96
        %v9822 = vpop.permute.xlu0 %9821
        %9825 = vrot.lane.b32.xlu0 %v9771, 112
        %v9826 = vpop.permute.xlu0 %9825
        %v9828 = vsel %vm767, %v9628, %v9774
        %v9829 = vsel %vm769, %v9828, %v9778
        %v9830 = vsel %vm771, %v9829, %v9782
        %v9831 = vsel %vm773, %v9830, %v9786
        %v9832 = vsel %vm775, %v9831, %v9790
        %v9833 = vsel %vm777, %v9832, %v9794
        %v9834 = vsel %vm779, %v9833, %v9798
        %v9835 = vsel %vm767, %v9764, %v9802
        %v9836 = vsel %vm769, %v9835, %v9806
        %v9837 = vsel %vm771, %v9836, %v9810
        %v9838 = vsel %vm773, %v9837, %v9814
        %v9839 = vsel %vm775, %v9838, %v9818
        %v9840 = vsel %vm777, %v9839, %v9822
        %v9841 = vsel %vm779, %v9840, %v9826
        %9858 = vrot.lane.b32.xlu0 %v9484, 127
        %v9859 = vpop.permute.xlu0 %9858
        %9860 = vrot.lane.b32.xlu0 %v9485, 127
        %v9861 = vpop.permute.xlu0 %9860
        %9862 = vrot.lane.b32.xlu0 %v9486, 127
        %v9863 = vpop.permute.xlu0 %9862
        %9864 = vrot.lane.b32.xlu0 %v9487, 127
        %v9865 = vpop.permute.xlu0 %9864
        %9866 = vrot.lane.b32.xlu0 %v9488, 127
        %v9867 = vpop.permute.xlu0 %9866
        %9868 = vrot.lane.b32.xlu0 %v9489, 127
        %v9869 = vpop.permute.xlu0 %9868
        %9870 = vrot.lane.b32.xlu0 %v9490, 127
        %v9871 = vpop.permute.xlu0 %9870
        %9872 = vrot.lane.b32.xlu0 %v9491, 127
        %v9873 = vpop.permute.xlu0 %9872
        %9874 = vrot.lane.b32.xlu0 %v9492, 127
        %v9875 = vpop.permute.xlu0 %9874
        %9876 = vrot.lane.b32.xlu0 %v9493, 127
        %v9877 = vpop.permute.xlu0 %9876
        %9878 = vrot.lane.b32.xlu0 %v9494, 127
        %v9879 = vpop.permute.xlu0 %9878
        %9880 = vrot.lane.b32.xlu0 %v9495, 127
        %v9881 = vpop.permute.xlu0 %9880
        %9882 = vrot.lane.b32.xlu0 %v9496, 127
        %v9883 = vpop.permute.xlu0 %9882
        %9884 = vrot.lane.b32.xlu0 %v9497, 127
        %v9885 = vpop.permute.xlu0 %9884
        %9886 = vrot.lane.b32.xlu0 %v9498, 127
        %v9887 = vpop.permute.xlu0 %9886
        %9888 = vrot.lane.b32.xlu0 %v9499, 127
        %v9889 = vpop.permute.xlu0 %9888
        %v9906 = vcombine.low %v9859, %v9867
        %v9907 = vcombine.high %v9859, %v9867
        %v9909 = vunpack.c.l.s4 1983009808
        %v9910 = vunpack.c.0.s8 %v9909
        %v9911 = vlaneseq
        %v9912 = vshrl.u32 %v9911, 7
        %v9913 = vsub.s32 %v9910, %v9912
        %v9914 = vrot.slane %v9906, %v9913
        %v9916 = vunpack.c.l.s4 1983009808
        %v9917 = vunpack.c.0.s8 %v9916
        %v9918 = vlaneseq
        %v9919 = vshrl.u32 %v9918, 7
        %v9920 = vsub.s32 %v9917, %v9919
        %v9921 = vrot.slane %v9907, %v9920
        %v9922 = vcombine.low %v9863, %v9871
        %v9923 = vcombine.high %v9863, %v9871
        %v9925 = vunpack.c.l.s4 1983009808
        %v9926 = vunpack.c.0.s8 %v9925
        %v9927 = vlaneseq
        %v9928 = vshrl.u32 %v9927, 7
        %v9929 = vsub.s32 %v9926, %v9928
        %v9930 = vrot.slane %v9922, %v9929
        %v9932 = vunpack.c.l.s4 1983009808
        %v9933 = vunpack.c.0.s8 %v9932
        %v9934 = vlaneseq
        %v9935 = vshrl.u32 %v9934, 7
        %v9936 = vsub.s32 %v9933, %v9935
        %v9937 = vrot.slane %v9923, %v9936
        %v9938 = vcombine.low %v9875, %v9883
        %v9939 = vcombine.high %v9875, %v9883
        %v9941 = vunpack.c.l.s4 1983009808
        %v9942 = vunpack.c.0.s8 %v9941
        %v9943 = vlaneseq
        %v9944 = vshrl.u32 %v9943, 7
        %v9945 = vsub.s32 %v9942, %v9944
        %v9946 = vrot.slane %v9938, %v9945
        %v9948 = vunpack.c.l.s4 1983009808
        %v9949 = vunpack.c.0.s8 %v9948
        %v9950 = vlaneseq
        %v9951 = vshrl.u32 %v9950, 7
        %v9952 = vsub.s32 %v9949, %v9951
        %v9953 = vrot.slane %v9939, %v9952
        %v9954 = vcombine.low %v9879, %v9887
        %v9955 = vcombine.high %v9879, %v9887
        %v9957 = vunpack.c.l.s4 1983009808
        %v9958 = vunpack.c.0.s8 %v9957
        %v9959 = vlaneseq
        %v9960 = vshrl.u32 %v9959, 7
        %v9961 = vsub.s32 %v9958, %v9960
        %v9962 = vrot.slane %v9954, %v9961
        %v9964 = vunpack.c.l.s4 1983009808
        %v9965 = vunpack.c.0.s8 %v9964
        %v9966 = vlaneseq
        %v9967 = vshrl.u32 %v9966, 7
        %v9968 = vsub.s32 %v9965, %v9967
        %v9969 = vrot.slane %v9955, %v9968
        %v9970 = vcombine.low %v9914, %v9930
        %v9971 = vcombine.high %v9914, %v9930
        %v9973 = vunpack.c.l.s4 1934713408
        %v9974 = vunpack.c.0.s8 %v9973
        %v9975 = vlaneseq
        %v9976 = vshrl.u32 %v9975, 7
        %v9977 = vsub.s32 %v9974, %v9976
        %v9978 = vrot.slane %v9970, %v9977
        %v9980 = vunpack.c.l.s4 1934713408
        %v9981 = vunpack.c.0.s8 %v9980
        %v9982 = vlaneseq
        %v9983 = vshrl.u32 %v9982, 7
        %v9984 = vsub.s32 %v9981, %v9983
        %v9985 = vrot.slane %v9971, %v9984
        %v9986 = vcombine.low %v9921, %v9937
        %v9987 = vcombine.high %v9921, %v9937
        %v9989 = vunpack.c.l.s4 1934713408
        %v9990 = vunpack.c.0.s8 %v9989
        %v9991 = vlaneseq
        %v9992 = vshrl.u32 %v9991, 7
        %v9993 = vsub.s32 %v9990, %v9992
        %v9994 = vrot.slane %v9986, %v9993
        %v9996 = vunpack.c.l.s4 1934713408
        %v9997 = vunpack.c.0.s8 %v9996
        %v9998 = vlaneseq
        %v9999 = vshrl.u32 %v9998, 7
        %v10000 = vsub.s32 %v9997, %v9999
        %v10001 = vrot.slane %v9987, %v10000
        %v10002 = vcombine.low %v9946, %v9962
        %v10003 = vcombine.high %v9946, %v9962
        %v10005 = vunpack.c.l.s4 1934713408
        %v10006 = vunpack.c.0.s8 %v10005
        %v10007 = vlaneseq
        %v10008 = vshrl.u32 %v10007, 7
        %v10009 = vsub.s32 %v10006, %v10008
        %v10010 = vrot.slane %v10002, %v10009
        %v10012 = vunpack.c.l.s4 1934713408
        %v10013 = vunpack.c.0.s8 %v10012
        %v10014 = vlaneseq
        %v10015 = vshrl.u32 %v10014, 7
        %v10016 = vsub.s32 %v10013, %v10015
        %v10017 = vrot.slane %v10003, %v10016
        %v10018 = vcombine.low %v9953, %v9969
        %v10019 = vcombine.high %v9953, %v9969
        %v10021 = vunpack.c.l.s4 1934713408
        %v10022 = vunpack.c.0.s8 %v10021
        %v10023 = vlaneseq
        %v10024 = vshrl.u32 %v10023, 7
        %v10025 = vsub.s32 %v10022, %v10024
        %v10026 = vrot.slane %v10018, %v10025
        %v10028 = vunpack.c.l.s4 1934713408
        %v10029 = vunpack.c.0.s8 %v10028
        %v10030 = vlaneseq
        %v10031 = vshrl.u32 %v10030, 7
        %v10032 = vsub.s32 %v10029, %v10031
        %v10033 = vrot.slane %v10019, %v10032
        %v10034 = vcombine.low %v9978, %v10010
        %v10035 = vcombine.high %v9978, %v10010
        %v10036 = vcombine.low %v9985, %v10017
        %v10037 = vcombine.high %v9985, %v10017
        %v10038 = vcombine.low %v9994, %v10026
        %v10039 = vcombine.high %v9994, %v10026
        %v10040 = vcombine.low %v10001, %v10033
        %v10041 = vcombine.high %v10001, %v10033
        %v10042 = vcombine.low %v9861, %v9869
        %v10043 = vcombine.high %v9861, %v9869
        %v10045 = vunpack.c.l.s4 1983009808
        %v10046 = vunpack.c.0.s8 %v10045
        %v10047 = vlaneseq
        %v10048 = vshrl.u32 %v10047, 7
        %v10049 = vsub.s32 %v10046, %v10048
        %v10050 = vrot.slane %v10042, %v10049
        %v10052 = vunpack.c.l.s4 1983009808
        %v10053 = vunpack.c.0.s8 %v10052
        %v10054 = vlaneseq
        %v10055 = vshrl.u32 %v10054, 7
        %v10056 = vsub.s32 %v10053, %v10055
        %v10057 = vrot.slane %v10043, %v10056
        %v10058 = vcombine.low %v9865, %v9873
        %v10059 = vcombine.high %v9865, %v9873
        %v10061 = vunpack.c.l.s4 1983009808
        %v10062 = vunpack.c.0.s8 %v10061
        %v10063 = vlaneseq
        %v10064 = vshrl.u32 %v10063, 7
        %v10065 = vsub.s32 %v10062, %v10064
        %v10066 = vrot.slane %v10058, %v10065
        %v10068 = vunpack.c.l.s4 1983009808
        %v10069 = vunpack.c.0.s8 %v10068
        %v10070 = vlaneseq
        %v10071 = vshrl.u32 %v10070, 7
        %v10072 = vsub.s32 %v10069, %v10071
        %v10073 = vrot.slane %v10059, %v10072
        %v10074 = vcombine.low %v9877, %v9885
        %v10075 = vcombine.high %v9877, %v9885
        %v10077 = vunpack.c.l.s4 1983009808
        %v10078 = vunpack.c.0.s8 %v10077
        %v10079 = vlaneseq
        %v10080 = vshrl.u32 %v10079, 7
        %v10081 = vsub.s32 %v10078, %v10080
        %v10082 = vrot.slane %v10074, %v10081
        %v10084 = vunpack.c.l.s4 1983009808
        %v10085 = vunpack.c.0.s8 %v10084
        %v10086 = vlaneseq
        %v10087 = vshrl.u32 %v10086, 7
        %v10088 = vsub.s32 %v10085, %v10087
        %v10089 = vrot.slane %v10075, %v10088
        %v10090 = vcombine.low %v9881, %v9889
        %v10091 = vcombine.high %v9881, %v9889
        %v10093 = vunpack.c.l.s4 1983009808
        %v10094 = vunpack.c.0.s8 %v10093
        %v10095 = vlaneseq
        %v10096 = vshrl.u32 %v10095, 7
        %v10097 = vsub.s32 %v10094, %v10096
        %v10098 = vrot.slane %v10090, %v10097
        %v10100 = vunpack.c.l.s4 1983009808
        %v10101 = vunpack.c.0.s8 %v10100
        %v10102 = vlaneseq
        %v10103 = vshrl.u32 %v10102, 7
        %v10104 = vsub.s32 %v10101, %v10103
        %v10105 = vrot.slane %v10091, %v10104
        %v10106 = vcombine.low %v10050, %v10066
        %v10107 = vcombine.high %v10050, %v10066
        %v10109 = vunpack.c.l.s4 1934713408
        %v10110 = vunpack.c.0.s8 %v10109
        %v10111 = vlaneseq
        %v10112 = vshrl.u32 %v10111, 7
        %v10113 = vsub.s32 %v10110, %v10112
        %v10114 = vrot.slane %v10106, %v10113
        %v10116 = vunpack.c.l.s4 1934713408
        %v10117 = vunpack.c.0.s8 %v10116
        %v10118 = vlaneseq
        %v10119 = vshrl.u32 %v10118, 7
        %v10120 = vsub.s32 %v10117, %v10119
        %v10121 = vrot.slane %v10107, %v10120
        %v10122 = vcombine.low %v10057, %v10073
        %v10123 = vcombine.high %v10057, %v10073
        %v10125 = vunpack.c.l.s4 1934713408
        %v10126 = vunpack.c.0.s8 %v10125
        %v10127 = vlaneseq
        %v10128 = vshrl.u32 %v10127, 7
        %v10129 = vsub.s32 %v10126, %v10128
        %v10130 = vrot.slane %v10122, %v10129
        %v10132 = vunpack.c.l.s4 1934713408
        %v10133 = vunpack.c.0.s8 %v10132
        %v10134 = vlaneseq
        %v10135 = vshrl.u32 %v10134, 7
        %v10136 = vsub.s32 %v10133, %v10135
        %v10137 = vrot.slane %v10123, %v10136
        %v10138 = vcombine.low %v10082, %v10098
        %v10139 = vcombine.high %v10082, %v10098
        %v10141 = vunpack.c.l.s4 1934713408
        %v10142 = vunpack.c.0.s8 %v10141
        %v10143 = vlaneseq
        %v10144 = vshrl.u32 %v10143, 7
        %v10145 = vsub.s32 %v10142, %v10144
        %v10146 = vrot.slane %v10138, %v10145
        %v10148 = vunpack.c.l.s4 1934713408
        %v10149 = vunpack.c.0.s8 %v10148
        %v10150 = vlaneseq
        %v10151 = vshrl.u32 %v10150, 7
        %v10152 = vsub.s32 %v10149, %v10151
        %v10153 = vrot.slane %v10139, %v10152
        %v10154 = vcombine.low %v10089, %v10105
        %v10155 = vcombine.high %v10089, %v10105
        %v10157 = vunpack.c.l.s4 1934713408
        %v10158 = vunpack.c.0.s8 %v10157
        %v10159 = vlaneseq
        %v10160 = vshrl.u32 %v10159, 7
        %v10161 = vsub.s32 %v10158, %v10160
        %v10162 = vrot.slane %v10154, %v10161
        %v10164 = vunpack.c.l.s4 1934713408
        %v10165 = vunpack.c.0.s8 %v10164
        %v10166 = vlaneseq
        %v10167 = vshrl.u32 %v10166, 7
        %v10168 = vsub.s32 %v10165, %v10167
        %v10169 = vrot.slane %v10155, %v10168
        %v10170 = vcombine.low %v10114, %v10146
        %v10171 = vcombine.high %v10114, %v10146
        %v10172 = vcombine.low %v10121, %v10153
        %v10173 = vcombine.high %v10121, %v10153
        %v10174 = vcombine.low %v10130, %v10162
        %v10175 = vcombine.high %v10130, %v10162
        %v10176 = vcombine.low %v10137, %v10169
        %v10177 = vcombine.high %v10137, %v10169
        %10179 = vrot.lane.b32.xlu0 %v10035, 16
        %v10180 = vpop.permute.xlu0 %10179
        %10183 = vrot.lane.b32.xlu0 %v10036, 32
        %v10184 = vpop.permute.xlu0 %10183
        %10187 = vrot.lane.b32.xlu0 %v10037, 48
        %v10188 = vpop.permute.xlu0 %10187
        %10191 = vrot.lane.b32.xlu0 %v10038, 64
        %v10192 = vpop.permute.xlu0 %10191
        %10195 = vrot.lane.b32.xlu0 %v10039, 80
        %v10196 = vpop.permute.xlu0 %10195
        %10199 = vrot.lane.b32.xlu0 %v10040, 96
        %v10200 = vpop.permute.xlu0 %10199
        %10203 = vrot.lane.b32.xlu0 %v10041, 112
        %v10204 = vpop.permute.xlu0 %10203
        %10207 = vrot.lane.b32.xlu0 %v10171, 16
        %v10208 = vpop.permute.xlu0 %10207
        %10211 = vrot.lane.b32.xlu0 %v10172, 32
        %v10212 = vpop.permute.xlu0 %10211
        %10215 = vrot.lane.b32.xlu0 %v10173, 48
        %v10216 = vpop.permute.xlu0 %10215
        %10219 = vrot.lane.b32.xlu0 %v10174, 64
        %v10220 = vpop.permute.xlu0 %10219
        %10223 = vrot.lane.b32.xlu0 %v10175, 80
        %v10224 = vpop.permute.xlu0 %10223
        %10227 = vrot.lane.b32.xlu0 %v10176, 96
        %v10228 = vpop.permute.xlu0 %10227
        %10231 = vrot.lane.b32.xlu0 %v10177, 112
        %v10232 = vpop.permute.xlu0 %10231
        %v10234 = vsel %vm767, %v10034, %v10180
        %v10235 = vsel %vm769, %v10234, %v10184
        %v10236 = vsel %vm771, %v10235, %v10188
        %v10237 = vsel %vm773, %v10236, %v10192
        %v10238 = vsel %vm775, %v10237, %v10196
        %v10239 = vsel %vm777, %v10238, %v10200
        %v10240 = vsel %vm779, %v10239, %v10204
        %v10241 = vsel %vm767, %v10170, %v10208
        %v10242 = vsel %vm769, %v10241, %v10212
        %v10243 = vsel %vm771, %v10242, %v10216
        %v10244 = vsel %vm773, %v10243, %v10220
        %v10245 = vsel %vm775, %v10244, %v10224
        %v10246 = vsel %vm777, %v10245, %v10228
        %v10247 = vsel %vm779, %v10246, %v10232
        %10248 = vrot.lane.b32.xlu0 %v9484, 126
        %v10249 = vpop.permute.xlu0 %10248
        %10250 = vrot.lane.b32.xlu0 %v9485, 126
        %v10251 = vpop.permute.xlu0 %10250
        %10252 = vrot.lane.b32.xlu0 %v9486, 126
        %v10253 = vpop.permute.xlu0 %10252
        %10254 = vrot.lane.b32.xlu0 %v9487, 126
        %v10255 = vpop.permute.xlu0 %10254
        %10256 = vrot.lane.b32.xlu0 %v9488, 126
        %v10257 = vpop.permute.xlu0 %10256
        %10258 = vrot.lane.b32.xlu0 %v9489, 126
        %v10259 = vpop.permute.xlu0 %10258
        %10260 = vrot.lane.b32.xlu0 %v9490, 126
        %v10261 = vpop.permute.xlu0 %10260
        %10262 = vrot.lane.b32.xlu0 %v9491, 126
        %v10263 = vpop.permute.xlu0 %10262
        %10264 = vrot.lane.b32.xlu0 %v9492, 126
        %v10265 = vpop.permute.xlu0 %10264
        %10266 = vrot.lane.b32.xlu0 %v9493, 126
        %v10267 = vpop.permute.xlu0 %10266
        %10268 = vrot.lane.b32.xlu0 %v9494, 126
        %v10269 = vpop.permute.xlu0 %10268
        %10270 = vrot.lane.b32.xlu0 %v9495, 126
        %v10271 = vpop.permute.xlu0 %10270
        %10272 = vrot.lane.b32.xlu0 %v9496, 126
        %v10273 = vpop.permute.xlu0 %10272
        %10274 = vrot.lane.b32.xlu0 %v9497, 126
        %v10275 = vpop.permute.xlu0 %10274
        %10276 = vrot.lane.b32.xlu0 %v9498, 126
        %v10277 = vpop.permute.xlu0 %10276
        %10278 = vrot.lane.b32.xlu0 %v9499, 126
        %v10279 = vpop.permute.xlu0 %10278
        %v10296 = vcombine.low %v10249, %v10257
        %v10297 = vcombine.high %v10249, %v10257
        %v10299 = vunpack.c.l.s4 1983009808
        %v10300 = vunpack.c.0.s8 %v10299
        %v10301 = vlaneseq
        %v10302 = vshrl.u32 %v10301, 7
        %v10303 = vsub.s32 %v10300, %v10302
        %v10304 = vrot.slane %v10296, %v10303
        %v10306 = vunpack.c.l.s4 1983009808
        %v10307 = vunpack.c.0.s8 %v10306
        %v10308 = vlaneseq
        %v10309 = vshrl.u32 %v10308, 7
        %v10310 = vsub.s32 %v10307, %v10309
        %v10311 = vrot.slane %v10297, %v10310
        %v10312 = vcombine.low %v10253, %v10261
        %v10313 = vcombine.high %v10253, %v10261
        %v10315 = vunpack.c.l.s4 1983009808
        %v10316 = vunpack.c.0.s8 %v10315
        %v10317 = vlaneseq
        %v10318 = vshrl.u32 %v10317, 7
        %v10319 = vsub.s32 %v10316, %v10318
        %v10320 = vrot.slane %v10312, %v10319
        %v10322 = vunpack.c.l.s4 1983009808
        %v10323 = vunpack.c.0.s8 %v10322
        %v10324 = vlaneseq
        %v10325 = vshrl.u32 %v10324, 7
        %v10326 = vsub.s32 %v10323, %v10325
        %v10327 = vrot.slane %v10313, %v10326
        %v10328 = vcombine.low %v10265, %v10273
        %v10329 = vcombine.high %v10265, %v10273
        %v10331 = vunpack.c.l.s4 1983009808
        %v10332 = vunpack.c.0.s8 %v10331
        %v10333 = vlaneseq
        %v10334 = vshrl.u32 %v10333, 7
        %v10335 = vsub.s32 %v10332, %v10334
        %v10336 = vrot.slane %v10328, %v10335
        %v10338 = vunpack.c.l.s4 1983009808
        %v10339 = vunpack.c.0.s8 %v10338
        %v10340 = vlaneseq
        %v10341 = vshrl.u32 %v10340, 7
        %v10342 = vsub.s32 %v10339, %v10341
        %v10343 = vrot.slane %v10329, %v10342
        %v10344 = vcombine.low %v10269, %v10277
        %v10345 = vcombine.high %v10269, %v10277
        %v10347 = vunpack.c.l.s4 1983009808
        %v10348 = vunpack.c.0.s8 %v10347
        %v10349 = vlaneseq
        %v10350 = vshrl.u32 %v10349, 7
        %v10351 = vsub.s32 %v10348, %v10350
        %v10352 = vrot.slane %v10344, %v10351
        %v10354 = vunpack.c.l.s4 1983009808
        %v10355 = vunpack.c.0.s8 %v10354
        %v10356 = vlaneseq
        %v10357 = vshrl.u32 %v10356, 7
        %v10358 = vsub.s32 %v10355, %v10357
        %v10359 = vrot.slane %v10345, %v10358
        %v10360 = vcombine.low %v10304, %v10320
        %v10361 = vcombine.high %v10304, %v10320
        %v10363 = vunpack.c.l.s4 1934713408
        %v10364 = vunpack.c.0.s8 %v10363
        %v10365 = vlaneseq
        %v10366 = vshrl.u32 %v10365, 7
        %v10367 = vsub.s32 %v10364, %v10366
        %v10368 = vrot.slane %v10360, %v10367
        %v10370 = vunpack.c.l.s4 1934713408
        %v10371 = vunpack.c.0.s8 %v10370
        %v10372 = vlaneseq
        %v10373 = vshrl.u32 %v10372, 7
        %v10374 = vsub.s32 %v10371, %v10373
        %v10375 = vrot.slane %v10361, %v10374
        %v10376 = vcombine.low %v10311, %v10327
        %v10377 = vcombine.high %v10311, %v10327
        %v10379 = vunpack.c.l.s4 1934713408
        %v10380 = vunpack.c.0.s8 %v10379
        %v10381 = vlaneseq
        %v10382 = vshrl.u32 %v10381, 7
        %v10383 = vsub.s32 %v10380, %v10382
        %v10384 = vrot.slane %v10376, %v10383
        %v10386 = vunpack.c.l.s4 1934713408
        %v10387 = vunpack.c.0.s8 %v10386
        %v10388 = vlaneseq
        %v10389 = vshrl.u32 %v10388, 7
        %v10390 = vsub.s32 %v10387, %v10389
        %v10391 = vrot.slane %v10377, %v10390
        %v10392 = vcombine.low %v10336, %v10352
        %v10393 = vcombine.high %v10336, %v10352
        %v10395 = vunpack.c.l.s4 1934713408
        %v10396 = vunpack.c.0.s8 %v10395
        %v10397 = vlaneseq
        %v10398 = vshrl.u32 %v10397, 7
        %v10399 = vsub.s32 %v10396, %v10398
        %v10400 = vrot.slane %v10392, %v10399
        %v10402 = vunpack.c.l.s4 1934713408
        %v10403 = vunpack.c.0.s8 %v10402
        %v10404 = vlaneseq
        %v10405 = vshrl.u32 %v10404, 7
        %v10406 = vsub.s32 %v10403, %v10405
        %v10407 = vrot.slane %v10393, %v10406
        %v10408 = vcombine.low %v10343, %v10359
        %v10409 = vcombine.high %v10343, %v10359
        %v10411 = vunpack.c.l.s4 1934713408
        %v10412 = vunpack.c.0.s8 %v10411
        %v10413 = vlaneseq
        %v10414 = vshrl.u32 %v10413, 7
        %v10415 = vsub.s32 %v10412, %v10414
        %v10416 = vrot.slane %v10408, %v10415
        %v10418 = vunpack.c.l.s4 1934713408
        %v10419 = vunpack.c.0.s8 %v10418
        %v10420 = vlaneseq
        %v10421 = vshrl.u32 %v10420, 7
        %v10422 = vsub.s32 %v10419, %v10421
        %v10423 = vrot.slane %v10409, %v10422
        %v10424 = vcombine.low %v10368, %v10400
        %v10425 = vcombine.high %v10368, %v10400
        %v10426 = vcombine.low %v10375, %v10407
        %v10427 = vcombine.high %v10375, %v10407
        %v10428 = vcombine.low %v10384, %v10416
        %v10429 = vcombine.high %v10384, %v10416
        %v10430 = vcombine.low %v10391, %v10423
        %v10431 = vcombine.high %v10391, %v10423
        %v10432 = vcombine.low %v10251, %v10259
        %v10433 = vcombine.high %v10251, %v10259
        %v10435 = vunpack.c.l.s4 1983009808
        %v10436 = vunpack.c.0.s8 %v10435
        %v10437 = vlaneseq
        %v10438 = vshrl.u32 %v10437, 7
        %v10439 = vsub.s32 %v10436, %v10438
        %v10440 = vrot.slane %v10432, %v10439
        %v10442 = vunpack.c.l.s4 1983009808
        %v10443 = vunpack.c.0.s8 %v10442
        %v10444 = vlaneseq
        %v10445 = vshrl.u32 %v10444, 7
        %v10446 = vsub.s32 %v10443, %v10445
        %v10447 = vrot.slane %v10433, %v10446
        %v10448 = vcombine.low %v10255, %v10263
        %v10449 = vcombine.high %v10255, %v10263
        %v10451 = vunpack.c.l.s4 1983009808
        %v10452 = vunpack.c.0.s8 %v10451
        %v10453 = vlaneseq
        %v10454 = vshrl.u32 %v10453, 7
        %v10455 = vsub.s32 %v10452, %v10454
        %v10456 = vrot.slane %v10448, %v10455
        %v10458 = vunpack.c.l.s4 1983009808
        %v10459 = vunpack.c.0.s8 %v10458
        %v10460 = vlaneseq
        %v10461 = vshrl.u32 %v10460, 7
        %v10462 = vsub.s32 %v10459, %v10461
        %v10463 = vrot.slane %v10449, %v10462
        %v10464 = vcombine.low %v10267, %v10275
        %v10465 = vcombine.high %v10267, %v10275
        %v10467 = vunpack.c.l.s4 1983009808
        %v10468 = vunpack.c.0.s8 %v10467
        %v10469 = vlaneseq
        %v10470 = vshrl.u32 %v10469, 7
        %v10471 = vsub.s32 %v10468, %v10470
        %v10472 = vrot.slane %v10464, %v10471
        %v10474 = vunpack.c.l.s4 1983009808
        %v10475 = vunpack.c.0.s8 %v10474
        %v10476 = vlaneseq
        %v10477 = vshrl.u32 %v10476, 7
        %v10478 = vsub.s32 %v10475, %v10477
        %v10479 = vrot.slane %v10465, %v10478
        %v10480 = vcombine.low %v10271, %v10279
        %v10481 = vcombine.high %v10271, %v10279
        %v10483 = vunpack.c.l.s4 1983009808
        %v10484 = vunpack.c.0.s8 %v10483
        %v10485 = vlaneseq
        %v10486 = vshrl.u32 %v10485, 7
        %v10487 = vsub.s32 %v10484, %v10486
        %v10488 = vrot.slane %v10480, %v10487
        %v10490 = vunpack.c.l.s4 1983009808
        %v10491 = vunpack.c.0.s8 %v10490
        %v10492 = vlaneseq
        %v10493 = vshrl.u32 %v10492, 7
        %v10494 = vsub.s32 %v10491, %v10493
        %v10495 = vrot.slane %v10481, %v10494
        %v10496 = vcombine.low %v10440, %v10456
        %v10497 = vcombine.high %v10440, %v10456
        %v10499 = vunpack.c.l.s4 1934713408
        %v10500 = vunpack.c.0.s8 %v10499
        %v10501 = vlaneseq
        %v10502 = vshrl.u32 %v10501, 7
        %v10503 = vsub.s32 %v10500, %v10502
        %v10504 = vrot.slane %v10496, %v10503
        %v10506 = vunpack.c.l.s4 1934713408
        %v10507 = vunpack.c.0.s8 %v10506
        %v10508 = vlaneseq
        %v10509 = vshrl.u32 %v10508, 7
        %v10510 = vsub.s32 %v10507, %v10509
        %v10511 = vrot.slane %v10497, %v10510
        %v10512 = vcombine.low %v10447, %v10463
        %v10513 = vcombine.high %v10447, %v10463
        %v10515 = vunpack.c.l.s4 1934713408
        %v10516 = vunpack.c.0.s8 %v10515
        %v10517 = vlaneseq
        %v10518 = vshrl.u32 %v10517, 7
        %v10519 = vsub.s32 %v10516, %v10518
        %v10520 = vrot.slane %v10512, %v10519
        %v10522 = vunpack.c.l.s4 1934713408
        %v10523 = vunpack.c.0.s8 %v10522
        %v10524 = vlaneseq
        %v10525 = vshrl.u32 %v10524, 7
        %v10526 = vsub.s32 %v10523, %v10525
        %v10527 = vrot.slane %v10513, %v10526
        %v10528 = vcombine.low %v10472, %v10488
        %v10529 = vcombine.high %v10472, %v10488
        %v10531 = vunpack.c.l.s4 1934713408
        %v10532 = vunpack.c.0.s8 %v10531
        %v10533 = vlaneseq
        %v10534 = vshrl.u32 %v10533, 7
        %v10535 = vsub.s32 %v10532, %v10534
        %v10536 = vrot.slane %v10528, %v10535
        %v10538 = vunpack.c.l.s4 1934713408
        %v10539 = vunpack.c.0.s8 %v10538
        %v10540 = vlaneseq
        %v10541 = vshrl.u32 %v10540, 7
        %v10542 = vsub.s32 %v10539, %v10541
        %v10543 = vrot.slane %v10529, %v10542
        %v10544 = vcombine.low %v10479, %v10495
        %v10545 = vcombine.high %v10479, %v10495
        %v10547 = vunpack.c.l.s4 1934713408
        %v10548 = vunpack.c.0.s8 %v10547
        %v10549 = vlaneseq
        %v10550 = vshrl.u32 %v10549, 7
        %v10551 = vsub.s32 %v10548, %v10550
        %v10552 = vrot.slane %v10544, %v10551
        %v10554 = vunpack.c.l.s4 1934713408
        %v10555 = vunpack.c.0.s8 %v10554
        %v10556 = vlaneseq
        %v10557 = vshrl.u32 %v10556, 7
        %v10558 = vsub.s32 %v10555, %v10557
        %v10559 = vrot.slane %v10545, %v10558
        %v10560 = vcombine.low %v10504, %v10536
        %v10561 = vcombine.high %v10504, %v10536
        %v10562 = vcombine.low %v10511, %v10543
        %v10563 = vcombine.high %v10511, %v10543
        %v10564 = vcombine.low %v10520, %v10552
        %v10565 = vcombine.high %v10520, %v10552
        %v10566 = vcombine.low %v10527, %v10559
        %v10567 = vcombine.high %v10527, %v10559
        %10569 = vrot.lane.b32.xlu0 %v10425, 16
        %v10570 = vpop.permute.xlu0 %10569
        %10573 = vrot.lane.b32.xlu0 %v10426, 32
        %v10574 = vpop.permute.xlu0 %10573
        %10577 = vrot.lane.b32.xlu0 %v10427, 48
        %v10578 = vpop.permute.xlu0 %10577
        %10581 = vrot.lane.b32.xlu0 %v10428, 64
        %v10582 = vpop.permute.xlu0 %10581
        %10585 = vrot.lane.b32.xlu0 %v10429, 80
        %v10586 = vpop.permute.xlu0 %10585
        %10589 = vrot.lane.b32.xlu0 %v10430, 96
        %v10590 = vpop.permute.xlu0 %10589
        %10593 = vrot.lane.b32.xlu0 %v10431, 112
        %v10594 = vpop.permute.xlu0 %10593
        %10597 = vrot.lane.b32.xlu0 %v10561, 16
        %v10598 = vpop.permute.xlu0 %10597
        %10601 = vrot.lane.b32.xlu0 %v10562, 32
        %v10602 = vpop.permute.xlu0 %10601
        %10605 = vrot.lane.b32.xlu0 %v10563, 48
        %v10606 = vpop.permute.xlu0 %10605
        %10609 = vrot.lane.b32.xlu0 %v10564, 64
        %v10610 = vpop.permute.xlu0 %10609
        %10613 = vrot.lane.b32.xlu0 %v10565, 80
        %v10614 = vpop.permute.xlu0 %10613
        %10617 = vrot.lane.b32.xlu0 %v10566, 96
        %v10618 = vpop.permute.xlu0 %10617
        %10621 = vrot.lane.b32.xlu0 %v10567, 112
        %v10622 = vpop.permute.xlu0 %10621
        %v10624 = vsel %vm767, %v10424, %v10570
        %v10625 = vsel %vm769, %v10624, %v10574
        %v10626 = vsel %vm771, %v10625, %v10578
        %v10627 = vsel %vm773, %v10626, %v10582
        %v10628 = vsel %vm775, %v10627, %v10586
        %v10629 = vsel %vm777, %v10628, %v10590
        %v10630 = vsel %vm779, %v10629, %v10594
        %v10631 = vsel %vm767, %v10560, %v10598
        %v10632 = vsel %vm769, %v10631, %v10602
        %v10633 = vsel %vm771, %v10632, %v10606
        %v10634 = vsel %vm773, %v10633, %v10610
        %v10635 = vsel %vm775, %v10634, %v10614
        %v10636 = vsel %vm777, %v10635, %v10618
        %v10637 = vsel %vm779, %v10636, %v10622
        %10639 = vset.pattern.permute.xlu0 0
        %10640 = vperm.xlu0 %10639, %v7171
        %v10641 = vpop.permute.xlu0 %10640
        %v10644 = vsel %vm6652, %v7169, 0
        %10646 = vmatprep.subr.mxu0 %v7533
        %10647 = vmatpush1.msra.mxu0 %v7526
        %10648 = vmatprep.subr.mxu0 %v7939
        %10649 = vmatpush1.msra.mxu0 %v7932
        %10650 = vmatprep.subr.mxu0 %v8329
        %10651 = vmatpush1.msra.mxu0 %v8322
        %10652 = vmatprep.subr.mxu0 %v8687
        %10653 = vmatpush1.msra.mxu0 %v8680
        %10654 = vmatprep.subr.mxu0 %v9093
        %10655 = vmatpush1.msra.mxu0 %v9086
        %10656 = vmatprep.subr.mxu0 %v9483
        %10657 = vmatpush1.msra.mxu0 %v9476
        %10658 = vmatprep.subr.mxu0 %v9841
        %10659 = vmatpush1.msra.mxu0 %v9834
        %10660 = vmatprep.subr.mxu0 %v10247
        %10661 = vmatpush1.msra.mxu0 %v10240
        %10662 = vmatprep.subr.mxu0 %v10637
        %10663 = vmatpush1.msra.mxu0 %v10630
        %10664 = vmatprep.subr.mxu0 0.0
        %10665 = vmatpush1.msra.mxu0 0.0
        %10666 = vmatprep.subr.mxu0 0.0
        %10667 = vmatpush1.msra.mxu0 0.0
        %10668 = vmatprep.subr.mxu0 0.0
        %10669 = vmatpush1.msra.mxu0 0.0
        %10670 = vmatprep.subr.mxu0 0.0
        %10671 = vmatpush1.msra.mxu0 0.0
        %10672 = vmatprep.subr.mxu0 0.0
        %10673 = vmatpush1.msra.mxu0 0.0
        %10674 = vmatprep.subr.mxu0 0.0
        %10675 = vmatpush1.msra.mxu0 0.0
        %10676 = vmatprep.subr.mxu0 0.0
        %10677 = vmatpush1.msra.mxu0 0.0
        %10678 = vmatprep.subr.mxu0 0.0
        %10679 = vmatpush1.msra.mxu0 0.0
        %10680 = vmatprep.subr.mxu0 0.0
        %10681 = vmatpush1.msra.mxu0 0.0
        %10682 = vmatprep.subr.mxu0 0.0
        %10683 = vmatpush1.msra.mxu0 0.0
        %10684 = vmatprep.subr.mxu0 0.0
        %10685 = vmatpush1.msra.mxu0 0.0
        %10686 = vmatprep.subr.mxu0 0.0
        %10687 = vmatpush1.msra.mxu0 0.0
        %10688 = vmatprep.subr.mxu0 0.0
        %10689 = vmatpush1.msra.mxu0 0.0
        %10690 = vmatprep.subr.mxu0 0.0
        %10691 = vmatpush1.msra.mxu0 0.0
        %10692 = vmatprep.subr.mxu0 0.0
        %10693 = vmatpush1.msra.mxu0 0.0
        %10694 = vmatprep.subr.mxu0 0.0
        %10695 = vmatpush1.msra.mxu0 0.0
        %10696 = vmatprep.subr.mxu0 0.0
        %10697 = vmatpush1.msra.mxu0 0.0
        %10698 = vmatprep.subr.mxu0 0.0
        %10699 = vmatpush1.msra.mxu0 0.0
        %10700 = vmatprep.subr.mxu0 0.0
        %10701 = vmatpush1.msra.mxu0 0.0
        %10702 = vmatprep.subr.mxu0 0.0
        %10703 = vmatpush1.msra.mxu0 0.0
        %10704 = vmatprep.subr.mxu0 0.0
        %10705 = vmatpush1.msra.mxu0 0.0
        %10706 = vmatprep.subr.mxu0 0.0
        %10707 = vmatpush1.msra.mxu0 0.0
        %10708 = vmatprep.subr.mxu0 0.0
        %10709 = vmatpush1.msra.mxu0 0.0
        %10710 = vmatprep.mubr.f32.mxu0 0.0
        %10711 = vmatmul.mubr.f32.gmra.mrb[0].mxu0 %v10644
        %v10712 = vpop.f32.mrb[0].mxu0
        %v10713 = vadd.f32 %v10641, %v10712
        %v10714 = vpop.f32.mrb[0].mxu0
        %v10715 = vadd.f32 %v10641, %v10714
        %10716 = vdwg.mxu0
        %v10717 = vadd.f32 %v10713, %v10715
        %10718 = vadd.xlane.f32.xlu0 %v10717
        %v10719 = vpop.xlane.xlu0 %10718
        %v10720 = vmul.f32 %v10713, %v10713
        %v10721 = vmul.f32 %v10715, %v10715
        %v10722 = vadd.f32 %v10720, %v10721
        %10723 = vadd.xlane.f32.xlu0 %v10722
        %v10724 = vpop.xlane.xlu0 %10723
        %v10725 = vmul.f32 %v10719, 0.00390625
        %v10726 = vmul.f32 %v10724, 0.00390625
        %v10727 = vmul.f32 %v10725, %v10725
        %v10728 = vsub.f32 %v10726, %v10727
        %v10729 = vmax.f32 %v10728, 0.0
        %v10730 = vsub.f32 %v10713, %v10725
        %v10731 = vsub.f32 %v10715, %v10725
        %v10732 = vadd.f32 %v10729, 1e-05
        %v10733 = vrsqrt.pop %v10732
        %v10734 = vmul.f32 %v10730, %v10733
        %v10735 = vmul.f32 %v10731, %v10733
        %10737 = vset.pattern.permute.xlu0 0
        %10738 = vperm.xlu0 %10737, %v7173
        %v10739 = vpop.permute.xlu0 %10738
        %v10741 = vmul.f32 %v10734, %v10739
        %v10742 = vmul.f32 %v10735, %v10739
        %10744 = vset.pattern.permute.xlu0 0
        %10745 = vperm.xlu0 %10744, %v7175
        %v10746 = vpop.permute.xlu0 %10745
        %v10748 = vadd.f32 %v10741, %v10746
        %v10749 = vadd.f32 %v10742, %v10746
        %vm10750 = vcmp.ge.f32.partialorder %v10748, 0.0
        %vm10751 = vcmp.ge.f32.partialorder %v10749, 0.0
        %v10752 = vmul.f32 %v10748, 0.01
        %v10753 = vmul.f32 %v10749, 0.01
        %v10754 = vsel %vm10750, %v10748, %v10752
        %v10755 = vsel %vm10751, %v10749, %v10753
        %s10756 = sld [smem:[#allocation4 + $0x2]]
        %v10757 = vstv %s10756
        %v10758 = vmul.f32 %v10757, %v10754
        %v10759 = vmul.f32 %v10757, %v10755
        %v10760 = vadd.f32 %v6770, %v10758
        %v10761 = vadd.f32 %v6771, %v10759
        %10762 = vst [vmem:[%s292] sm:$0xff] %v10760
        %10763 = vst [vmem:[%s292 + $0x8] sm:$0xff] %v10761
        %p10764 = scmp.lt.s32.totalorder %s19, 1
        %s10765 = scalar_select %p10764, %s19, 1
        %s10766 = smul.addr %s10765, 2
        %s10767 = smul.addr %s10766, 8
        %s10768 = scalar_lea.vmem %s7, %s10767
        // Predicated region
        $region53: #{adaptive_depth_stacked_forward.1} parent=47 // pred_check
          %p10769 = pneg %p189
        $region54: #{adaptive_depth_stacked_forward.1} parent=47 // pred_check_branch
          %10771 = sbr.rel (%p10769) target = $region56
        $region55: #{adaptive_depth_stacked_forward.1} parent=47 // pred_region
          _
        $region56: #{adaptive_depth_stacked_forward.1} parent=47 // pred_fallthru
          _
      $region48: #{adaptive_depth_stacked_forward.1} parent=5 // pred_fallthru
        _
      %p10772 = scmp.le.s32.totalorder 2, %s14
      // Predicated region
      $region57: #{adaptive_depth_stacked_forward.1} parent=5 // pred_check
        %p10773 = pneg %p10772
      $region58: #{adaptive_depth_stacked_forward.1} parent=5 // pred_check_branch
        %10775 = sbr.rel (%p10773) target = $region60
      $region59: #{adaptive_depth_stacked_forward.1} parent=5 // pred_region
        %s10776 = ssub.s32 %s14, 2
        // Predicated region
        $region61: #{adaptive_depth_stacked_forward.1} parent=59 // pred_check
          %p10777 = pneg %p195
        $region62: #{adaptive_depth_stacked_forward.1} parent=59 // pred_check_branch
          %10779 = sbr.rel (%p10777) target = $region64
        $region63: #{adaptive_depth_stacked_forward.1} parent=59 // pred_region
          %p10780 = scmp.lt.s32.totalorder %s20, 1
          %s10781 = scalar_select %p10780, %s20, 1
          %s10782 = smul.addr %s10781, 2
          %s10783 = smul.addr %s10782, 8
          %s10784 = scalar_lea.vmem %s7, %s10783
        $region64: #{adaptive_depth_stacked_forward.1} parent=59 // pred_fallthru
          _
      $region60: #{adaptive_depth_stacked_forward.1} parent=5 // pred_fallthru
        _
    $region6: #{adaptive_depth_stacked_forward.1} parent=1 // loop_footer
      %s18 = sadd.s32 1, %s14
    $region7: #{adaptive_depth_stacked_forward.1} parent=1 // loop_footer_branch
      %13 = sbr.rel target = $region3
    $region8: #{adaptive_depth_stacked_forward.1} parent=1 // loop_exit
      _
    %10785 = vsyncpa [#allocation5], 1
    %s10786 = scalar_lea.sflag [#allocation5], 1
    %10787 = vsyncpa %s10786, 1

</llo_original>
